<compile_context>
chip_gen: v5e
topology: v5e:2x2
jax: 0.10.0
libtpu: 0.0.40
codegen_flags: <defaults>
</compile_context>

<pallas_src>
import functools

import jax
import jax.numpy as jnp
import numpy as np
from jax import lax
from jax.experimental import pallas as pl
from jax.experimental.pallas import tpu as pltpu


def _round_up(x, m):
    return (x + m - 1) // m * m


def _vmem_capacity_bytes():
    # Per-generation physical VMEM (v5e/v6e: 128 MiB, v7x: 64 MiB per TC).
    try:
        return int(pltpu.get_tpu_info().vmem_capacity_bytes)
    except Exception:
        return 64 << 20  # conservative (v7x)


# --------------------------------------------------------------------------------------
# Fused kernel: per grid step = one (batch-block, time-chunk).
#   1) chunk-wide input projection  gin = x_chunk @ W_ih^T + bias   (one MXU matmul,
#      no dependence on h) into VMEM scratch;
#   2) TT sequential LSTM steps, only h @ W_hh^T on the serial path; h/c carried in
#      VMEM scratch across time chunks.
# --------------------------------------------------------------------------------------
def _fused_lstm_kernel(x_ref, wih_ref, whh_ref, bias_ref,
                       out_ref, h_out_ref, c_out_ref,
                       gin_scr, h_scr, c_scr,
                       *, seq_len, tt, hp, bb, mask_tail, unroll):
    chunk = pl.program_id(1)

    @pl.when(chunk == 0)
    def _init():
        h_scr[...] = jnp.zeros_like(h_scr)
        c_scr[...] = jnp.zeros_like(c_scr)

    # ---- chunk-wide input projection (MXU-shaped: bb*tt rows) -------------------------
    x2d = x_ref[...].reshape(bb * tt, hp)                       # major-dim collapse
    gin_scr[...] = (
        jnp.dot(x2d, wih_ref[...], preferred_element_type=jnp.float32)
        + bias_ref[...]
    ).reshape(bb, tt, 4 * hp)

    w_dtype = whh_ref.dtype

    # ---- sequential recurrence over the chunk -----------------------------------------
    def step(s, carry):
        h, c = carry
        g_in = gin_scr[:, pl.ds(s, 1), :].reshape(bb, 4 * hp)
        gates = g_in + jnp.dot(h.astype(w_dtype), whh_ref[...],
                               preferred_element_type=jnp.float32)
        # Each gate sits in its own 128-aligned lane block -> free slices.
        ig = jax.nn.sigmoid(gates[:, 0 * hp:1 * hp])
        fg = jax.nn.sigmoid(gates[:, 1 * hp:2 * hp])
        gg = jnp.tanh(gates[:, 2 * hp:3 * hp])
        og = jax.nn.sigmoid(gates[:, 3 * hp:4 * hp])
        c_new = fg * c + ig * gg
        h_new = og * jnp.tanh(c_new)

        # Lane-dense per-step store; padded timesteps/rows are sliced off in the wrapper.
        out_ref[:, pl.ds(s, 1), :] = h_new.reshape(bb, 1, hp).astype(out_ref.dtype)

        if mask_tail:  # only emitted when T was padded up to a chunk multiple
            valid = (chunk * tt + s) < seq_len
            h_new = jnp.where(valid, h_new, h)
            c_new = jnp.where(valid, c_new, c)
        return h_new, c_new

    h_fin, c_fin = lax.fori_loop(0, tt, step, (h_scr[...], c_scr[...]),
                                 unroll=unroll)
    h_scr[...] = h_fin
    c_scr[...] = c_fin

    # Write final states only once, on the last time chunk.
    @pl.when(chunk == pl.num_programs(1) - 1)
    def _final():
        h_out_ref[...] = h_fin
        c_out_ref[...] = c_fin


# --------------------------------------------------------------------------------------
# Wrapper: embedding lookup (glue), padding / gate-block layout, one pallas_call.
# --------------------------------------------------------------------------------------
@functools.partial(jax.jit, static_argnames=("chunk_steps", "compute_dtype"))
def encoder_lstm_forward(token_ids, embedding_matrix, w_ih, w_hh, b_ih, b_hh,
                         chunk_steps=32, compute_dtype=jnp.bfloat16):
    """token_ids: (B, T) int32.  Weights in PyTorch layout: w_ih/w_hh (4H, H), b_* (4H,)."""
    B, T = token_ids.shape
    H = embedding_matrix.shape[1]

    Hp = _round_up(H, 128)                   # lane-dense hidden size
    Bp = _round_up(B, 16)                    # bf16 min tile is (16, 128)
    TT = _round_up(min(chunk_steps, _round_up(T, 8)), 8)
    Tp = _round_up(T, TT)
    num_chunks = Tp // TT

    # Batch-parallel axis (v7x second TensorCore) when each half stays >= 16 rows.
    NB = 2 if (Bp % 32 == 0) else 1
    Bb = Bp // NB

    # --- glue: embedding lookup + eval-mode dropout (identity) -------------------------
    embedded = jnp.take(embedding_matrix, token_ids, axis=0).astype(jnp.float32)  # (B,T,H)
    x = jnp.pad(embedded, ((0, Bp - B), (0, Tp - T), (0, Hp - H))).astype(compute_dtype)

    # Gate-major weights, each gate padded to its own 128-aligned lane block.
    # Padded lanes get zero weights/bias -> gates there stay 0 and h/c stay exactly 0.
    wih_p = jnp.pad(jnp.transpose(w_ih).reshape(H, 4, H),
                    ((0, Hp - H), (0, 0), (0, Hp - H))
                    ).reshape(Hp, 4 * Hp).astype(compute_dtype)
    whh_p = jnp.pad(jnp.transpose(w_hh).reshape(H, 4, H),
                    ((0, Hp - H), (0, 0), (0, Hp - H))
                    ).reshape(Hp, 4 * Hp).astype(compute_dtype)
    bias_p = jnp.pad((b_ih + b_hh).reshape(4, H),
                     ((0, 0), (0, Hp - H))).reshape(1, 4 * Hp).astype(jnp.float32)

    # --- VMEM budget derived from actual sizes, clamped to chip capacity ----------------
    cd_bytes = jnp.dtype(compute_dtype).itemsize
    est = (2 * Bb * TT * Hp * cd_bytes           # x block (double-buffered)
           + 2 * Bb * TT * Hp * 4                # sequence-out block (double-buffered)
           + 2 * 2 * Hp * 4 * Hp * cd_bytes      # W_ih^T, W_hh^T (assume 2 buffers each)
           + Bb * TT * 4 * Hp * 4                # gin scratch
           + 4 * Bb * Hp * 4                     # h/c scratch + final-state blocks
           + 4 * Hp * 4)                         # bias
    vmem_limit = int(min(max(est * 5 // 4 + (4 << 20), 32 << 20), _vmem_capacity_bytes()))

    kernel = functools.partial(
        _fused_lstm_kernel,
        seq_len=T, tt=TT, hp=Hp, bb=Bb, mask_tail=(Tp != T), unroll=min(TT, 8))

    out_seq_p, h_fin_p, c_fin_p = pl.pallas_call(
        kernel,
        out_shape=(
            jax.ShapeDtypeStruct((Bp, Tp, Hp), jnp.float32),
            jax.ShapeDtypeStruct((Bp, Hp), jnp.float32),
            jax.ShapeDtypeStruct((Bp, Hp), jnp.float32),
        ),
        grid_spec=pltpu.PrefetchScalarGridSpec(
            num_scalar_prefetch=0,
            grid=(NB, num_chunks),
            in_specs=[
                pl.BlockSpec((Bb, TT, Hp), lambda b, c: (b, c, 0)),    # x chunk
                pl.BlockSpec((Hp, 4 * Hp), lambda b, c: (0, 0)),       # W_ih^T (resident)
                pl.BlockSpec((Hp, 4 * Hp), lambda b, c: (0, 0)),       # W_hh^T (resident)
                pl.BlockSpec((1, 4 * Hp), lambda b, c: (0, 0)),        # bias
            ],
            out_specs=[
                pl.BlockSpec((Bb, TT, Hp), lambda b, c: (b, c, 0)),    # sequence output
                pl.BlockSpec((Bb, Hp), lambda b, c: (b, 0)),           # final hidden
                pl.BlockSpec((Bb, Hp), lambda b, c: (b, 0)),           # final cell
            ],
            scratch_shapes=[
                pltpu.VMEM((Bb, TT, 4 * Hp), jnp.float32),   # chunk input projection
                pltpu.VMEM((Bb, Hp), jnp.float32),           # h carry
                pltpu.VMEM((Bb, Hp), jnp.float32),           # c carry
            ],
        ),
        compiler_params=pltpu.CompilerParams(
            dimension_semantics=("parallel", "arbitrary"),   # batch || , time sequential
            vmem_limit_bytes=vmem_limit),
    )(x, wih_p, whh_p, bias_p)

    # Strip padding; already batch_first, no transposes needed.
    output = out_seq_p[:B, :T, :H]                 # (B, T, H)
    hidden = h_fin_p[:B, :H][None, :, :]           # (1, B, H)
    cell = c_fin_p[:B, :H][None, :, :]             # (1, B, H)
    return output, (hidden, cell)


# --------------------------------------------------------------------------------------
# Plain-JAX reference matching torch.nn.LSTM semantics (for validation).
# --------------------------------------------------------------------------------------
def _reference_forward(token_ids, embedding_matrix, w_ih, w_hh, b_ih, b_hh):
    B, T = token_ids.shape
    H = embedding_matrix.shape[1]
    x = jnp.take(embedding_matrix, token_ids, axis=0)     # (B, T, H)

    def step(carry, x_t):
        h, c = carry
        gates = x_t @ w_ih.T + b_ih + h @ w_hh.T + b_hh
        i = jax.nn.sigmoid(gates[:, 0 * H:1 * H])
        f = jax.nn.sigmoid(gates[:, 1 * H:2 * H])
        g = jnp.tanh(gates[:, 2 * H:3 * H])
        o = jax.nn.sigmoid(gates[:, 3 * H:4 * H])
        c = f * c + i * g
        h = o * jnp.tanh(c)
        return (h, c), h

    h0 = jnp.zeros((B, H), jnp.float32)
    c0 = jnp.zeros((B, H), jnp.float32)
    (hT, cT), hs = lax.scan(step, (h0, c0), jnp.transpose(x, (1, 0, 2)))
    return jnp.transpose(hs, (1, 0, 2)), (hT[None], cT[None])


if __name__ == "__main__":
    H, VOCAB = 32, 50

    key = jax.random.PRNGKey(0)
    k_emb, k_wih, k_whh, k_bih, k_bhh, k_ta, k_tb = jax.random.split(key, 7)

    bound = 1.0 / np.sqrt(H)
    embedding_matrix = jax.random.normal(k_emb, (VOCAB, H), jnp.float32)
    w_ih = jax.random.uniform(k_wih, (4 * H, H), jnp.float32, -bound, bound)
    w_hh = jax.random.uniform(k_whh, (4 * H, H), jnp.float32, -bound, bound)
    b_ih = jax.random.uniform(k_bih, (4 * H,), jnp.float32, -bound, bound)
    b_hh = jax.random.uniform(k_bhh, (4 * H,), jnp.float32, -bound, bound)

    # ---- Test A: f32 path, single chunk, exactness vs reference -----------------------
    Ba, Ta = 2, 8
    tok_a = jax.random.randint(k_ta, (Ba, Ta), 0, VOCAB, jnp.int32)
    out_a, (h_a, c_a) = encoder_lstm_forward(
        tok_a, embedding_matrix, w_ih, w_hh, b_ih, b_hh,
        chunk_steps=32, compute_dtype=jnp.float32)
    jax.block_until_ready((out_a, h_a, c_a))
    ref_o, (ref_h, ref_c) = _reference_forward(tok_a, embedding_matrix, w_ih, w_hh, b_ih, b_hh)
    assert out_a.shape == (Ba, Ta, H) and h_a.shape == (1, Ba, H) and c_a.shape == (1, Ba, H)
    np.testing.assert_allclose(np.asarray(out_a), np.asarray(ref_o), atol=1e-4, rtol=1e-4)
    np.testing.assert_allclose(np.asarray(h_a), np.asarray(ref_h), atol=1e-4, rtol=1e-4)
    np.testing.assert_allclose(np.asarray(c_a), np.asarray(ref_c), atol=1e-4, rtol=1e-4)

    # ---- Test B: default bf16 path, multi-chunk, batch/time padding + tail masking -----
    Bb_, Tb = 3, 11
    tok_b = jax.random.randint(k_tb, (Bb_, Tb), 0, VOCAB, jnp.int32)
    out_b, (h_b, c_b) = encoder_lstm_forward(
        tok_b, embedding_matrix, w_ih, w_hh, b_ih, b_hh, chunk_steps=8)
    jax.block_until_ready((out_b, h_b, c_b))
    ref_o, (ref_h, ref_c) = _reference_forward(tok_b, embedding_matrix, w_ih, w_hh, b_ih, b_hh)
    assert out_b.shape == (Bb_, Tb, H) and h_b.shape == (1, Bb_, H) and c_b.shape == (1, Bb_, H)
    np.testing.assert_allclose(np.asarray(out_b), np.asarray(ref_o), atol=5e-2, rtol=5e-2)
    np.testing.assert_allclose(np.asarray(h_b), np.asarray(ref_h), atol=5e-2, rtol=5e-2)
    np.testing.assert_allclose(np.asarray(c_b), np.asarray(ref_c), atol=5e-2, rtol=5e-2)

    print("KERNEL_OK")
</pallas_src>

<mosaic_0001>
module attributes {stable_mosaic.version = 11 : i64} {
  func.func @_fused_lstm_kernel(%arg0: i32, %arg1: i32, %arg2: memref<16x8x128xf32, #tpu.memory_space<vmem>>, %arg3: memref<128x512xf32, #tpu.memory_space<vmem>>, %arg4: memref<128x512xf32, #tpu.memory_space<vmem>>, %arg5: memref<1x512xf32, #tpu.memory_space<vmem>>, %arg6: memref<16x8x128xf32, #tpu.memory_space<vmem>>, %arg7: memref<16x128xf32, #tpu.memory_space<vmem>>, %arg8: memref<16x128xf32, #tpu.memory_space<vmem>>, %arg9: memref<16x8x512xf32, #tpu.memory_space<vmem>>, %arg10: memref<16x128xf32, #tpu.memory_space<vmem>>, %arg11: memref<16x128xf32, #tpu.memory_space<vmem>>) attributes {dimension_semantics = [#tpu.dimension_semantics<parallel>, #tpu.dimension_semantics<arbitrary>], iteration_bounds = array<i64: 1, 1>, scalar_prefetch = 0 : i64, scratch_operands = 3 : i64, tpu.core_type = #tpu.core_type<tc>, window_params = [{transform_indices = @transform_0, window_bounds = array<i64: 16, 8, 128>}, {pipeline_mode = #tpu.pipeline_mode<synchronous>, transform_indices = @transform_1, window_bounds = array<i64: 128, 512>}, {pipeline_mode = #tpu.pipeline_mode<synchronous>, transform_indices = @transform_2, window_bounds = array<i64: 128, 512>}, {pipeline_mode = #tpu.pipeline_mode<synchronous>, transform_indices = @transform_3, window_bounds = array<i64: 1, 512>}, {transform_indices = @transform_4, window_bounds = array<i64: 16, 8, 128>}, {transform_indices = @transform_5, window_bounds = array<i64: 16, 128>}, {transform_indices = @transform_6, window_bounds = array<i64: 16, 128>}]} {
    %c0_i32 = arith.constant 0 : i32
    %0 = arith.cmpi eq, %arg1, %c0_i32 : i32
    %1 = arith.extui %0 : i1 to i32
    %c0_i32_0 = arith.constant 0 : i32
    %2 = arith.cmpi ne, %1, %c0_i32_0 : i32
    scf.if %2 {
      %cst_101 = arith.constant 0.000000e+00 : f32
      %291 = vector.broadcast %cst_101 : f32 to vector<16x128xf32>
      %c0_102 = arith.constant 0 : index
      %c0_103 = arith.constant 0 : index
      %292 = vector.load %arg10[%c0_102, %c0_103] : memref<16x128xf32, #tpu.memory_space<vmem>>, vector<16x128xf32>
      tpu.vector_store %arg10[%c0_102, %c0_103], %291 {strides = array<i32>} : memref<16x128xf32, #tpu.memory_space<vmem>>, vector<16x128xf32>,
      %cst_104 = arith.constant 0.000000e+00 : f32
      %293 = vector.broadcast %cst_104 : f32 to vector<16x128xf32>
      %c0_105 = arith.constant 0 : index
      %c0_106 = arith.constant 0 : index
      %294 = vector.load %arg11[%c0_105, %c0_106] : memref<16x128xf32, #tpu.memory_space<vmem>>, vector<16x128xf32>
      tpu.vector_store %arg11[%c0_105, %c0_106], %293 {strides = array<i32>} : memref<16x128xf32, #tpu.memory_space<vmem>>, vector<16x128xf32>,
    } else {
    }
    %c0 = arith.constant 0 : index
    %c0_1 = arith.constant 0 : index
    %c0_2 = arith.constant 0 : index
    %3 = vector.load %arg2[%c0, %c0_1, %c0_2] : memref<16x8x128xf32, #tpu.memory_space<vmem>>, vector<16x8x128xf32>
    %4 = vector.shape_cast %3 : vector<16x8x128xf32> to vector<128x128xf32>
    %c0_3 = arith.constant 0 : index
    %c0_4 = arith.constant 0 : index
    %5 = vector.load %arg3[%c0_3, %c0_4] : memref<128x512xf32, #tpu.memory_space<vmem>>, vector<128x512xf32>
    %cst = arith.constant dense<0.000000e+00> : vector<128x512xf32>
    %6 = tpu.matmul %4, %5, %cst {dimension_numbers = #tpu.dot_dimension_numbers<[1], [0], [0], [1], [0, 0, 1, 1], [], []>} : vector<128x128xf32>, vector<128x512xf32>, vector<128x512xf32> -> vector<128x512xf32>
    %c0_5 = arith.constant 0 : index
    %c0_6 = arith.constant 0 : index
    %7 = vector.load %arg5[%c0_5, %c0_6] : memref<1x512xf32, #tpu.memory_space<vmem>>, vector<1x512xf32>
    %8 = vector.broadcast %7 : vector<1x512xf32> to vector<128x512xf32>
    %9 = arith.addf %6, %8 : vector<128x512xf32>
    %10 = vector.shape_cast %9 : vector<128x512xf32> to vector<16x8x512xf32>
    %c0_7 = arith.constant 0 : index
    %c0_8 = arith.constant 0 : index
    %c0_9 = arith.constant 0 : index
    %11 = vector.load %arg9[%c0_7, %c0_8, %c0_9] : memref<16x8x512xf32, #tpu.memory_space<vmem>>, vector<16x8x512xf32>
    tpu.vector_store %arg9[%c0_7, %c0_8, %c0_9], %10 {strides = array<i32>} : memref<16x8x512xf32, #tpu.memory_space<vmem>>, vector<16x8x512xf32>,
    %c0_10 = arith.constant 0 : index
    %c0_11 = arith.constant 0 : index
    %12 = vector.load %arg10[%c0_10, %c0_11] : memref<16x128xf32, #tpu.memory_space<vmem>>, vector<16x128xf32>
    %c0_12 = arith.constant 0 : index
    %c0_13 = arith.constant 0 : index
    %13 = vector.load %arg11[%c0_12, %c0_13] : memref<16x128xf32, #tpu.memory_space<vmem>>, vector<16x128xf32>
    %c0_i32_14 = arith.constant 0 : i32
    %c0_15 = arith.constant 0 : index
    %14 = arith.index_cast %c0_i32_14 : i32 to index
    %c0_16 = arith.constant 0 : index
    %15 = vector.load %arg9[%c0_15, %14, %c0_16] : memref<16x8x512xf32, #tpu.memory_space<vmem>>, vector<16x1x512xf32>
    %16 = vector.shape_cast %15 : vector<16x1x512xf32> to vector<16x512xf32>
    %c0_17 = arith.constant 0 : index
    %c0_18 = arith.constant 0 : index
    %17 = vector.load %arg4[%c0_17, %c0_18] : memref<128x512xf32, #tpu.memory_space<vmem>>, vector<128x512xf32>
    %cst_19 = arith.constant dense<0.000000e+00> : vector<16x512xf32>
    %18 = tpu.matmul %12, %17, %cst_19 {dimension_numbers = #tpu.dot_dimension_numbers<[1], [0], [0], [1], [0, 0, 1, 1], [], []>} : vector<16x128xf32>, vector<128x512xf32>, vector<16x512xf32> -> vector<16x512xf32>
    %19 = arith.addf %16, %18 : vector<16x512xf32>
    %20 = vector.extract_strided_slice %19 {offsets = [0, 0], sizes = [16, 128], strides = [1, 1]} : vector<16x512xf32> to vector<16x128xf32>
    %21 = arith.negf %20 : vector<16x128xf32>
    %22 = math.exp %21 : vector<16x128xf32>
    %cst_20 = arith.constant 1.000000e+00 : f32
    %23 = vector.broadcast %cst_20 : f32 to vector<16x128xf32>
    %24 = arith.addf %23, %22 : vector<16x128xf32>
    %25 = arith.divf %23, %24 : vector<16x128xf32>
    %26 = vector.extract_strided_slice %19 {offsets = [0, 128], sizes = [16, 128], strides = [1, 1]} : vector<16x512xf32> to vector<16x128xf32>
    %27 = arith.negf %26 : vector<16x128xf32>
    %28 = math.exp %27 : vector<16x128xf32>
    %cst_21 = arith.constant 1.000000e+00 : f32
    %29 = vector.broadcast %cst_21 : f32 to vector<16x128xf32>
    %30 = arith.addf %29, %28 : vector<16x128xf32>
    %31 = arith.divf %29, %30 : vector<16x128xf32>
    %32 = vector.extract_strided_slice %19 {offsets = [0, 256], sizes = [16, 128], strides = [1, 1]} : vector<16x512xf32> to vector<16x128xf32>
    %33 = math.tanh %32 : vector<16x128xf32>
    %34 = vector.extract_strided_slice %19 {offsets = [0, 384], sizes = [16, 128], strides = [1, 1]} : vector<16x512xf32> to vector<16x128xf32>
    %35 = arith.negf %34 : vector<16x128xf32>
    %36 = math.exp %35 : vector<16x128xf32>
    %cst_22 = arith.constant 1.000000e+00 : f32
    %37 = vector.broadcast %cst_22 : f32 to vector<16x128xf32>
    %38 = arith.addf %37, %36 : vector<16x128xf32>
    %39 = arith.divf %37, %38 : vector<16x128xf32>
    %40 = arith.mulf %31, %13 : vector<16x128xf32>
    %41 = arith.mulf %25, %33 : vector<16x128xf32>
    %42 = arith.addf %40, %41 : vector<16x128xf32>
    %43 = math.tanh %42 : vector<16x128xf32>
    %44 = arith.mulf %39, %43 : vector<16x128xf32>
    %45 = vector.shape_cast %44 : vector<16x128xf32> to vector<16x1x128xf32>
    %c0_23 = arith.constant 0 : index
    %46 = arith.index_cast %c0_i32_14 : i32 to index
    %c0_24 = arith.constant 0 : index
    %47 = vector.load %arg6[%c0_23, %46, %c0_24] : memref<16x8x128xf32, #tpu.memory_space<vmem>>, vector<16x1x128xf32>
    tpu.vector_store %arg6[%c0_23, %46, %c0_24], %45 {strides = array<i32>} : memref<16x8x128xf32, #tpu.memory_space<vmem>>, vector<16x1x128xf32>,
    %c1_i32 = arith.constant 1 : i32
    %c0_25 = arith.constant 0 : index
    %48 = arith.index_cast %c1_i32 : i32 to index
    %c0_26 = arith.constant 0 : index
    %49 = vector.load %arg9[%c0_25, %48, %c0_26] : memref<16x8x512xf32, #tpu.memory_space<vmem>>, vector<16x1x512xf32>
    %50 = vector.shape_cast %49 : vector<16x1x512xf32> to vector<16x512xf32>
    %c0_27 = arith.constant 0 : index
    %c0_28 = arith.constant 0 : index
    %51 = vector.load %arg4[%c0_27, %c0_28] : memref<128x512xf32, #tpu.memory_space<vmem>>, vector<128x512xf32>
    %cst_29 = arith.constant dense<0.000000e+00> : vector<16x512xf32>
    %52 = tpu.matmul %44, %51, %cst_29 {dimension_numbers = #tpu.dot_dimension_numbers<[1], [0], [0], [1], [0, 0, 1, 1], [], []>} : vector<16x128xf32>, vector<128x512xf32>, vector<16x512xf32> -> vector<16x512xf32>
    %53 = arith.addf %50, %52 : vector<16x512xf32>
    %54 = vector.extract_strided_slice %53 {offsets = [0, 0], sizes = [16, 128], strides = [1, 1]} : vector<16x512xf32> to vector<16x128xf32>
    %55 = arith.negf %54 : vector<16x128xf32>
    %56 = math.exp %55 : vector<16x128xf32>
    %cst_30 = arith.constant 1.000000e+00 : f32
    %57 = vector.broadcast %cst_30 : f32 to vector<16x128xf32>
    %58 = arith.addf %57, %56 : vector<16x128xf32>
    %59 = arith.divf %57, %58 : vector<16x128xf32>
    %60 = vector.extract_strided_slice %53 {offsets = [0, 128], sizes = [16, 128], strides = [1, 1]} : vector<16x512xf32> to vector<16x128xf32>
    %61 = arith.negf %60 : vector<16x128xf32>
    %62 = math.exp %61 : vector<16x128xf32>
    %cst_31 = arith.constant 1.000000e+00 : f32
    %63 = vector.broadcast %cst_31 : f32 to vector<16x128xf32>
    %64 = arith.addf %63, %62 : vector<16x128xf32>
    %65 = arith.divf %63, %64 : vector<16x128xf32>
    %66 = vector.extract_strided_slice %53 {offsets = [0, 256], sizes = [16, 128], strides = [1, 1]} : vector<16x512xf32> to vector<16x128xf32>
    %67 = math.tanh %66 : vector<16x128xf32>
    %68 = vector.extract_strided_slice %53 {offsets = [0, 384], sizes = [16, 128], strides = [1, 1]} : vector<16x512xf32> to vector<16x128xf32>
    %69 = arith.negf %68 : vector<16x128xf32>
    %70 = math.exp %69 : vector<16x128xf32>
    %cst_32 = arith.constant 1.000000e+00 : f32
    %71 = vector.broadcast %cst_32 : f32 to vector<16x128xf32>
    %72 = arith.addf %71, %70 : vector<16x128xf32>
    %73 = arith.divf %71, %72 : vector<16x128xf32>
    %74 = arith.mulf %65, %42 : vector<16x128xf32>
    %75 = arith.mulf %59, %67 : vector<16x128xf32>
    %76 = arith.addf %74, %75 : vector<16x128xf32>
    %77 = math.tanh %76 : vector<16x128xf32>
    %78 = arith.mulf %73, %77 : vector<16x128xf32>
    %79 = vector.shape_cast %78 : vector<16x128xf32> to vector<16x1x128xf32>
    %c0_33 = arith.constant 0 : index
    %80 = arith.index_cast %c1_i32 : i32 to index
    %c0_34 = arith.constant 0 : index
    %81 = vector.load %arg6[%c0_33, %80, %c0_34] : memref<16x8x128xf32, #tpu.memory_space<vmem>>, vector<16x1x128xf32>
    tpu.vector_store %arg6[%c0_33, %80, %c0_34], %79 {strides = array<i32>} : memref<16x8x128xf32, #tpu.memory_space<vmem>>, vector<16x1x128xf32>,
    %c2_i32 = arith.constant 2 : i32
    %c0_35 = arith.constant 0 : index
    %82 = arith.index_cast %c2_i32 : i32 to index
    %c0_36 = arith.constant 0 : index
    %83 = vector.load %arg9[%c0_35, %82, %c0_36] : memref<16x8x512xf32, #tpu.memory_space<vmem>>, vector<16x1x512xf32>
    %84 = vector.shape_cast %83 : vector<16x1x512xf32> to vector<16x512xf32>
    %c0_37 = arith.constant 0 : index
    %c0_38 = arith.constant 0 : index
    %85 = vector.load %arg4[%c0_37, %c0_38] : memref<128x512xf32, #tpu.memory_space<vmem>>, vector<128x512xf32>
    %cst_39 = arith.constant dense<0.000000e+00> : vector<16x512xf32>
    %86 = tpu.matmul %78, %85, %cst_39 {dimension_numbers = #tpu.dot_dimension_numbers<[1], [0], [0], [1], [0, 0, 1, 1], [], []>} : vector<16x128xf32>, vector<128x512xf32>, vector<16x512xf32> -> vector<16x512xf32>
    %87 = arith.addf %84, %86 : vector<16x512xf32>
    %88 = vector.extract_strided_slice %87 {offsets = [0, 0], sizes = [16, 128], strides = [1, 1]} : vector<16x512xf32> to vector<16x128xf32>
    %89 = arith.negf %88 : vector<16x128xf32>
    %90 = math.exp %89 : vector<16x128xf32>
    %cst_40 = arith.constant 1.000000e+00 : f32
    %91 = vector.broadcast %cst_40 : f32 to vector<16x128xf32>
    %92 = arith.addf %91, %90 : vector<16x128xf32>
    %93 = arith.divf %91, %92 : vector<16x128xf32>
    %94 = vector.extract_strided_slice %87 {offsets = [0, 128], sizes = [16, 128], strides = [1, 1]} : vector<16x512xf32> to vector<16x128xf32>
    %95 = arith.negf %94 : vector<16x128xf32>
    %96 = math.exp %95 : vector<16x128xf32>
    %cst_41 = arith.constant 1.000000e+00 : f32
    %97 = vector.broadcast %cst_41 : f32 to vector<16x128xf32>
    %98 = arith.addf %97, %96 : vector<16x128xf32>
    %99 = arith.divf %97, %98 : vector<16x128xf32>
    %100 = vector.extract_strided_slice %87 {offsets = [0, 256], sizes = [16, 128], strides = [1, 1]} : vector<16x512xf32> to vector<16x128xf32>
    %101 = math.tanh %100 : vector<16x128xf32>
    %102 = vector.extract_strided_slice %87 {offsets = [0, 384], sizes = [16, 128], strides = [1, 1]} : vector<16x512xf32> to vector<16x128xf32>
    %103 = arith.negf %102 : vector<16x128xf32>
    %104 = math.exp %103 : vector<16x128xf32>
    %cst_42 = arith.constant 1.000000e+00 : f32
    %105 = vector.broadcast %cst_42 : f32 to vector<16x128xf32>
    %106 = arith.addf %105, %104 : vector<16x128xf32>
    %107 = arith.divf %105, %106 : vector<16x128xf32>
    %108 = arith.mulf %99, %76 : vector<16x128xf32>
    %109 = arith.mulf %93, %101 : vector<16x128xf32>
    %110 = arith.addf %108, %109 : vector<16x128xf32>
    %111 = math.tanh %110 : vector<16x128xf32>
    %112 = arith.mulf %107, %111 : vector<16x128xf32>
    %113 = vector.shape_cast %112 : vector<16x128xf32> to vector<16x1x128xf32>
    %c0_43 = arith.constant 0 : index
    %114 = arith.index_cast %c2_i32 : i32 to index
    %c0_44 = arith.constant 0 : index
    %115 = vector.load %arg6[%c0_43, %114, %c0_44] : memref<16x8x128xf32, #tpu.memory_space<vmem>>, vector<16x1x128xf32>
    tpu.vector_store %arg6[%c0_43, %114, %c0_44], %113 {strides = array<i32>} : memref<16x8x128xf32, #tpu.memory_space<vmem>>, vector<16x1x128xf32>,
    %c3_i32 = arith.constant 3 : i32
    %c0_45 = arith.constant 0 : index
    %116 = arith.index_cast %c3_i32 : i32 to index
    %c0_46 = arith.constant 0 : index
    %117 = vector.load %arg9[%c0_45, %116, %c0_46] : memref<16x8x512xf32, #tpu.memory_space<vmem>>, vector<16x1x512xf32>
    %118 = vector.shape_cast %117 : vector<16x1x512xf32> to vector<16x512xf32>
    %c0_47 = arith.constant 0 : index
    %c0_48 = arith.constant 0 : index
    %119 = vector.load %arg4[%c0_47, %c0_48] : memref<128x512xf32, #tpu.memory_space<vmem>>, vector<128x512xf32>
    %cst_49 = arith.constant dense<0.000000e+00> : vector<16x512xf32>
    %120 = tpu.matmul %112, %119, %cst_49 {dimension_numbers = #tpu.dot_dimension_numbers<[1], [0], [0], [1], [0, 0, 1, 1], [], []>} : vector<16x128xf32>, vector<128x512xf32>, vector<16x512xf32> -> vector<16x512xf32>
    %121 = arith.addf %118, %120 : vector<16x512xf32>
    %122 = vector.extract_strided_slice %121 {offsets = [0, 0], sizes = [16, 128], strides = [1, 1]} : vector<16x512xf32> to vector<16x128xf32>
    %123 = arith.negf %122 : vector<16x128xf32>
    %124 = math.exp %123 : vector<16x128xf32>
    %cst_50 = arith.constant 1.000000e+00 : f32
    %125 = vector.broadcast %cst_50 : f32 to vector<16x128xf32>
    %126 = arith.addf %125, %124 : vector<16x128xf32>
    %127 = arith.divf %125, %126 : vector<16x128xf32>
    %128 = vector.extract_strided_slice %121 {offsets = [0, 128], sizes = [16, 128], strides = [1, 1]} : vector<16x512xf32> to vector<16x128xf32>
    %129 = arith.negf %128 : vector<16x128xf32>
    %130 = math.exp %129 : vector<16x128xf32>
    %cst_51 = arith.constant 1.000000e+00 : f32
    %131 = vector.broadcast %cst_51 : f32 to vector<16x128xf32>
    %132 = arith.addf %131, %130 : vector<16x128xf32>
    %133 = arith.divf %131, %132 : vector<16x128xf32>
    %134 = vector.extract_strided_slice %121 {offsets = [0, 256], sizes = [16, 128], strides = [1, 1]} : vector<16x512xf32> to vector<16x128xf32>
    %135 = math.tanh %134 : vector<16x128xf32>
    %136 = vector.extract_strided_slice %121 {offsets = [0, 384], sizes = [16, 128], strides = [1, 1]} : vector<16x512xf32> to vector<16x128xf32>
    %137 = arith.negf %136 : vector<16x128xf32>
    %138 = math.exp %137 : vector<16x128xf32>
    %cst_52 = arith.constant 1.000000e+00 : f32
    %139 = vector.broadcast %cst_52 : f32 to vector<16x128xf32>
    %140 = arith.addf %139, %138 : vector<16x128xf32>
    %141 = arith.divf %139, %140 : vector<16x128xf32>
    %142 = arith.mulf %133, %110 : vector<16x128xf32>
    %143 = arith.mulf %127, %135 : vector<16x128xf32>
    %144 = arith.addf %142, %143 : vector<16x128xf32>
    %145 = math.tanh %144 : vector<16x128xf32>
    %146 = arith.mulf %141, %145 : vector<16x128xf32>
    %147 = vector.shape_cast %146 : vector<16x128xf32> to vector<16x1x128xf32>
    %c0_53 = arith.constant 0 : index
    %148 = arith.index_cast %c3_i32 : i32 to index
    %c0_54 = arith.constant 0 : index
    %149 = vector.load %arg6[%c0_53, %148, %c0_54] : memref<16x8x128xf32, #tpu.memory_space<vmem>>, vector<16x1x128xf32>
    tpu.vector_store %arg6[%c0_53, %148, %c0_54], %147 {strides = array<i32>} : memref<16x8x128xf32, #tpu.memory_space<vmem>>, vector<16x1x128xf32>,
    %c4_i32 = arith.constant 4 : i32
    %c0_55 = arith.constant 0 : index
    %150 = arith.index_cast %c4_i32 : i32 to index
    %c0_56 = arith.constant 0 : index
    %151 = vector.load %arg9[%c0_55, %150, %c0_56] : memref<16x8x512xf32, #tpu.memory_space<vmem>>, vector<16x1x512xf32>
    %152 = vector.shape_cast %151 : vector<16x1x512xf32> to vector<16x512xf32>
    %c0_57 = arith.constant 0 : index
    %c0_58 = arith.constant 0 : index
    %153 = vector.load %arg4[%c0_57, %c0_58] : memref<128x512xf32, #tpu.memory_space<vmem>>, vector<128x512xf32>
    %cst_59 = arith.constant dense<0.000000e+00> : vector<16x512xf32>
    %154 = tpu.matmul %146, %153, %cst_59 {dimension_numbers = #tpu.dot_dimension_numbers<[1], [0], [0], [1], [0, 0, 1, 1], [], []>} : vector<16x128xf32>, vector<128x512xf32>, vector<16x512xf32> -> vector<16x512xf32>
    %155 = arith.addf %152, %154 : vector<16x512xf32>
    %156 = vector.extract_strided_slice %155 {offsets = [0, 0], sizes = [16, 128], strides = [1, 1]} : vector<16x512xf32> to vector<16x128xf32>
    %157 = arith.negf %156 : vector<16x128xf32>
    %158 = math.exp %157 : vector<16x128xf32>
    %cst_60 = arith.constant 1.000000e+00 : f32
    %159 = vector.broadcast %cst_60 : f32 to vector<16x128xf32>
    %160 = arith.addf %159, %158 : vector<16x128xf32>
    %161 = arith.divf %159, %160 : vector<16x128xf32>
    %162 = vector.extract_strided_slice %155 {offsets = [0, 128], sizes = [16, 128], strides = [1, 1]} : vector<16x512xf32> to vector<16x128xf32>
    %163 = arith.negf %162 : vector<16x128xf32>
    %164 = math.exp %163 : vector<16x128xf32>
    %cst_61 = arith.constant 1.000000e+00 : f32
    %165 = vector.broadcast %cst_61 : f32 to vector<16x128xf32>
    %166 = arith.addf %165, %164 : vector<16x128xf32>
    %167 = arith.divf %165, %166 : vector<16x128xf32>
    %168 = vector.extract_strided_slice %155 {offsets = [0, 256], sizes = [16, 128], strides = [1, 1]} : vector<16x512xf32> to vector<16x128xf32>
    %169 = math.tanh %168 : vector<16x128xf32>
    %170 = vector.extract_strided_slice %155 {offsets = [0, 384], sizes = [16, 128], strides = [1, 1]} : vector<16x512xf32> to vector<16x128xf32>
    %171 = arith.negf %170 : vector<16x128xf32>
    %172 = math.exp %171 : vector<16x128xf32>
    %cst_62 = arith.constant 1.000000e+00 : f32
    %173 = vector.broadcast %cst_62 : f32 to vector<16x128xf32>
    %174 = arith.addf %173, %172 : vector<16x128xf32>
    %175 = arith.divf %173, %174 : vector<16x128xf32>
    %176 = arith.mulf %167, %144 : vector<16x128xf32>
    %177 = arith.mulf %161, %169 : vector<16x128xf32>
    %178 = arith.addf %176, %177 : vector<16x128xf32>
    %179 = math.tanh %178 : vector<16x128xf32>
    %180 = arith.mulf %175, %179 : vector<16x128xf32>
    %181 = vector.shape_cast %180 : vector<16x128xf32> to vector<16x1x128xf32>
    %c0_63 = arith.constant 0 : index
    %182 = arith.index_cast %c4_i32 : i32 to index
    %c0_64 = arith.constant 0 : index
    %183 = vector.load %arg6[%c0_63, %182, %c0_64] : memref<16x8x128xf32, #tpu.memory_space<vmem>>, vector<16x1x128xf32>
    tpu.vector_store %arg6[%c0_63, %182, %c0_64], %181 {strides = array<i32>} : memref<16x8x128xf32, #tpu.memory_space<vmem>>, vector<16x1x128xf32>,
    %c5_i32 = arith.constant 5 : i32
    %c0_65 = arith.constant 0 : index
    %184 = arith.index_cast %c5_i32 : i32 to index
    %c0_66 = arith.constant 0 : index
    %185 = vector.load %arg9[%c0_65, %184, %c0_66] : memref<16x8x512xf32, #tpu.memory_space<vmem>>, vector<16x1x512xf32>
    %186 = vector.shape_cast %185 : vector<16x1x512xf32> to vector<16x512xf32>
    %c0_67 = arith.constant 0 : index
    %c0_68 = arith.constant 0 : index
    %187 = vector.load %arg4[%c0_67, %c0_68] : memref<128x512xf32, #tpu.memory_space<vmem>>, vector<128x512xf32>
    %cst_69 = arith.constant dense<0.000000e+00> : vector<16x512xf32>
    %188 = tpu.matmul %180, %187, %cst_69 {dimension_numbers = #tpu.dot_dimension_numbers<[1], [0], [0], [1], [0, 0, 1, 1], [], []>} : vector<16x128xf32>, vector<128x512xf32>, vector<16x512xf32> -> vector<16x512xf32>
    %189 = arith.addf %186, %188 : vector<16x512xf32>
    %190 = vector.extract_strided_slice %189 {offsets = [0, 0], sizes = [16, 128], strides = [1, 1]} : vector<16x512xf32> to vector<16x128xf32>
    %191 = arith.negf %190 : vector<16x128xf32>
    %192 = math.exp %191 : vector<16x128xf32>
    %cst_70 = arith.constant 1.000000e+00 : f32
    %193 = vector.broadcast %cst_70 : f32 to vector<16x128xf32>
    %194 = arith.addf %193, %192 : vector<16x128xf32>
    %195 = arith.divf %193, %194 : vector<16x128xf32>
    %196 = vector.extract_strided_slice %189 {offsets = [0, 128], sizes = [16, 128], strides = [1, 1]} : vector<16x512xf32> to vector<16x128xf32>
    %197 = arith.negf %196 : vector<16x128xf32>
    %198 = math.exp %197 : vector<16x128xf32>
    %cst_71 = arith.constant 1.000000e+00 : f32
    %199 = vector.broadcast %cst_71 : f32 to vector<16x128xf32>
    %200 = arith.addf %199, %198 : vector<16x128xf32>
    %201 = arith.divf %199, %200 : vector<16x128xf32>
    %202 = vector.extract_strided_slice %189 {offsets = [0, 256], sizes = [16, 128], strides = [1, 1]} : vector<16x512xf32> to vector<16x128xf32>
    %203 = math.tanh %202 : vector<16x128xf32>
    %204 = vector.extract_strided_slice %189 {offsets = [0, 384], sizes = [16, 128], strides = [1, 1]} : vector<16x512xf32> to vector<16x128xf32>
    %205 = arith.negf %204 : vector<16x128xf32>
    %206 = math.exp %205 : vector<16x128xf32>
    %cst_72 = arith.constant 1.000000e+00 : f32
    %207 = vector.broadcast %cst_72 : f32 to vector<16x128xf32>
    %208 = arith.addf %207, %206 : vector<16x128xf32>
    %209 = arith.divf %207, %208 : vector<16x128xf32>
    %210 = arith.mulf %201, %178 : vector<16x128xf32>
    %211 = arith.mulf %195, %203 : vector<16x128xf32>
    %212 = arith.addf %210, %211 : vector<16x128xf32>
    %213 = math.tanh %212 : vector<16x128xf32>
    %214 = arith.mulf %209, %213 : vector<16x128xf32>
    %215 = vector.shape_cast %214 : vector<16x128xf32> to vector<16x1x128xf32>
    %c0_73 = arith.constant 0 : index
    %216 = arith.index_cast %c5_i32 : i32 to index
    %c0_74 = arith.constant 0 : index
    %217 = vector.load %arg6[%c0_73, %216, %c0_74] : memref<16x8x128xf32, #tpu.memory_space<vmem>>, vector<16x1x128xf32>
    tpu.vector_store %arg6[%c0_73, %216, %c0_74], %215 {strides = array<i32>} : memref<16x8x128xf32, #tpu.memory_space<vmem>>, vector<16x1x128xf32>,
    %c6_i32 = arith.constant 6 : i32
    %c0_75 = arith.constant 0 : index
    %218 = arith.index_cast %c6_i32 : i32 to index
    %c0_76 = arith.constant 0 : index
    %219 = vector.load %arg9[%c0_75, %218, %c0_76] : memref<16x8x512xf32, #tpu.memory_space<vmem>>, vector<16x1x512xf32>
    %220 = vector.shape_cast %219 : vector<16x1x512xf32> to vector<16x512xf32>
    %c0_77 = arith.constant 0 : index
    %c0_78 = arith.constant 0 : index
    %221 = vector.load %arg4[%c0_77, %c0_78] : memref<128x512xf32, #tpu.memory_space<vmem>>, vector<128x512xf32>
    %cst_79 = arith.constant dense<0.000000e+00> : vector<16x512xf32>
    %222 = tpu.matmul %214, %221, %cst_79 {dimension_numbers = #tpu.dot_dimension_numbers<[1], [0], [0], [1], [0, 0, 1, 1], [], []>} : vector<16x128xf32>, vector<128x512xf32>, vector<16x512xf32> -> vector<16x512xf32>
    %223 = arith.addf %220, %222 : vector<16x512xf32>
    %224 = vector.extract_strided_slice %223 {offsets = [0, 0], sizes = [16, 128], strides = [1, 1]} : vector<16x512xf32> to vector<16x128xf32>
    %225 = arith.negf %224 : vector<16x128xf32>
    %226 = math.exp %225 : vector<16x128xf32>
    %cst_80 = arith.constant 1.000000e+00 : f32
    %227 = vector.broadcast %cst_80 : f32 to vector<16x128xf32>
    %228 = arith.addf %227, %226 : vector<16x128xf32>
    %229 = arith.divf %227, %228 : vector<16x128xf32>
    %230 = vector.extract_strided_slice %223 {offsets = [0, 128], sizes = [16, 128], strides = [1, 1]} : vector<16x512xf32> to vector<16x128xf32>
    %231 = arith.negf %230 : vector<16x128xf32>
    %232 = math.exp %231 : vector<16x128xf32>
    %cst_81 = arith.constant 1.000000e+00 : f32
    %233 = vector.broadcast %cst_81 : f32 to vector<16x128xf32>
    %234 = arith.addf %233, %232 : vector<16x128xf32>
    %235 = arith.divf %233, %234 : vector<16x128xf32>
    %236 = vector.extract_strided_slice %223 {offsets = [0, 256], sizes = [16, 128], strides = [1, 1]} : vector<16x512xf32> to vector<16x128xf32>
    %237 = math.tanh %236 : vector<16x128xf32>
    %238 = vector.extract_strided_slice %223 {offsets = [0, 384], sizes = [16, 128], strides = [1, 1]} : vector<16x512xf32> to vector<16x128xf32>
    %239 = arith.negf %238 : vector<16x128xf32>
    %240 = math.exp %239 : vector<16x128xf32>
    %cst_82 = arith.constant 1.000000e+00 : f32
    %241 = vector.broadcast %cst_82 : f32 to vector<16x128xf32>
    %242 = arith.addf %241, %240 : vector<16x128xf32>
    %243 = arith.divf %241, %242 : vector<16x128xf32>
    %244 = arith.mulf %235, %212 : vector<16x128xf32>
    %245 = arith.mulf %229, %237 : vector<16x128xf32>
    %246 = arith.addf %244, %245 : vector<16x128xf32>
    %247 = math.tanh %246 : vector<16x128xf32>
    %248 = arith.mulf %243, %247 : vector<16x128xf32>
    %249 = vector.shape_cast %248 : vector<16x128xf32> to vector<16x1x128xf32>
    %c0_83 = arith.constant 0 : index
    %250 = arith.index_cast %c6_i32 : i32 to index
    %c0_84 = arith.constant 0 : index
    %251 = vector.load %arg6[%c0_83, %250, %c0_84] : memref<16x8x128xf32, #tpu.memory_space<vmem>>, vector<16x1x128xf32>
    tpu.vector_store %arg6[%c0_83, %250, %c0_84], %249 {strides = array<i32>} : memref<16x8x128xf32, #tpu.memory_space<vmem>>, vector<16x1x128xf32>,
    %c7_i32 = arith.constant 7 : i32
    %c0_85 = arith.constant 0 : index
    %252 = arith.index_cast %c7_i32 : i32 to index
    %c0_86 = arith.constant 0 : index
    %253 = vector.load %arg9[%c0_85, %252, %c0_86] : memref<16x8x512xf32, #tpu.memory_space<vmem>>, vector<16x1x512xf32>
    %254 = vector.shape_cast %253 : vector<16x1x512xf32> to vector<16x512xf32>
    %c0_87 = arith.constant 0 : index
    %c0_88 = arith.constant 0 : index
    %255 = vector.load %arg4[%c0_87, %c0_88] : memref<128x512xf32, #tpu.memory_space<vmem>>, vector<128x512xf32>
    %cst_89 = arith.constant dense<0.000000e+00> : vector<16x512xf32>
    %256 = tpu.matmul %248, %255, %cst_89 {dimension_numbers = #tpu.dot_dimension_numbers<[1], [0], [0], [1], [0, 0, 1, 1], [], []>} : vector<16x128xf32>, vector<128x512xf32>, vector<16x512xf32> -> vector<16x512xf32>
    %257 = arith.addf %254, %256 : vector<16x512xf32>
    %258 = vector.extract_strided_slice %257 {offsets = [0, 0], sizes = [16, 128], strides = [1, 1]} : vector<16x512xf32> to vector<16x128xf32>
    %259 = arith.negf %258 : vector<16x128xf32>
    %260 = math.exp %259 : vector<16x128xf32>
    %cst_90 = arith.constant 1.000000e+00 : f32
    %261 = vector.broadcast %cst_90 : f32 to vector<16x128xf32>
    %262 = arith.addf %261, %260 : vector<16x128xf32>
    %263 = arith.divf %261, %262 : vector<16x128xf32>
    %264 = vector.extract_strided_slice %257 {offsets = [0, 128], sizes = [16, 128], strides = [1, 1]} : vector<16x512xf32> to vector<16x128xf32>
    %265 = arith.negf %264 : vector<16x128xf32>
    %266 = math.exp %265 : vector<16x128xf32>
    %cst_91 = arith.constant 1.000000e+00 : f32
    %267 = vector.broadcast %cst_91 : f32 to vector<16x128xf32>
    %268 = arith.addf %267, %266 : vector<16x128xf32>
    %269 = arith.divf %267, %268 : vector<16x128xf32>
    %270 = vector.extract_strided_slice %257 {offsets = [0, 256], sizes = [16, 128], strides = [1, 1]} : vector<16x512xf32> to vector<16x128xf32>
    %271 = math.tanh %270 : vector<16x128xf32>
    %272 = vector.extract_strided_slice %257 {offsets = [0, 384], sizes = [16, 128], strides = [1, 1]} : vector<16x512xf32> to vector<16x128xf32>
    %273 = arith.negf %272 : vector<16x128xf32>
    %274 = math.exp %273 : vector<16x128xf32>
    %cst_92 = arith.constant 1.000000e+00 : f32
    %275 = vector.broadcast %cst_92 : f32 to vector<16x128xf32>
    %276 = arith.addf %275, %274 : vector<16x128xf32>
    %277 = arith.divf %275, %276 : vector<16x128xf32>
    %278 = arith.mulf %269, %246 : vector<16x128xf32>
    %279 = arith.mulf %263, %271 : vector<16x128xf32>
    %280 = arith.addf %278, %279 : vector<16x128xf32>
    %281 = math.tanh %280 : vector<16x128xf32>
    %282 = arith.mulf %277, %281 : vector<16x128xf32>
    %283 = vector.shape_cast %282 : vector<16x128xf32> to vector<16x1x128xf32>
    %c0_93 = arith.constant 0 : index
    %284 = arith.index_cast %c7_i32 : i32 to index
    %c0_94 = arith.constant 0 : index
    %285 = vector.load %arg6[%c0_93, %284, %c0_94] : memref<16x8x128xf32, #tpu.memory_space<vmem>>, vector<16x1x128xf32>
    tpu.vector_store %arg6[%c0_93, %284, %c0_94], %283 {strides = array<i32>} : memref<16x8x128xf32, #tpu.memory_space<vmem>>, vector<16x1x128xf32>,
    %c8_i32 = arith.constant 8 : i32
    %c0_95 = arith.constant 0 : index
    %c0_96 = arith.constant 0 : index
    %286 = vector.load %arg10[%c0_95, %c0_96] : memref<16x128xf32, #tpu.memory_space<vmem>>, vector<16x128xf32>
    tpu.vector_store %arg10[%c0_95, %c0_96], %282 {strides = array<i32>} : memref<16x128xf32, #tpu.memory_space<vmem>>, vector<16x128xf32>,
    %c0_97 = arith.constant 0 : index
    %c0_98 = arith.constant 0 : index
    %287 = vector.load %arg11[%c0_97, %c0_98] : memref<16x128xf32, #tpu.memory_space<vmem>>, vector<16x128xf32>
    tpu.vector_store %arg11[%c0_97, %c0_98], %280 {strides = array<i32>} : memref<16x128xf32, #tpu.memory_space<vmem>>, vector<16x128xf32>,
    %c0_i32_99 = arith.constant 0 : i32
    %288 = arith.cmpi eq, %arg1, %c0_i32_99 : i32
    %289 = arith.extui %288 : i1 to i32
    %c0_i32_100 = arith.constant 0 : i32
    %290 = arith.cmpi ne, %289, %c0_i32_100 : i32
    scf.if %290 {
      %c0_101 = arith.constant 0 : index
      %c0_102 = arith.constant 0 : index
      %291 = vector.load %arg7[%c0_101, %c0_102] : memref<16x128xf32, #tpu.memory_space<vmem>>, vector<16x128xf32>
      tpu.vector_store %arg7[%c0_101, %c0_102], %282 {strides = array<i32>} : memref<16x128xf32, #tpu.memory_space<vmem>>, vector<16x128xf32>,
      %c0_103 = arith.constant 0 : index
      %c0_104 = arith.constant 0 : index
      %292 = vector.load %arg8[%c0_103, %c0_104] : memref<16x128xf32, #tpu.memory_space<vmem>>, vector<16x128xf32>
      tpu.vector_store %arg8[%c0_103, %c0_104], %280 {strides = array<i32>} : memref<16x128xf32, #tpu.memory_space<vmem>>, vector<16x128xf32>,
    } else {
    }
    return
  }
  func.func @transform_0(%arg0: i32, %arg1: i32) -> (i32, i32, i32) {
    %c0_i32 = arith.constant 0 : i32
    %c0_i32_0 = arith.constant 0 : i32
    return %arg0, %arg1, %c0_i32 : i32, i32, i32
  }
  func.func @transform_1(%arg0: i32, %arg1: i32) -> (i32, i32) {
    %c0_i32 = arith.constant 0 : i32
    %c0_i32_0 = arith.constant 0 : i32
    %c0_i32_1 = arith.constant 0 : i32
    return %c0_i32, %c0_i32_0 : i32, i32
  }
  func.func @transform_2(%arg0: i32, %arg1: i32) -> (i32, i32) {
    %c0_i32 = arith.constant 0 : i32
    %c0_i32_0 = arith.constant 0 : i32
    %c0_i32_1 = arith.constant 0 : i32
    return %c0_i32, %c0_i32_0 : i32, i32
  }
  func.func @transform_3(%arg0: i32, %arg1: i32) -> (i32, i32) {
    %c0_i32 = arith.constant 0 : i32
    %c0_i32_0 = arith.constant 0 : i32
    %c0_i32_1 = arith.constant 0 : i32
    return %c0_i32, %c0_i32_0 : i32, i32
  }
  func.func @transform_4(%arg0: i32, %arg1: i32) -> (i32, i32, i32) {
    %c0_i32 = arith.constant 0 : i32
    %c0_i32_0 = arith.constant 0 : i32
    return %arg0, %arg1, %c0_i32 : i32, i32, i32
  }
  func.func @transform_5(%arg0: i32, %arg1: i32) -> (i32, i32) {
    %c0_i32 = arith.constant 0 : i32
    %c0_i32_0 = arith.constant 0 : i32
    return %arg0, %c0_i32 : i32, i32
  }
  func.func @transform_6(%arg0: i32, %arg1: i32) -> (i32, i32) {
    %c0_i32 = arith.constant 0 : i32
    %c0_i32_0 = arith.constant 0 : i32
    return %arg0, %c0_i32 : i32, i32
  }
}

</mosaic_0001>

<llo_original>
// kernel: encoder_lstm_forward.1
$region0: #{encoder_lstm_forward.1}
  #allocation0 [shape = 'u32[]', space=smem, size = 0x4, offset = 0x4, fixed_abs, tag = 'smem constant byte address 0x4 - core index']
  #allocation1 [shape = 'u32[72,128]{1,0:T(1,128)}', space=vmem, size = 0x9000, scoped, tag = 'internal scratch']
  #allocation2 [shape = 'f32[16,8,512]{2,1,0:T(8,128)}', space=vmem, size = 0x40000, scoped, tag = 'scratch operand']
  #allocation3 [shape = 'f32[16,128]{1,0:T(8,128)}', space=vmem, size = 0x2000, scoped, tag = 'scratch operand']
  #allocation4 [shape = 'f32[16,128]{1,0:T(8,128)}', space=vmem, size = 0x2000, scoped, tag = 'scratch operand']
  %s0 = inlined_call_operand.vmem [shape: f32[16,8,128], index: 0, kind: input, shape index: {}]
  %s1 = inlined_call_operand.vmem [shape: f32[128,512], index: 1, kind: input, shape index: {}]
  %s2 = inlined_call_operand.vmem [shape: f32[128,512], index: 2, kind: input, shape index: {}]
  %s3 = inlined_call_operand.vmem [shape: f32[1,512], index: 3, kind: input, shape index: {}]
  %s4 = inlined_call_operand.vmem [shape: f32[16,8,128], index: 4, kind: output, shape index: {0}]
  %s5 = inlined_call_operand.vmem [shape: f32[16,128], index: 5, kind: output, shape index: {1}]
  %s6 = inlined_call_operand.vmem [shape: f32[16,128], index: 6, kind: output, shape index: {2}]
  %7 = xla_tuple %s4, %s5, %s6
  %s8 = sld [smem:[#allocation0]]
  $region50: #{encoder_lstm_forward.1} parent=0
    _
  %s10 = ssub.s32 1, %s8
  %s11 = scalar_select 0, %s10, %s8
  // Predicated region
  $region2: #{encoder_lstm_forward.1} parent=0 // pred_check
    _
  $region3: #{encoder_lstm_forward.1} parent=0 // pred_check_branch
    %13 = sbr.rel (0) target = $region5
  $region4: #{encoder_lstm_forward.1} parent=0 // pred_region
    _
  $region5: #{encoder_lstm_forward.1} parent=0 // pred_fallthru
    _
  // Predicated region
  $region6: #{encoder_lstm_forward.1} parent=0 // pred_check
    _
  $region7: #{encoder_lstm_forward.1} parent=0 // pred_check_branch
    %15 = sbr.rel (0) target = $region9
  $region8: #{encoder_lstm_forward.1} parent=0 // pred_region
    _
  $region9: #{encoder_lstm_forward.1} parent=0 // pred_fallthru
    _
  // Predicated region
  $region10: #{encoder_lstm_forward.1} parent=0 // pred_check
    _
  $region11: #{encoder_lstm_forward.1} parent=0 // pred_check_branch
    %17 = sbr.rel (0) target = $region13
  $region12: #{encoder_lstm_forward.1} parent=0 // pred_region
    _
  $region13: #{encoder_lstm_forward.1} parent=0 // pred_fallthru
    _
  // Predicated region
  $region14: #{encoder_lstm_forward.1} parent=0 // pred_check
    _
  $region15: #{encoder_lstm_forward.1} parent=0 // pred_check_branch
    %19 = sbr.rel (0) target = $region17
  $region16: #{encoder_lstm_forward.1} parent=0 // pred_region
    _
  $region17: #{encoder_lstm_forward.1} parent=0 // pred_fallthru
    _
  %p20 = scmp.eq.s32.totalorder 0, 0
  // Predicated region
  $region18: #{encoder_lstm_forward.1} parent=0 // pred_check
    %p21 = pneg %p20
  $region19: #{encoder_lstm_forward.1} parent=0 // pred_check_branch
    %23 = sbr.rel (%p21) target = $region21
  $region20: #{encoder_lstm_forward.1} parent=0 // pred_region
    %24 = vst [vmem:[#allocation3] sm:$0xff] 0.0
    %25 = vst [vmem:[#allocation3 + $0x8] sm:$0xff] 0.0
    %26 = vst [vmem:[#allocation4] sm:$0xff] 0.0
    %27 = vst [vmem:[#allocation4 + $0x8] sm:$0xff] 0.0
  $region21: #{encoder_lstm_forward.1} parent=0 // pred_fallthru
    _
  %v28 = vld [vmem:[%s0] sm:$0xff]
  %v29 = vld [vmem:[%s0 + $0x8] sm:$0xff]
  %v30 = vld [vmem:[%s0 + $0x10] sm:$0xff]
  %v31 = vld [vmem:[%s0 + $0x18] sm:$0xff]
  %v32 = vld [vmem:[%s0 + $0x20] sm:$0xff]
  %v33 = vld [vmem:[%s0 + $0x28] sm:$0xff]
  %v34 = vld [vmem:[%s0 + $0x30] sm:$0xff]
  %v35 = vld [vmem:[%s0 + $0x38] sm:$0xff]
  %v36 = vld [vmem:[%s0 + $0x40] sm:$0xff]
  %v37 = vld [vmem:[%s0 + $0x48] sm:$0xff]
  %v38 = vld [vmem:[%s0 + $0x50] sm:$0xff]
  %v39 = vld [vmem:[%s0 + $0x58] sm:$0xff]
  %v40 = vld [vmem:[%s0 + $0x60] sm:$0xff]
  %v41 = vld [vmem:[%s0 + $0x68] sm:$0xff]
  %v42 = vld [vmem:[%s0 + $0x70] sm:$0xff]
  %v43 = vld [vmem:[%s0 + $0x78] sm:$0xff]
  %v44 = vld [vmem:[%s1] sm:$0xff]
  %v45 = vld [vmem:[%s1 + $0x8] sm:$0xff]
  %v46 = vld [vmem:[%s1 + $0x10] sm:$0xff]
  %v47 = vld [vmem:[%s1 + $0x18] sm:$0xff]
  %v48 = vld [vmem:[%s1 + $0x20] sm:$0xff]
  %v49 = vld [vmem:[%s1 + $0x28] sm:$0xff]
  %v50 = vld [vmem:[%s1 + $0x30] sm:$0xff]
  %v51 = vld [vmem:[%s1 + $0x38] sm:$0xff]
  %v52 = vld [vmem:[%s1 + $0x40] sm:$0xff]
  %v53 = vld [vmem:[%s1 + $0x48] sm:$0xff]
  %v54 = vld [vmem:[%s1 + $0x50] sm:$0xff]
  %v55 = vld [vmem:[%s1 + $0x58] sm:$0xff]
  %v56 = vld [vmem:[%s1 + $0x60] sm:$0xff]
  %v57 = vld [vmem:[%s1 + $0x68] sm:$0xff]
  %v58 = vld [vmem:[%s1 + $0x70] sm:$0xff]
  %v59 = vld [vmem:[%s1 + $0x78] sm:$0xff]
  %v60 = vld [vmem:[%s1 + $0x80] sm:$0xff]
  %v61 = vld [vmem:[%s1 + $0x88] sm:$0xff]
  %v62 = vld [vmem:[%s1 + $0x90] sm:$0xff]
  %v63 = vld [vmem:[%s1 + $0x98] sm:$0xff]
  %v64 = vld [vmem:[%s1 + $0xa0] sm:$0xff]
  %v65 = vld [vmem:[%s1 + $0xa8] sm:$0xff]
  %v66 = vld [vmem:[%s1 + $0xb0] sm:$0xff]
  %v67 = vld [vmem:[%s1 + $0xb8] sm:$0xff]
  %v68 = vld [vmem:[%s1 + $0xc0] sm:$0xff]
  %v69 = vld [vmem:[%s1 + $0xc8] sm:$0xff]
  %v70 = vld [vmem:[%s1 + $0xd0] sm:$0xff]
  %v71 = vld [vmem:[%s1 + $0xd8] sm:$0xff]
  %v72 = vld [vmem:[%s1 + $0xe0] sm:$0xff]
  %v73 = vld [vmem:[%s1 + $0xe8] sm:$0xff]
  %v74 = vld [vmem:[%s1 + $0xf0] sm:$0xff]
  %v75 = vld [vmem:[%s1 + $0xf8] sm:$0xff]
  %v76 = vld [vmem:[%s1 + $0x100] sm:$0xff]
  %v77 = vld [vmem:[%s1 + $0x108] sm:$0xff]
  %v78 = vld [vmem:[%s1 + $0x110] sm:$0xff]
  %v79 = vld [vmem:[%s1 + $0x118] sm:$0xff]
  %v80 = vld [vmem:[%s1 + $0x120] sm:$0xff]
  %v81 = vld [vmem:[%s1 + $0x128] sm:$0xff]
  %v82 = vld [vmem:[%s1 + $0x130] sm:$0xff]
  %v83 = vld [vmem:[%s1 + $0x138] sm:$0xff]
  %v84 = vld [vmem:[%s1 + $0x140] sm:$0xff]
  %v85 = vld [vmem:[%s1 + $0x148] sm:$0xff]
  %v86 = vld [vmem:[%s1 + $0x150] sm:$0xff]
  %v87 = vld [vmem:[%s1 + $0x158] sm:$0xff]
  %v88 = vld [vmem:[%s1 + $0x160] sm:$0xff]
  %v89 = vld [vmem:[%s1 + $0x168] sm:$0xff]
  %v90 = vld [vmem:[%s1 + $0x170] sm:$0xff]
  %v91 = vld [vmem:[%s1 + $0x178] sm:$0xff]
  %v92 = vld [vmem:[%s1 + $0x180] sm:$0xff]
  %v93 = vld [vmem:[%s1 + $0x188] sm:$0xff]
  %v94 = vld [vmem:[%s1 + $0x190] sm:$0xff]
  %v95 = vld [vmem:[%s1 + $0x198] sm:$0xff]
  %v96 = vld [vmem:[%s1 + $0x1a0] sm:$0xff]
  %v97 = vld [vmem:[%s1 + $0x1a8] sm:$0xff]
  %v98 = vld [vmem:[%s1 + $0x1b0] sm:$0xff]
  %v99 = vld [vmem:[%s1 + $0x1b8] sm:$0xff]
  %v100 = vld [vmem:[%s1 + $0x1c0] sm:$0xff]
  %v101 = vld [vmem:[%s1 + $0x1c8] sm:$0xff]
  %v102 = vld [vmem:[%s1 + $0x1d0] sm:$0xff]
  %v103 = vld [vmem:[%s1 + $0x1d8] sm:$0xff]
  %v104 = vld [vmem:[%s1 + $0x1e0] sm:$0xff]
  %v105 = vld [vmem:[%s1 + $0x1e8] sm:$0xff]
  %v106 = vld [vmem:[%s1 + $0x1f0] sm:$0xff]
  %v107 = vld [vmem:[%s1 + $0x1f8] sm:$0xff]
  %v108 = vld [vmem:[%s3] sm:$0xf]
  %v110 = vperm.slane %v108, 0
  %v111 = vperm.slane %v108, 1
  %v112 = vperm.slane %v108, 2
  %v113 = vperm.slane %v108, 3
  %118 = vmatpush.msra.mxu0 %v104
  %119 = vmatpush.msra.mxu0 %v100
  %120 = vmatpush.msra.mxu0 %v96
  %121 = vmatpush.msra.mxu0 %v92
  %122 = vmatpush.msra.mxu0 %v88
  %123 = vmatpush.msra.mxu0 %v84
  %124 = vmatpush.msra.mxu0 %v80
  %125 = vmatpush.msra.mxu0 %v76
  %126 = vmatpush.msra.mxu0 %v72
  %127 = vmatpush.msra.mxu0 %v68
  %128 = vmatpush.msra.mxu0 %v64
  %129 = vmatpush.msra.mxu0 %v60
  %130 = vmatpush.msra.mxu0 %v56
  %131 = vmatpush.msra.mxu0 %v52
  %132 = vmatpush.msra.mxu0 %v48
  %133 = vmatpush.msra.mxu0 %v44
  %134 = vmatmul.f32.gmra.mxu0 %v28
  %v135 = vpop.f32.mrf.mxu0
  %v136 = vadd.f32 %v110, %v135
  %137 = vmatmul.f32.gmra.mxu0 %v29
  %v138 = vpop.f32.mrf.mxu0
  %v139 = vadd.f32 %v110, %v138
  %140 = vmatmul.f32.gmra.mxu0 %v30
  %v141 = vpop.f32.mrf.mxu0
  %v142 = vadd.f32 %v110, %v141
  %143 = vmatmul.f32.gmra.mxu0 %v31
  %v144 = vpop.f32.mrf.mxu0
  %v145 = vadd.f32 %v110, %v144
  %146 = vmatmul.f32.gmra.mxu0 %v32
  %v147 = vpop.f32.mrf.mxu0
  %v148 = vadd.f32 %v110, %v147
  %149 = vmatmul.f32.gmra.mxu0 %v33
  %v150 = vpop.f32.mrf.mxu0
  %v151 = vadd.f32 %v110, %v150
  %152 = vmatmul.f32.gmra.mxu0 %v34
  %v153 = vpop.f32.mrf.mxu0
  %v154 = vadd.f32 %v110, %v153
  %155 = vmatmul.f32.gmra.mxu0 %v35
  %v156 = vpop.f32.mrf.mxu0
  %v157 = vadd.f32 %v110, %v156
  %158 = vmatmul.f32.gmra.mxu0 %v36
  %v159 = vpop.f32.mrf.mxu0
  %v160 = vadd.f32 %v110, %v159
  %161 = vmatmul.f32.gmra.mxu0 %v37
  %v162 = vpop.f32.mrf.mxu0
  %v163 = vadd.f32 %v110, %v162
  %164 = vmatmul.f32.gmra.mxu0 %v38
  %v165 = vpop.f32.mrf.mxu0
  %v166 = vadd.f32 %v110, %v165
  %167 = vmatmul.f32.gmra.mxu0 %v39
  %v168 = vpop.f32.mrf.mxu0
  %v169 = vadd.f32 %v110, %v168
  %170 = vmatmul.f32.gmra.mxu0 %v40
  %v171 = vpop.f32.mrf.mxu0
  %v172 = vadd.f32 %v110, %v171
  %173 = vmatmul.f32.gmra.mxu0 %v41
  %v174 = vpop.f32.mrf.mxu0
  %v175 = vadd.f32 %v110, %v174
  %176 = vmatmul.f32.gmra.mxu0 %v42
  %v177 = vpop.f32.mrf.mxu0
  %v178 = vadd.f32 %v110, %v177
  %179 = vmatmul.f32.gmra.mxu0 %v43
  %v180 = vpop.f32.mrf.mxu0
  %v181 = vadd.f32 %v110, %v180
  %182 = vdwg.mxu0
  %183 = vmatpush.msra.mxu0 %v105
  %184 = vmatpush.msra.mxu0 %v101
  %185 = vmatpush.msra.mxu0 %v97
  %186 = vmatpush.msra.mxu0 %v93
  %187 = vmatpush.msra.mxu0 %v89
  %188 = vmatpush.msra.mxu0 %v85
  %189 = vmatpush.msra.mxu0 %v81
  %190 = vmatpush.msra.mxu0 %v77
  %191 = vmatpush.msra.mxu0 %v73
  %192 = vmatpush.msra.mxu0 %v69
  %193 = vmatpush.msra.mxu0 %v65
  %194 = vmatpush.msra.mxu0 %v61
  %195 = vmatpush.msra.mxu0 %v57
  %196 = vmatpush.msra.mxu0 %v53
  %197 = vmatpush.msra.mxu0 %v49
  %198 = vmatpush.msra.mxu0 %v45
  %199 = vmatmul.f32.gmra.mxu0 %v28
  %v200 = vpop.f32.mrf.mxu0
  %v201 = vadd.f32 %v111, %v200
  %202 = vmatmul.f32.gmra.mxu0 %v29
  %v203 = vpop.f32.mrf.mxu0
  %v204 = vadd.f32 %v111, %v203
  %205 = vmatmul.f32.gmra.mxu0 %v30
  %v206 = vpop.f32.mrf.mxu0
  %v207 = vadd.f32 %v111, %v206
  %208 = vmatmul.f32.gmra.mxu0 %v31
  %v209 = vpop.f32.mrf.mxu0
  %v210 = vadd.f32 %v111, %v209
  %211 = vmatmul.f32.gmra.mxu0 %v32
  %v212 = vpop.f32.mrf.mxu0
  %v213 = vadd.f32 %v111, %v212
  %214 = vmatmul.f32.gmra.mxu0 %v33
  %v215 = vpop.f32.mrf.mxu0
  %v216 = vadd.f32 %v111, %v215
  %217 = vmatmul.f32.gmra.mxu0 %v34
  %v218 = vpop.f32.mrf.mxu0
  %v219 = vadd.f32 %v111, %v218
  %220 = vmatmul.f32.gmra.mxu0 %v35
  %v221 = vpop.f32.mrf.mxu0
  %v222 = vadd.f32 %v111, %v221
  %223 = vmatmul.f32.gmra.mxu0 %v36
  %v224 = vpop.f32.mrf.mxu0
  %v225 = vadd.f32 %v111, %v224
  %226 = vmatmul.f32.gmra.mxu0 %v37
  %v227 = vpop.f32.mrf.mxu0
  %v228 = vadd.f32 %v111, %v227
  %229 = vmatmul.f32.gmra.mxu0 %v38
  %v230 = vpop.f32.mrf.mxu0
  %v231 = vadd.f32 %v111, %v230
  %232 = vmatmul.f32.gmra.mxu0 %v39
  %v233 = vpop.f32.mrf.mxu0
  %v234 = vadd.f32 %v111, %v233
  %235 = vmatmul.f32.gmra.mxu0 %v40
  %v236 = vpop.f32.mrf.mxu0
  %v237 = vadd.f32 %v111, %v236
  %238 = vmatmul.f32.gmra.mxu0 %v41
  %v239 = vpop.f32.mrf.mxu0
  %v240 = vadd.f32 %v111, %v239
  %241 = vmatmul.f32.gmra.mxu0 %v42
  %v242 = vpop.f32.mrf.mxu0
  %v243 = vadd.f32 %v111, %v242
  %244 = vmatmul.f32.gmra.mxu0 %v43
  %v245 = vpop.f32.mrf.mxu0
  %v246 = vadd.f32 %v111, %v245
  %247 = vdwg.mxu0
  %248 = vmatpush.msra.mxu0 %v106
  %249 = vmatpush.msra.mxu0 %v102
  %250 = vmatpush.msra.mxu0 %v98
  %251 = vmatpush.msra.mxu0 %v94
  %252 = vmatpush.msra.mxu0 %v90
  %253 = vmatpush.msra.mxu0 %v86
  %254 = vmatpush.msra.mxu0 %v82
  %255 = vmatpush.msra.mxu0 %v78
  %256 = vmatpush.msra.mxu0 %v74
  %257 = vmatpush.msra.mxu0 %v70
  %258 = vmatpush.msra.mxu0 %v66
  %259 = vmatpush.msra.mxu0 %v62
  %260 = vmatpush.msra.mxu0 %v58
  %261 = vmatpush.msra.mxu0 %v54
  %262 = vmatpush.msra.mxu0 %v50
  %263 = vmatpush.msra.mxu0 %v46
  %264 = vmatmul.f32.gmra.mxu0 %v28
  %v265 = vpop.f32.mrf.mxu0
  %v266 = vadd.f32 %v112, %v265
  %267 = vmatmul.f32.gmra.mxu0 %v29
  %v268 = vpop.f32.mrf.mxu0
  %v269 = vadd.f32 %v112, %v268
  %270 = vmatmul.f32.gmra.mxu0 %v30
  %v271 = vpop.f32.mrf.mxu0
  %v272 = vadd.f32 %v112, %v271
  %273 = vmatmul.f32.gmra.mxu0 %v31
  %v274 = vpop.f32.mrf.mxu0
  %v275 = vadd.f32 %v112, %v274
  %276 = vmatmul.f32.gmra.mxu0 %v32
  %v277 = vpop.f32.mrf.mxu0
  %v278 = vadd.f32 %v112, %v277
  %279 = vmatmul.f32.gmra.mxu0 %v33
  %v280 = vpop.f32.mrf.mxu0
  %v281 = vadd.f32 %v112, %v280
  %282 = vmatmul.f32.gmra.mxu0 %v34
  %v283 = vpop.f32.mrf.mxu0
  %v284 = vadd.f32 %v112, %v283
  %285 = vmatmul.f32.gmra.mxu0 %v35
  %v286 = vpop.f32.mrf.mxu0
  %v287 = vadd.f32 %v112, %v286
  %288 = vmatmul.f32.gmra.mxu0 %v36
  %v289 = vpop.f32.mrf.mxu0
  %v290 = vadd.f32 %v112, %v289
  %291 = vmatmul.f32.gmra.mxu0 %v37
  %v292 = vpop.f32.mrf.mxu0
  %v293 = vadd.f32 %v112, %v292
  %294 = vmatmul.f32.gmra.mxu0 %v38
  %v295 = vpop.f32.mrf.mxu0
  %v296 = vadd.f32 %v112, %v295
  %297 = vmatmul.f32.gmra.mxu0 %v39
  %v298 = vpop.f32.mrf.mxu0
  %v299 = vadd.f32 %v112, %v298
  %300 = vmatmul.f32.gmra.mxu0 %v40
  %v301 = vpop.f32.mrf.mxu0
  %v302 = vadd.f32 %v112, %v301
  %303 = vmatmul.f32.gmra.mxu0 %v41
  %v304 = vpop.f32.mrf.mxu0
  %v305 = vadd.f32 %v112, %v304
  %306 = vmatmul.f32.gmra.mxu0 %v42
  %v307 = vpop.f32.mrf.mxu0
  %v308 = vadd.f32 %v112, %v307
  %309 = vmatmul.f32.gmra.mxu0 %v43
  %v310 = vpop.f32.mrf.mxu0
  %v311 = vadd.f32 %v112, %v310
  %312 = vdwg.mxu0
  %313 = vmatpush.msra.mxu0 %v107
  %314 = vmatpush.msra.mxu0 %v103
  %315 = vmatpush.msra.mxu0 %v99
  %316 = vmatpush.msra.mxu0 %v95
  %317 = vmatpush.msra.mxu0 %v91
  %318 = vmatpush.msra.mxu0 %v87
  %319 = vmatpush.msra.mxu0 %v83
  %320 = vmatpush.msra.mxu0 %v79
  %321 = vmatpush.msra.mxu0 %v75
  %322 = vmatpush.msra.mxu0 %v71
  %323 = vmatpush.msra.mxu0 %v67
  %324 = vmatpush.msra.mxu0 %v63
  %325 = vmatpush.msra.mxu0 %v59
  %326 = vmatpush.msra.mxu0 %v55
  %327 = vmatpush.msra.mxu0 %v51
  %328 = vmatpush.msra.mxu0 %v47
  %329 = vmatmul.f32.gmra.mxu0 %v28
  %v330 = vpop.f32.mrf.mxu0
  %v331 = vadd.f32 %v113, %v330
  %332 = vmatmul.f32.gmra.mxu0 %v29
  %v333 = vpop.f32.mrf.mxu0
  %v334 = vadd.f32 %v113, %v333
  %335 = vmatmul.f32.gmra.mxu0 %v30
  %v336 = vpop.f32.mrf.mxu0
  %v337 = vadd.f32 %v113, %v336
  %338 = vmatmul.f32.gmra.mxu0 %v31
  %v339 = vpop.f32.mrf.mxu0
  %v340 = vadd.f32 %v113, %v339
  %341 = vmatmul.f32.gmra.mxu0 %v32
  %v342 = vpop.f32.mrf.mxu0
  %v343 = vadd.f32 %v113, %v342
  %344 = vmatmul.f32.gmra.mxu0 %v33
  %v345 = vpop.f32.mrf.mxu0
  %v346 = vadd.f32 %v113, %v345
  %347 = vmatmul.f32.gmra.mxu0 %v34
  %v348 = vpop.f32.mrf.mxu0
  %v349 = vadd.f32 %v113, %v348
  %350 = vmatmul.f32.gmra.mxu0 %v35
  %v351 = vpop.f32.mrf.mxu0
  %v352 = vadd.f32 %v113, %v351
  %353 = vmatmul.f32.gmra.mxu0 %v36
  %v354 = vpop.f32.mrf.mxu0
  %v355 = vadd.f32 %v113, %v354
  %356 = vmatmul.f32.gmra.mxu0 %v37
  %v357 = vpop.f32.mrf.mxu0
  %v358 = vadd.f32 %v113, %v357
  %359 = vmatmul.f32.gmra.mxu0 %v38
  %v360 = vpop.f32.mrf.mxu0
  %v361 = vadd.f32 %v113, %v360
  %362 = vmatmul.f32.gmra.mxu0 %v39
  %v363 = vpop.f32.mrf.mxu0
  %v364 = vadd.f32 %v113, %v363
  %365 = vmatmul.f32.gmra.mxu0 %v40
  %v366 = vpop.f32.mrf.mxu0
  %v367 = vadd.f32 %v113, %v366
  %368 = vmatmul.f32.gmra.mxu0 %v41
  %v369 = vpop.f32.mrf.mxu0
  %v370 = vadd.f32 %v113, %v369
  %371 = vmatmul.f32.gmra.mxu0 %v42
  %v372 = vpop.f32.mrf.mxu0
  %v373 = vadd.f32 %v113, %v372
  %374 = vmatmul.f32.gmra.mxu0 %v43
  %v375 = vpop.f32.mrf.mxu0
  %v376 = vadd.f32 %v113, %v375
  %377 = vdwg.mxu0
  %378 = vst [vmem:[#allocation2] sm:$0xff] %v136
  %379 = vst [vmem:[#allocation2 + $0x8] sm:$0xff] %v201
  %380 = vst [vmem:[#allocation2 + $0x10] sm:$0xff] %v266
  %381 = vst [vmem:[#allocation2 + $0x18] sm:$0xff] %v331
  %382 = vst [vmem:[#allocation2 + $0x20] sm:$0xff] %v139
  %383 = vst [vmem:[#allocation2 + $0x28] sm:$0xff] %v204
  %384 = vst [vmem:[#allocation2 + $0x30] sm:$0xff] %v269
  %385 = vst [vmem:[#allocation2 + $0x38] sm:$0xff] %v334
  %386 = vst [vmem:[#allocation2 + $0x40] sm:$0xff] %v142
  %387 = vst [vmem:[#allocation2 + $0x48] sm:$0xff] %v207
  %388 = vst [vmem:[#allocation2 + $0x50] sm:$0xff] %v272
  %389 = vst [vmem:[#allocation2 + $0x58] sm:$0xff] %v337
  %390 = vst [vmem:[#allocation2 + $0x60] sm:$0xff] %v145
  %391 = vst [vmem:[#allocation2 + $0x68] sm:$0xff] %v210
  %392 = vst [vmem:[#allocation2 + $0x70] sm:$0xff] %v275
  %393 = vst [vmem:[#allocation2 + $0x78] sm:$0xff] %v340
  %394 = vst [vmem:[#allocation2 + $0x80] sm:$0xff] %v148
  %395 = vst [vmem:[#allocation2 + $0x88] sm:$0xff] %v213
  %396 = vst [vmem:[#allocation2 + $0x90] sm:$0xff] %v278
  %397 = vst [vmem:[#allocation2 + $0x98] sm:$0xff] %v343
  %398 = vst [vmem:[#allocation2 + $0xa0] sm:$0xff] %v151
  %399 = vst [vmem:[#allocation2 + $0xa8] sm:$0xff] %v216
  %400 = vst [vmem:[#allocation2 + $0xb0] sm:$0xff] %v281
  %401 = vst [vmem:[#allocation2 + $0xb8] sm:$0xff] %v346
  %402 = vst [vmem:[#allocation2 + $0xc0] sm:$0xff] %v154
  %403 = vst [vmem:[#allocation2 + $0xc8] sm:$0xff] %v219
  %404 = vst [vmem:[#allocation2 + $0xd0] sm:$0xff] %v284
  %405 = vst [vmem:[#allocation2 + $0xd8] sm:$0xff] %v349
  %406 = vst [vmem:[#allocation2 + $0xe0] sm:$0xff] %v157
  %407 = vst [vmem:[#allocation2 + $0xe8] sm:$0xff] %v222
  %408 = vst [vmem:[#allocation2 + $0xf0] sm:$0xff] %v287
  %409 = vst [vmem:[#allocation2 + $0xf8] sm:$0xff] %v352
  %410 = vst [vmem:[#allocation2 + $0x100] sm:$0xff] %v160
  %411 = vst [vmem:[#allocation2 + $0x108] sm:$0xff] %v225
  %412 = vst [vmem:[#allocation2 + $0x110] sm:$0xff] %v290
  %413 = vst [vmem:[#allocation2 + $0x118] sm:$0xff] %v355
  %414 = vst [vmem:[#allocation2 + $0x120] sm:$0xff] %v163
  %415 = vst [vmem:[#allocation2 + $0x128] sm:$0xff] %v228
  %416 = vst [vmem:[#allocation2 + $0x130] sm:$0xff] %v293
  %417 = vst [vmem:[#allocation2 + $0x138] sm:$0xff] %v358
  %418 = vst [vmem:[#allocation2 + $0x140] sm:$0xff] %v166
  %419 = vst [vmem:[#allocation2 + $0x148] sm:$0xff] %v231
  %420 = vst [vmem:[#allocation2 + $0x150] sm:$0xff] %v296
  %421 = vst [vmem:[#allocation2 + $0x158] sm:$0xff] %v361
  %422 = vst [vmem:[#allocation2 + $0x160] sm:$0xff] %v169
  %423 = vst [vmem:[#allocation2 + $0x168] sm:$0xff] %v234
  %424 = vst [vmem:[#allocation2 + $0x170] sm:$0xff] %v299
  %425 = vst [vmem:[#allocation2 + $0x178] sm:$0xff] %v364
  %426 = vst [vmem:[#allocation2 + $0x180] sm:$0xff] %v172
  %427 = vst [vmem:[#allocation2 + $0x188] sm:$0xff] %v237
  %428 = vst [vmem:[#allocation2 + $0x190] sm:$0xff] %v302
  %429 = vst [vmem:[#allocation2 + $0x198] sm:$0xff] %v367
  %430 = vst [vmem:[#allocation2 + $0x1a0] sm:$0xff] %v175
  %431 = vst [vmem:[#allocation2 + $0x1a8] sm:$0xff] %v240
  %432 = vst [vmem:[#allocation2 + $0x1b0] sm:$0xff] %v305
  %433 = vst [vmem:[#allocation2 + $0x1b8] sm:$0xff] %v370
  %434 = vst [vmem:[#allocation2 + $0x1c0] sm:$0xff] %v178
  %435 = vst [vmem:[#allocation2 + $0x1c8] sm:$0xff] %v243
  %436 = vst [vmem:[#allocation2 + $0x1d0] sm:$0xff] %v308
  %437 = vst [vmem:[#allocation2 + $0x1d8] sm:$0xff] %v373
  %438 = vst [vmem:[#allocation2 + $0x1e0] sm:$0xff] %v181
  %439 = vst [vmem:[#allocation2 + $0x1e8] sm:$0xff] %v246
  %440 = vst [vmem:[#allocation2 + $0x1f0] sm:$0xff] %v311
  %441 = vst [vmem:[#allocation2 + $0x1f8] sm:$0xff] %v376
  %v442 = vld [vmem:[#allocation3] sm:$0xff]
  %v443 = vld [vmem:[#allocation3 + $0x8] sm:$0xff]
  %v444 = vld [vmem:[#allocation4] sm:$0xff]
  %v445 = vld [vmem:[#allocation4 + $0x8] sm:$0xff]
  %v446 = vld [vmem:[#allocation2] ss:$8 sm:$0xf]
  %s447 = scalar_lea.vmem [#allocation2], 32
  %v448 = vld [vmem:[%s447] ss:$8 sm:$0xf]
  %s449 = scalar_lea.vmem [#allocation2], 64
  %v450 = vld [vmem:[%s449] ss:$8 sm:$0xf]
  %s451 = scalar_lea.vmem [#allocation2], 96
  %v452 = vld [vmem:[%s451] ss:$8 sm:$0xf]
  %s453 = scalar_lea.vmem [#allocation2], 128
  %v454 = vld [vmem:[%s453] ss:$8 sm:$0xf]
  %s455 = scalar_lea.vmem [#allocation2], 160
  %v456 = vld [vmem:[%s455] ss:$8 sm:$0xf]
  %s457 = scalar_lea.vmem [#allocation2], 192
  %v458 = vld [vmem:[%s457] ss:$8 sm:$0xf]
  %s459 = scalar_lea.vmem [#allocation2], 224
  %v460 = vld [vmem:[%s459] ss:$8 sm:$0xf]
  %s461 = scalar_lea.vmem [#allocation2], 256
  %v462 = vld [vmem:[%s461] ss:$8 sm:$0xf]
  %s463 = scalar_lea.vmem [#allocation2], 288
  %v464 = vld [vmem:[%s463] ss:$8 sm:$0xf]
  %s465 = scalar_lea.vmem [#allocation2], 320
  %v466 = vld [vmem:[%s465] ss:$8 sm:$0xf]
  %s467 = scalar_lea.vmem [#allocation2], 352
  %v468 = vld [vmem:[%s467] ss:$8 sm:$0xf]
  %s469 = scalar_lea.vmem [#allocation2], 384
  %v470 = vld [vmem:[%s469] ss:$8 sm:$0xf]
  %s471 = scalar_lea.vmem [#allocation2], 416
  %v472 = vld [vmem:[%s471] ss:$8 sm:$0xf]
  %s473 = scalar_lea.vmem [#allocation2], 448
  %v474 = vld [vmem:[%s473] ss:$8 sm:$0xf]
  %s475 = scalar_lea.vmem [#allocation2], 480
  %v476 = vld [vmem:[%s475] ss:$8 sm:$0xf]
  %v477 = vld [vmem:[%s2] sm:$0xff]
  %v478 = vld [vmem:[%s2 + $0x8] sm:$0xff]
  %v479 = vld [vmem:[%s2 + $0x10] sm:$0xff]
  %v480 = vld [vmem:[%s2 + $0x18] sm:$0xff]
  %v481 = vld [vmem:[%s2 + $0x20] sm:$0xff]
  %v482 = vld [vmem:[%s2 + $0x28] sm:$0xff]
  %v483 = vld [vmem:[%s2 + $0x30] sm:$0xff]
  %v484 = vld [vmem:[%s2 + $0x38] sm:$0xff]
  %v485 = vld [vmem:[%s2 + $0x40] sm:$0xff]
  %v486 = vld [vmem:[%s2 + $0x48] sm:$0xff]
  %v487 = vld [vmem:[%s2 + $0x50] sm:$0xff]
  %v488 = vld [vmem:[%s2 + $0x58] sm:$0xff]
  %v489 = vld [vmem:[%s2 + $0x60] sm:$0xff]
  %v490 = vld [vmem:[%s2 + $0x68] sm:$0xff]
  %v491 = vld [vmem:[%s2 + $0x70] sm:$0xff]
  %v492 = vld [vmem:[%s2 + $0x78] sm:$0xff]
  %v493 = vld [vmem:[%s2 + $0x80] sm:$0xff]
  %v494 = vld [vmem:[%s2 + $0x88] sm:$0xff]
  %v495 = vld [vmem:[%s2 + $0x90] sm:$0xff]
  %v496 = vld [vmem:[%s2 + $0x98] sm:$0xff]
  %v497 = vld [vmem:[%s2 + $0xa0] sm:$0xff]
  %v498 = vld [vmem:[%s2 + $0xa8] sm:$0xff]
  %v499 = vld [vmem:[%s2 + $0xb0] sm:$0xff]
  %v500 = vld [vmem:[%s2 + $0xb8] sm:$0xff]
  %v501 = vld [vmem:[%s2 + $0xc0] sm:$0xff]
  %v502 = vld [vmem:[%s2 + $0xc8] sm:$0xff]
  %v503 = vld [vmem:[%s2 + $0xd0] sm:$0xff]
  %v504 = vld [vmem:[%s2 + $0xd8] sm:$0xff]
  %v505 = vld [vmem:[%s2 + $0xe0] sm:$0xff]
  %v506 = vld [vmem:[%s2 + $0xe8] sm:$0xff]
  %v507 = vld [vmem:[%s2 + $0xf0] sm:$0xff]
  %v508 = vld [vmem:[%s2 + $0xf8] sm:$0xff]
  %v509 = vld [vmem:[%s2 + $0x100] sm:$0xff]
  %v510 = vld [vmem:[%s2 + $0x108] sm:$0xff]
  %v511 = vld [vmem:[%s2 + $0x110] sm:$0xff]
  %v512 = vld [vmem:[%s2 + $0x118] sm:$0xff]
  %v513 = vld [vmem:[%s2 + $0x120] sm:$0xff]
  %v514 = vld [vmem:[%s2 + $0x128] sm:$0xff]
  %v515 = vld [vmem:[%s2 + $0x130] sm:$0xff]
  %v516 = vld [vmem:[%s2 + $0x138] sm:$0xff]
  %v517 = vld [vmem:[%s2 + $0x140] sm:$0xff]
  %v518 = vld [vmem:[%s2 + $0x148] sm:$0xff]
  %v519 = vld [vmem:[%s2 + $0x150] sm:$0xff]
  %v520 = vld [vmem:[%s2 + $0x158] sm:$0xff]
  %v521 = vld [vmem:[%s2 + $0x160] sm:$0xff]
  %v522 = vld [vmem:[%s2 + $0x168] sm:$0xff]
  %v523 = vld [vmem:[%s2 + $0x170] sm:$0xff]
  %v524 = vld [vmem:[%s2 + $0x178] sm:$0xff]
  %v525 = vld [vmem:[%s2 + $0x180] sm:$0xff]
  %v526 = vld [vmem:[%s2 + $0x188] sm:$0xff]
  %v527 = vld [vmem:[%s2 + $0x190] sm:$0xff]
  %v528 = vld [vmem:[%s2 + $0x198] sm:$0xff]
  %v529 = vld [vmem:[%s2 + $0x1a0] sm:$0xff]
  %v530 = vld [vmem:[%s2 + $0x1a8] sm:$0xff]
  %v531 = vld [vmem:[%s2 + $0x1b0] sm:$0xff]
  %v532 = vld [vmem:[%s2 + $0x1b8] sm:$0xff]
  %v533 = vld [vmem:[%s2 + $0x1c0] sm:$0xff]
  %v534 = vld [vmem:[%s2 + $0x1c8] sm:$0xff]
  %v535 = vld [vmem:[%s2 + $0x1d0] sm:$0xff]
  %v536 = vld [vmem:[%s2 + $0x1d8] sm:$0xff]
  %v537 = vld [vmem:[%s2 + $0x1e0] sm:$0xff]
  %v538 = vld [vmem:[%s2 + $0x1e8] sm:$0xff]
  %v539 = vld [vmem:[%s2 + $0x1f0] sm:$0xff]
  %v540 = vld [vmem:[%s2 + $0x1f8] sm:$0xff]
  %541 = vmatpush.msra.mxu0 %v537
  %542 = vmatpush.msra.mxu0 %v533
  %543 = vmatpush.msra.mxu0 %v529
  %544 = vmatpush.msra.mxu0 %v525
  %545 = vmatpush.msra.mxu0 %v521
  %546 = vmatpush.msra.mxu0 %v517
  %547 = vmatpush.msra.mxu0 %v513
  %548 = vmatpush.msra.mxu0 %v509
  %549 = vmatpush.msra.mxu0 %v505
  %550 = vmatpush.msra.mxu0 %v501
  %551 = vmatpush.msra.mxu0 %v497
  %552 = vmatpush.msra.mxu0 %v493
  %553 = vmatpush.msra.mxu0 %v489
  %554 = vmatpush.msra.mxu0 %v485
  %555 = vmatpush.msra.mxu0 %v481
  %556 = vmatpush.msra.mxu0 %v477
  %557 = vmatmul.f32.gmra.mxu0 %v442
  %v558 = vpop.f32.mrf.mxu0
  %v559 = vadd.f32 0.0, %v558
  %560 = vmatmul.f32.gmra.mxu0 %v443
  %v561 = vpop.f32.mrf.mxu0
  %v562 = vadd.f32 0.0, %v561
  %563 = vdwg.mxu0
  %564 = vmatpush.msra.mxu0 %v538
  %565 = vmatpush.msra.mxu0 %v534
  %566 = vmatpush.msra.mxu0 %v530
  %567 = vmatpush.msra.mxu0 %v526
  %568 = vmatpush.msra.mxu0 %v522
  %569 = vmatpush.msra.mxu0 %v518
  %570 = vmatpush.msra.mxu0 %v514
  %571 = vmatpush.msra.mxu0 %v510
  %572 = vmatpush.msra.mxu0 %v506
  %573 = vmatpush.msra.mxu0 %v502
  %574 = vmatpush.msra.mxu0 %v498
  %575 = vmatpush.msra.mxu0 %v494
  %576 = vmatpush.msra.mxu0 %v490
  %577 = vmatpush.msra.mxu0 %v486
  %578 = vmatpush.msra.mxu0 %v482
  %579 = vmatpush.msra.mxu0 %v478
  %580 = vmatmul.f32.gmra.mxu0 %v442
  %v581 = vpop.f32.mrf.mxu0
  %v582 = vadd.f32 0.0, %v581
  %583 = vmatmul.f32.gmra.mxu0 %v443
  %v584 = vpop.f32.mrf.mxu0
  %v585 = vadd.f32 0.0, %v584
  %586 = vdwg.mxu0
  %587 = vmatpush.msra.mxu0 %v539
  %588 = vmatpush.msra.mxu0 %v535
  %589 = vmatpush.msra.mxu0 %v531
  %590 = vmatpush.msra.mxu0 %v527
  %591 = vmatpush.msra.mxu0 %v523
  %592 = vmatpush.msra.mxu0 %v519
  %593 = vmatpush.msra.mxu0 %v515
  %594 = vmatpush.msra.mxu0 %v511
  %595 = vmatpush.msra.mxu0 %v507
  %596 = vmatpush.msra.mxu0 %v503
  %597 = vmatpush.msra.mxu0 %v499
  %598 = vmatpush.msra.mxu0 %v495
  %599 = vmatpush.msra.mxu0 %v491
  %600 = vmatpush.msra.mxu0 %v487
  %601 = vmatpush.msra.mxu0 %v483
  %602 = vmatpush.msra.mxu0 %v479
  %603 = vmatmul.f32.gmra.mxu0 %v442
  %v604 = vpop.f32.mrf.mxu0
  %v605 = vadd.f32 0.0, %v604
  %606 = vmatmul.f32.gmra.mxu0 %v443
  %v607 = vpop.f32.mrf.mxu0
  %v608 = vadd.f32 0.0, %v607
  %609 = vdwg.mxu0
  %610 = vmatpush.msra.mxu0 %v540
  %611 = vmatpush.msra.mxu0 %v536
  %612 = vmatpush.msra.mxu0 %v532
  %613 = vmatpush.msra.mxu0 %v528
  %614 = vmatpush.msra.mxu0 %v524
  %615 = vmatpush.msra.mxu0 %v520
  %616 = vmatpush.msra.mxu0 %v516
  %617 = vmatpush.msra.mxu0 %v512
  %618 = vmatpush.msra.mxu0 %v508
  %619 = vmatpush.msra.mxu0 %v504
  %620 = vmatpush.msra.mxu0 %v500
  %621 = vmatpush.msra.mxu0 %v496
  %622 = vmatpush.msra.mxu0 %v492
  %623 = vmatpush.msra.mxu0 %v488
  %624 = vmatpush.msra.mxu0 %v484
  %625 = vmatpush.msra.mxu0 %v480
  %626 = vmatmul.f32.gmra.mxu0 %v442
  %v627 = vpop.f32.mrf.mxu0
  %v628 = vadd.f32 0.0, %v627
  %629 = vmatmul.f32.gmra.mxu0 %v443
  %v630 = vpop.f32.mrf.mxu0
  %v631 = vadd.f32 0.0, %v630
  %632 = vdwg.mxu0
  %v641 = vrot.slane %v582, 7
  %v642 = vrot.slane %v605, 6
  %v643 = vrot.slane %v628, 5
  %v644 = vrot.slane %v585, 7
  %v645 = vrot.slane %v608, 6
  %v646 = vrot.slane %v631, 5
  %vm647 = vcmask 1040384
  %v648 = vsel %vm647, %v559, %v641
  %vm649 = vcmask 1042434
  %v650 = vsel %vm649, %v642, %v643
  %vm651 = vcmask 1041408
  %v652 = vsel %vm651, %v648, %v650
  %vm653 = vcmask 1041409
  %v654 = vsel %vm653, %v559, %v641
  %vm655 = vcmask 1043459
  %v656 = vsel %vm655, %v642, %v643
  %vm657 = vcmask 1042433
  %v658 = vsel %vm657, %v654, %v656
  %v659 = vrot.slane %v658, 1
  %v660 = vsel %vm649, %v559, %v641
  %vm661 = vcmask 1044484
  %v662 = vsel %vm661, %v642, %v643
  %vm663 = vcmask 1043458
  %v664 = vsel %vm663, %v660, %v662
  %v665 = vrot.slane %v664, 2
  %v666 = vsel %vm655, %v559, %v641
  %vm667 = vcmask 1045509
  %v668 = vsel %vm667, %v642, %v643
  %vm669 = vcmask 1044483
  %v670 = vsel %vm669, %v666, %v668
  %v671 = vrot.slane %v670, 3
  %v672 = vsel %vm661, %v559, %v641
  %vm673 = vcmask 1046534
  %v674 = vsel %vm673, %v642, %v643
  %vm675 = vcmask 1045508
  %v676 = vsel %vm675, %v672, %v674
  %v677 = vrot.slane %v676, 4
  %v678 = vsel %vm667, %v559, %v641
  %vm679 = vcmask 1046528
  %v680 = vsel %vm679, %v643, %v642
  %vm681 = vcmask 1046533
  %v682 = vsel %vm681, %v678, %v680
  %v683 = vrot.slane %v682, 5
  %v684 = vsel %vm673, %v559, %v641
  %v685 = vsel %vm647, %v642, %v643
  %vm686 = vcmask 1045504
  %v687 = vsel %vm686, %v685, %v684
  %v688 = vrot.slane %v687, 6
  %v689 = vsel %vm679, %v641, %v559
  %v690 = vsel %vm653, %v642, %v643
  %vm691 = vcmask 1046529
  %v692 = vsel %vm691, %v690, %v689
  %v693 = vrot.slane %v692, 7
  %v694 = vsel %vm647, %v562, %v644
  %v695 = vsel %vm649, %v645, %v646
  %v696 = vsel %vm651, %v694, %v695
  %v697 = vsel %vm653, %v562, %v644
  %v698 = vsel %vm655, %v645, %v646
  %v699 = vsel %vm657, %v697, %v698
  %v700 = vrot.slane %v699, 1
  %v701 = vsel %vm649, %v562, %v644
  %v702 = vsel %vm661, %v645, %v646
  %v703 = vsel %vm663, %v701, %v702
  %v704 = vrot.slane %v703, 2
  %v705 = vsel %vm655, %v562, %v644
  %v706 = vsel %vm667, %v645, %v646
  %v707 = vsel %vm669, %v705, %v706
  %v708 = vrot.slane %v707, 3
  %v709 = vsel %vm661, %v562, %v644
  %v710 = vsel %vm673, %v645, %v646
  %v711 = vsel %vm675, %v709, %v710
  %v712 = vrot.slane %v711, 4
  %v713 = vsel %vm667, %v562, %v644
  %v714 = vsel %vm679, %v646, %v645
  %v715 = vsel %vm681, %v713, %v714
  %v716 = vrot.slane %v715, 5
  %v717 = vsel %vm673, %v562, %v644
  %v718 = vsel %vm647, %v645, %v646
  %v719 = vsel %vm686, %v718, %v717
  %v720 = vrot.slane %v719, 6
  %v721 = vsel %vm679, %v644, %v562
  %v722 = vsel %vm653, %v645, %v646
  %v723 = vsel %vm691, %v722, %v721
  %v724 = vrot.slane %v723, 7
  %v741 = vadd.f32 %v446, %v652
  %v742 = vadd.f32 %v448, %v659
  %v743 = vadd.f32 %v450, %v665
  %v744 = vadd.f32 %v452, %v671
  %v745 = vadd.f32 %v454, %v677
  %v746 = vadd.f32 %v456, %v683
  %v747 = vadd.f32 %v458, %v688
  %v748 = vadd.f32 %v460, %v693
  %v749 = vadd.f32 %v462, %v696
  %v750 = vadd.f32 %v464, %v700
  %v751 = vadd.f32 %v466, %v704
  %v752 = vadd.f32 %v468, %v708
  %v753 = vadd.f32 %v470, %v712
  %v754 = vadd.f32 %v472, %v716
  %v755 = vadd.f32 %v474, %v720
  %v756 = vadd.f32 %v476, %v724
  %v757 = vxor.u32 %v741, 2147483648
  %v758 = vxor.u32 %v742, 2147483648
  %v759 = vxor.u32 %v743, 2147483648
  %v760 = vxor.u32 %v744, 2147483648
  %v761 = vxor.u32 %v745, 2147483648
  %v762 = vxor.u32 %v746, 2147483648
  %v763 = vxor.u32 %v747, 2147483648
  %v764 = vxor.u32 %v748, 2147483648
  %v765 = vxor.u32 %v749, 2147483648
  %v766 = vxor.u32 %v750, 2147483648
  %v767 = vxor.u32 %v751, 2147483648
  %v768 = vxor.u32 %v752, 2147483648
  %v769 = vxor.u32 %v753, 2147483648
  %v770 = vxor.u32 %v754, 2147483648
  %v771 = vxor.u32 %v755, 2147483648
  %v772 = vxor.u32 %v756, 2147483648
  %v773 = vmul.f32 %v757, 1.442695
  %v774 = vpow.pop %v773
  %v775 = vmul.f32 %v758, 1.442695
  %v776 = vpow.pop %v775
  %v777 = vmul.f32 %v759, 1.442695
  %v778 = vpow.pop %v777
  %v779 = vmul.f32 %v760, 1.442695
  %v780 = vpow.pop %v779
  %v781 = vmul.f32 %v761, 1.442695
  %v782 = vpow.pop %v781
  %v783 = vmul.f32 %v762, 1.442695
  %v784 = vpow.pop %v783
  %v785 = vmul.f32 %v763, 1.442695
  %v786 = vpow.pop %v785
  %v787 = vmul.f32 %v764, 1.442695
  %v788 = vpow.pop %v787
  %v789 = vmul.f32 %v765, 1.442695
  %v790 = vpow.pop %v789
  %v791 = vmul.f32 %v766, 1.442695
  %v792 = vpow.pop %v791
  %v793 = vmul.f32 %v767, 1.442695
  %v794 = vpow.pop %v793
  %v795 = vmul.f32 %v768, 1.442695
  %v796 = vpow.pop %v795
  %v797 = vmul.f32 %v769, 1.442695
  %v798 = vpow.pop %v797
  %v799 = vmul.f32 %v770, 1.442695
  %v800 = vpow.pop %v799
  %v801 = vmul.f32 %v771, 1.442695
  %v802 = vpow.pop %v801
  %v803 = vmul.f32 %v772, 1.442695
  %v804 = vpow.pop %v803
  %v805 = vadd.f32 %v774, 1.0
  %v806 = vadd.f32 %v776, 1.0
  %v807 = vadd.f32 %v778, 1.0
  %v808 = vadd.f32 %v780, 1.0
  %v809 = vadd.f32 %v782, 1.0
  %v810 = vadd.f32 %v784, 1.0
  %v811 = vadd.f32 %v786, 1.0
  %v812 = vadd.f32 %v788, 1.0
  %v813 = vadd.f32 %v790, 1.0
  %v814 = vadd.f32 %v792, 1.0
  %v815 = vadd.f32 %v794, 1.0
  %v816 = vadd.f32 %v796, 1.0
  %v817 = vadd.f32 %v798, 1.0
  %v818 = vadd.f32 %v800, 1.0
  %v819 = vadd.f32 %v802, 1.0
  %v820 = vadd.f32 %v804, 1.0
  %v821 = vrcp.pop %v805
  %v822 = vmul.f32 %v805, %v821
  %v823 = vsub.f32 1.0, %v822
  %v824 = vmul.f32 %v821, %v823
  %v825 = vadd.f32 %v821, %v824
  %vm826 = vweird.f32 %v805
  %vm827 = vweird.f32 %v821
  %vm828 = vmor %vm826, %vm827
  %v829 = vsel %vm828, %v821, %v825
  %v830 = vand.u32 2147483647, %v805
  %vm831 = vcmp.eq.f32.partialorder %v830, 8.507059e+37
  %v832 = vand.u32 %v805, 2147483648
  %v833 = vor.u32 1.1754944e-38, %v832
  %v834 = vsel %vm831, %v833, %v829
  %v835 = vmul.f32 1.0, %v834
  %v836 = vrcp.pop %v806
  %v837 = vmul.f32 %v806, %v836
  %v838 = vsub.f32 1.0, %v837
  %v839 = vmul.f32 %v836, %v838
  %v840 = vadd.f32 %v836, %v839
  %vm841 = vweird.f32 %v806
  %vm842 = vweird.f32 %v836
  %vm843 = vmor %vm841, %vm842
  %v844 = vsel %vm843, %v836, %v840
  %v845 = vand.u32 2147483647, %v806
  %vm846 = vcmp.eq.f32.partialorder %v845, 8.507059e+37
  %v847 = vand.u32 %v806, 2147483648
  %v848 = vor.u32 1.1754944e-38, %v847
  %v849 = vsel %vm846, %v848, %v844
  %v850 = vmul.f32 1.0, %v849
  %v851 = vrcp.pop %v807
  %v852 = vmul.f32 %v807, %v851
  %v853 = vsub.f32 1.0, %v852
  %v854 = vmul.f32 %v851, %v853
  %v855 = vadd.f32 %v851, %v854
  %vm856 = vweird.f32 %v807
  %vm857 = vweird.f32 %v851
  %vm858 = vmor %vm856, %vm857
  %v859 = vsel %vm858, %v851, %v855
  %v860 = vand.u32 2147483647, %v807
  %vm861 = vcmp.eq.f32.partialorder %v860, 8.507059e+37
  %v862 = vand.u32 %v807, 2147483648
  %v863 = vor.u32 1.1754944e-38, %v862
  %v864 = vsel %vm861, %v863, %v859
  %v865 = vmul.f32 1.0, %v864
  %v866 = vrcp.pop %v808
  %v867 = vmul.f32 %v808, %v866
  %v868 = vsub.f32 1.0, %v867
  %v869 = vmul.f32 %v866, %v868
  %v870 = vadd.f32 %v866, %v869
  %vm871 = vweird.f32 %v808
  %vm872 = vweird.f32 %v866
  %vm873 = vmor %vm871, %vm872
  %v874 = vsel %vm873, %v866, %v870
  %v875 = vand.u32 2147483647, %v808
  %vm876 = vcmp.eq.f32.partialorder %v875, 8.507059e+37
  %v877 = vand.u32 %v808, 2147483648
  %v878 = vor.u32 1.1754944e-38, %v877
  %v879 = vsel %vm876, %v878, %v874
  %v880 = vmul.f32 1.0, %v879
  %v881 = vrcp.pop %v809
  %v882 = vmul.f32 %v809, %v881
  %v883 = vsub.f32 1.0, %v882
  %v884 = vmul.f32 %v881, %v883
  %v885 = vadd.f32 %v881, %v884
  %vm886 = vweird.f32 %v809
  %vm887 = vweird.f32 %v881
  %vm888 = vmor %vm886, %vm887
  %v889 = vsel %vm888, %v881, %v885
  %v890 = vand.u32 2147483647, %v809
  %vm891 = vcmp.eq.f32.partialorder %v890, 8.507059e+37
  %v892 = vand.u32 %v809, 2147483648
  %v893 = vor.u32 1.1754944e-38, %v892
  %v894 = vsel %vm891, %v893, %v889
  %v895 = vmul.f32 1.0, %v894
  %v896 = vrcp.pop %v810
  %v897 = vmul.f32 %v810, %v896
  %v898 = vsub.f32 1.0, %v897
  %v899 = vmul.f32 %v896, %v898
  %v900 = vadd.f32 %v896, %v899
  %vm901 = vweird.f32 %v810
  %vm902 = vweird.f32 %v896
  %vm903 = vmor %vm901, %vm902
  %v904 = vsel %vm903, %v896, %v900
  %v905 = vand.u32 2147483647, %v810
  %vm906 = vcmp.eq.f32.partialorder %v905, 8.507059e+37
  %v907 = vand.u32 %v810, 2147483648
  %v908 = vor.u32 1.1754944e-38, %v907
  %v909 = vsel %vm906, %v908, %v904
  %v910 = vmul.f32 1.0, %v909
  %v911 = vrcp.pop %v811
  %v912 = vmul.f32 %v811, %v911
  %v913 = vsub.f32 1.0, %v912
  %v914 = vmul.f32 %v911, %v913
  %v915 = vadd.f32 %v911, %v914
  %vm916 = vweird.f32 %v811
  %vm917 = vweird.f32 %v911
  %vm918 = vmor %vm916, %vm917
  %v919 = vsel %vm918, %v911, %v915
  %v920 = vand.u32 2147483647, %v811
  %vm921 = vcmp.eq.f32.partialorder %v920, 8.507059e+37
  %v922 = vand.u32 %v811, 2147483648
  %v923 = vor.u32 1.1754944e-38, %v922
  %v924 = vsel %vm921, %v923, %v919
  %v925 = vmul.f32 1.0, %v924
  %v926 = vrcp.pop %v812
  %v927 = vmul.f32 %v812, %v926
  %v928 = vsub.f32 1.0, %v927
  %v929 = vmul.f32 %v926, %v928
  %v930 = vadd.f32 %v926, %v929
  %vm931 = vweird.f32 %v812
  %vm932 = vweird.f32 %v926
  %vm933 = vmor %vm931, %vm932
  %v934 = vsel %vm933, %v926, %v930
  %v935 = vand.u32 2147483647, %v812
  %vm936 = vcmp.eq.f32.partialorder %v935, 8.507059e+37
  %v937 = vand.u32 %v812, 2147483648
  %v938 = vor.u32 1.1754944e-38, %v937
  %v939 = vsel %vm936, %v938, %v934
  %v940 = vmul.f32 1.0, %v939
  %v941 = vrcp.pop %v813
  %v942 = vmul.f32 %v813, %v941
  %v943 = vsub.f32 1.0, %v942
  %v944 = vmul.f32 %v941, %v943
  %v945 = vadd.f32 %v941, %v944
  %vm946 = vweird.f32 %v813
  %vm947 = vweird.f32 %v941
  %vm948 = vmor %vm946, %vm947
  %v949 = vsel %vm948, %v941, %v945
  %v950 = vand.u32 2147483647, %v813
  %vm951 = vcmp.eq.f32.partialorder %v950, 8.507059e+37
  %v952 = vand.u32 %v813, 2147483648
  %v953 = vor.u32 1.1754944e-38, %v952
  %v954 = vsel %vm951, %v953, %v949
  %v955 = vmul.f32 1.0, %v954
  %v956 = vrcp.pop %v814
  %v957 = vmul.f32 %v814, %v956
  %v958 = vsub.f32 1.0, %v957
  %v959 = vmul.f32 %v956, %v958
  %v960 = vadd.f32 %v956, %v959
  %vm961 = vweird.f32 %v814
  %vm962 = vweird.f32 %v956
  %vm963 = vmor %vm961, %vm962
  %v964 = vsel %vm963, %v956, %v960
  %v965 = vand.u32 2147483647, %v814
  %vm966 = vcmp.eq.f32.partialorder %v965, 8.507059e+37
  %v967 = vand.u32 %v814, 2147483648
  %v968 = vor.u32 1.1754944e-38, %v967
  %v969 = vsel %vm966, %v968, %v964
  %v970 = vmul.f32 1.0, %v969
  %v971 = vrcp.pop %v815
  %v972 = vmul.f32 %v815, %v971
  %v973 = vsub.f32 1.0, %v972
  %v974 = vmul.f32 %v971, %v973
  %v975 = vadd.f32 %v971, %v974
  %vm976 = vweird.f32 %v815
  %vm977 = vweird.f32 %v971
  %vm978 = vmor %vm976, %vm977
  %v979 = vsel %vm978, %v971, %v975
  %v980 = vand.u32 2147483647, %v815
  %vm981 = vcmp.eq.f32.partialorder %v980, 8.507059e+37
  %v982 = vand.u32 %v815, 2147483648
  %v983 = vor.u32 1.1754944e-38, %v982
  %v984 = vsel %vm981, %v983, %v979
  %v985 = vmul.f32 1.0, %v984
  %v986 = vrcp.pop %v816
  %v987 = vmul.f32 %v816, %v986
  %v988 = vsub.f32 1.0, %v987
  %v989 = vmul.f32 %v986, %v988
  %v990 = vadd.f32 %v986, %v989
  %vm991 = vweird.f32 %v816
  %vm992 = vweird.f32 %v986
  %vm993 = vmor %vm991, %vm992
  %v994 = vsel %vm993, %v986, %v990
  %v995 = vand.u32 2147483647, %v816
  %vm996 = vcmp.eq.f32.partialorder %v995, 8.507059e+37
  %v997 = vand.u32 %v816, 2147483648
  %v998 = vor.u32 1.1754944e-38, %v997
  %v999 = vsel %vm996, %v998, %v994
  %v1000 = vmul.f32 1.0, %v999
  %v1001 = vrcp.pop %v817
  %v1002 = vmul.f32 %v817, %v1001
  %v1003 = vsub.f32 1.0, %v1002
  %v1004 = vmul.f32 %v1001, %v1003
  %v1005 = vadd.f32 %v1001, %v1004
  %vm1006 = vweird.f32 %v817
  %vm1007 = vweird.f32 %v1001
  %vm1008 = vmor %vm1006, %vm1007
  %v1009 = vsel %vm1008, %v1001, %v1005
  %v1010 = vand.u32 2147483647, %v817
  %vm1011 = vcmp.eq.f32.partialorder %v1010, 8.507059e+37
  %v1012 = vand.u32 %v817, 2147483648
  %v1013 = vor.u32 1.1754944e-38, %v1012
  %v1014 = vsel %vm1011, %v1013, %v1009
  %v1015 = vmul.f32 1.0, %v1014
  %v1016 = vrcp.pop %v818
  %v1017 = vmul.f32 %v818, %v1016
  %v1018 = vsub.f32 1.0, %v1017
  %v1019 = vmul.f32 %v1016, %v1018
  %v1020 = vadd.f32 %v1016, %v1019
  %vm1021 = vweird.f32 %v818
  %vm1022 = vweird.f32 %v1016
  %vm1023 = vmor %vm1021, %vm1022
  %v1024 = vsel %vm1023, %v1016, %v1020
  %v1025 = vand.u32 2147483647, %v818
  %vm1026 = vcmp.eq.f32.partialorder %v1025, 8.507059e+37
  %v1027 = vand.u32 %v818, 2147483648
  %v1028 = vor.u32 1.1754944e-38, %v1027
  %v1029 = vsel %vm1026, %v1028, %v1024
  %v1030 = vmul.f32 1.0, %v1029
  %v1031 = vrcp.pop %v819
  %v1032 = vmul.f32 %v819, %v1031
  %v1033 = vsub.f32 1.0, %v1032
  %v1034 = vmul.f32 %v1031, %v1033
  %v1035 = vadd.f32 %v1031, %v1034
  %vm1036 = vweird.f32 %v819
  %vm1037 = vweird.f32 %v1031
  %vm1038 = vmor %vm1036, %vm1037
  %v1039 = vsel %vm1038, %v1031, %v1035
  %v1040 = vand.u32 2147483647, %v819
  %vm1041 = vcmp.eq.f32.partialorder %v1040, 8.507059e+37
  %v1042 = vand.u32 %v819, 2147483648
  %v1043 = vor.u32 1.1754944e-38, %v1042
  %v1044 = vsel %vm1041, %v1043, %v1039
  %v1045 = vmul.f32 1.0, %v1044
  %v1046 = vrcp.pop %v820
  %v1047 = vmul.f32 %v820, %v1046
  %v1048 = vsub.f32 1.0, %v1047
  %v1049 = vmul.f32 %v1046, %v1048
  %v1050 = vadd.f32 %v1046, %v1049
  %vm1051 = vweird.f32 %v820
  %vm1052 = vweird.f32 %v1046
  %vm1053 = vmor %vm1051, %vm1052
  %v1054 = vsel %vm1053, %v1046, %v1050
  %v1055 = vand.u32 2147483647, %v820
  %vm1056 = vcmp.eq.f32.partialorder %v1055, 8.507059e+37
  %v1057 = vand.u32 %v820, 2147483648
  %v1058 = vor.u32 1.1754944e-38, %v1057
  %v1059 = vsel %vm1056, %v1058, %v1054
  %v1060 = vmul.f32 1.0, %v1059
  %v1077 = vrot.slane %v741, 1
  %v1078 = vrot.slane %v742, 1
  %v1079 = vrot.slane %v743, 1
  %v1080 = vrot.slane %v744, 1
  %v1081 = vrot.slane %v745, 1
  %v1082 = vrot.slane %v746, 1
  %v1083 = vrot.slane %v747, 1
  %v1084 = vrot.slane %v748, 1
  %v1085 = vrot.slane %v749, 1
  %v1086 = vrot.slane %v750, 1
  %v1087 = vrot.slane %v751, 1
  %v1088 = vrot.slane %v752, 1
  %v1089 = vrot.slane %v753, 1
  %v1090 = vrot.slane %v754, 1
  %v1091 = vrot.slane %v755, 1
  %v1092 = vrot.slane %v756, 1
  %v1109 = vxor.u32 %v1077, 2147483648
  %v1110 = vxor.u32 %v1078, 2147483648
  %v1111 = vxor.u32 %v1079, 2147483648
  %v1112 = vxor.u32 %v1080, 2147483648
  %v1113 = vxor.u32 %v1081, 2147483648
  %v1114 = vxor.u32 %v1082, 2147483648
  %v1115 = vxor.u32 %v1083, 2147483648
  %v1116 = vxor.u32 %v1084, 2147483648
  %v1117 = vxor.u32 %v1085, 2147483648
  %v1118 = vxor.u32 %v1086, 2147483648
  %v1119 = vxor.u32 %v1087, 2147483648
  %v1120 = vxor.u32 %v1088, 2147483648
  %v1121 = vxor.u32 %v1089, 2147483648
  %v1122 = vxor.u32 %v1090, 2147483648
  %v1123 = vxor.u32 %v1091, 2147483648
  %v1124 = vxor.u32 %v1092, 2147483648
  %v1125 = vmul.f32 %v1109, 1.442695
  %v1126 = vpow.pop %v1125
  %v1127 = vmul.f32 %v1110, 1.442695
  %v1128 = vpow.pop %v1127
  %v1129 = vmul.f32 %v1111, 1.442695
  %v1130 = vpow.pop %v1129
  %v1131 = vmul.f32 %v1112, 1.442695
  %v1132 = vpow.pop %v1131
  %v1133 = vmul.f32 %v1113, 1.442695
  %v1134 = vpow.pop %v1133
  %v1135 = vmul.f32 %v1114, 1.442695
  %v1136 = vpow.pop %v1135
  %v1137 = vmul.f32 %v1115, 1.442695
  %v1138 = vpow.pop %v1137
  %v1139 = vmul.f32 %v1116, 1.442695
  %v1140 = vpow.pop %v1139
  %v1141 = vmul.f32 %v1117, 1.442695
  %v1142 = vpow.pop %v1141
  %v1143 = vmul.f32 %v1118, 1.442695
  %v1144 = vpow.pop %v1143
  %v1145 = vmul.f32 %v1119, 1.442695
  %v1146 = vpow.pop %v1145
  %v1147 = vmul.f32 %v1120, 1.442695
  %v1148 = vpow.pop %v1147
  %v1149 = vmul.f32 %v1121, 1.442695
  %v1150 = vpow.pop %v1149
  %v1151 = vmul.f32 %v1122, 1.442695
  %v1152 = vpow.pop %v1151
  %v1153 = vmul.f32 %v1123, 1.442695
  %v1154 = vpow.pop %v1153
  %v1155 = vmul.f32 %v1124, 1.442695
  %v1156 = vpow.pop %v1155
  %v1157 = vadd.f32 %v1126, 1.0
  %v1158 = vadd.f32 %v1128, 1.0
  %v1159 = vadd.f32 %v1130, 1.0
  %v1160 = vadd.f32 %v1132, 1.0
  %v1161 = vadd.f32 %v1134, 1.0
  %v1162 = vadd.f32 %v1136, 1.0
  %v1163 = vadd.f32 %v1138, 1.0
  %v1164 = vadd.f32 %v1140, 1.0
  %v1165 = vadd.f32 %v1142, 1.0
  %v1166 = vadd.f32 %v1144, 1.0
  %v1167 = vadd.f32 %v1146, 1.0
  %v1168 = vadd.f32 %v1148, 1.0
  %v1169 = vadd.f32 %v1150, 1.0
  %v1170 = vadd.f32 %v1152, 1.0
  %v1171 = vadd.f32 %v1154, 1.0
  %v1172 = vadd.f32 %v1156, 1.0
  %v1173 = vrcp.pop %v1157
  %v1174 = vmul.f32 %v1157, %v1173
  %v1175 = vsub.f32 1.0, %v1174
  %v1176 = vmul.f32 %v1173, %v1175
  %v1177 = vadd.f32 %v1173, %v1176
  %vm1178 = vweird.f32 %v1157
  %vm1179 = vweird.f32 %v1173
  %vm1180 = vmor %vm1178, %vm1179
  %v1181 = vsel %vm1180, %v1173, %v1177
  %v1182 = vand.u32 2147483647, %v1157
  %vm1183 = vcmp.eq.f32.partialorder %v1182, 8.507059e+37
  %v1184 = vand.u32 %v1157, 2147483648
  %v1185 = vor.u32 1.1754944e-38, %v1184
  %v1186 = vsel %vm1183, %v1185, %v1181
  %v1187 = vmul.f32 1.0, %v1186
  %v1188 = vrcp.pop %v1158
  %v1189 = vmul.f32 %v1158, %v1188
  %v1190 = vsub.f32 1.0, %v1189
  %v1191 = vmul.f32 %v1188, %v1190
  %v1192 = vadd.f32 %v1188, %v1191
  %vm1193 = vweird.f32 %v1158
  %vm1194 = vweird.f32 %v1188
  %vm1195 = vmor %vm1193, %vm1194
  %v1196 = vsel %vm1195, %v1188, %v1192
  %v1197 = vand.u32 2147483647, %v1158
  %vm1198 = vcmp.eq.f32.partialorder %v1197, 8.507059e+37
  %v1199 = vand.u32 %v1158, 2147483648
  %v1200 = vor.u32 1.1754944e-38, %v1199
  %v1201 = vsel %vm1198, %v1200, %v1196
  %v1202 = vmul.f32 1.0, %v1201
  %v1203 = vrcp.pop %v1159
  %v1204 = vmul.f32 %v1159, %v1203
  %v1205 = vsub.f32 1.0, %v1204
  %v1206 = vmul.f32 %v1203, %v1205
  %v1207 = vadd.f32 %v1203, %v1206
  %vm1208 = vweird.f32 %v1159
  %vm1209 = vweird.f32 %v1203
  %vm1210 = vmor %vm1208, %vm1209
  %v1211 = vsel %vm1210, %v1203, %v1207
  %v1212 = vand.u32 2147483647, %v1159
  %vm1213 = vcmp.eq.f32.partialorder %v1212, 8.507059e+37
  %v1214 = vand.u32 %v1159, 2147483648
  %v1215 = vor.u32 1.1754944e-38, %v1214
  %v1216 = vsel %vm1213, %v1215, %v1211
  %v1217 = vmul.f32 1.0, %v1216
  %v1218 = vrcp.pop %v1160
  %v1219 = vmul.f32 %v1160, %v1218
  %v1220 = vsub.f32 1.0, %v1219
  %v1221 = vmul.f32 %v1218, %v1220
  %v1222 = vadd.f32 %v1218, %v1221
  %vm1223 = vweird.f32 %v1160
  %vm1224 = vweird.f32 %v1218
  %vm1225 = vmor %vm1223, %vm1224
  %v1226 = vsel %vm1225, %v1218, %v1222
  %v1227 = vand.u32 2147483647, %v1160
  %vm1228 = vcmp.eq.f32.partialorder %v1227, 8.507059e+37
  %v1229 = vand.u32 %v1160, 2147483648
  %v1230 = vor.u32 1.1754944e-38, %v1229
  %v1231 = vsel %vm1228, %v1230, %v1226
  %v1232 = vmul.f32 1.0, %v1231
  %v1233 = vrcp.pop %v1161
  %v1234 = vmul.f32 %v1161, %v1233
  %v1235 = vsub.f32 1.0, %v1234
  %v1236 = vmul.f32 %v1233, %v1235
  %v1237 = vadd.f32 %v1233, %v1236
  %vm1238 = vweird.f32 %v1161
  %vm1239 = vweird.f32 %v1233
  %vm1240 = vmor %vm1238, %vm1239
  %v1241 = vsel %vm1240, %v1233, %v1237
  %v1242 = vand.u32 2147483647, %v1161
  %vm1243 = vcmp.eq.f32.partialorder %v1242, 8.507059e+37
  %v1244 = vand.u32 %v1161, 2147483648
  %v1245 = vor.u32 1.1754944e-38, %v1244
  %v1246 = vsel %vm1243, %v1245, %v1241
  %v1247 = vmul.f32 1.0, %v1246
  %v1248 = vrcp.pop %v1162
  %v1249 = vmul.f32 %v1162, %v1248
  %v1250 = vsub.f32 1.0, %v1249
  %v1251 = vmul.f32 %v1248, %v1250
  %v1252 = vadd.f32 %v1248, %v1251
  %vm1253 = vweird.f32 %v1162
  %vm1254 = vweird.f32 %v1248
  %vm1255 = vmor %vm1253, %vm1254
  %v1256 = vsel %vm1255, %v1248, %v1252
  %v1257 = vand.u32 2147483647, %v1162
  %vm1258 = vcmp.eq.f32.partialorder %v1257, 8.507059e+37
  %v1259 = vand.u32 %v1162, 2147483648
  %v1260 = vor.u32 1.1754944e-38, %v1259
  %v1261 = vsel %vm1258, %v1260, %v1256
  %v1262 = vmul.f32 1.0, %v1261
  %v1263 = vrcp.pop %v1163
  %v1264 = vmul.f32 %v1163, %v1263
  %v1265 = vsub.f32 1.0, %v1264
  %v1266 = vmul.f32 %v1263, %v1265
  %v1267 = vadd.f32 %v1263, %v1266
  %vm1268 = vweird.f32 %v1163
  %vm1269 = vweird.f32 %v1263
  %vm1270 = vmor %vm1268, %vm1269
  %v1271 = vsel %vm1270, %v1263, %v1267
  %v1272 = vand.u32 2147483647, %v1163
  %vm1273 = vcmp.eq.f32.partialorder %v1272, 8.507059e+37
  %v1274 = vand.u32 %v1163, 2147483648
  %v1275 = vor.u32 1.1754944e-38, %v1274
  %v1276 = vsel %vm1273, %v1275, %v1271
  %v1277 = vmul.f32 1.0, %v1276
  %v1278 = vrcp.pop %v1164
  %v1279 = vmul.f32 %v1164, %v1278
  %v1280 = vsub.f32 1.0, %v1279
  %v1281 = vmul.f32 %v1278, %v1280
  %v1282 = vadd.f32 %v1278, %v1281
  %vm1283 = vweird.f32 %v1164
  %vm1284 = vweird.f32 %v1278
  %vm1285 = vmor %vm1283, %vm1284
  %v1286 = vsel %vm1285, %v1278, %v1282
  %v1287 = vand.u32 2147483647, %v1164
  %vm1288 = vcmp.eq.f32.partialorder %v1287, 8.507059e+37
  %v1289 = vand.u32 %v1164, 2147483648
  %v1290 = vor.u32 1.1754944e-38, %v1289
  %v1291 = vsel %vm1288, %v1290, %v1286
  %v1292 = vmul.f32 1.0, %v1291
  %v1293 = vrcp.pop %v1165
  %v1294 = vmul.f32 %v1165, %v1293
  %v1295 = vsub.f32 1.0, %v1294
  %v1296 = vmul.f32 %v1293, %v1295
  %v1297 = vadd.f32 %v1293, %v1296
  %vm1298 = vweird.f32 %v1165
  %vm1299 = vweird.f32 %v1293
  %vm1300 = vmor %vm1298, %vm1299
  %v1301 = vsel %vm1300, %v1293, %v1297
  %v1302 = vand.u32 2147483647, %v1165
  %vm1303 = vcmp.eq.f32.partialorder %v1302, 8.507059e+37
  %v1304 = vand.u32 %v1165, 2147483648
  %v1305 = vor.u32 1.1754944e-38, %v1304
  %v1306 = vsel %vm1303, %v1305, %v1301
  %v1307 = vmul.f32 1.0, %v1306
  %v1308 = vrcp.pop %v1166
  %v1309 = vmul.f32 %v1166, %v1308
  %v1310 = vsub.f32 1.0, %v1309
  %v1311 = vmul.f32 %v1308, %v1310
  %v1312 = vadd.f32 %v1308, %v1311
  %vm1313 = vweird.f32 %v1166
  %vm1314 = vweird.f32 %v1308
  %vm1315 = vmor %vm1313, %vm1314
  %v1316 = vsel %vm1315, %v1308, %v1312
  %v1317 = vand.u32 2147483647, %v1166
  %vm1318 = vcmp.eq.f32.partialorder %v1317, 8.507059e+37
  %v1319 = vand.u32 %v1166, 2147483648
  %v1320 = vor.u32 1.1754944e-38, %v1319
  %v1321 = vsel %vm1318, %v1320, %v1316
  %v1322 = vmul.f32 1.0, %v1321
  %v1323 = vrcp.pop %v1167
  %v1324 = vmul.f32 %v1167, %v1323
  %v1325 = vsub.f32 1.0, %v1324
  %v1326 = vmul.f32 %v1323, %v1325
  %v1327 = vadd.f32 %v1323, %v1326
  %vm1328 = vweird.f32 %v1167
  %vm1329 = vweird.f32 %v1323
  %vm1330 = vmor %vm1328, %vm1329
  %v1331 = vsel %vm1330, %v1323, %v1327
  %v1332 = vand.u32 2147483647, %v1167
  %vm1333 = vcmp.eq.f32.partialorder %v1332, 8.507059e+37
  %v1334 = vand.u32 %v1167, 2147483648
  %v1335 = vor.u32 1.1754944e-38, %v1334
  %v1336 = vsel %vm1333, %v1335, %v1331
  %v1337 = vmul.f32 1.0, %v1336
  %v1338 = vrcp.pop %v1168
  %v1339 = vmul.f32 %v1168, %v1338
  %v1340 = vsub.f32 1.0, %v1339
  %v1341 = vmul.f32 %v1338, %v1340
  %v1342 = vadd.f32 %v1338, %v1341
  %vm1343 = vweird.f32 %v1168
  %vm1344 = vweird.f32 %v1338
  %vm1345 = vmor %vm1343, %vm1344
  %v1346 = vsel %vm1345, %v1338, %v1342
  %v1347 = vand.u32 2147483647, %v1168
  %vm1348 = vcmp.eq.f32.partialorder %v1347, 8.507059e+37
  %v1349 = vand.u32 %v1168, 2147483648
  %v1350 = vor.u32 1.1754944e-38, %v1349
  %v1351 = vsel %vm1348, %v1350, %v1346
  %v1352 = vmul.f32 1.0, %v1351
  %v1353 = vrcp.pop %v1169
  %v1354 = vmul.f32 %v1169, %v1353
  %v1355 = vsub.f32 1.0, %v1354
  %v1356 = vmul.f32 %v1353, %v1355
  %v1357 = vadd.f32 %v1353, %v1356
  %vm1358 = vweird.f32 %v1169
  %vm1359 = vweird.f32 %v1353
  %vm1360 = vmor %vm1358, %vm1359
  %v1361 = vsel %vm1360, %v1353, %v1357
  %v1362 = vand.u32 2147483647, %v1169
  %vm1363 = vcmp.eq.f32.partialorder %v1362, 8.507059e+37
  %v1364 = vand.u32 %v1169, 2147483648
  %v1365 = vor.u32 1.1754944e-38, %v1364
  %v1366 = vsel %vm1363, %v1365, %v1361
  %v1367 = vmul.f32 1.0, %v1366
  %v1368 = vrcp.pop %v1170
  %v1369 = vmul.f32 %v1170, %v1368
  %v1370 = vsub.f32 1.0, %v1369
  %v1371 = vmul.f32 %v1368, %v1370
  %v1372 = vadd.f32 %v1368, %v1371
  %vm1373 = vweird.f32 %v1170
  %vm1374 = vweird.f32 %v1368
  %vm1375 = vmor %vm1373, %vm1374
  %v1376 = vsel %vm1375, %v1368, %v1372
  %v1377 = vand.u32 2147483647, %v1170
  %vm1378 = vcmp.eq.f32.partialorder %v1377, 8.507059e+37
  %v1379 = vand.u32 %v1170, 2147483648
  %v1380 = vor.u32 1.1754944e-38, %v1379
  %v1381 = vsel %vm1378, %v1380, %v1376
  %v1382 = vmul.f32 1.0, %v1381
  %v1383 = vrcp.pop %v1171
  %v1384 = vmul.f32 %v1171, %v1383
  %v1385 = vsub.f32 1.0, %v1384
  %v1386 = vmul.f32 %v1383, %v1385
  %v1387 = vadd.f32 %v1383, %v1386
  %vm1388 = vweird.f32 %v1171
  %vm1389 = vweird.f32 %v1383
  %vm1390 = vmor %vm1388, %vm1389
  %v1391 = vsel %vm1390, %v1383, %v1387
  %v1392 = vand.u32 2147483647, %v1171
  %vm1393 = vcmp.eq.f32.partialorder %v1392, 8.507059e+37
  %v1394 = vand.u32 %v1171, 2147483648
  %v1395 = vor.u32 1.1754944e-38, %v1394
  %v1396 = vsel %vm1393, %v1395, %v1391
  %v1397 = vmul.f32 1.0, %v1396
  %v1398 = vrcp.pop %v1172
  %v1399 = vmul.f32 %v1172, %v1398
  %v1400 = vsub.f32 1.0, %v1399
  %v1401 = vmul.f32 %v1398, %v1400
  %v1402 = vadd.f32 %v1398, %v1401
  %vm1403 = vweird.f32 %v1172
  %vm1404 = vweird.f32 %v1398
  %vm1405 = vmor %vm1403, %vm1404
  %v1406 = vsel %vm1405, %v1398, %v1402
  %v1407 = vand.u32 2147483647, %v1172
  %vm1408 = vcmp.eq.f32.partialorder %v1407, 8.507059e+37
  %v1409 = vand.u32 %v1172, 2147483648
  %v1410 = vor.u32 1.1754944e-38, %v1409
  %v1411 = vsel %vm1408, %v1410, %v1406
  %v1412 = vmul.f32 1.0, %v1411
  %v1413 = vrot.slane %v741, 2
  %v1414 = vrot.slane %v742, 2
  %v1415 = vrot.slane %v743, 2
  %v1416 = vrot.slane %v744, 2
  %v1417 = vrot.slane %v745, 2
  %v1418 = vrot.slane %v746, 2
  %v1419 = vrot.slane %v747, 2
  %v1420 = vrot.slane %v748, 2
  %v1421 = vrot.slane %v749, 2
  %v1422 = vrot.slane %v750, 2
  %v1423 = vrot.slane %v751, 2
  %v1424 = vrot.slane %v752, 2
  %v1425 = vrot.slane %v753, 2
  %v1426 = vrot.slane %v754, 2
  %v1427 = vrot.slane %v755, 2
  %v1428 = vrot.slane %v756, 2
  %v1445 = vtanh.pop %v1413
  %v1446 = vtanh.pop %v1414
  %v1447 = vtanh.pop %v1415
  %v1448 = vtanh.pop %v1416
  %v1449 = vtanh.pop %v1417
  %v1450 = vtanh.pop %v1418
  %v1451 = vtanh.pop %v1419
  %v1452 = vtanh.pop %v1420
  %v1453 = vtanh.pop %v1421
  %v1454 = vtanh.pop %v1422
  %v1455 = vtanh.pop %v1423
  %v1456 = vtanh.pop %v1424
  %v1457 = vtanh.pop %v1425
  %v1458 = vtanh.pop %v1426
  %v1459 = vtanh.pop %v1427
  %v1460 = vtanh.pop %v1428
  %v1461 = vrot.slane %v741, 3
  %v1462 = vrot.slane %v742, 3
  %v1463 = vrot.slane %v743, 3
  %v1464 = vrot.slane %v744, 3
  %v1465 = vrot.slane %v745, 3
  %v1466 = vrot.slane %v746, 3
  %v1467 = vrot.slane %v747, 3
  %v1468 = vrot.slane %v748, 3
  %v1469 = vrot.slane %v749, 3
  %v1470 = vrot.slane %v750, 3
  %v1471 = vrot.slane %v751, 3
  %v1472 = vrot.slane %v752, 3
  %v1473 = vrot.slane %v753, 3
  %v1474 = vrot.slane %v754, 3
  %v1475 = vrot.slane %v755, 3
  %v1476 = vrot.slane %v756, 3
  %v1493 = vxor.u32 %v1461, 2147483648
  %v1494 = vxor.u32 %v1462, 2147483648
  %v1495 = vxor.u32 %v1463, 2147483648
  %v1496 = vxor.u32 %v1464, 2147483648
  %v1497 = vxor.u32 %v1465, 2147483648
  %v1498 = vxor.u32 %v1466, 2147483648
  %v1499 = vxor.u32 %v1467, 2147483648
  %v1500 = vxor.u32 %v1468, 2147483648
  %v1501 = vxor.u32 %v1469, 2147483648
  %v1502 = vxor.u32 %v1470, 2147483648
  %v1503 = vxor.u32 %v1471, 2147483648
  %v1504 = vxor.u32 %v1472, 2147483648
  %v1505 = vxor.u32 %v1473, 2147483648
  %v1506 = vxor.u32 %v1474, 2147483648
  %v1507 = vxor.u32 %v1475, 2147483648
  %v1508 = vxor.u32 %v1476, 2147483648
  %v1509 = vmul.f32 %v1493, 1.442695
  %v1510 = vpow.pop %v1509
  %v1511 = vmul.f32 %v1494, 1.442695
  %v1512 = vpow.pop %v1511
  %v1513 = vmul.f32 %v1495, 1.442695
  %v1514 = vpow.pop %v1513
  %v1515 = vmul.f32 %v1496, 1.442695
  %v1516 = vpow.pop %v1515
  %v1517 = vmul.f32 %v1497, 1.442695
  %v1518 = vpow.pop %v1517
  %v1519 = vmul.f32 %v1498, 1.442695
  %v1520 = vpow.pop %v1519
  %v1521 = vmul.f32 %v1499, 1.442695
  %v1522 = vpow.pop %v1521
  %v1523 = vmul.f32 %v1500, 1.442695
  %v1524 = vpow.pop %v1523
  %v1525 = vmul.f32 %v1501, 1.442695
  %v1526 = vpow.pop %v1525
  %v1527 = vmul.f32 %v1502, 1.442695
  %v1528 = vpow.pop %v1527
  %v1529 = vmul.f32 %v1503, 1.442695
  %v1530 = vpow.pop %v1529
  %v1531 = vmul.f32 %v1504, 1.442695
  %v1532 = vpow.pop %v1531
  %v1533 = vmul.f32 %v1505, 1.442695
  %v1534 = vpow.pop %v1533
  %v1535 = vmul.f32 %v1506, 1.442695
  %v1536 = vpow.pop %v1535
  %v1537 = vmul.f32 %v1507, 1.442695
  %v1538 = vpow.pop %v1537
  %v1539 = vmul.f32 %v1508, 1.442695
  %v1540 = vpow.pop %v1539
  %v1541 = vadd.f32 %v1510, 1.0
  %v1542 = vadd.f32 %v1512, 1.0
  %v1543 = vadd.f32 %v1514, 1.0
  %v1544 = vadd.f32 %v1516, 1.0
  %v1545 = vadd.f32 %v1518, 1.0
  %v1546 = vadd.f32 %v1520, 1.0
  %v1547 = vadd.f32 %v1522, 1.0
  %v1548 = vadd.f32 %v1524, 1.0
  %v1549 = vadd.f32 %v1526, 1.0
  %v1550 = vadd.f32 %v1528, 1.0
  %v1551 = vadd.f32 %v1530, 1.0
  %v1552 = vadd.f32 %v1532, 1.0
  %v1553 = vadd.f32 %v1534, 1.0
  %v1554 = vadd.f32 %v1536, 1.0
  %v1555 = vadd.f32 %v1538, 1.0
  %v1556 = vadd.f32 %v1540, 1.0
  %v1557 = vrcp.pop %v1541
  %v1558 = vmul.f32 %v1541, %v1557
  %v1559 = vsub.f32 1.0, %v1558
  %v1560 = vmul.f32 %v1557, %v1559
  %v1561 = vadd.f32 %v1557, %v1560
  %vm1562 = vweird.f32 %v1541
  %vm1563 = vweird.f32 %v1557
  %vm1564 = vmor %vm1562, %vm1563
  %v1565 = vsel %vm1564, %v1557, %v1561
  %v1566 = vand.u32 2147483647, %v1541
  %vm1567 = vcmp.eq.f32.partialorder %v1566, 8.507059e+37
  %v1568 = vand.u32 %v1541, 2147483648
  %v1569 = vor.u32 1.1754944e-38, %v1568
  %v1570 = vsel %vm1567, %v1569, %v1565
  %v1571 = vmul.f32 1.0, %v1570
  %v1572 = vrcp.pop %v1542
  %v1573 = vmul.f32 %v1542, %v1572
  %v1574 = vsub.f32 1.0, %v1573
  %v1575 = vmul.f32 %v1572, %v1574
  %v1576 = vadd.f32 %v1572, %v1575
  %vm1577 = vweird.f32 %v1542
  %vm1578 = vweird.f32 %v1572
  %vm1579 = vmor %vm1577, %vm1578
  %v1580 = vsel %vm1579, %v1572, %v1576
  %v1581 = vand.u32 2147483647, %v1542
  %vm1582 = vcmp.eq.f32.partialorder %v1581, 8.507059e+37
  %v1583 = vand.u32 %v1542, 2147483648
  %v1584 = vor.u32 1.1754944e-38, %v1583
  %v1585 = vsel %vm1582, %v1584, %v1580
  %v1586 = vmul.f32 1.0, %v1585
  %v1587 = vrcp.pop %v1543
  %v1588 = vmul.f32 %v1543, %v1587
  %v1589 = vsub.f32 1.0, %v1588
  %v1590 = vmul.f32 %v1587, %v1589
  %v1591 = vadd.f32 %v1587, %v1590
  %vm1592 = vweird.f32 %v1543
  %vm1593 = vweird.f32 %v1587
  %vm1594 = vmor %vm1592, %vm1593
  %v1595 = vsel %vm1594, %v1587, %v1591
  %v1596 = vand.u32 2147483647, %v1543
  %vm1597 = vcmp.eq.f32.partialorder %v1596, 8.507059e+37
  %v1598 = vand.u32 %v1543, 2147483648
  %v1599 = vor.u32 1.1754944e-38, %v1598
  %v1600 = vsel %vm1597, %v1599, %v1595
  %v1601 = vmul.f32 1.0, %v1600
  %v1602 = vrcp.pop %v1544
  %v1603 = vmul.f32 %v1544, %v1602
  %v1604 = vsub.f32 1.0, %v1603
  %v1605 = vmul.f32 %v1602, %v1604
  %v1606 = vadd.f32 %v1602, %v1605
  %vm1607 = vweird.f32 %v1544
  %vm1608 = vweird.f32 %v1602
  %vm1609 = vmor %vm1607, %vm1608
  %v1610 = vsel %vm1609, %v1602, %v1606
  %v1611 = vand.u32 2147483647, %v1544
  %vm1612 = vcmp.eq.f32.partialorder %v1611, 8.507059e+37
  %v1613 = vand.u32 %v1544, 2147483648
  %v1614 = vor.u32 1.1754944e-38, %v1613
  %v1615 = vsel %vm1612, %v1614, %v1610
  %v1616 = vmul.f32 1.0, %v1615
  %v1617 = vrcp.pop %v1545
  %v1618 = vmul.f32 %v1545, %v1617
  %v1619 = vsub.f32 1.0, %v1618
  %v1620 = vmul.f32 %v1617, %v1619
  %v1621 = vadd.f32 %v1617, %v1620
  %vm1622 = vweird.f32 %v1545
  %vm1623 = vweird.f32 %v1617
  %vm1624 = vmor %vm1622, %vm1623
  %v1625 = vsel %vm1624, %v1617, %v1621
  %v1626 = vand.u32 2147483647, %v1545
  %vm1627 = vcmp.eq.f32.partialorder %v1626, 8.507059e+37
  %v1628 = vand.u32 %v1545, 2147483648
  %v1629 = vor.u32 1.1754944e-38, %v1628
  %v1630 = vsel %vm1627, %v1629, %v1625
  %v1631 = vmul.f32 1.0, %v1630
  %v1632 = vrcp.pop %v1546
  %v1633 = vmul.f32 %v1546, %v1632
  %v1634 = vsub.f32 1.0, %v1633
  %v1635 = vmul.f32 %v1632, %v1634
  %v1636 = vadd.f32 %v1632, %v1635
  %vm1637 = vweird.f32 %v1546
  %vm1638 = vweird.f32 %v1632
  %vm1639 = vmor %vm1637, %vm1638
  %v1640 = vsel %vm1639, %v1632, %v1636
  %v1641 = vand.u32 2147483647, %v1546
  %vm1642 = vcmp.eq.f32.partialorder %v1641, 8.507059e+37
  %v1643 = vand.u32 %v1546, 2147483648
  %v1644 = vor.u32 1.1754944e-38, %v1643
  %v1645 = vsel %vm1642, %v1644, %v1640
  %v1646 = vmul.f32 1.0, %v1645
  %v1647 = vrcp.pop %v1547
  %v1648 = vmul.f32 %v1547, %v1647
  %v1649 = vsub.f32 1.0, %v1648
  %v1650 = vmul.f32 %v1647, %v1649
  %v1651 = vadd.f32 %v1647, %v1650
  %vm1652 = vweird.f32 %v1547
  %vm1653 = vweird.f32 %v1647
  %vm1654 = vmor %vm1652, %vm1653
  %v1655 = vsel %vm1654, %v1647, %v1651
  %v1656 = vand.u32 2147483647, %v1547
  %vm1657 = vcmp.eq.f32.partialorder %v1656, 8.507059e+37
  %v1658 = vand.u32 %v1547, 2147483648
  %v1659 = vor.u32 1.1754944e-38, %v1658
  %v1660 = vsel %vm1657, %v1659, %v1655
  %v1661 = vmul.f32 1.0, %v1660
  %v1662 = vrcp.pop %v1548
  %v1663 = vmul.f32 %v1548, %v1662
  %v1664 = vsub.f32 1.0, %v1663
  %v1665 = vmul.f32 %v1662, %v1664
  %v1666 = vadd.f32 %v1662, %v1665
  %vm1667 = vweird.f32 %v1548
  %vm1668 = vweird.f32 %v1662
  %vm1669 = vmor %vm1667, %vm1668
  %v1670 = vsel %vm1669, %v1662, %v1666
  %v1671 = vand.u32 2147483647, %v1548
  %vm1672 = vcmp.eq.f32.partialorder %v1671, 8.507059e+37
  %v1673 = vand.u32 %v1548, 2147483648
  %v1674 = vor.u32 1.1754944e-38, %v1673
  %v1675 = vsel %vm1672, %v1674, %v1670
  %v1676 = vmul.f32 1.0, %v1675
  %v1677 = vrcp.pop %v1549
  %v1678 = vmul.f32 %v1549, %v1677
  %v1679 = vsub.f32 1.0, %v1678
  %v1680 = vmul.f32 %v1677, %v1679
  %v1681 = vadd.f32 %v1677, %v1680
  %vm1682 = vweird.f32 %v1549
  %vm1683 = vweird.f32 %v1677
  %vm1684 = vmor %vm1682, %vm1683
  %v1685 = vsel %vm1684, %v1677, %v1681
  %v1686 = vand.u32 2147483647, %v1549
  %vm1687 = vcmp.eq.f32.partialorder %v1686, 8.507059e+37
  %v1688 = vand.u32 %v1549, 2147483648
  %v1689 = vor.u32 1.1754944e-38, %v1688
  %v1690 = vsel %vm1687, %v1689, %v1685
  %v1691 = vmul.f32 1.0, %v1690
  %v1692 = vrcp.pop %v1550
  %v1693 = vmul.f32 %v1550, %v1692
  %v1694 = vsub.f32 1.0, %v1693
  %v1695 = vmul.f32 %v1692, %v1694
  %v1696 = vadd.f32 %v1692, %v1695
  %vm1697 = vweird.f32 %v1550
  %vm1698 = vweird.f32 %v1692
  %vm1699 = vmor %vm1697, %vm1698
  %v1700 = vsel %vm1699, %v1692, %v1696
  %v1701 = vand.u32 2147483647, %v1550
  %vm1702 = vcmp.eq.f32.partialorder %v1701, 8.507059e+37
  %v1703 = vand.u32 %v1550, 2147483648
  %v1704 = vor.u32 1.1754944e-38, %v1703
  %v1705 = vsel %vm1702, %v1704, %v1700
  %v1706 = vmul.f32 1.0, %v1705
  %v1707 = vrcp.pop %v1551
  %v1708 = vmul.f32 %v1551, %v1707
  %v1709 = vsub.f32 1.0, %v1708
  %v1710 = vmul.f32 %v1707, %v1709
  %v1711 = vadd.f32 %v1707, %v1710
  %vm1712 = vweird.f32 %v1551
  %vm1713 = vweird.f32 %v1707
  %vm1714 = vmor %vm1712, %vm1713
  %v1715 = vsel %vm1714, %v1707, %v1711
  %v1716 = vand.u32 2147483647, %v1551
  %vm1717 = vcmp.eq.f32.partialorder %v1716, 8.507059e+37
  %v1718 = vand.u32 %v1551, 2147483648
  %v1719 = vor.u32 1.1754944e-38, %v1718
  %v1720 = vsel %vm1717, %v1719, %v1715
  %v1721 = vmul.f32 1.0, %v1720
  %v1722 = vrcp.pop %v1552
  %v1723 = vmul.f32 %v1552, %v1722
  %v1724 = vsub.f32 1.0, %v1723
  %v1725 = vmul.f32 %v1722, %v1724
  %v1726 = vadd.f32 %v1722, %v1725
  %vm1727 = vweird.f32 %v1552
  %vm1728 = vweird.f32 %v1722
  %vm1729 = vmor %vm1727, %vm1728
  %v1730 = vsel %vm1729, %v1722, %v1726
  %v1731 = vand.u32 2147483647, %v1552
  %vm1732 = vcmp.eq.f32.partialorder %v1731, 8.507059e+37
  %v1733 = vand.u32 %v1552, 2147483648
  %v1734 = vor.u32 1.1754944e-38, %v1733
  %v1735 = vsel %vm1732, %v1734, %v1730
  %v1736 = vmul.f32 1.0, %v1735
  %v1737 = vrcp.pop %v1553
  %v1738 = vmul.f32 %v1553, %v1737
  %v1739 = vsub.f32 1.0, %v1738
  %v1740 = vmul.f32 %v1737, %v1739
  %v1741 = vadd.f32 %v1737, %v1740
  %vm1742 = vweird.f32 %v1553
  %vm1743 = vweird.f32 %v1737
  %vm1744 = vmor %vm1742, %vm1743
  %v1745 = vsel %vm1744, %v1737, %v1741
  %v1746 = vand.u32 2147483647, %v1553
  %vm1747 = vcmp.eq.f32.partialorder %v1746, 8.507059e+37
  %v1748 = vand.u32 %v1553, 2147483648
  %v1749 = vor.u32 1.1754944e-38, %v1748
  %v1750 = vsel %vm1747, %v1749, %v1745
  %v1751 = vmul.f32 1.0, %v1750
  %v1752 = vrcp.pop %v1554
  %v1753 = vmul.f32 %v1554, %v1752
  %v1754 = vsub.f32 1.0, %v1753
  %v1755 = vmul.f32 %v1752, %v1754
  %v1756 = vadd.f32 %v1752, %v1755
  %vm1757 = vweird.f32 %v1554
  %vm1758 = vweird.f32 %v1752
  %vm1759 = vmor %vm1757, %vm1758
  %v1760 = vsel %vm1759, %v1752, %v1756
  %v1761 = vand.u32 2147483647, %v1554
  %vm1762 = vcmp.eq.f32.partialorder %v1761, 8.507059e+37
  %v1763 = vand.u32 %v1554, 2147483648
  %v1764 = vor.u32 1.1754944e-38, %v1763
  %v1765 = vsel %vm1762, %v1764, %v1760
  %v1766 = vmul.f32 1.0, %v1765
  %v1767 = vrcp.pop %v1555
  %v1768 = vmul.f32 %v1555, %v1767
  %v1769 = vsub.f32 1.0, %v1768
  %v1770 = vmul.f32 %v1767, %v1769
  %v1771 = vadd.f32 %v1767, %v1770
  %vm1772 = vweird.f32 %v1555
  %vm1773 = vweird.f32 %v1767
  %vm1774 = vmor %vm1772, %vm1773
  %v1775 = vsel %vm1774, %v1767, %v1771
  %v1776 = vand.u32 2147483647, %v1555
  %vm1777 = vcmp.eq.f32.partialorder %v1776, 8.507059e+37
  %v1778 = vand.u32 %v1555, 2147483648
  %v1779 = vor.u32 1.1754944e-38, %v1778
  %v1780 = vsel %vm1777, %v1779, %v1775
  %v1781 = vmul.f32 1.0, %v1780
  %v1782 = vrcp.pop %v1556
  %v1783 = vmul.f32 %v1556, %v1782
  %v1784 = vsub.f32 1.0, %v1783
  %v1785 = vmul.f32 %v1782, %v1784
  %v1786 = vadd.f32 %v1782, %v1785
  %vm1787 = vweird.f32 %v1556
  %vm1788 = vweird.f32 %v1782
  %vm1789 = vmor %vm1787, %vm1788
  %v1790 = vsel %vm1789, %v1782, %v1786
  %v1791 = vand.u32 2147483647, %v1556
  %vm1792 = vcmp.eq.f32.partialorder %v1791, 8.507059e+37
  %v1793 = vand.u32 %v1556, 2147483648
  %v1794 = vor.u32 1.1754944e-38, %v1793
  %v1795 = vsel %vm1792, %v1794, %v1790
  %v1796 = vmul.f32 1.0, %v1795
  %v1799 = vrot.slane %v444, 1
  %v1800 = vrot.slane %v444, 2
  %v1801 = vrot.slane %v444, 3
  %v1802 = vrot.slane %v444, 4
  %v1803 = vrot.slane %v444, 5
  %v1804 = vrot.slane %v444, 6
  %v1805 = vrot.slane %v444, 7
  %v1806 = vrot.slane %v445, 1
  %v1807 = vrot.slane %v445, 2
  %v1808 = vrot.slane %v445, 3
  %v1809 = vrot.slane %v445, 4
  %v1810 = vrot.slane %v445, 5
  %v1811 = vrot.slane %v445, 6
  %v1812 = vrot.slane %v445, 7
  %v1827 = vmul.f32 %v1187, %v444
  %v1828 = vmul.f32 %v1202, %v1799
  %v1829 = vmul.f32 %v1217, %v1800
  %v1830 = vmul.f32 %v1232, %v1801
  %v1831 = vmul.f32 %v1247, %v1802
  %v1832 = vmul.f32 %v1262, %v1803
  %v1833 = vmul.f32 %v1277, %v1804
  %v1834 = vmul.f32 %v1292, %v1805
  %v1835 = vmul.f32 %v1307, %v445
  %v1836 = vmul.f32 %v1322, %v1806
  %v1837 = vmul.f32 %v1337, %v1807
  %v1838 = vmul.f32 %v1352, %v1808
  %v1839 = vmul.f32 %v1367, %v1809
  %v1840 = vmul.f32 %v1382, %v1810
  %v1841 = vmul.f32 %v1397, %v1811
  %v1842 = vmul.f32 %v1412, %v1812
  %v1843 = vmul.f32 %v835, %v1445
  %v1844 = vmul.f32 %v850, %v1446
  %v1845 = vmul.f32 %v865, %v1447
  %v1846 = vmul.f32 %v880, %v1448
  %v1847 = vmul.f32 %v895, %v1449
  %v1848 = vmul.f32 %v910, %v1450
  %v1849 = vmul.f32 %v925, %v1451
  %v1850 = vmul.f32 %v940, %v1452
  %v1851 = vmul.f32 %v955, %v1453
  %v1852 = vmul.f32 %v970, %v1454
  %v1853 = vmul.f32 %v985, %v1455
  %v1854 = vmul.f32 %v1000, %v1456
  %v1855 = vmul.f32 %v1015, %v1457
  %v1856 = vmul.f32 %v1030, %v1458
  %v1857 = vmul.f32 %v1045, %v1459
  %v1858 = vmul.f32 %v1060, %v1460
  %v1859 = vadd.f32 %v1827, %v1843
  %v1860 = vadd.f32 %v1828, %v1844
  %v1861 = vadd.f32 %v1829, %v1845
  %v1862 = vadd.f32 %v1830, %v1846
  %v1863 = vadd.f32 %v1831, %v1847
  %v1864 = vadd.f32 %v1832, %v1848
  %v1865 = vadd.f32 %v1833, %v1849
  %v1866 = vadd.f32 %v1834, %v1850
  %v1867 = vadd.f32 %v1835, %v1851
  %v1868 = vadd.f32 %v1836, %v1852
  %v1869 = vadd.f32 %v1837, %v1853
  %v1870 = vadd.f32 %v1838, %v1854
  %v1871 = vadd.f32 %v1839, %v1855
  %v1872 = vadd.f32 %v1840, %v1856
  %v1873 = vadd.f32 %v1841, %v1857
  %v1874 = vadd.f32 %v1842, %v1858
  %v1875 = vtanh.pop %v1859
  %v1876 = vtanh.pop %v1860
  %v1877 = vtanh.pop %v1861
  %v1878 = vtanh.pop %v1862
  %v1879 = vtanh.pop %v1863
  %v1880 = vtanh.pop %v1864
  %v1881 = vtanh.pop %v1865
  %v1882 = vtanh.pop %v1866
  %v1883 = vtanh.pop %v1867
  %v1884 = vtanh.pop %v1868
  %v1885 = vtanh.pop %v1869
  %v1886 = vtanh.pop %v1870
  %v1887 = vtanh.pop %v1871
  %v1888 = vtanh.pop %v1872
  %v1889 = vtanh.pop %v1873
  %v1890 = vtanh.pop %v1874
  %v1891 = vmul.f32 %v1571, %v1875
  %v1892 = vmul.f32 %v1586, %v1876
  %v1893 = vmul.f32 %v1601, %v1877
  %v1894 = vmul.f32 %v1616, %v1878
  %v1895 = vmul.f32 %v1631, %v1879
  %v1896 = vmul.f32 %v1646, %v1880
  %v1897 = vmul.f32 %v1661, %v1881
  %v1898 = vmul.f32 %v1676, %v1882
  %v1899 = vmul.f32 %v1691, %v1883
  %v1900 = vmul.f32 %v1706, %v1884
  %v1901 = vmul.f32 %v1721, %v1885
  %v1902 = vmul.f32 %v1736, %v1886
  %v1903 = vmul.f32 %v1751, %v1887
  %v1904 = vmul.f32 %v1766, %v1888
  %v1905 = vmul.f32 %v1781, %v1889
  %v1906 = vmul.f32 %v1796, %v1890
  %1907 = vst [vmem:[%s4] sm:$0x1] %v1891
  %1908 = vst [vmem:[%s4 + $0x8] sm:$0x1] %v1892
  %1909 = vst [vmem:[%s4 + $0x10] sm:$0x1] %v1893
  %1910 = vst [vmem:[%s4 + $0x18] sm:$0x1] %v1894
  %1911 = vst [vmem:[%s4 + $0x20] sm:$0x1] %v1895
  %1912 = vst [vmem:[%s4 + $0x28] sm:$0x1] %v1896
  %1913 = vst [vmem:[%s4 + $0x30] sm:$0x1] %v1897
  %1914 = vst [vmem:[%s4 + $0x38] sm:$0x1] %v1898
  %1915 = vst [vmem:[%s4 + $0x40] sm:$0x1] %v1899
  %1916 = vst [vmem:[%s4 + $0x48] sm:$0x1] %v1900
  %1917 = vst [vmem:[%s4 + $0x50] sm:$0x1] %v1901
  %1918 = vst [vmem:[%s4 + $0x58] sm:$0x1] %v1902
  %1919 = vst [vmem:[%s4 + $0x60] sm:$0x1] %v1903
  %1920 = vst [vmem:[%s4 + $0x68] sm:$0x1] %v1904
  %1921 = vst [vmem:[%s4 + $0x70] sm:$0x1] %v1905
  %1922 = vst [vmem:[%s4 + $0x78] sm:$0x1] %v1906
  %s1923 = scalar_lea.vmem [#allocation2], 1
  %v1924 = vld [vmem:[%s1923] ss:$8 sm:$0xf]
  %s1925 = scalar_lea.vmem [#allocation2], 33
  %v1926 = vld [vmem:[%s1925] ss:$8 sm:$0xf]
  %s1927 = scalar_lea.vmem [#allocation2], 65
  %v1928 = vld [vmem:[%s1927] ss:$8 sm:$0xf]
  %s1929 = scalar_lea.vmem [#allocation2], 97
  %v1930 = vld [vmem:[%s1929] ss:$8 sm:$0xf]
  %s1931 = scalar_lea.vmem [#allocation2], 129
  %v1932 = vld [vmem:[%s1931] ss:$8 sm:$0xf]
  %s1933 = scalar_lea.vmem [#allocation2], 161
  %v1934 = vld [vmem:[%s1933] ss:$8 sm:$0xf]
  %s1935 = scalar_lea.vmem [#allocation2], 193
  %v1936 = vld [vmem:[%s1935] ss:$8 sm:$0xf]
  %s1937 = scalar_lea.vmem [#allocation2], 225
  %v1938 = vld [vmem:[%s1937] ss:$8 sm:$0xf]
  %s1939 = scalar_lea.vmem [#allocation2], 257
  %v1940 = vld [vmem:[%s1939] ss:$8 sm:$0xf]
  %s1941 = scalar_lea.vmem [#allocation2], 289
  %v1942 = vld [vmem:[%s1941] ss:$8 sm:$0xf]
  %s1943 = scalar_lea.vmem [#allocation2], 321
  %v1944 = vld [vmem:[%s1943] ss:$8 sm:$0xf]
  %s1945 = scalar_lea.vmem [#allocation2], 353
  %v1946 = vld [vmem:[%s1945] ss:$8 sm:$0xf]
  %s1947 = scalar_lea.vmem [#allocation2], 385
  %v1948 = vld [vmem:[%s1947] ss:$8 sm:$0xf]
  %s1949 = scalar_lea.vmem [#allocation2], 417
  %v1950 = vld [vmem:[%s1949] ss:$8 sm:$0xf]
  %s1951 = scalar_lea.vmem [#allocation2], 449
  %v1952 = vld [vmem:[%s1951] ss:$8 sm:$0xf]
  %s1953 = scalar_lea.vmem [#allocation2], 481
  %v1954 = vld [vmem:[%s1953] ss:$8 sm:$0xf]
  %v1955 = vld [vmem:[%s2] sm:$0xff]
  %v1956 = vld [vmem:[%s2 + $0x8] sm:$0xff]
  %v1957 = vld [vmem:[%s2 + $0x10] sm:$0xff]
  %v1958 = vld [vmem:[%s2 + $0x18] sm:$0xff]
  %v1959 = vld [vmem:[%s2 + $0x20] sm:$0xff]
  %v1960 = vld [vmem:[%s2 + $0x28] sm:$0xff]
  %v1961 = vld [vmem:[%s2 + $0x30] sm:$0xff]
  %v1962 = vld [vmem:[%s2 + $0x38] sm:$0xff]
  %v1963 = vld [vmem:[%s2 + $0x40] sm:$0xff]
  %v1964 = vld [vmem:[%s2 + $0x48] sm:$0xff]
  %v1965 = vld [vmem:[%s2 + $0x50] sm:$0xff]
  %v1966 = vld [vmem:[%s2 + $0x58] sm:$0xff]
  %v1967 = vld [vmem:[%s2 + $0x60] sm:$0xff]
  %v1968 = vld [vmem:[%s2 + $0x68] sm:$0xff]
  %v1969 = vld [vmem:[%s2 + $0x70] sm:$0xff]
  %v1970 = vld [vmem:[%s2 + $0x78] sm:$0xff]
  %v1971 = vld [vmem:[%s2 + $0x80] sm:$0xff]
  %v1972 = vld [vmem:[%s2 + $0x88] sm:$0xff]
  %v1973 = vld [vmem:[%s2 + $0x90] sm:$0xff]
  %v1974 = vld [vmem:[%s2 + $0x98] sm:$0xff]
  %v1975 = vld [vmem:[%s2 + $0xa0] sm:$0xff]
  %v1976 = vld [vmem:[%s2 + $0xa8] sm:$0xff]
  %v1977 = vld [vmem:[%s2 + $0xb0] sm:$0xff]
  %v1978 = vld [vmem:[%s2 + $0xb8] sm:$0xff]
  %v1979 = vld [vmem:[%s2 + $0xc0] sm:$0xff]
  %v1980 = vld [vmem:[%s2 + $0xc8] sm:$0xff]
  %v1981 = vld [vmem:[%s2 + $0xd0] sm:$0xff]
  %v1982 = vld [vmem:[%s2 + $0xd8] sm:$0xff]
  %v1983 = vld [vmem:[%s2 + $0xe0] sm:$0xff]
  %v1984 = vld [vmem:[%s2 + $0xe8] sm:$0xff]
  %v1985 = vld [vmem:[%s2 + $0xf0] sm:$0xff]
  %v1986 = vld [vmem:[%s2 + $0xf8] sm:$0xff]
  %v1987 = vld [vmem:[%s2 + $0x100] sm:$0xff]
  %v1988 = vld [vmem:[%s2 + $0x108] sm:$0xff]
  %v1989 = vld [vmem:[%s2 + $0x110] sm:$0xff]
  %v1990 = vld [vmem:[%s2 + $0x118] sm:$0xff]
  %v1991 = vld [vmem:[%s2 + $0x120] sm:$0xff]
  %v1992 = vld [vmem:[%s2 + $0x128] sm:$0xff]
  %v1993 = vld [vmem:[%s2 + $0x130] sm:$0xff]
  %v1994 = vld [vmem:[%s2 + $0x138] sm:$0xff]
  %v1995 = vld [vmem:[%s2 + $0x140] sm:$0xff]
  %v1996 = vld [vmem:[%s2 + $0x148] sm:$0xff]
  %v1997 = vld [vmem:[%s2 + $0x150] sm:$0xff]
  %v1998 = vld [vmem:[%s2 + $0x158] sm:$0xff]
  %v1999 = vld [vmem:[%s2 + $0x160] sm:$0xff]
  %v2000 = vld [vmem:[%s2 + $0x168] sm:$0xff]
  %v2001 = vld [vmem:[%s2 + $0x170] sm:$0xff]
  %v2002 = vld [vmem:[%s2 + $0x178] sm:$0xff]
  %v2003 = vld [vmem:[%s2 + $0x180] sm:$0xff]
  %v2004 = vld [vmem:[%s2 + $0x188] sm:$0xff]
  %v2005 = vld [vmem:[%s2 + $0x190] sm:$0xff]
  %v2006 = vld [vmem:[%s2 + $0x198] sm:$0xff]
  %v2007 = vld [vmem:[%s2 + $0x1a0] sm:$0xff]
  %v2008 = vld [vmem:[%s2 + $0x1a8] sm:$0xff]
  %v2009 = vld [vmem:[%s2 + $0x1b0] sm:$0xff]
  %v2010 = vld [vmem:[%s2 + $0x1b8] sm:$0xff]
  %v2011 = vld [vmem:[%s2 + $0x1c0] sm:$0xff]
  %v2012 = vld [vmem:[%s2 + $0x1c8] sm:$0xff]
  %v2013 = vld [vmem:[%s2 + $0x1d0] sm:$0xff]
  %v2014 = vld [vmem:[%s2 + $0x1d8] sm:$0xff]
  %v2015 = vld [vmem:[%s2 + $0x1e0] sm:$0xff]
  %v2016 = vld [vmem:[%s2 + $0x1e8] sm:$0xff]
  %v2017 = vld [vmem:[%s2 + $0x1f0] sm:$0xff]
  %v2018 = vld [vmem:[%s2 + $0x1f8] sm:$0xff]
  %2035 = vst [vmem:[#allocation1] ss:$9 sm:$0xff] %v1891
  %s2036 = scalar_lea.vmem [#allocation1], 1
  %2037 = vst [vmem:[%s2036] ss:$9 sm:$0xff] %v1892
  %s2038 = scalar_lea.vmem [#allocation1], 2
  %2039 = vst [vmem:[%s2038] ss:$9 sm:$0xff] %v1893
  %s2040 = scalar_lea.vmem [#allocation1], 3
  %2041 = vst [vmem:[%s2040] ss:$9 sm:$0xff] %v1894
  %s2042 = scalar_lea.vmem [#allocation1], 4
  %2043 = vst [vmem:[%s2042] ss:$9 sm:$0xff] %v1895
  %s2044 = scalar_lea.vmem [#allocation1], 5
  %2045 = vst [vmem:[%s2044] ss:$9 sm:$0xff] %v1896
  %s2046 = scalar_lea.vmem [#allocation1], 6
  %2047 = vst [vmem:[%s2046] ss:$9 sm:$0xff] %v1897
  %s2048 = scalar_lea.vmem [#allocation1], 7
  %2049 = vst [vmem:[%s2048] ss:$9 sm:$0xff] %v1898
  %v2050 = vld [vmem:[#allocation1] sm:$0xff]
  %2051 = vst [vmem:[#allocation1] ss:$9 sm:$0xff] %v1899
  %2052 = vst [vmem:[%s2036] ss:$9 sm:$0xff] %v1900
  %2053 = vst [vmem:[%s2038] ss:$9 sm:$0xff] %v1901
  %2054 = vst [vmem:[%s2040] ss:$9 sm:$0xff] %v1902
  %2055 = vst [vmem:[%s2042] ss:$9 sm:$0xff] %v1903
  %2056 = vst [vmem:[%s2044] ss:$9 sm:$0xff] %v1904
  %2057 = vst [vmem:[%s2046] ss:$9 sm:$0xff] %v1905
  %2058 = vst [vmem:[%s2048] ss:$9 sm:$0xff] %v1906
  %v2059 = vld [vmem:[#allocation1] sm:$0xff]
  %2062 = vmatpush.msra.mxu0 %v2015
  %2063 = vmatpush.msra.mxu0 %v2011
  %2064 = vmatpush.msra.mxu0 %v2007
  %2065 = vmatpush.msra.mxu0 %v2003
  %2066 = vmatpush.msra.mxu0 %v1999
  %2067 = vmatpush.msra.mxu0 %v1995
  %2068 = vmatpush.msra.mxu0 %v1991
  %2069 = vmatpush.msra.mxu0 %v1987
  %2070 = vmatpush.msra.mxu0 %v1983
  %2071 = vmatpush.msra.mxu0 %v1979
  %2072 = vmatpush.msra.mxu0 %v1975
  %2073 = vmatpush.msra.mxu0 %v1971
  %2074 = vmatpush.msra.mxu0 %v1967
  %2075 = vmatpush.msra.mxu0 %v1963
  %2076 = vmatpush.msra.mxu0 %v1959
  %2077 = vmatpush.msra.mxu0 %v1955
  %2078 = vmatmul.f32.gmra.mxu0 %v2050
  %v2079 = vpop.f32.mrf.mxu0
  %v2080 = vadd.f32 0.0, %v2079
  %2081 = vmatmul.f32.gmra.mxu0 %v2059
  %v2082 = vpop.f32.mrf.mxu0
  %v2083 = vadd.f32 0.0, %v2082
  %2084 = vdwg.mxu0
  %2085 = vmatpush.msra.mxu0 %v2016
  %2086 = vmatpush.msra.mxu0 %v2012
  %2087 = vmatpush.msra.mxu0 %v2008
  %2088 = vmatpush.msra.mxu0 %v2004
  %2089 = vmatpush.msra.mxu0 %v2000
  %2090 = vmatpush.msra.mxu0 %v1996
  %2091 = vmatpush.msra.mxu0 %v1992
  %2092 = vmatpush.msra.mxu0 %v1988
  %2093 = vmatpush.msra.mxu0 %v1984
  %2094 = vmatpush.msra.mxu0 %v1980
  %2095 = vmatpush.msra.mxu0 %v1976
  %2096 = vmatpush.msra.mxu0 %v1972
  %2097 = vmatpush.msra.mxu0 %v1968
  %2098 = vmatpush.msra.mxu0 %v1964
  %2099 = vmatpush.msra.mxu0 %v1960
  %2100 = vmatpush.msra.mxu0 %v1956
  %2101 = vmatmul.f32.gmra.mxu0 %v2050
  %v2102 = vpop.f32.mrf.mxu0
  %v2103 = vadd.f32 0.0, %v2102
  %2104 = vmatmul.f32.gmra.mxu0 %v2059
  %v2105 = vpop.f32.mrf.mxu0
  %v2106 = vadd.f32 0.0, %v2105
  %2107 = vdwg.mxu0
  %2108 = vmatpush.msra.mxu0 %v2017
  %2109 = vmatpush.msra.mxu0 %v2013
  %2110 = vmatpush.msra.mxu0 %v2009
  %2111 = vmatpush.msra.mxu0 %v2005
  %2112 = vmatpush.msra.mxu0 %v2001
  %2113 = vmatpush.msra.mxu0 %v1997
  %2114 = vmatpush.msra.mxu0 %v1993
  %2115 = vmatpush.msra.mxu0 %v1989
  %2116 = vmatpush.msra.mxu0 %v1985
  %2117 = vmatpush.msra.mxu0 %v1981
  %2118 = vmatpush.msra.mxu0 %v1977
  %2119 = vmatpush.msra.mxu0 %v1973
  %2120 = vmatpush.msra.mxu0 %v1969
  %2121 = vmatpush.msra.mxu0 %v1965
  %2122 = vmatpush.msra.mxu0 %v1961
  %2123 = vmatpush.msra.mxu0 %v1957
  %2124 = vmatmul.f32.gmra.mxu0 %v2050
  %v2125 = vpop.f32.mrf.mxu0
  %v2126 = vadd.f32 0.0, %v2125
  %2127 = vmatmul.f32.gmra.mxu0 %v2059
  %v2128 = vpop.f32.mrf.mxu0
  %v2129 = vadd.f32 0.0, %v2128
  %2130 = vdwg.mxu0
  %2131 = vmatpush.msra.mxu0 %v2018
  %2132 = vmatpush.msra.mxu0 %v2014
  %2133 = vmatpush.msra.mxu0 %v2010
  %2134 = vmatpush.msra.mxu0 %v2006
  %2135 = vmatpush.msra.mxu0 %v2002
  %2136 = vmatpush.msra.mxu0 %v1998
  %2137 = vmatpush.msra.mxu0 %v1994
  %2138 = vmatpush.msra.mxu0 %v1990
  %2139 = vmatpush.msra.mxu0 %v1986
  %2140 = vmatpush.msra.mxu0 %v1982
  %2141 = vmatpush.msra.mxu0 %v1978
  %2142 = vmatpush.msra.mxu0 %v1974
  %2143 = vmatpush.msra.mxu0 %v1970
  %2144 = vmatpush.msra.mxu0 %v1966
  %2145 = vmatpush.msra.mxu0 %v1962
  %2146 = vmatpush.msra.mxu0 %v1958
  %2147 = vmatmul.f32.gmra.mxu0 %v2050
  %v2148 = vpop.f32.mrf.mxu0
  %v2149 = vadd.f32 0.0, %v2148
  %2150 = vmatmul.f32.gmra.mxu0 %v2059
  %v2151 = vpop.f32.mrf.mxu0
  %v2152 = vadd.f32 0.0, %v2151
  %2153 = vdwg.mxu0
  %v2162 = vrot.slane %v2103, 7
  %v2163 = vrot.slane %v2126, 6
  %v2164 = vrot.slane %v2149, 5
  %v2165 = vrot.slane %v2106, 7
  %v2166 = vrot.slane %v2129, 6
  %v2167 = vrot.slane %v2152, 5
  %v2168 = vsel %vm647, %v2080, %v2162
  %v2169 = vsel %vm649, %v2163, %v2164
  %v2170 = vsel %vm651, %v2168, %v2169
  %v2171 = vsel %vm653, %v2080, %v2162
  %v2172 = vsel %vm655, %v2163, %v2164
  %v2173 = vsel %vm657, %v2171, %v2172
  %v2174 = vrot.slane %v2173, 1
  %v2175 = vsel %vm649, %v2080, %v2162
  %v2176 = vsel %vm661, %v2163, %v2164
  %v2177 = vsel %vm663, %v2175, %v2176
  %v2178 = vrot.slane %v2177, 2
  %v2179 = vsel %vm655, %v2080, %v2162
  %v2180 = vsel %vm667, %v2163, %v2164
  %v2181 = vsel %vm669, %v2179, %v2180
  %v2182 = vrot.slane %v2181, 3
  %v2183 = vsel %vm661, %v2080, %v2162
  %v2184 = vsel %vm673, %v2163, %v2164
  %v2185 = vsel %vm675, %v2183, %v2184
  %v2186 = vrot.slane %v2185, 4
  %v2187 = vsel %vm667, %v2080, %v2162
  %v2188 = vsel %vm679, %v2164, %v2163
  %v2189 = vsel %vm681, %v2187, %v2188
  %v2190 = vrot.slane %v2189, 5
  %v2191 = vsel %vm673, %v2080, %v2162
  %v2192 = vsel %vm647, %v2163, %v2164
  %v2193 = vsel %vm686, %v2192, %v2191
  %v2194 = vrot.slane %v2193, 6
  %v2195 = vsel %vm679, %v2162, %v2080
  %v2196 = vsel %vm653, %v2163, %v2164
  %v2197 = vsel %vm691, %v2196, %v2195
  %v2198 = vrot.slane %v2197, 7
  %v2199 = vsel %vm647, %v2083, %v2165
  %v2200 = vsel %vm649, %v2166, %v2167
  %v2201 = vsel %vm651, %v2199, %v2200
  %v2202 = vsel %vm653, %v2083, %v2165
  %v2203 = vsel %vm655, %v2166, %v2167
  %v2204 = vsel %vm657, %v2202, %v2203
  %v2205 = vrot.slane %v2204, 1
  %v2206 = vsel %vm649, %v2083, %v2165
  %v2207 = vsel %vm661, %v2166, %v2167
  %v2208 = vsel %vm663, %v2206, %v2207
  %v2209 = vrot.slane %v2208, 2
  %v2210 = vsel %vm655, %v2083, %v2165
  %v2211 = vsel %vm667, %v2166, %v2167
  %v2212 = vsel %vm669, %v2210, %v2211
  %v2213 = vrot.slane %v2212, 3
  %v2214 = vsel %vm661, %v2083, %v2165
  %v2215 = vsel %vm673, %v2166, %v2167
  %v2216 = vsel %vm675, %v2214, %v2215
  %v2217 = vrot.slane %v2216, 4
  %v2218 = vsel %vm667, %v2083, %v2165
  %v2219 = vsel %vm679, %v2167, %v2166
  %v2220 = vsel %vm681, %v2218, %v2219
  %v2221 = vrot.slane %v2220, 5
  %v2222 = vsel %vm673, %v2083, %v2165
  %v2223 = vsel %vm647, %v2166, %v2167
  %v2224 = vsel %vm686, %v2223, %v2222
  %v2225 = vrot.slane %v2224, 6
  %v2226 = vsel %vm679, %v2165, %v2083
  %v2227 = vsel %vm653, %v2166, %v2167
  %v2228 = vsel %vm691, %v2227, %v2226
  %v2229 = vrot.slane %v2228, 7
  %v2246 = vadd.f32 %v1924, %v2170
  %v2247 = vadd.f32 %v1926, %v2174
  %v2248 = vadd.f32 %v1928, %v2178
  %v2249 = vadd.f32 %v1930, %v2182
  %v2250 = vadd.f32 %v1932, %v2186
  %v2251 = vadd.f32 %v1934, %v2190
  %v2252 = vadd.f32 %v1936, %v2194
  %v2253 = vadd.f32 %v1938, %v2198
  %v2254 = vadd.f32 %v1940, %v2201
  %v2255 = vadd.f32 %v1942, %v2205
  %v2256 = vadd.f32 %v1944, %v2209
  %v2257 = vadd.f32 %v1946, %v2213
  %v2258 = vadd.f32 %v1948, %v2217
  %v2259 = vadd.f32 %v1950, %v2221
  %v2260 = vadd.f32 %v1952, %v2225
  %v2261 = vadd.f32 %v1954, %v2229
  %v2262 = vxor.u32 %v2246, 2147483648
  %v2263 = vxor.u32 %v2247, 2147483648
  %v2264 = vxor.u32 %v2248, 2147483648
  %v2265 = vxor.u32 %v2249, 2147483648
  %v2266 = vxor.u32 %v2250, 2147483648
  %v2267 = vxor.u32 %v2251, 2147483648
  %v2268 = vxor.u32 %v2252, 2147483648
  %v2269 = vxor.u32 %v2253, 2147483648
  %v2270 = vxor.u32 %v2254, 2147483648
  %v2271 = vxor.u32 %v2255, 2147483648
  %v2272 = vxor.u32 %v2256, 2147483648
  %v2273 = vxor.u32 %v2257, 2147483648
  %v2274 = vxor.u32 %v2258, 2147483648
  %v2275 = vxor.u32 %v2259, 2147483648
  %v2276 = vxor.u32 %v2260, 2147483648
  %v2277 = vxor.u32 %v2261, 2147483648
  %v2278 = vmul.f32 %v2262, 1.442695
  %v2279 = vpow.pop %v2278
  %v2280 = vmul.f32 %v2263, 1.442695
  %v2281 = vpow.pop %v2280
  %v2282 = vmul.f32 %v2264, 1.442695
  %v2283 = vpow.pop %v2282
  %v2284 = vmul.f32 %v2265, 1.442695
  %v2285 = vpow.pop %v2284
  %v2286 = vmul.f32 %v2266, 1.442695
  %v2287 = vpow.pop %v2286
  %v2288 = vmul.f32 %v2267, 1.442695
  %v2289 = vpow.pop %v2288
  %v2290 = vmul.f32 %v2268, 1.442695
  %v2291 = vpow.pop %v2290
  %v2292 = vmul.f32 %v2269, 1.442695
  %v2293 = vpow.pop %v2292
  %v2294 = vmul.f32 %v2270, 1.442695
  %v2295 = vpow.pop %v2294
  %v2296 = vmul.f32 %v2271, 1.442695
  %v2297 = vpow.pop %v2296
  %v2298 = vmul.f32 %v2272, 1.442695
  %v2299 = vpow.pop %v2298
  %v2300 = vmul.f32 %v2273, 1.442695
  %v2301 = vpow.pop %v2300
  %v2302 = vmul.f32 %v2274, 1.442695
  %v2303 = vpow.pop %v2302
  %v2304 = vmul.f32 %v2275, 1.442695
  %v2305 = vpow.pop %v2304
  %v2306 = vmul.f32 %v2276, 1.442695
  %v2307 = vpow.pop %v2306
  %v2308 = vmul.f32 %v2277, 1.442695
  %v2309 = vpow.pop %v2308
  %v2310 = vadd.f32 %v2279, 1.0
  %v2311 = vadd.f32 %v2281, 1.0
  %v2312 = vadd.f32 %v2283, 1.0
  %v2313 = vadd.f32 %v2285, 1.0
  %v2314 = vadd.f32 %v2287, 1.0
  %v2315 = vadd.f32 %v2289, 1.0
  %v2316 = vadd.f32 %v2291, 1.0
  %v2317 = vadd.f32 %v2293, 1.0
  %v2318 = vadd.f32 %v2295, 1.0
  %v2319 = vadd.f32 %v2297, 1.0
  %v2320 = vadd.f32 %v2299, 1.0
  %v2321 = vadd.f32 %v2301, 1.0
  %v2322 = vadd.f32 %v2303, 1.0
  %v2323 = vadd.f32 %v2305, 1.0
  %v2324 = vadd.f32 %v2307, 1.0
  %v2325 = vadd.f32 %v2309, 1.0
  %v2326 = vrcp.pop %v2310
  %v2327 = vmul.f32 %v2310, %v2326
  %v2328 = vsub.f32 1.0, %v2327
  %v2329 = vmul.f32 %v2326, %v2328
  %v2330 = vadd.f32 %v2326, %v2329
  %vm2331 = vweird.f32 %v2310
  %vm2332 = vweird.f32 %v2326
  %vm2333 = vmor %vm2331, %vm2332
  %v2334 = vsel %vm2333, %v2326, %v2330
  %v2335 = vand.u32 2147483647, %v2310
  %vm2336 = vcmp.eq.f32.partialorder %v2335, 8.507059e+37
  %v2337 = vand.u32 %v2310, 2147483648
  %v2338 = vor.u32 1.1754944e-38, %v2337
  %v2339 = vsel %vm2336, %v2338, %v2334
  %v2340 = vmul.f32 1.0, %v2339
  %v2341 = vrcp.pop %v2311
  %v2342 = vmul.f32 %v2311, %v2341
  %v2343 = vsub.f32 1.0, %v2342
  %v2344 = vmul.f32 %v2341, %v2343
  %v2345 = vadd.f32 %v2341, %v2344
  %vm2346 = vweird.f32 %v2311
  %vm2347 = vweird.f32 %v2341
  %vm2348 = vmor %vm2346, %vm2347
  %v2349 = vsel %vm2348, %v2341, %v2345
  %v2350 = vand.u32 2147483647, %v2311
  %vm2351 = vcmp.eq.f32.partialorder %v2350, 8.507059e+37
  %v2352 = vand.u32 %v2311, 2147483648
  %v2353 = vor.u32 1.1754944e-38, %v2352
  %v2354 = vsel %vm2351, %v2353, %v2349
  %v2355 = vmul.f32 1.0, %v2354
  %v2356 = vrcp.pop %v2312
  %v2357 = vmul.f32 %v2312, %v2356
  %v2358 = vsub.f32 1.0, %v2357
  %v2359 = vmul.f32 %v2356, %v2358
  %v2360 = vadd.f32 %v2356, %v2359
  %vm2361 = vweird.f32 %v2312
  %vm2362 = vweird.f32 %v2356
  %vm2363 = vmor %vm2361, %vm2362
  %v2364 = vsel %vm2363, %v2356, %v2360
  %v2365 = vand.u32 2147483647, %v2312
  %vm2366 = vcmp.eq.f32.partialorder %v2365, 8.507059e+37
  %v2367 = vand.u32 %v2312, 2147483648
  %v2368 = vor.u32 1.1754944e-38, %v2367
  %v2369 = vsel %vm2366, %v2368, %v2364
  %v2370 = vmul.f32 1.0, %v2369
  %v2371 = vrcp.pop %v2313
  %v2372 = vmul.f32 %v2313, %v2371
  %v2373 = vsub.f32 1.0, %v2372
  %v2374 = vmul.f32 %v2371, %v2373
  %v2375 = vadd.f32 %v2371, %v2374
  %vm2376 = vweird.f32 %v2313
  %vm2377 = vweird.f32 %v2371
  %vm2378 = vmor %vm2376, %vm2377
  %v2379 = vsel %vm2378, %v2371, %v2375
  %v2380 = vand.u32 2147483647, %v2313
  %vm2381 = vcmp.eq.f32.partialorder %v2380, 8.507059e+37
  %v2382 = vand.u32 %v2313, 2147483648
  %v2383 = vor.u32 1.1754944e-38, %v2382
  %v2384 = vsel %vm2381, %v2383, %v2379
  %v2385 = vmul.f32 1.0, %v2384
  %v2386 = vrcp.pop %v2314
  %v2387 = vmul.f32 %v2314, %v2386
  %v2388 = vsub.f32 1.0, %v2387
  %v2389 = vmul.f32 %v2386, %v2388
  %v2390 = vadd.f32 %v2386, %v2389
  %vm2391 = vweird.f32 %v2314
  %vm2392 = vweird.f32 %v2386
  %vm2393 = vmor %vm2391, %vm2392
  %v2394 = vsel %vm2393, %v2386, %v2390
  %v2395 = vand.u32 2147483647, %v2314
  %vm2396 = vcmp.eq.f32.partialorder %v2395, 8.507059e+37
  %v2397 = vand.u32 %v2314, 2147483648
  %v2398 = vor.u32 1.1754944e-38, %v2397
  %v2399 = vsel %vm2396, %v2398, %v2394
  %v2400 = vmul.f32 1.0, %v2399
  %v2401 = vrcp.pop %v2315
  %v2402 = vmul.f32 %v2315, %v2401
  %v2403 = vsub.f32 1.0, %v2402
  %v2404 = vmul.f32 %v2401, %v2403
  %v2405 = vadd.f32 %v2401, %v2404
  %vm2406 = vweird.f32 %v2315
  %vm2407 = vweird.f32 %v2401
  %vm2408 = vmor %vm2406, %vm2407
  %v2409 = vsel %vm2408, %v2401, %v2405
  %v2410 = vand.u32 2147483647, %v2315
  %vm2411 = vcmp.eq.f32.partialorder %v2410, 8.507059e+37
  %v2412 = vand.u32 %v2315, 2147483648
  %v2413 = vor.u32 1.1754944e-38, %v2412
  %v2414 = vsel %vm2411, %v2413, %v2409
  %v2415 = vmul.f32 1.0, %v2414
  %v2416 = vrcp.pop %v2316
  %v2417 = vmul.f32 %v2316, %v2416
  %v2418 = vsub.f32 1.0, %v2417
  %v2419 = vmul.f32 %v2416, %v2418
  %v2420 = vadd.f32 %v2416, %v2419
  %vm2421 = vweird.f32 %v2316
  %vm2422 = vweird.f32 %v2416
  %vm2423 = vmor %vm2421, %vm2422
  %v2424 = vsel %vm2423, %v2416, %v2420
  %v2425 = vand.u32 2147483647, %v2316
  %vm2426 = vcmp.eq.f32.partialorder %v2425, 8.507059e+37
  %v2427 = vand.u32 %v2316, 2147483648
  %v2428 = vor.u32 1.1754944e-38, %v2427
  %v2429 = vsel %vm2426, %v2428, %v2424
  %v2430 = vmul.f32 1.0, %v2429
  %v2431 = vrcp.pop %v2317
  %v2432 = vmul.f32 %v2317, %v2431
  %v2433 = vsub.f32 1.0, %v2432
  %v2434 = vmul.f32 %v2431, %v2433
  %v2435 = vadd.f32 %v2431, %v2434
  %vm2436 = vweird.f32 %v2317
  %vm2437 = vweird.f32 %v2431
  %vm2438 = vmor %vm2436, %vm2437
  %v2439 = vsel %vm2438, %v2431, %v2435
  %v2440 = vand.u32 2147483647, %v2317
  %vm2441 = vcmp.eq.f32.partialorder %v2440, 8.507059e+37
  %v2442 = vand.u32 %v2317, 2147483648
  %v2443 = vor.u32 1.1754944e-38, %v2442
  %v2444 = vsel %vm2441, %v2443, %v2439
  %v2445 = vmul.f32 1.0, %v2444
  %v2446 = vrcp.pop %v2318
  %v2447 = vmul.f32 %v2318, %v2446
  %v2448 = vsub.f32 1.0, %v2447
  %v2449 = vmul.f32 %v2446, %v2448
  %v2450 = vadd.f32 %v2446, %v2449
  %vm2451 = vweird.f32 %v2318
  %vm2452 = vweird.f32 %v2446
  %vm2453 = vmor %vm2451, %vm2452
  %v2454 = vsel %vm2453, %v2446, %v2450
  %v2455 = vand.u32 2147483647, %v2318
  %vm2456 = vcmp.eq.f32.partialorder %v2455, 8.507059e+37
  %v2457 = vand.u32 %v2318, 2147483648
  %v2458 = vor.u32 1.1754944e-38, %v2457
  %v2459 = vsel %vm2456, %v2458, %v2454
  %v2460 = vmul.f32 1.0, %v2459
  %v2461 = vrcp.pop %v2319
  %v2462 = vmul.f32 %v2319, %v2461
  %v2463 = vsub.f32 1.0, %v2462
  %v2464 = vmul.f32 %v2461, %v2463
  %v2465 = vadd.f32 %v2461, %v2464
  %vm2466 = vweird.f32 %v2319
  %vm2467 = vweird.f32 %v2461
  %vm2468 = vmor %vm2466, %vm2467
  %v2469 = vsel %vm2468, %v2461, %v2465
  %v2470 = vand.u32 2147483647, %v2319
  %vm2471 = vcmp.eq.f32.partialorder %v2470, 8.507059e+37
  %v2472 = vand.u32 %v2319, 2147483648
  %v2473 = vor.u32 1.1754944e-38, %v2472
  %v2474 = vsel %vm2471, %v2473, %v2469
  %v2475 = vmul.f32 1.0, %v2474
  %v2476 = vrcp.pop %v2320
  %v2477 = vmul.f32 %v2320, %v2476
  %v2478 = vsub.f32 1.0, %v2477
  %v2479 = vmul.f32 %v2476, %v2478
  %v2480 = vadd.f32 %v2476, %v2479
  %vm2481 = vweird.f32 %v2320
  %vm2482 = vweird.f32 %v2476
  %vm2483 = vmor %vm2481, %vm2482
  %v2484 = vsel %vm2483, %v2476, %v2480
  %v2485 = vand.u32 2147483647, %v2320
  %vm2486 = vcmp.eq.f32.partialorder %v2485, 8.507059e+37
  %v2487 = vand.u32 %v2320, 2147483648
  %v2488 = vor.u32 1.1754944e-38, %v2487
  %v2489 = vsel %vm2486, %v2488, %v2484
  %v2490 = vmul.f32 1.0, %v2489
  %v2491 = vrcp.pop %v2321
  %v2492 = vmul.f32 %v2321, %v2491
  %v2493 = vsub.f32 1.0, %v2492
  %v2494 = vmul.f32 %v2491, %v2493
  %v2495 = vadd.f32 %v2491, %v2494
  %vm2496 = vweird.f32 %v2321
  %vm2497 = vweird.f32 %v2491
  %vm2498 = vmor %vm2496, %vm2497
  %v2499 = vsel %vm2498, %v2491, %v2495
  %v2500 = vand.u32 2147483647, %v2321
  %vm2501 = vcmp.eq.f32.partialorder %v2500, 8.507059e+37
  %v2502 = vand.u32 %v2321, 2147483648
  %v2503 = vor.u32 1.1754944e-38, %v2502
  %v2504 = vsel %vm2501, %v2503, %v2499
  %v2505 = vmul.f32 1.0, %v2504
  %v2506 = vrcp.pop %v2322
  %v2507 = vmul.f32 %v2322, %v2506
  %v2508 = vsub.f32 1.0, %v2507
  %v2509 = vmul.f32 %v2506, %v2508
  %v2510 = vadd.f32 %v2506, %v2509
  %vm2511 = vweird.f32 %v2322
  %vm2512 = vweird.f32 %v2506
  %vm2513 = vmor %vm2511, %vm2512
  %v2514 = vsel %vm2513, %v2506, %v2510
  %v2515 = vand.u32 2147483647, %v2322
  %vm2516 = vcmp.eq.f32.partialorder %v2515, 8.507059e+37
  %v2517 = vand.u32 %v2322, 2147483648
  %v2518 = vor.u32 1.1754944e-38, %v2517
  %v2519 = vsel %vm2516, %v2518, %v2514
  %v2520 = vmul.f32 1.0, %v2519
  %v2521 = vrcp.pop %v2323
  %v2522 = vmul.f32 %v2323, %v2521
  %v2523 = vsub.f32 1.0, %v2522
  %v2524 = vmul.f32 %v2521, %v2523
  %v2525 = vadd.f32 %v2521, %v2524
  %vm2526 = vweird.f32 %v2323
  %vm2527 = vweird.f32 %v2521
  %vm2528 = vmor %vm2526, %vm2527
  %v2529 = vsel %vm2528, %v2521, %v2525
  %v2530 = vand.u32 2147483647, %v2323
  %vm2531 = vcmp.eq.f32.partialorder %v2530, 8.507059e+37
  %v2532 = vand.u32 %v2323, 2147483648
  %v2533 = vor.u32 1.1754944e-38, %v2532
  %v2534 = vsel %vm2531, %v2533, %v2529
  %v2535 = vmul.f32 1.0, %v2534
  %v2536 = vrcp.pop %v2324
  %v2537 = vmul.f32 %v2324, %v2536
  %v2538 = vsub.f32 1.0, %v2537
  %v2539 = vmul.f32 %v2536, %v2538
  %v2540 = vadd.f32 %v2536, %v2539
  %vm2541 = vweird.f32 %v2324
  %vm2542 = vweird.f32 %v2536
  %vm2543 = vmor %vm2541, %vm2542
  %v2544 = vsel %vm2543, %v2536, %v2540
  %v2545 = vand.u32 2147483647, %v2324
  %vm2546 = vcmp.eq.f32.partialorder %v2545, 8.507059e+37
  %v2547 = vand.u32 %v2324, 2147483648
  %v2548 = vor.u32 1.1754944e-38, %v2547
  %v2549 = vsel %vm2546, %v2548, %v2544
  %v2550 = vmul.f32 1.0, %v2549
  %v2551 = vrcp.pop %v2325
  %v2552 = vmul.f32 %v2325, %v2551
  %v2553 = vsub.f32 1.0, %v2552
  %v2554 = vmul.f32 %v2551, %v2553
  %v2555 = vadd.f32 %v2551, %v2554
  %vm2556 = vweird.f32 %v2325
  %vm2557 = vweird.f32 %v2551
  %vm2558 = vmor %vm2556, %vm2557
  %v2559 = vsel %vm2558, %v2551, %v2555
  %v2560 = vand.u32 2147483647, %v2325
  %vm2561 = vcmp.eq.f32.partialorder %v2560, 8.507059e+37
  %v2562 = vand.u32 %v2325, 2147483648
  %v2563 = vor.u32 1.1754944e-38, %v2562
  %v2564 = vsel %vm2561, %v2563, %v2559
  %v2565 = vmul.f32 1.0, %v2564
  %v2582 = vrot.slane %v2246, 1
  %v2583 = vrot.slane %v2247, 1
  %v2584 = vrot.slane %v2248, 1
  %v2585 = vrot.slane %v2249, 1
  %v2586 = vrot.slane %v2250, 1
  %v2587 = vrot.slane %v2251, 1
  %v2588 = vrot.slane %v2252, 1
  %v2589 = vrot.slane %v2253, 1
  %v2590 = vrot.slane %v2254, 1
  %v2591 = vrot.slane %v2255, 1
  %v2592 = vrot.slane %v2256, 1
  %v2593 = vrot.slane %v2257, 1
  %v2594 = vrot.slane %v2258, 1
  %v2595 = vrot.slane %v2259, 1
  %v2596 = vrot.slane %v2260, 1
  %v2597 = vrot.slane %v2261, 1
  %v2614 = vxor.u32 %v2582, 2147483648
  %v2615 = vxor.u32 %v2583, 2147483648
  %v2616 = vxor.u32 %v2584, 2147483648
  %v2617 = vxor.u32 %v2585, 2147483648
  %v2618 = vxor.u32 %v2586, 2147483648
  %v2619 = vxor.u32 %v2587, 2147483648
  %v2620 = vxor.u32 %v2588, 2147483648
  %v2621 = vxor.u32 %v2589, 2147483648
  %v2622 = vxor.u32 %v2590, 2147483648
  %v2623 = vxor.u32 %v2591, 2147483648
  %v2624 = vxor.u32 %v2592, 2147483648
  %v2625 = vxor.u32 %v2593, 2147483648
  %v2626 = vxor.u32 %v2594, 2147483648
  %v2627 = vxor.u32 %v2595, 2147483648
  %v2628 = vxor.u32 %v2596, 2147483648
  %v2629 = vxor.u32 %v2597, 2147483648
  %v2630 = vmul.f32 %v2614, 1.442695
  %v2631 = vpow.pop %v2630
  %v2632 = vmul.f32 %v2615, 1.442695
  %v2633 = vpow.pop %v2632
  %v2634 = vmul.f32 %v2616, 1.442695
  %v2635 = vpow.pop %v2634
  %v2636 = vmul.f32 %v2617, 1.442695
  %v2637 = vpow.pop %v2636
  %v2638 = vmul.f32 %v2618, 1.442695
  %v2639 = vpow.pop %v2638
  %v2640 = vmul.f32 %v2619, 1.442695
  %v2641 = vpow.pop %v2640
  %v2642 = vmul.f32 %v2620, 1.442695
  %v2643 = vpow.pop %v2642
  %v2644 = vmul.f32 %v2621, 1.442695
  %v2645 = vpow.pop %v2644
  %v2646 = vmul.f32 %v2622, 1.442695
  %v2647 = vpow.pop %v2646
  %v2648 = vmul.f32 %v2623, 1.442695
  %v2649 = vpow.pop %v2648
  %v2650 = vmul.f32 %v2624, 1.442695
  %v2651 = vpow.pop %v2650
  %v2652 = vmul.f32 %v2625, 1.442695
  %v2653 = vpow.pop %v2652
  %v2654 = vmul.f32 %v2626, 1.442695
  %v2655 = vpow.pop %v2654
  %v2656 = vmul.f32 %v2627, 1.442695
  %v2657 = vpow.pop %v2656
  %v2658 = vmul.f32 %v2628, 1.442695
  %v2659 = vpow.pop %v2658
  %v2660 = vmul.f32 %v2629, 1.442695
  %v2661 = vpow.pop %v2660
  %v2662 = vadd.f32 %v2631, 1.0
  %v2663 = vadd.f32 %v2633, 1.0
  %v2664 = vadd.f32 %v2635, 1.0
  %v2665 = vadd.f32 %v2637, 1.0
  %v2666 = vadd.f32 %v2639, 1.0
  %v2667 = vadd.f32 %v2641, 1.0
  %v2668 = vadd.f32 %v2643, 1.0
  %v2669 = vadd.f32 %v2645, 1.0
  %v2670 = vadd.f32 %v2647, 1.0
  %v2671 = vadd.f32 %v2649, 1.0
  %v2672 = vadd.f32 %v2651, 1.0
  %v2673 = vadd.f32 %v2653, 1.0
  %v2674 = vadd.f32 %v2655, 1.0
  %v2675 = vadd.f32 %v2657, 1.0
  %v2676 = vadd.f32 %v2659, 1.0
  %v2677 = vadd.f32 %v2661, 1.0
  %v2678 = vrcp.pop %v2662
  %v2679 = vmul.f32 %v2662, %v2678
  %v2680 = vsub.f32 1.0, %v2679
  %v2681 = vmul.f32 %v2678, %v2680
  %v2682 = vadd.f32 %v2678, %v2681
  %vm2683 = vweird.f32 %v2662
  %vm2684 = vweird.f32 %v2678
  %vm2685 = vmor %vm2683, %vm2684
  %v2686 = vsel %vm2685, %v2678, %v2682
  %v2687 = vand.u32 2147483647, %v2662
  %vm2688 = vcmp.eq.f32.partialorder %v2687, 8.507059e+37
  %v2689 = vand.u32 %v2662, 2147483648
  %v2690 = vor.u32 1.1754944e-38, %v2689
  %v2691 = vsel %vm2688, %v2690, %v2686
  %v2692 = vmul.f32 1.0, %v2691
  %v2693 = vrcp.pop %v2663
  %v2694 = vmul.f32 %v2663, %v2693
  %v2695 = vsub.f32 1.0, %v2694
  %v2696 = vmul.f32 %v2693, %v2695
  %v2697 = vadd.f32 %v2693, %v2696
  %vm2698 = vweird.f32 %v2663
  %vm2699 = vweird.f32 %v2693
  %vm2700 = vmor %vm2698, %vm2699
  %v2701 = vsel %vm2700, %v2693, %v2697
  %v2702 = vand.u32 2147483647, %v2663
  %vm2703 = vcmp.eq.f32.partialorder %v2702, 8.507059e+37
  %v2704 = vand.u32 %v2663, 2147483648
  %v2705 = vor.u32 1.1754944e-38, %v2704
  %v2706 = vsel %vm2703, %v2705, %v2701
  %v2707 = vmul.f32 1.0, %v2706
  %v2708 = vrcp.pop %v2664
  %v2709 = vmul.f32 %v2664, %v2708
  %v2710 = vsub.f32 1.0, %v2709
  %v2711 = vmul.f32 %v2708, %v2710
  %v2712 = vadd.f32 %v2708, %v2711
  %vm2713 = vweird.f32 %v2664
  %vm2714 = vweird.f32 %v2708
  %vm2715 = vmor %vm2713, %vm2714
  %v2716 = vsel %vm2715, %v2708, %v2712
  %v2717 = vand.u32 2147483647, %v2664
  %vm2718 = vcmp.eq.f32.partialorder %v2717, 8.507059e+37
  %v2719 = vand.u32 %v2664, 2147483648
  %v2720 = vor.u32 1.1754944e-38, %v2719
  %v2721 = vsel %vm2718, %v2720, %v2716
  %v2722 = vmul.f32 1.0, %v2721
  %v2723 = vrcp.pop %v2665
  %v2724 = vmul.f32 %v2665, %v2723
  %v2725 = vsub.f32 1.0, %v2724
  %v2726 = vmul.f32 %v2723, %v2725
  %v2727 = vadd.f32 %v2723, %v2726
  %vm2728 = vweird.f32 %v2665
  %vm2729 = vweird.f32 %v2723
  %vm2730 = vmor %vm2728, %vm2729
  %v2731 = vsel %vm2730, %v2723, %v2727
  %v2732 = vand.u32 2147483647, %v2665
  %vm2733 = vcmp.eq.f32.partialorder %v2732, 8.507059e+37
  %v2734 = vand.u32 %v2665, 2147483648
  %v2735 = vor.u32 1.1754944e-38, %v2734
  %v2736 = vsel %vm2733, %v2735, %v2731
  %v2737 = vmul.f32 1.0, %v2736
  %v2738 = vrcp.pop %v2666
  %v2739 = vmul.f32 %v2666, %v2738
  %v2740 = vsub.f32 1.0, %v2739
  %v2741 = vmul.f32 %v2738, %v2740
  %v2742 = vadd.f32 %v2738, %v2741
  %vm2743 = vweird.f32 %v2666
  %vm2744 = vweird.f32 %v2738
  %vm2745 = vmor %vm2743, %vm2744
  %v2746 = vsel %vm2745, %v2738, %v2742
  %v2747 = vand.u32 2147483647, %v2666
  %vm2748 = vcmp.eq.f32.partialorder %v2747, 8.507059e+37
  %v2749 = vand.u32 %v2666, 2147483648
  %v2750 = vor.u32 1.1754944e-38, %v2749
  %v2751 = vsel %vm2748, %v2750, %v2746
  %v2752 = vmul.f32 1.0, %v2751
  %v2753 = vrcp.pop %v2667
  %v2754 = vmul.f32 %v2667, %v2753
  %v2755 = vsub.f32 1.0, %v2754
  %v2756 = vmul.f32 %v2753, %v2755
  %v2757 = vadd.f32 %v2753, %v2756
  %vm2758 = vweird.f32 %v2667
  %vm2759 = vweird.f32 %v2753
  %vm2760 = vmor %vm2758, %vm2759
  %v2761 = vsel %vm2760, %v2753, %v2757
  %v2762 = vand.u32 2147483647, %v2667
  %vm2763 = vcmp.eq.f32.partialorder %v2762, 8.507059e+37
  %v2764 = vand.u32 %v2667, 2147483648
  %v2765 = vor.u32 1.1754944e-38, %v2764
  %v2766 = vsel %vm2763, %v2765, %v2761
  %v2767 = vmul.f32 1.0, %v2766
  %v2768 = vrcp.pop %v2668
  %v2769 = vmul.f32 %v2668, %v2768
  %v2770 = vsub.f32 1.0, %v2769
  %v2771 = vmul.f32 %v2768, %v2770
  %v2772 = vadd.f32 %v2768, %v2771
  %vm2773 = vweird.f32 %v2668
  %vm2774 = vweird.f32 %v2768
  %vm2775 = vmor %vm2773, %vm2774
  %v2776 = vsel %vm2775, %v2768, %v2772
  %v2777 = vand.u32 2147483647, %v2668
  %vm2778 = vcmp.eq.f32.partialorder %v2777, 8.507059e+37
  %v2779 = vand.u32 %v2668, 2147483648
  %v2780 = vor.u32 1.1754944e-38, %v2779
  %v2781 = vsel %vm2778, %v2780, %v2776
  %v2782 = vmul.f32 1.0, %v2781
  %v2783 = vrcp.pop %v2669
  %v2784 = vmul.f32 %v2669, %v2783
  %v2785 = vsub.f32 1.0, %v2784
  %v2786 = vmul.f32 %v2783, %v2785
  %v2787 = vadd.f32 %v2783, %v2786
  %vm2788 = vweird.f32 %v2669
  %vm2789 = vweird.f32 %v2783
  %vm2790 = vmor %vm2788, %vm2789
  %v2791 = vsel %vm2790, %v2783, %v2787
  %v2792 = vand.u32 2147483647, %v2669
  %vm2793 = vcmp.eq.f32.partialorder %v2792, 8.507059e+37
  %v2794 = vand.u32 %v2669, 2147483648
  %v2795 = vor.u32 1.1754944e-38, %v2794
  %v2796 = vsel %vm2793, %v2795, %v2791
  %v2797 = vmul.f32 1.0, %v2796
  %v2798 = vrcp.pop %v2670
  %v2799 = vmul.f32 %v2670, %v2798
  %v2800 = vsub.f32 1.0, %v2799
  %v2801 = vmul.f32 %v2798, %v2800
  %v2802 = vadd.f32 %v2798, %v2801
  %vm2803 = vweird.f32 %v2670
  %vm2804 = vweird.f32 %v2798
  %vm2805 = vmor %vm2803, %vm2804
  %v2806 = vsel %vm2805, %v2798, %v2802
  %v2807 = vand.u32 2147483647, %v2670
  %vm2808 = vcmp.eq.f32.partialorder %v2807, 8.507059e+37
  %v2809 = vand.u32 %v2670, 2147483648
  %v2810 = vor.u32 1.1754944e-38, %v2809
  %v2811 = vsel %vm2808, %v2810, %v2806
  %v2812 = vmul.f32 1.0, %v2811
  %v2813 = vrcp.pop %v2671
  %v2814 = vmul.f32 %v2671, %v2813
  %v2815 = vsub.f32 1.0, %v2814
  %v2816 = vmul.f32 %v2813, %v2815
  %v2817 = vadd.f32 %v2813, %v2816
  %vm2818 = vweird.f32 %v2671
  %vm2819 = vweird.f32 %v2813
  %vm2820 = vmor %vm2818, %vm2819
  %v2821 = vsel %vm2820, %v2813, %v2817
  %v2822 = vand.u32 2147483647, %v2671
  %vm2823 = vcmp.eq.f32.partialorder %v2822, 8.507059e+37
  %v2824 = vand.u32 %v2671, 2147483648
  %v2825 = vor.u32 1.1754944e-38, %v2824
  %v2826 = vsel %vm2823, %v2825, %v2821
  %v2827 = vmul.f32 1.0, %v2826
  %v2828 = vrcp.pop %v2672
  %v2829 = vmul.f32 %v2672, %v2828
  %v2830 = vsub.f32 1.0, %v2829
  %v2831 = vmul.f32 %v2828, %v2830
  %v2832 = vadd.f32 %v2828, %v2831
  %vm2833 = vweird.f32 %v2672
  %vm2834 = vweird.f32 %v2828
  %vm2835 = vmor %vm2833, %vm2834
  %v2836 = vsel %vm2835, %v2828, %v2832
  %v2837 = vand.u32 2147483647, %v2672
  %vm2838 = vcmp.eq.f32.partialorder %v2837, 8.507059e+37
  %v2839 = vand.u32 %v2672, 2147483648
  %v2840 = vor.u32 1.1754944e-38, %v2839
  %v2841 = vsel %vm2838, %v2840, %v2836
  %v2842 = vmul.f32 1.0, %v2841
  %v2843 = vrcp.pop %v2673
  %v2844 = vmul.f32 %v2673, %v2843
  %v2845 = vsub.f32 1.0, %v2844
  %v2846 = vmul.f32 %v2843, %v2845
  %v2847 = vadd.f32 %v2843, %v2846
  %vm2848 = vweird.f32 %v2673
  %vm2849 = vweird.f32 %v2843
  %vm2850 = vmor %vm2848, %vm2849
  %v2851 = vsel %vm2850, %v2843, %v2847
  %v2852 = vand.u32 2147483647, %v2673
  %vm2853 = vcmp.eq.f32.partialorder %v2852, 8.507059e+37
  %v2854 = vand.u32 %v2673, 2147483648
  %v2855 = vor.u32 1.1754944e-38, %v2854
  %v2856 = vsel %vm2853, %v2855, %v2851
  %v2857 = vmul.f32 1.0, %v2856
  %v2858 = vrcp.pop %v2674
  %v2859 = vmul.f32 %v2674, %v2858
  %v2860 = vsub.f32 1.0, %v2859
  %v2861 = vmul.f32 %v2858, %v2860
  %v2862 = vadd.f32 %v2858, %v2861
  %vm2863 = vweird.f32 %v2674
  %vm2864 = vweird.f32 %v2858
  %vm2865 = vmor %vm2863, %vm2864
  %v2866 = vsel %vm2865, %v2858, %v2862
  %v2867 = vand.u32 2147483647, %v2674
  %vm2868 = vcmp.eq.f32.partialorder %v2867, 8.507059e+37
  %v2869 = vand.u32 %v2674, 2147483648
  %v2870 = vor.u32 1.1754944e-38, %v2869
  %v2871 = vsel %vm2868, %v2870, %v2866
  %v2872 = vmul.f32 1.0, %v2871
  %v2873 = vrcp.pop %v2675
  %v2874 = vmul.f32 %v2675, %v2873
  %v2875 = vsub.f32 1.0, %v2874
  %v2876 = vmul.f32 %v2873, %v2875
  %v2877 = vadd.f32 %v2873, %v2876
  %vm2878 = vweird.f32 %v2675
  %vm2879 = vweird.f32 %v2873
  %vm2880 = vmor %vm2878, %vm2879
  %v2881 = vsel %vm2880, %v2873, %v2877
  %v2882 = vand.u32 2147483647, %v2675
  %vm2883 = vcmp.eq.f32.partialorder %v2882, 8.507059e+37
  %v2884 = vand.u32 %v2675, 2147483648
  %v2885 = vor.u32 1.1754944e-38, %v2884
  %v2886 = vsel %vm2883, %v2885, %v2881
  %v2887 = vmul.f32 1.0, %v2886
  %v2888 = vrcp.pop %v2676
  %v2889 = vmul.f32 %v2676, %v2888
  %v2890 = vsub.f32 1.0, %v2889
  %v2891 = vmul.f32 %v2888, %v2890
  %v2892 = vadd.f32 %v2888, %v2891
  %vm2893 = vweird.f32 %v2676
  %vm2894 = vweird.f32 %v2888
  %vm2895 = vmor %vm2893, %vm2894
  %v2896 = vsel %vm2895, %v2888, %v2892
  %v2897 = vand.u32 2147483647, %v2676
  %vm2898 = vcmp.eq.f32.partialorder %v2897, 8.507059e+37
  %v2899 = vand.u32 %v2676, 2147483648
  %v2900 = vor.u32 1.1754944e-38, %v2899
  %v2901 = vsel %vm2898, %v2900, %v2896
  %v2902 = vmul.f32 1.0, %v2901
  %v2903 = vrcp.pop %v2677
  %v2904 = vmul.f32 %v2677, %v2903
  %v2905 = vsub.f32 1.0, %v2904
  %v2906 = vmul.f32 %v2903, %v2905
  %v2907 = vadd.f32 %v2903, %v2906
  %vm2908 = vweird.f32 %v2677
  %vm2909 = vweird.f32 %v2903
  %vm2910 = vmor %vm2908, %vm2909
  %v2911 = vsel %vm2910, %v2903, %v2907
  %v2912 = vand.u32 2147483647, %v2677
  %vm2913 = vcmp.eq.f32.partialorder %v2912, 8.507059e+37
  %v2914 = vand.u32 %v2677, 2147483648
  %v2915 = vor.u32 1.1754944e-38, %v2914
  %v2916 = vsel %vm2913, %v2915, %v2911
  %v2917 = vmul.f32 1.0, %v2916
  %v2918 = vrot.slane %v2246, 2
  %v2919 = vrot.slane %v2247, 2
  %v2920 = vrot.slane %v2248, 2
  %v2921 = vrot.slane %v2249, 2
  %v2922 = vrot.slane %v2250, 2
  %v2923 = vrot.slane %v2251, 2
  %v2924 = vrot.slane %v2252, 2
  %v2925 = vrot.slane %v2253, 2
  %v2926 = vrot.slane %v2254, 2
  %v2927 = vrot.slane %v2255, 2
  %v2928 = vrot.slane %v2256, 2
  %v2929 = vrot.slane %v2257, 2
  %v2930 = vrot.slane %v2258, 2
  %v2931 = vrot.slane %v2259, 2
  %v2932 = vrot.slane %v2260, 2
  %v2933 = vrot.slane %v2261, 2
  %v2950 = vtanh.pop %v2918
  %v2951 = vtanh.pop %v2919
  %v2952 = vtanh.pop %v2920
  %v2953 = vtanh.pop %v2921
  %v2954 = vtanh.pop %v2922
  %v2955 = vtanh.pop %v2923
  %v2956 = vtanh.pop %v2924
  %v2957 = vtanh.pop %v2925
  %v2958 = vtanh.pop %v2926
  %v2959 = vtanh.pop %v2927
  %v2960 = vtanh.pop %v2928
  %v2961 = vtanh.pop %v2929
  %v2962 = vtanh.pop %v2930
  %v2963 = vtanh.pop %v2931
  %v2964 = vtanh.pop %v2932
  %v2965 = vtanh.pop %v2933
  %v2966 = vrot.slane %v2246, 3
  %v2967 = vrot.slane %v2247, 3
  %v2968 = vrot.slane %v2248, 3
  %v2969 = vrot.slane %v2249, 3
  %v2970 = vrot.slane %v2250, 3
  %v2971 = vrot.slane %v2251, 3
  %v2972 = vrot.slane %v2252, 3
  %v2973 = vrot.slane %v2253, 3
  %v2974 = vrot.slane %v2254, 3
  %v2975 = vrot.slane %v2255, 3
  %v2976 = vrot.slane %v2256, 3
  %v2977 = vrot.slane %v2257, 3
  %v2978 = vrot.slane %v2258, 3
  %v2979 = vrot.slane %v2259, 3
  %v2980 = vrot.slane %v2260, 3
  %v2981 = vrot.slane %v2261, 3
  %v2998 = vxor.u32 %v2966, 2147483648
  %v2999 = vxor.u32 %v2967, 2147483648
  %v3000 = vxor.u32 %v2968, 2147483648
  %v3001 = vxor.u32 %v2969, 2147483648
  %v3002 = vxor.u32 %v2970, 2147483648
  %v3003 = vxor.u32 %v2971, 2147483648
  %v3004 = vxor.u32 %v2972, 2147483648
  %v3005 = vxor.u32 %v2973, 2147483648
  %v3006 = vxor.u32 %v2974, 2147483648
  %v3007 = vxor.u32 %v2975, 2147483648
  %v3008 = vxor.u32 %v2976, 2147483648
  %v3009 = vxor.u32 %v2977, 2147483648
  %v3010 = vxor.u32 %v2978, 2147483648
  %v3011 = vxor.u32 %v2979, 2147483648
  %v3012 = vxor.u32 %v2980, 2147483648
  %v3013 = vxor.u32 %v2981, 2147483648
  %v3014 = vmul.f32 %v2998, 1.442695
  %v3015 = vpow.pop %v3014
  %v3016 = vmul.f32 %v2999, 1.442695
  %v3017 = vpow.pop %v3016
  %v3018 = vmul.f32 %v3000, 1.442695
  %v3019 = vpow.pop %v3018
  %v3020 = vmul.f32 %v3001, 1.442695
  %v3021 = vpow.pop %v3020
  %v3022 = vmul.f32 %v3002, 1.442695
  %v3023 = vpow.pop %v3022
  %v3024 = vmul.f32 %v3003, 1.442695
  %v3025 = vpow.pop %v3024
  %v3026 = vmul.f32 %v3004, 1.442695
  %v3027 = vpow.pop %v3026
  %v3028 = vmul.f32 %v3005, 1.442695
  %v3029 = vpow.pop %v3028
  %v3030 = vmul.f32 %v3006, 1.442695
  %v3031 = vpow.pop %v3030
  %v3032 = vmul.f32 %v3007, 1.442695
  %v3033 = vpow.pop %v3032
  %v3034 = vmul.f32 %v3008, 1.442695
  %v3035 = vpow.pop %v3034
  %v3036 = vmul.f32 %v3009, 1.442695
  %v3037 = vpow.pop %v3036
  %v3038 = vmul.f32 %v3010, 1.442695
  %v3039 = vpow.pop %v3038
  %v3040 = vmul.f32 %v3011, 1.442695
  %v3041 = vpow.pop %v3040
  %v3042 = vmul.f32 %v3012, 1.442695
  %v3043 = vpow.pop %v3042
  %v3044 = vmul.f32 %v3013, 1.442695
  %v3045 = vpow.pop %v3044
  %v3046 = vadd.f32 %v3015, 1.0
  %v3047 = vadd.f32 %v3017, 1.0
  %v3048 = vadd.f32 %v3019, 1.0
  %v3049 = vadd.f32 %v3021, 1.0
  %v3050 = vadd.f32 %v3023, 1.0
  %v3051 = vadd.f32 %v3025, 1.0
  %v3052 = vadd.f32 %v3027, 1.0
  %v3053 = vadd.f32 %v3029, 1.0
  %v3054 = vadd.f32 %v3031, 1.0
  %v3055 = vadd.f32 %v3033, 1.0
  %v3056 = vadd.f32 %v3035, 1.0
  %v3057 = vadd.f32 %v3037, 1.0
  %v3058 = vadd.f32 %v3039, 1.0
  %v3059 = vadd.f32 %v3041, 1.0
  %v3060 = vadd.f32 %v3043, 1.0
  %v3061 = vadd.f32 %v3045, 1.0
  %v3062 = vrcp.pop %v3046
  %v3063 = vmul.f32 %v3046, %v3062
  %v3064 = vsub.f32 1.0, %v3063
  %v3065 = vmul.f32 %v3062, %v3064
  %v3066 = vadd.f32 %v3062, %v3065
  %vm3067 = vweird.f32 %v3046
  %vm3068 = vweird.f32 %v3062
  %vm3069 = vmor %vm3067, %vm3068
  %v3070 = vsel %vm3069, %v3062, %v3066
  %v3071 = vand.u32 2147483647, %v3046
  %vm3072 = vcmp.eq.f32.partialorder %v3071, 8.507059e+37
  %v3073 = vand.u32 %v3046, 2147483648
  %v3074 = vor.u32 1.1754944e-38, %v3073
  %v3075 = vsel %vm3072, %v3074, %v3070
  %v3076 = vmul.f32 1.0, %v3075
  %v3077 = vrcp.pop %v3047
  %v3078 = vmul.f32 %v3047, %v3077
  %v3079 = vsub.f32 1.0, %v3078
  %v3080 = vmul.f32 %v3077, %v3079
  %v3081 = vadd.f32 %v3077, %v3080
  %vm3082 = vweird.f32 %v3047
  %vm3083 = vweird.f32 %v3077
  %vm3084 = vmor %vm3082, %vm3083
  %v3085 = vsel %vm3084, %v3077, %v3081
  %v3086 = vand.u32 2147483647, %v3047
  %vm3087 = vcmp.eq.f32.partialorder %v3086, 8.507059e+37
  %v3088 = vand.u32 %v3047, 2147483648
  %v3089 = vor.u32 1.1754944e-38, %v3088
  %v3090 = vsel %vm3087, %v3089, %v3085
  %v3091 = vmul.f32 1.0, %v3090
  %v3092 = vrcp.pop %v3048
  %v3093 = vmul.f32 %v3048, %v3092
  %v3094 = vsub.f32 1.0, %v3093
  %v3095 = vmul.f32 %v3092, %v3094
  %v3096 = vadd.f32 %v3092, %v3095
  %vm3097 = vweird.f32 %v3048
  %vm3098 = vweird.f32 %v3092
  %vm3099 = vmor %vm3097, %vm3098
  %v3100 = vsel %vm3099, %v3092, %v3096
  %v3101 = vand.u32 2147483647, %v3048
  %vm3102 = vcmp.eq.f32.partialorder %v3101, 8.507059e+37
  %v3103 = vand.u32 %v3048, 2147483648
  %v3104 = vor.u32 1.1754944e-38, %v3103
  %v3105 = vsel %vm3102, %v3104, %v3100
  %v3106 = vmul.f32 1.0, %v3105
  %v3107 = vrcp.pop %v3049
  %v3108 = vmul.f32 %v3049, %v3107
  %v3109 = vsub.f32 1.0, %v3108
  %v3110 = vmul.f32 %v3107, %v3109
  %v3111 = vadd.f32 %v3107, %v3110
  %vm3112 = vweird.f32 %v3049
  %vm3113 = vweird.f32 %v3107
  %vm3114 = vmor %vm3112, %vm3113
  %v3115 = vsel %vm3114, %v3107, %v3111
  %v3116 = vand.u32 2147483647, %v3049
  %vm3117 = vcmp.eq.f32.partialorder %v3116, 8.507059e+37
  %v3118 = vand.u32 %v3049, 2147483648
  %v3119 = vor.u32 1.1754944e-38, %v3118
  %v3120 = vsel %vm3117, %v3119, %v3115
  %v3121 = vmul.f32 1.0, %v3120
  %v3122 = vrcp.pop %v3050
  %v3123 = vmul.f32 %v3050, %v3122
  %v3124 = vsub.f32 1.0, %v3123
  %v3125 = vmul.f32 %v3122, %v3124
  %v3126 = vadd.f32 %v3122, %v3125
  %vm3127 = vweird.f32 %v3050
  %vm3128 = vweird.f32 %v3122
  %vm3129 = vmor %vm3127, %vm3128
  %v3130 = vsel %vm3129, %v3122, %v3126
  %v3131 = vand.u32 2147483647, %v3050
  %vm3132 = vcmp.eq.f32.partialorder %v3131, 8.507059e+37
  %v3133 = vand.u32 %v3050, 2147483648
  %v3134 = vor.u32 1.1754944e-38, %v3133
  %v3135 = vsel %vm3132, %v3134, %v3130
  %v3136 = vmul.f32 1.0, %v3135
  %v3137 = vrcp.pop %v3051
  %v3138 = vmul.f32 %v3051, %v3137
  %v3139 = vsub.f32 1.0, %v3138
  %v3140 = vmul.f32 %v3137, %v3139
  %v3141 = vadd.f32 %v3137, %v3140
  %vm3142 = vweird.f32 %v3051
  %vm3143 = vweird.f32 %v3137
  %vm3144 = vmor %vm3142, %vm3143
  %v3145 = vsel %vm3144, %v3137, %v3141
  %v3146 = vand.u32 2147483647, %v3051
  %vm3147 = vcmp.eq.f32.partialorder %v3146, 8.507059e+37
  %v3148 = vand.u32 %v3051, 2147483648
  %v3149 = vor.u32 1.1754944e-38, %v3148
  %v3150 = vsel %vm3147, %v3149, %v3145
  %v3151 = vmul.f32 1.0, %v3150
  %v3152 = vrcp.pop %v3052
  %v3153 = vmul.f32 %v3052, %v3152
  %v3154 = vsub.f32 1.0, %v3153
  %v3155 = vmul.f32 %v3152, %v3154
  %v3156 = vadd.f32 %v3152, %v3155
  %vm3157 = vweird.f32 %v3052
  %vm3158 = vweird.f32 %v3152
  %vm3159 = vmor %vm3157, %vm3158
  %v3160 = vsel %vm3159, %v3152, %v3156
  %v3161 = vand.u32 2147483647, %v3052
  %vm3162 = vcmp.eq.f32.partialorder %v3161, 8.507059e+37
  %v3163 = vand.u32 %v3052, 2147483648
  %v3164 = vor.u32 1.1754944e-38, %v3163
  %v3165 = vsel %vm3162, %v3164, %v3160
  %v3166 = vmul.f32 1.0, %v3165
  %v3167 = vrcp.pop %v3053
  %v3168 = vmul.f32 %v3053, %v3167
  %v3169 = vsub.f32 1.0, %v3168
  %v3170 = vmul.f32 %v3167, %v3169
  %v3171 = vadd.f32 %v3167, %v3170
  %vm3172 = vweird.f32 %v3053
  %vm3173 = vweird.f32 %v3167
  %vm3174 = vmor %vm3172, %vm3173
  %v3175 = vsel %vm3174, %v3167, %v3171
  %v3176 = vand.u32 2147483647, %v3053
  %vm3177 = vcmp.eq.f32.partialorder %v3176, 8.507059e+37
  %v3178 = vand.u32 %v3053, 2147483648
  %v3179 = vor.u32 1.1754944e-38, %v3178
  %v3180 = vsel %vm3177, %v3179, %v3175
  %v3181 = vmul.f32 1.0, %v3180
  %v3182 = vrcp.pop %v3054
  %v3183 = vmul.f32 %v3054, %v3182
  %v3184 = vsub.f32 1.0, %v3183
  %v3185 = vmul.f32 %v3182, %v3184
  %v3186 = vadd.f32 %v3182, %v3185
  %vm3187 = vweird.f32 %v3054
  %vm3188 = vweird.f32 %v3182
  %vm3189 = vmor %vm3187, %vm3188
  %v3190 = vsel %vm3189, %v3182, %v3186
  %v3191 = vand.u32 2147483647, %v3054
  %vm3192 = vcmp.eq.f32.partialorder %v3191, 8.507059e+37
  %v3193 = vand.u32 %v3054, 2147483648
  %v3194 = vor.u32 1.1754944e-38, %v3193
  %v3195 = vsel %vm3192, %v3194, %v3190
  %v3196 = vmul.f32 1.0, %v3195
  %v3197 = vrcp.pop %v3055
  %v3198 = vmul.f32 %v3055, %v3197
  %v3199 = vsub.f32 1.0, %v3198
  %v3200 = vmul.f32 %v3197, %v3199
  %v3201 = vadd.f32 %v3197, %v3200
  %vm3202 = vweird.f32 %v3055
  %vm3203 = vweird.f32 %v3197
  %vm3204 = vmor %vm3202, %vm3203
  %v3205 = vsel %vm3204, %v3197, %v3201
  %v3206 = vand.u32 2147483647, %v3055
  %vm3207 = vcmp.eq.f32.partialorder %v3206, 8.507059e+37
  %v3208 = vand.u32 %v3055, 2147483648
  %v3209 = vor.u32 1.1754944e-38, %v3208
  %v3210 = vsel %vm3207, %v3209, %v3205
  %v3211 = vmul.f32 1.0, %v3210
  %v3212 = vrcp.pop %v3056
  %v3213 = vmul.f32 %v3056, %v3212
  %v3214 = vsub.f32 1.0, %v3213
  %v3215 = vmul.f32 %v3212, %v3214
  %v3216 = vadd.f32 %v3212, %v3215
  %vm3217 = vweird.f32 %v3056
  %vm3218 = vweird.f32 %v3212
  %vm3219 = vmor %vm3217, %vm3218
  %v3220 = vsel %vm3219, %v3212, %v3216
  %v3221 = vand.u32 2147483647, %v3056
  %vm3222 = vcmp.eq.f32.partialorder %v3221, 8.507059e+37
  %v3223 = vand.u32 %v3056, 2147483648
  %v3224 = vor.u32 1.1754944e-38, %v3223
  %v3225 = vsel %vm3222, %v3224, %v3220
  %v3226 = vmul.f32 1.0, %v3225
  %v3227 = vrcp.pop %v3057
  %v3228 = vmul.f32 %v3057, %v3227
  %v3229 = vsub.f32 1.0, %v3228
  %v3230 = vmul.f32 %v3227, %v3229
  %v3231 = vadd.f32 %v3227, %v3230
  %vm3232 = vweird.f32 %v3057
  %vm3233 = vweird.f32 %v3227
  %vm3234 = vmor %vm3232, %vm3233
  %v3235 = vsel %vm3234, %v3227, %v3231
  %v3236 = vand.u32 2147483647, %v3057
  %vm3237 = vcmp.eq.f32.partialorder %v3236, 8.507059e+37
  %v3238 = vand.u32 %v3057, 2147483648
  %v3239 = vor.u32 1.1754944e-38, %v3238
  %v3240 = vsel %vm3237, %v3239, %v3235
  %v3241 = vmul.f32 1.0, %v3240
  %v3242 = vrcp.pop %v3058
  %v3243 = vmul.f32 %v3058, %v3242
  %v3244 = vsub.f32 1.0, %v3243
  %v3245 = vmul.f32 %v3242, %v3244
  %v3246 = vadd.f32 %v3242, %v3245
  %vm3247 = vweird.f32 %v3058
  %vm3248 = vweird.f32 %v3242
  %vm3249 = vmor %vm3247, %vm3248
  %v3250 = vsel %vm3249, %v3242, %v3246
  %v3251 = vand.u32 2147483647, %v3058
  %vm3252 = vcmp.eq.f32.partialorder %v3251, 8.507059e+37
  %v3253 = vand.u32 %v3058, 2147483648
  %v3254 = vor.u32 1.1754944e-38, %v3253
  %v3255 = vsel %vm3252, %v3254, %v3250
  %v3256 = vmul.f32 1.0, %v3255
  %v3257 = vrcp.pop %v3059
  %v3258 = vmul.f32 %v3059, %v3257
  %v3259 = vsub.f32 1.0, %v3258
  %v3260 = vmul.f32 %v3257, %v3259
  %v3261 = vadd.f32 %v3257, %v3260
  %vm3262 = vweird.f32 %v3059
  %vm3263 = vweird.f32 %v3257
  %vm3264 = vmor %vm3262, %vm3263
  %v3265 = vsel %vm3264, %v3257, %v3261
  %v3266 = vand.u32 2147483647, %v3059
  %vm3267 = vcmp.eq.f32.partialorder %v3266, 8.507059e+37
  %v3268 = vand.u32 %v3059, 2147483648
  %v3269 = vor.u32 1.1754944e-38, %v3268
  %v3270 = vsel %vm3267, %v3269, %v3265
  %v3271 = vmul.f32 1.0, %v3270
  %v3272 = vrcp.pop %v3060
  %v3273 = vmul.f32 %v3060, %v3272
  %v3274 = vsub.f32 1.0, %v3273
  %v3275 = vmul.f32 %v3272, %v3274
  %v3276 = vadd.f32 %v3272, %v3275
  %vm3277 = vweird.f32 %v3060
  %vm3278 = vweird.f32 %v3272
  %vm3279 = vmor %vm3277, %vm3278
  %v3280 = vsel %vm3279, %v3272, %v3276
  %v3281 = vand.u32 2147483647, %v3060
  %vm3282 = vcmp.eq.f32.partialorder %v3281, 8.507059e+37
  %v3283 = vand.u32 %v3060, 2147483648
  %v3284 = vor.u32 1.1754944e-38, %v3283
  %v3285 = vsel %vm3282, %v3284, %v3280
  %v3286 = vmul.f32 1.0, %v3285
  %v3287 = vrcp.pop %v3061
  %v3288 = vmul.f32 %v3061, %v3287
  %v3289 = vsub.f32 1.0, %v3288
  %v3290 = vmul.f32 %v3287, %v3289
  %v3291 = vadd.f32 %v3287, %v3290
  %vm3292 = vweird.f32 %v3061
  %vm3293 = vweird.f32 %v3287
  %vm3294 = vmor %vm3292, %vm3293
  %v3295 = vsel %vm3294, %v3287, %v3291
  %v3296 = vand.u32 2147483647, %v3061
  %vm3297 = vcmp.eq.f32.partialorder %v3296, 8.507059e+37
  %v3298 = vand.u32 %v3061, 2147483648
  %v3299 = vor.u32 1.1754944e-38, %v3298
  %v3300 = vsel %vm3297, %v3299, %v3295
  %v3301 = vmul.f32 1.0, %v3300
  %v3302 = vmul.f32 %v2692, %v1859
  %v3303 = vmul.f32 %v2707, %v1860
  %v3304 = vmul.f32 %v2722, %v1861
  %v3305 = vmul.f32 %v2737, %v1862
  %v3306 = vmul.f32 %v2752, %v1863
  %v3307 = vmul.f32 %v2767, %v1864
  %v3308 = vmul.f32 %v2782, %v1865
  %v3309 = vmul.f32 %v2797, %v1866
  %v3310 = vmul.f32 %v2812, %v1867
  %v3311 = vmul.f32 %v2827, %v1868
  %v3312 = vmul.f32 %v2842, %v1869
  %v3313 = vmul.f32 %v2857, %v1870
  %v3314 = vmul.f32 %v2872, %v1871
  %v3315 = vmul.f32 %v2887, %v1872
  %v3316 = vmul.f32 %v2902, %v1873
  %v3317 = vmul.f32 %v2917, %v1874
  %v3318 = vmul.f32 %v2340, %v2950
  %v3319 = vmul.f32 %v2355, %v2951
  %v3320 = vmul.f32 %v2370, %v2952
  %v3321 = vmul.f32 %v2385, %v2953
  %v3322 = vmul.f32 %v2400, %v2954
  %v3323 = vmul.f32 %v2415, %v2955
  %v3324 = vmul.f32 %v2430, %v2956
  %v3325 = vmul.f32 %v2445, %v2957
  %v3326 = vmul.f32 %v2460, %v2958
  %v3327 = vmul.f32 %v2475, %v2959
  %v3328 = vmul.f32 %v2490, %v2960
  %v3329 = vmul.f32 %v2505, %v2961
  %v3330 = vmul.f32 %v2520, %v2962
  %v3331 = vmul.f32 %v2535, %v2963
  %v3332 = vmul.f32 %v2550, %v2964
  %v3333 = vmul.f32 %v2565, %v2965
  %v3334 = vadd.f32 %v3302, %v3318
  %v3335 = vadd.f32 %v3303, %v3319
  %v3336 = vadd.f32 %v3304, %v3320
  %v3337 = vadd.f32 %v3305, %v3321
  %v3338 = vadd.f32 %v3306, %v3322
  %v3339 = vadd.f32 %v3307, %v3323
  %v3340 = vadd.f32 %v3308, %v3324
  %v3341 = vadd.f32 %v3309, %v3325
  %v3342 = vadd.f32 %v3310, %v3326
  %v3343 = vadd.f32 %v3311, %v3327
  %v3344 = vadd.f32 %v3312, %v3328
  %v3345 = vadd.f32 %v3313, %v3329
  %v3346 = vadd.f32 %v3314, %v3330
  %v3347 = vadd.f32 %v3315, %v3331
  %v3348 = vadd.f32 %v3316, %v3332
  %v3349 = vadd.f32 %v3317, %v3333
  %v3350 = vtanh.pop %v3334
  %v3351 = vtanh.pop %v3335
  %v3352 = vtanh.pop %v3336
  %v3353 = vtanh.pop %v3337
  %v3354 = vtanh.pop %v3338
  %v3355 = vtanh.pop %v3339
  %v3356 = vtanh.pop %v3340
  %v3357 = vtanh.pop %v3341
  %v3358 = vtanh.pop %v3342
  %v3359 = vtanh.pop %v3343
  %v3360 = vtanh.pop %v3344
  %v3361 = vtanh.pop %v3345
  %v3362 = vtanh.pop %v3346
  %v3363 = vtanh.pop %v3347
  %v3364 = vtanh.pop %v3348
  %v3365 = vtanh.pop %v3349
  %v3366 = vmul.f32 %v3076, %v3350
  %v3367 = vmul.f32 %v3091, %v3351
  %v3368 = vmul.f32 %v3106, %v3352
  %v3369 = vmul.f32 %v3121, %v3353
  %v3370 = vmul.f32 %v3136, %v3354
  %v3371 = vmul.f32 %v3151, %v3355
  %v3372 = vmul.f32 %v3166, %v3356
  %v3373 = vmul.f32 %v3181, %v3357
  %v3374 = vmul.f32 %v3196, %v3358
  %v3375 = vmul.f32 %v3211, %v3359
  %v3376 = vmul.f32 %v3226, %v3360
  %v3377 = vmul.f32 %v3241, %v3361
  %v3378 = vmul.f32 %v3256, %v3362
  %v3379 = vmul.f32 %v3271, %v3363
  %v3380 = vmul.f32 %v3286, %v3364
  %v3381 = vmul.f32 %v3301, %v3365
  %3382 = vst [vmem:[%s4 + $0x1] sm:$0x1] %v3366
  %3383 = vst [vmem:[%s4 + $0x9] sm:$0x1] %v3367
  %3384 = vst [vmem:[%s4 + $0x11] sm:$0x1] %v3368
  %3385 = vst [vmem:[%s4 + $0x19] sm:$0x1] %v3369
  %3386 = vst [vmem:[%s4 + $0x21] sm:$0x1] %v3370
  %3387 = vst [vmem:[%s4 + $0x29] sm:$0x1] %v3371
  %3388 = vst [vmem:[%s4 + $0x31] sm:$0x1] %v3372
  %3389 = vst [vmem:[%s4 + $0x39] sm:$0x1] %v3373
  %3390 = vst [vmem:[%s4 + $0x41] sm:$0x1] %v3374
  %3391 = vst [vmem:[%s4 + $0x49] sm:$0x1] %v3375
  %3392 = vst [vmem:[%s4 + $0x51] sm:$0x1] %v3376
  %3393 = vst [vmem:[%s4 + $0x59] sm:$0x1] %v3377
  %3394 = vst [vmem:[%s4 + $0x61] sm:$0x1] %v3378
  %3395 = vst [vmem:[%s4 + $0x69] sm:$0x1] %v3379
  %3396 = vst [vmem:[%s4 + $0x71] sm:$0x1] %v3380
  %3397 = vst [vmem:[%s4 + $0x79] sm:$0x1] %v3381
  %s3398 = scalar_lea.vmem [#allocation2], 2
  %v3399 = vld [vmem:[%s3398] ss:$8 sm:$0xf]
  %s3400 = scalar_lea.vmem [#allocation2], 34
  %v3401 = vld [vmem:[%s3400] ss:$8 sm:$0xf]
  %s3402 = scalar_lea.vmem [#allocation2], 66
  %v3403 = vld [vmem:[%s3402] ss:$8 sm:$0xf]
  %s3404 = scalar_lea.vmem [#allocation2], 98
  %v3405 = vld [vmem:[%s3404] ss:$8 sm:$0xf]
  %s3406 = scalar_lea.vmem [#allocation2], 130
  %v3407 = vld [vmem:[%s3406] ss:$8 sm:$0xf]
  %s3408 = scalar_lea.vmem [#allocation2], 162
  %v3409 = vld [vmem:[%s3408] ss:$8 sm:$0xf]
  %s3410 = scalar_lea.vmem [#allocation2], 194
  %v3411 = vld [vmem:[%s3410] ss:$8 sm:$0xf]
  %s3412 = scalar_lea.vmem [#allocation2], 226
  %v3413 = vld [vmem:[%s3412] ss:$8 sm:$0xf]
  %s3414 = scalar_lea.vmem [#allocation2], 258
  %v3415 = vld [vmem:[%s3414] ss:$8 sm:$0xf]
  %s3416 = scalar_lea.vmem [#allocation2], 290
  %v3417 = vld [vmem:[%s3416] ss:$8 sm:$0xf]
  %s3418 = scalar_lea.vmem [#allocation2], 322
  %v3419 = vld [vmem:[%s3418] ss:$8 sm:$0xf]
  %s3420 = scalar_lea.vmem [#allocation2], 354
  %v3421 = vld [vmem:[%s3420] ss:$8 sm:$0xf]
  %s3422 = scalar_lea.vmem [#allocation2], 386
  %v3423 = vld [vmem:[%s3422] ss:$8 sm:$0xf]
  %s3424 = scalar_lea.vmem [#allocation2], 418
  %v3425 = vld [vmem:[%s3424] ss:$8 sm:$0xf]
  %s3426 = scalar_lea.vmem [#allocation2], 450
  %v3427 = vld [vmem:[%s3426] ss:$8 sm:$0xf]
  %s3428 = scalar_lea.vmem [#allocation2], 482
  %v3429 = vld [vmem:[%s3428] ss:$8 sm:$0xf]
  %v3430 = vld [vmem:[%s2] sm:$0xff]
  %v3431 = vld [vmem:[%s2 + $0x8] sm:$0xff]
  %v3432 = vld [vmem:[%s2 + $0x10] sm:$0xff]
  %v3433 = vld [vmem:[%s2 + $0x18] sm:$0xff]
  %v3434 = vld [vmem:[%s2 + $0x20] sm:$0xff]
  %v3435 = vld [vmem:[%s2 + $0x28] sm:$0xff]
  %v3436 = vld [vmem:[%s2 + $0x30] sm:$0xff]
  %v3437 = vld [vmem:[%s2 + $0x38] sm:$0xff]
  %v3438 = vld [vmem:[%s2 + $0x40] sm:$0xff]
  %v3439 = vld [vmem:[%s2 + $0x48] sm:$0xff]
  %v3440 = vld [vmem:[%s2 + $0x50] sm:$0xff]
  %v3441 = vld [vmem:[%s2 + $0x58] sm:$0xff]
  %v3442 = vld [vmem:[%s2 + $0x60] sm:$0xff]
  %v3443 = vld [vmem:[%s2 + $0x68] sm:$0xff]
  %v3444 = vld [vmem:[%s2 + $0x70] sm:$0xff]
  %v3445 = vld [vmem:[%s2 + $0x78] sm:$0xff]
  %v3446 = vld [vmem:[%s2 + $0x80] sm:$0xff]
  %v3447 = vld [vmem:[%s2 + $0x88] sm:$0xff]
  %v3448 = vld [vmem:[%s2 + $0x90] sm:$0xff]
  %v3449 = vld [vmem:[%s2 + $0x98] sm:$0xff]
  %v3450 = vld [vmem:[%s2 + $0xa0] sm:$0xff]
  %v3451 = vld [vmem:[%s2 + $0xa8] sm:$0xff]
  %v3452 = vld [vmem:[%s2 + $0xb0] sm:$0xff]
  %v3453 = vld [vmem:[%s2 + $0xb8] sm:$0xff]
  %v3454 = vld [vmem:[%s2 + $0xc0] sm:$0xff]
  %v3455 = vld [vmem:[%s2 + $0xc8] sm:$0xff]
  %v3456 = vld [vmem:[%s2 + $0xd0] sm:$0xff]
  %v3457 = vld [vmem:[%s2 + $0xd8] sm:$0xff]
  %v3458 = vld [vmem:[%s2 + $0xe0] sm:$0xff]
  %v3459 = vld [vmem:[%s2 + $0xe8] sm:$0xff]
  %v3460 = vld [vmem:[%s2 + $0xf0] sm:$0xff]
  %v3461 = vld [vmem:[%s2 + $0xf8] sm:$0xff]
  %v3462 = vld [vmem:[%s2 + $0x100] sm:$0xff]
  %v3463 = vld [vmem:[%s2 + $0x108] sm:$0xff]
  %v3464 = vld [vmem:[%s2 + $0x110] sm:$0xff]
  %v3465 = vld [vmem:[%s2 + $0x118] sm:$0xff]
  %v3466 = vld [vmem:[%s2 + $0x120] sm:$0xff]
  %v3467 = vld [vmem:[%s2 + $0x128] sm:$0xff]
  %v3468 = vld [vmem:[%s2 + $0x130] sm:$0xff]
  %v3469 = vld [vmem:[%s2 + $0x138] sm:$0xff]
  %v3470 = vld [vmem:[%s2 + $0x140] sm:$0xff]
  %v3471 = vld [vmem:[%s2 + $0x148] sm:$0xff]
  %v3472 = vld [vmem:[%s2 + $0x150] sm:$0xff]
  %v3473 = vld [vmem:[%s2 + $0x158] sm:$0xff]
  %v3474 = vld [vmem:[%s2 + $0x160] sm:$0xff]
  %v3475 = vld [vmem:[%s2 + $0x168] sm:$0xff]
  %v3476 = vld [vmem:[%s2 + $0x170] sm:$0xff]
  %v3477 = vld [vmem:[%s2 + $0x178] sm:$0xff]
  %v3478 = vld [vmem:[%s2 + $0x180] sm:$0xff]
  %v3479 = vld [vmem:[%s2 + $0x188] sm:$0xff]
  %v3480 = vld [vmem:[%s2 + $0x190] sm:$0xff]
  %v3481 = vld [vmem:[%s2 + $0x198] sm:$0xff]
  %v3482 = vld [vmem:[%s2 + $0x1a0] sm:$0xff]
  %v3483 = vld [vmem:[%s2 + $0x1a8] sm:$0xff]
  %v3484 = vld [vmem:[%s2 + $0x1b0] sm:$0xff]
  %v3485 = vld [vmem:[%s2 + $0x1b8] sm:$0xff]
  %v3486 = vld [vmem:[%s2 + $0x1c0] sm:$0xff]
  %v3487 = vld [vmem:[%s2 + $0x1c8] sm:$0xff]
  %v3488 = vld [vmem:[%s2 + $0x1d0] sm:$0xff]
  %v3489 = vld [vmem:[%s2 + $0x1d8] sm:$0xff]
  %v3490 = vld [vmem:[%s2 + $0x1e0] sm:$0xff]
  %v3491 = vld [vmem:[%s2 + $0x1e8] sm:$0xff]
  %v3492 = vld [vmem:[%s2 + $0x1f0] sm:$0xff]
  %v3493 = vld [vmem:[%s2 + $0x1f8] sm:$0xff]
  %3510 = vst [vmem:[#allocation1] ss:$9 sm:$0xff] %v3366
  %s3511 = scalar_lea.vmem [#allocation1], 1
  %3512 = vst [vmem:[%s3511] ss:$9 sm:$0xff] %v3367
  %s3513 = scalar_lea.vmem [#allocation1], 2
  %3514 = vst [vmem:[%s3513] ss:$9 sm:$0xff] %v3368
  %s3515 = scalar_lea.vmem [#allocation1], 3
  %3516 = vst [vmem:[%s3515] ss:$9 sm:$0xff] %v3369
  %s3517 = scalar_lea.vmem [#allocation1], 4
  %3518 = vst [vmem:[%s3517] ss:$9 sm:$0xff] %v3370
  %s3519 = scalar_lea.vmem [#allocation1], 5
  %3520 = vst [vmem:[%s3519] ss:$9 sm:$0xff] %v3371
  %s3521 = scalar_lea.vmem [#allocation1], 6
  %3522 = vst [vmem:[%s3521] ss:$9 sm:$0xff] %v3372
  %s3523 = scalar_lea.vmem [#allocation1], 7
  %3524 = vst [vmem:[%s3523] ss:$9 sm:$0xff] %v3373
  %v3525 = vld [vmem:[#allocation1] sm:$0xff]
  %3526 = vst [vmem:[#allocation1] ss:$9 sm:$0xff] %v3374
  %3527 = vst [vmem:[%s3511] ss:$9 sm:$0xff] %v3375
  %3528 = vst [vmem:[%s3513] ss:$9 sm:$0xff] %v3376
  %3529 = vst [vmem:[%s3515] ss:$9 sm:$0xff] %v3377
  %3530 = vst [vmem:[%s3517] ss:$9 sm:$0xff] %v3378
  %3531 = vst [vmem:[%s3519] ss:$9 sm:$0xff] %v3379
  %3532 = vst [vmem:[%s3521] ss:$9 sm:$0xff] %v3380
  %3533 = vst [vmem:[%s3523] ss:$9 sm:$0xff] %v3381
  %v3534 = vld [vmem:[#allocation1] sm:$0xff]
  %3537 = vmatpush.msra.mxu0 %v3490
  %3538 = vmatpush.msra.mxu0 %v3486
  %3539 = vmatpush.msra.mxu0 %v3482
  %3540 = vmatpush.msra.mxu0 %v3478
  %3541 = vmatpush.msra.mxu0 %v3474
  %3542 = vmatpush.msra.mxu0 %v3470
  %3543 = vmatpush.msra.mxu0 %v3466
  %3544 = vmatpush.msra.mxu0 %v3462
  %3545 = vmatpush.msra.mxu0 %v3458
  %3546 = vmatpush.msra.mxu0 %v3454
  %3547 = vmatpush.msra.mxu0 %v3450
  %3548 = vmatpush.msra.mxu0 %v3446
  %3549 = vmatpush.msra.mxu0 %v3442
  %3550 = vmatpush.msra.mxu0 %v3438
  %3551 = vmatpush.msra.mxu0 %v3434
  %3552 = vmatpush.msra.mxu0 %v3430
  %3553 = vmatmul.f32.gmra.mxu0 %v3525
  %v3554 = vpop.f32.mrf.mxu0
  %v3555 = vadd.f32 0.0, %v3554
  %3556 = vmatmul.f32.gmra.mxu0 %v3534
  %v3557 = vpop.f32.mrf.mxu0
  %v3558 = vadd.f32 0.0, %v3557
  %3559 = vdwg.mxu0
  %3560 = vmatpush.msra.mxu0 %v3491
  %3561 = vmatpush.msra.mxu0 %v3487
  %3562 = vmatpush.msra.mxu0 %v3483
  %3563 = vmatpush.msra.mxu0 %v3479
  %3564 = vmatpush.msra.mxu0 %v3475
  %3565 = vmatpush.msra.mxu0 %v3471
  %3566 = vmatpush.msra.mxu0 %v3467
  %3567 = vmatpush.msra.mxu0 %v3463
  %3568 = vmatpush.msra.mxu0 %v3459
  %3569 = vmatpush.msra.mxu0 %v3455
  %3570 = vmatpush.msra.mxu0 %v3451
  %3571 = vmatpush.msra.mxu0 %v3447
  %3572 = vmatpush.msra.mxu0 %v3443
  %3573 = vmatpush.msra.mxu0 %v3439
  %3574 = vmatpush.msra.mxu0 %v3435
  %3575 = vmatpush.msra.mxu0 %v3431
  %3576 = vmatmul.f32.gmra.mxu0 %v3525
  %v3577 = vpop.f32.mrf.mxu0
  %v3578 = vadd.f32 0.0, %v3577
  %3579 = vmatmul.f32.gmra.mxu0 %v3534
  %v3580 = vpop.f32.mrf.mxu0
  %v3581 = vadd.f32 0.0, %v3580
  %3582 = vdwg.mxu0
  %3583 = vmatpush.msra.mxu0 %v3492
  %3584 = vmatpush.msra.mxu0 %v3488
  %3585 = vmatpush.msra.mxu0 %v3484
  %3586 = vmatpush.msra.mxu0 %v3480
  %3587 = vmatpush.msra.mxu0 %v3476
  %3588 = vmatpush.msra.mxu0 %v3472
  %3589 = vmatpush.msra.mxu0 %v3468
  %3590 = vmatpush.msra.mxu0 %v3464
  %3591 = vmatpush.msra.mxu0 %v3460
  %3592 = vmatpush.msra.mxu0 %v3456
  %3593 = vmatpush.msra.mxu0 %v3452
  %3594 = vmatpush.msra.mxu0 %v3448
  %3595 = vmatpush.msra.mxu0 %v3444
  %3596 = vmatpush.msra.mxu0 %v3440
  %3597 = vmatpush.msra.mxu0 %v3436
  %3598 = vmatpush.msra.mxu0 %v3432
  %3599 = vmatmul.f32.gmra.mxu0 %v3525
  %v3600 = vpop.f32.mrf.mxu0
  %v3601 = vadd.f32 0.0, %v3600
  %3602 = vmatmul.f32.gmra.mxu0 %v3534
  %v3603 = vpop.f32.mrf.mxu0
  %v3604 = vadd.f32 0.0, %v3603
  %3605 = vdwg.mxu0
  %3606 = vmatpush.msra.mxu0 %v3493
  %3607 = vmatpush.msra.mxu0 %v3489
  %3608 = vmatpush.msra.mxu0 %v3485
  %3609 = vmatpush.msra.mxu0 %v3481
  %3610 = vmatpush.msra.mxu0 %v3477
  %3611 = vmatpush.msra.mxu0 %v3473
  %3612 = vmatpush.msra.mxu0 %v3469
  %3613 = vmatpush.msra.mxu0 %v3465
  %3614 = vmatpush.msra.mxu0 %v3461
  %3615 = vmatpush.msra.mxu0 %v3457
  %3616 = vmatpush.msra.mxu0 %v3453
  %3617 = vmatpush.msra.mxu0 %v3449
  %3618 = vmatpush.msra.mxu0 %v3445
  %3619 = vmatpush.msra.mxu0 %v3441
  %3620 = vmatpush.msra.mxu0 %v3437
  %3621 = vmatpush.msra.mxu0 %v3433
  %3622 = vmatmul.f32.gmra.mxu0 %v3525
  %v3623 = vpop.f32.mrf.mxu0
  %v3624 = vadd.f32 0.0, %v3623
  %3625 = vmatmul.f32.gmra.mxu0 %v3534
  %v3626 = vpop.f32.mrf.mxu0
  %v3627 = vadd.f32 0.0, %v3626
  %3628 = vdwg.mxu0
  %v3637 = vrot.slane %v3578, 7
  %v3638 = vrot.slane %v3601, 6
  %v3639 = vrot.slane %v3624, 5
  %v3640 = vrot.slane %v3581, 7
  %v3641 = vrot.slane %v3604, 6
  %v3642 = vrot.slane %v3627, 5
  %v3643 = vsel %vm647, %v3555, %v3637
  %v3644 = vsel %vm649, %v3638, %v3639
  %v3645 = vsel %vm651, %v3643, %v3644
  %v3646 = vsel %vm653, %v3555, %v3637
  %v3647 = vsel %vm655, %v3638, %v3639
  %v3648 = vsel %vm657, %v3646, %v3647
  %v3649 = vrot.slane %v3648, 1
  %v3650 = vsel %vm649, %v3555, %v3637
  %v3651 = vsel %vm661, %v3638, %v3639
  %v3652 = vsel %vm663, %v3650, %v3651
  %v3653 = vrot.slane %v3652, 2
  %v3654 = vsel %vm655, %v3555, %v3637
  %v3655 = vsel %vm667, %v3638, %v3639
  %v3656 = vsel %vm669, %v3654, %v3655
  %v3657 = vrot.slane %v3656, 3
  %v3658 = vsel %vm661, %v3555, %v3637
  %v3659 = vsel %vm673, %v3638, %v3639
  %v3660 = vsel %vm675, %v3658, %v3659
  %v3661 = vrot.slane %v3660, 4
  %v3662 = vsel %vm667, %v3555, %v3637
  %v3663 = vsel %vm679, %v3639, %v3638
  %v3664 = vsel %vm681, %v3662, %v3663
  %v3665 = vrot.slane %v3664, 5
  %v3666 = vsel %vm673, %v3555, %v3637
  %v3667 = vsel %vm647, %v3638, %v3639
  %v3668 = vsel %vm686, %v3667, %v3666
  %v3669 = vrot.slane %v3668, 6
  %v3670 = vsel %vm679, %v3637, %v3555
  %v3671 = vsel %vm653, %v3638, %v3639
  %v3672 = vsel %vm691, %v3671, %v3670
  %v3673 = vrot.slane %v3672, 7
  %v3674 = vsel %vm647, %v3558, %v3640
  %v3675 = vsel %vm649, %v3641, %v3642
  %v3676 = vsel %vm651, %v3674, %v3675
  %v3677 = vsel %vm653, %v3558, %v3640
  %v3678 = vsel %vm655, %v3641, %v3642
  %v3679 = vsel %vm657, %v3677, %v3678
  %v3680 = vrot.slane %v3679, 1
  %v3681 = vsel %vm649, %v3558, %v3640
  %v3682 = vsel %vm661, %v3641, %v3642
  %v3683 = vsel %vm663, %v3681, %v3682
  %v3684 = vrot.slane %v3683, 2
  %v3685 = vsel %vm655, %v3558, %v3640
  %v3686 = vsel %vm667, %v3641, %v3642
  %v3687 = vsel %vm669, %v3685, %v3686
  %v3688 = vrot.slane %v3687, 3
  %v3689 = vsel %vm661, %v3558, %v3640
  %v3690 = vsel %vm673, %v3641, %v3642
  %v3691 = vsel %vm675, %v3689, %v3690
  %v3692 = vrot.slane %v3691, 4
  %v3693 = vsel %vm667, %v3558, %v3640
  %v3694 = vsel %vm679, %v3642, %v3641
  %v3695 = vsel %vm681, %v3693, %v3694
  %v3696 = vrot.slane %v3695, 5
  %v3697 = vsel %vm673, %v3558, %v3640
  %v3698 = vsel %vm647, %v3641, %v3642
  %v3699 = vsel %vm686, %v3698, %v3697
  %v3700 = vrot.slane %v3699, 6
  %v3701 = vsel %vm679, %v3640, %v3558
  %v3702 = vsel %vm653, %v3641, %v3642
  %v3703 = vsel %vm691, %v3702, %v3701
  %v3704 = vrot.slane %v3703, 7
  %v3721 = vadd.f32 %v3399, %v3645
  %v3722 = vadd.f32 %v3401, %v3649
  %v3723 = vadd.f32 %v3403, %v3653
  %v3724 = vadd.f32 %v3405, %v3657
  %v3725 = vadd.f32 %v3407, %v3661
  %v3726 = vadd.f32 %v3409, %v3665
  %v3727 = vadd.f32 %v3411, %v3669
  %v3728 = vadd.f32 %v3413, %v3673
  %v3729 = vadd.f32 %v3415, %v3676
  %v3730 = vadd.f32 %v3417, %v3680
  %v3731 = vadd.f32 %v3419, %v3684
  %v3732 = vadd.f32 %v3421, %v3688
  %v3733 = vadd.f32 %v3423, %v3692
  %v3734 = vadd.f32 %v3425, %v3696
  %v3735 = vadd.f32 %v3427, %v3700
  %v3736 = vadd.f32 %v3429, %v3704
  %v3737 = vxor.u32 %v3721, 2147483648
  %v3738 = vxor.u32 %v3722, 2147483648
  %v3739 = vxor.u32 %v3723, 2147483648
  %v3740 = vxor.u32 %v3724, 2147483648
  %v3741 = vxor.u32 %v3725, 2147483648
  %v3742 = vxor.u32 %v3726, 2147483648
  %v3743 = vxor.u32 %v3727, 2147483648
  %v3744 = vxor.u32 %v3728, 2147483648
  %v3745 = vxor.u32 %v3729, 2147483648
  %v3746 = vxor.u32 %v3730, 2147483648
  %v3747 = vxor.u32 %v3731, 2147483648
  %v3748 = vxor.u32 %v3732, 2147483648
  %v3749 = vxor.u32 %v3733, 2147483648
  %v3750 = vxor.u32 %v3734, 2147483648
  %v3751 = vxor.u32 %v3735, 2147483648
  %v3752 = vxor.u32 %v3736, 2147483648
  %v3753 = vmul.f32 %v3737, 1.442695
  %v3754 = vpow.pop %v3753
  %v3755 = vmul.f32 %v3738, 1.442695
  %v3756 = vpow.pop %v3755
  %v3757 = vmul.f32 %v3739, 1.442695
  %v3758 = vpow.pop %v3757
  %v3759 = vmul.f32 %v3740, 1.442695
  %v3760 = vpow.pop %v3759
  %v3761 = vmul.f32 %v3741, 1.442695
  %v3762 = vpow.pop %v3761
  %v3763 = vmul.f32 %v3742, 1.442695
  %v3764 = vpow.pop %v3763
  %v3765 = vmul.f32 %v3743, 1.442695
  %v3766 = vpow.pop %v3765
  %v3767 = vmul.f32 %v3744, 1.442695
  %v3768 = vpow.pop %v3767
  %v3769 = vmul.f32 %v3745, 1.442695
  %v3770 = vpow.pop %v3769
  %v3771 = vmul.f32 %v3746, 1.442695
  %v3772 = vpow.pop %v3771
  %v3773 = vmul.f32 %v3747, 1.442695
  %v3774 = vpow.pop %v3773
  %v3775 = vmul.f32 %v3748, 1.442695
  %v3776 = vpow.pop %v3775
  %v3777 = vmul.f32 %v3749, 1.442695
  %v3778 = vpow.pop %v3777
  %v3779 = vmul.f32 %v3750, 1.442695
  %v3780 = vpow.pop %v3779
  %v3781 = vmul.f32 %v3751, 1.442695
  %v3782 = vpow.pop %v3781
  %v3783 = vmul.f32 %v3752, 1.442695
  %v3784 = vpow.pop %v3783
  %v3785 = vadd.f32 %v3754, 1.0
  %v3786 = vadd.f32 %v3756, 1.0
  %v3787 = vadd.f32 %v3758, 1.0
  %v3788 = vadd.f32 %v3760, 1.0
  %v3789 = vadd.f32 %v3762, 1.0
  %v3790 = vadd.f32 %v3764, 1.0
  %v3791 = vadd.f32 %v3766, 1.0
  %v3792 = vadd.f32 %v3768, 1.0
  %v3793 = vadd.f32 %v3770, 1.0
  %v3794 = vadd.f32 %v3772, 1.0
  %v3795 = vadd.f32 %v3774, 1.0
  %v3796 = vadd.f32 %v3776, 1.0
  %v3797 = vadd.f32 %v3778, 1.0
  %v3798 = vadd.f32 %v3780, 1.0
  %v3799 = vadd.f32 %v3782, 1.0
  %v3800 = vadd.f32 %v3784, 1.0
  %v3801 = vrcp.pop %v3785
  %v3802 = vmul.f32 %v3785, %v3801
  %v3803 = vsub.f32 1.0, %v3802
  %v3804 = vmul.f32 %v3801, %v3803
  %v3805 = vadd.f32 %v3801, %v3804
  %vm3806 = vweird.f32 %v3785
  %vm3807 = vweird.f32 %v3801
  %vm3808 = vmor %vm3806, %vm3807
  %v3809 = vsel %vm3808, %v3801, %v3805
  %v3810 = vand.u32 2147483647, %v3785
  %vm3811 = vcmp.eq.f32.partialorder %v3810, 8.507059e+37
  %v3812 = vand.u32 %v3785, 2147483648
  %v3813 = vor.u32 1.1754944e-38, %v3812
  %v3814 = vsel %vm3811, %v3813, %v3809
  %v3815 = vmul.f32 1.0, %v3814
  %v3816 = vrcp.pop %v3786
  %v3817 = vmul.f32 %v3786, %v3816
  %v3818 = vsub.f32 1.0, %v3817
  %v3819 = vmul.f32 %v3816, %v3818
  %v3820 = vadd.f32 %v3816, %v3819
  %vm3821 = vweird.f32 %v3786
  %vm3822 = vweird.f32 %v3816
  %vm3823 = vmor %vm3821, %vm3822
  %v3824 = vsel %vm3823, %v3816, %v3820
  %v3825 = vand.u32 2147483647, %v3786
  %vm3826 = vcmp.eq.f32.partialorder %v3825, 8.507059e+37
  %v3827 = vand.u32 %v3786, 2147483648
  %v3828 = vor.u32 1.1754944e-38, %v3827
  %v3829 = vsel %vm3826, %v3828, %v3824
  %v3830 = vmul.f32 1.0, %v3829
  %v3831 = vrcp.pop %v3787
  %v3832 = vmul.f32 %v3787, %v3831
  %v3833 = vsub.f32 1.0, %v3832
  %v3834 = vmul.f32 %v3831, %v3833
  %v3835 = vadd.f32 %v3831, %v3834
  %vm3836 = vweird.f32 %v3787
  %vm3837 = vweird.f32 %v3831
  %vm3838 = vmor %vm3836, %vm3837
  %v3839 = vsel %vm3838, %v3831, %v3835
  %v3840 = vand.u32 2147483647, %v3787
  %vm3841 = vcmp.eq.f32.partialorder %v3840, 8.507059e+37
  %v3842 = vand.u32 %v3787, 2147483648
  %v3843 = vor.u32 1.1754944e-38, %v3842
  %v3844 = vsel %vm3841, %v3843, %v3839
  %v3845 = vmul.f32 1.0, %v3844
  %v3846 = vrcp.pop %v3788
  %v3847 = vmul.f32 %v3788, %v3846
  %v3848 = vsub.f32 1.0, %v3847
  %v3849 = vmul.f32 %v3846, %v3848
  %v3850 = vadd.f32 %v3846, %v3849
  %vm3851 = vweird.f32 %v3788
  %vm3852 = vweird.f32 %v3846
  %vm3853 = vmor %vm3851, %vm3852
  %v3854 = vsel %vm3853, %v3846, %v3850
  %v3855 = vand.u32 2147483647, %v3788
  %vm3856 = vcmp.eq.f32.partialorder %v3855, 8.507059e+37
  %v3857 = vand.u32 %v3788, 2147483648
  %v3858 = vor.u32 1.1754944e-38, %v3857
  %v3859 = vsel %vm3856, %v3858, %v3854
  %v3860 = vmul.f32 1.0, %v3859
  %v3861 = vrcp.pop %v3789
  %v3862 = vmul.f32 %v3789, %v3861
  %v3863 = vsub.f32 1.0, %v3862
  %v3864 = vmul.f32 %v3861, %v3863
  %v3865 = vadd.f32 %v3861, %v3864
  %vm3866 = vweird.f32 %v3789
  %vm3867 = vweird.f32 %v3861
  %vm3868 = vmor %vm3866, %vm3867
  %v3869 = vsel %vm3868, %v3861, %v3865
  %v3870 = vand.u32 2147483647, %v3789
  %vm3871 = vcmp.eq.f32.partialorder %v3870, 8.507059e+37
  %v3872 = vand.u32 %v3789, 2147483648
  %v3873 = vor.u32 1.1754944e-38, %v3872
  %v3874 = vsel %vm3871, %v3873, %v3869
  %v3875 = vmul.f32 1.0, %v3874
  %v3876 = vrcp.pop %v3790
  %v3877 = vmul.f32 %v3790, %v3876
  %v3878 = vsub.f32 1.0, %v3877
  %v3879 = vmul.f32 %v3876, %v3878
  %v3880 = vadd.f32 %v3876, %v3879
  %vm3881 = vweird.f32 %v3790
  %vm3882 = vweird.f32 %v3876
  %vm3883 = vmor %vm3881, %vm3882
  %v3884 = vsel %vm3883, %v3876, %v3880
  %v3885 = vand.u32 2147483647, %v3790
  %vm3886 = vcmp.eq.f32.partialorder %v3885, 8.507059e+37
  %v3887 = vand.u32 %v3790, 2147483648
  %v3888 = vor.u32 1.1754944e-38, %v3887
  %v3889 = vsel %vm3886, %v3888, %v3884
  %v3890 = vmul.f32 1.0, %v3889
  %v3891 = vrcp.pop %v3791
  %v3892 = vmul.f32 %v3791, %v3891
  %v3893 = vsub.f32 1.0, %v3892
  %v3894 = vmul.f32 %v3891, %v3893
  %v3895 = vadd.f32 %v3891, %v3894
  %vm3896 = vweird.f32 %v3791
  %vm3897 = vweird.f32 %v3891
  %vm3898 = vmor %vm3896, %vm3897
  %v3899 = vsel %vm3898, %v3891, %v3895
  %v3900 = vand.u32 2147483647, %v3791
  %vm3901 = vcmp.eq.f32.partialorder %v3900, 8.507059e+37
  %v3902 = vand.u32 %v3791, 2147483648
  %v3903 = vor.u32 1.1754944e-38, %v3902
  %v3904 = vsel %vm3901, %v3903, %v3899
  %v3905 = vmul.f32 1.0, %v3904
  %v3906 = vrcp.pop %v3792
  %v3907 = vmul.f32 %v3792, %v3906
  %v3908 = vsub.f32 1.0, %v3907
  %v3909 = vmul.f32 %v3906, %v3908
  %v3910 = vadd.f32 %v3906, %v3909
  %vm3911 = vweird.f32 %v3792
  %vm3912 = vweird.f32 %v3906
  %vm3913 = vmor %vm3911, %vm3912
  %v3914 = vsel %vm3913, %v3906, %v3910
  %v3915 = vand.u32 2147483647, %v3792
  %vm3916 = vcmp.eq.f32.partialorder %v3915, 8.507059e+37
  %v3917 = vand.u32 %v3792, 2147483648
  %v3918 = vor.u32 1.1754944e-38, %v3917
  %v3919 = vsel %vm3916, %v3918, %v3914
  %v3920 = vmul.f32 1.0, %v3919
  %v3921 = vrcp.pop %v3793
  %v3922 = vmul.f32 %v3793, %v3921
  %v3923 = vsub.f32 1.0, %v3922
  %v3924 = vmul.f32 %v3921, %v3923
  %v3925 = vadd.f32 %v3921, %v3924
  %vm3926 = vweird.f32 %v3793
  %vm3927 = vweird.f32 %v3921
  %vm3928 = vmor %vm3926, %vm3927
  %v3929 = vsel %vm3928, %v3921, %v3925
  %v3930 = vand.u32 2147483647, %v3793
  %vm3931 = vcmp.eq.f32.partialorder %v3930, 8.507059e+37
  %v3932 = vand.u32 %v3793, 2147483648
  %v3933 = vor.u32 1.1754944e-38, %v3932
  %v3934 = vsel %vm3931, %v3933, %v3929
  %v3935 = vmul.f32 1.0, %v3934
  %v3936 = vrcp.pop %v3794
  %v3937 = vmul.f32 %v3794, %v3936
  %v3938 = vsub.f32 1.0, %v3937
  %v3939 = vmul.f32 %v3936, %v3938
  %v3940 = vadd.f32 %v3936, %v3939
  %vm3941 = vweird.f32 %v3794
  %vm3942 = vweird.f32 %v3936
  %vm3943 = vmor %vm3941, %vm3942
  %v3944 = vsel %vm3943, %v3936, %v3940
  %v3945 = vand.u32 2147483647, %v3794
  %vm3946 = vcmp.eq.f32.partialorder %v3945, 8.507059e+37
  %v3947 = vand.u32 %v3794, 2147483648
  %v3948 = vor.u32 1.1754944e-38, %v3947
  %v3949 = vsel %vm3946, %v3948, %v3944
  %v3950 = vmul.f32 1.0, %v3949
  %v3951 = vrcp.pop %v3795
  %v3952 = vmul.f32 %v3795, %v3951
  %v3953 = vsub.f32 1.0, %v3952
  %v3954 = vmul.f32 %v3951, %v3953
  %v3955 = vadd.f32 %v3951, %v3954
  %vm3956 = vweird.f32 %v3795
  %vm3957 = vweird.f32 %v3951
  %vm3958 = vmor %vm3956, %vm3957
  %v3959 = vsel %vm3958, %v3951, %v3955
  %v3960 = vand.u32 2147483647, %v3795
  %vm3961 = vcmp.eq.f32.partialorder %v3960, 8.507059e+37
  %v3962 = vand.u32 %v3795, 2147483648
  %v3963 = vor.u32 1.1754944e-38, %v3962
  %v3964 = vsel %vm3961, %v3963, %v3959
  %v3965 = vmul.f32 1.0, %v3964
  %v3966 = vrcp.pop %v3796
  %v3967 = vmul.f32 %v3796, %v3966
  %v3968 = vsub.f32 1.0, %v3967
  %v3969 = vmul.f32 %v3966, %v3968
  %v3970 = vadd.f32 %v3966, %v3969
  %vm3971 = vweird.f32 %v3796
  %vm3972 = vweird.f32 %v3966
  %vm3973 = vmor %vm3971, %vm3972
  %v3974 = vsel %vm3973, %v3966, %v3970
  %v3975 = vand.u32 2147483647, %v3796
  %vm3976 = vcmp.eq.f32.partialorder %v3975, 8.507059e+37
  %v3977 = vand.u32 %v3796, 2147483648
  %v3978 = vor.u32 1.1754944e-38, %v3977
  %v3979 = vsel %vm3976, %v3978, %v3974
  %v3980 = vmul.f32 1.0, %v3979
  %v3981 = vrcp.pop %v3797
  %v3982 = vmul.f32 %v3797, %v3981
  %v3983 = vsub.f32 1.0, %v3982
  %v3984 = vmul.f32 %v3981, %v3983
  %v3985 = vadd.f32 %v3981, %v3984
  %vm3986 = vweird.f32 %v3797
  %vm3987 = vweird.f32 %v3981
  %vm3988 = vmor %vm3986, %vm3987
  %v3989 = vsel %vm3988, %v3981, %v3985
  %v3990 = vand.u32 2147483647, %v3797
  %vm3991 = vcmp.eq.f32.partialorder %v3990, 8.507059e+37
  %v3992 = vand.u32 %v3797, 2147483648
  %v3993 = vor.u32 1.1754944e-38, %v3992
  %v3994 = vsel %vm3991, %v3993, %v3989
  %v3995 = vmul.f32 1.0, %v3994
  %v3996 = vrcp.pop %v3798
  %v3997 = vmul.f32 %v3798, %v3996
  %v3998 = vsub.f32 1.0, %v3997
  %v3999 = vmul.f32 %v3996, %v3998
  %v4000 = vadd.f32 %v3996, %v3999
  %vm4001 = vweird.f32 %v3798
  %vm4002 = vweird.f32 %v3996
  %vm4003 = vmor %vm4001, %vm4002
  %v4004 = vsel %vm4003, %v3996, %v4000
  %v4005 = vand.u32 2147483647, %v3798
  %vm4006 = vcmp.eq.f32.partialorder %v4005, 8.507059e+37
  %v4007 = vand.u32 %v3798, 2147483648
  %v4008 = vor.u32 1.1754944e-38, %v4007
  %v4009 = vsel %vm4006, %v4008, %v4004
  %v4010 = vmul.f32 1.0, %v4009
  %v4011 = vrcp.pop %v3799
  %v4012 = vmul.f32 %v3799, %v4011
  %v4013 = vsub.f32 1.0, %v4012
  %v4014 = vmul.f32 %v4011, %v4013
  %v4015 = vadd.f32 %v4011, %v4014
  %vm4016 = vweird.f32 %v3799
  %vm4017 = vweird.f32 %v4011
  %vm4018 = vmor %vm4016, %vm4017
  %v4019 = vsel %vm4018, %v4011, %v4015
  %v4020 = vand.u32 2147483647, %v3799
  %vm4021 = vcmp.eq.f32.partialorder %v4020, 8.507059e+37
  %v4022 = vand.u32 %v3799, 2147483648
  %v4023 = vor.u32 1.1754944e-38, %v4022
  %v4024 = vsel %vm4021, %v4023, %v4019
  %v4025 = vmul.f32 1.0, %v4024
  %v4026 = vrcp.pop %v3800
  %v4027 = vmul.f32 %v3800, %v4026
  %v4028 = vsub.f32 1.0, %v4027
  %v4029 = vmul.f32 %v4026, %v4028
  %v4030 = vadd.f32 %v4026, %v4029
  %vm4031 = vweird.f32 %v3800
  %vm4032 = vweird.f32 %v4026
  %vm4033 = vmor %vm4031, %vm4032
  %v4034 = vsel %vm4033, %v4026, %v4030
  %v4035 = vand.u32 2147483647, %v3800
  %vm4036 = vcmp.eq.f32.partialorder %v4035, 8.507059e+37
  %v4037 = vand.u32 %v3800, 2147483648
  %v4038 = vor.u32 1.1754944e-38, %v4037
  %v4039 = vsel %vm4036, %v4038, %v4034
  %v4040 = vmul.f32 1.0, %v4039
  %v4057 = vrot.slane %v3721, 1
  %v4058 = vrot.slane %v3722, 1
  %v4059 = vrot.slane %v3723, 1
  %v4060 = vrot.slane %v3724, 1
  %v4061 = vrot.slane %v3725, 1
  %v4062 = vrot.slane %v3726, 1
  %v4063 = vrot.slane %v3727, 1
  %v4064 = vrot.slane %v3728, 1
  %v4065 = vrot.slane %v3729, 1
  %v4066 = vrot.slane %v3730, 1
  %v4067 = vrot.slane %v3731, 1
  %v4068 = vrot.slane %v3732, 1
  %v4069 = vrot.slane %v3733, 1
  %v4070 = vrot.slane %v3734, 1
  %v4071 = vrot.slane %v3735, 1
  %v4072 = vrot.slane %v3736, 1
  %v4089 = vxor.u32 %v4057, 2147483648
  %v4090 = vxor.u32 %v4058, 2147483648
  %v4091 = vxor.u32 %v4059, 2147483648
  %v4092 = vxor.u32 %v4060, 2147483648
  %v4093 = vxor.u32 %v4061, 2147483648
  %v4094 = vxor.u32 %v4062, 2147483648
  %v4095 = vxor.u32 %v4063, 2147483648
  %v4096 = vxor.u32 %v4064, 2147483648
  %v4097 = vxor.u32 %v4065, 2147483648
  %v4098 = vxor.u32 %v4066, 2147483648
  %v4099 = vxor.u32 %v4067, 2147483648
  %v4100 = vxor.u32 %v4068, 2147483648
  %v4101 = vxor.u32 %v4069, 2147483648
  %v4102 = vxor.u32 %v4070, 2147483648
  %v4103 = vxor.u32 %v4071, 2147483648
  %v4104 = vxor.u32 %v4072, 2147483648
  %v4105 = vmul.f32 %v4089, 1.442695
  %v4106 = vpow.pop %v4105
  %v4107 = vmul.f32 %v4090, 1.442695
  %v4108 = vpow.pop %v4107
  %v4109 = vmul.f32 %v4091, 1.442695
  %v4110 = vpow.pop %v4109
  %v4111 = vmul.f32 %v4092, 1.442695
  %v4112 = vpow.pop %v4111
  %v4113 = vmul.f32 %v4093, 1.442695
  %v4114 = vpow.pop %v4113
  %v4115 = vmul.f32 %v4094, 1.442695
  %v4116 = vpow.pop %v4115
  %v4117 = vmul.f32 %v4095, 1.442695
  %v4118 = vpow.pop %v4117
  %v4119 = vmul.f32 %v4096, 1.442695
  %v4120 = vpow.pop %v4119
  %v4121 = vmul.f32 %v4097, 1.442695
  %v4122 = vpow.pop %v4121
  %v4123 = vmul.f32 %v4098, 1.442695
  %v4124 = vpow.pop %v4123
  %v4125 = vmul.f32 %v4099, 1.442695
  %v4126 = vpow.pop %v4125
  %v4127 = vmul.f32 %v4100, 1.442695
  %v4128 = vpow.pop %v4127
  %v4129 = vmul.f32 %v4101, 1.442695
  %v4130 = vpow.pop %v4129
  %v4131 = vmul.f32 %v4102, 1.442695
  %v4132 = vpow.pop %v4131
  %v4133 = vmul.f32 %v4103, 1.442695
  %v4134 = vpow.pop %v4133
  %v4135 = vmul.f32 %v4104, 1.442695
  %v4136 = vpow.pop %v4135
  %v4137 = vadd.f32 %v4106, 1.0
  %v4138 = vadd.f32 %v4108, 1.0
  %v4139 = vadd.f32 %v4110, 1.0
  %v4140 = vadd.f32 %v4112, 1.0
  %v4141 = vadd.f32 %v4114, 1.0
  %v4142 = vadd.f32 %v4116, 1.0
  %v4143 = vadd.f32 %v4118, 1.0
  %v4144 = vadd.f32 %v4120, 1.0
  %v4145 = vadd.f32 %v4122, 1.0
  %v4146 = vadd.f32 %v4124, 1.0
  %v4147 = vadd.f32 %v4126, 1.0
  %v4148 = vadd.f32 %v4128, 1.0
  %v4149 = vadd.f32 %v4130, 1.0
  %v4150 = vadd.f32 %v4132, 1.0
  %v4151 = vadd.f32 %v4134, 1.0
  %v4152 = vadd.f32 %v4136, 1.0
  %v4153 = vrcp.pop %v4137
  %v4154 = vmul.f32 %v4137, %v4153
  %v4155 = vsub.f32 1.0, %v4154
  %v4156 = vmul.f32 %v4153, %v4155
  %v4157 = vadd.f32 %v4153, %v4156
  %vm4158 = vweird.f32 %v4137
  %vm4159 = vweird.f32 %v4153
  %vm4160 = vmor %vm4158, %vm4159
  %v4161 = vsel %vm4160, %v4153, %v4157
  %v4162 = vand.u32 2147483647, %v4137
  %vm4163 = vcmp.eq.f32.partialorder %v4162, 8.507059e+37
  %v4164 = vand.u32 %v4137, 2147483648
  %v4165 = vor.u32 1.1754944e-38, %v4164
  %v4166 = vsel %vm4163, %v4165, %v4161
  %v4167 = vmul.f32 1.0, %v4166
  %v4168 = vrcp.pop %v4138
  %v4169 = vmul.f32 %v4138, %v4168
  %v4170 = vsub.f32 1.0, %v4169
  %v4171 = vmul.f32 %v4168, %v4170
  %v4172 = vadd.f32 %v4168, %v4171
  %vm4173 = vweird.f32 %v4138
  %vm4174 = vweird.f32 %v4168
  %vm4175 = vmor %vm4173, %vm4174
  %v4176 = vsel %vm4175, %v4168, %v4172
  %v4177 = vand.u32 2147483647, %v4138
  %vm4178 = vcmp.eq.f32.partialorder %v4177, 8.507059e+37
  %v4179 = vand.u32 %v4138, 2147483648
  %v4180 = vor.u32 1.1754944e-38, %v4179
  %v4181 = vsel %vm4178, %v4180, %v4176
  %v4182 = vmul.f32 1.0, %v4181
  %v4183 = vrcp.pop %v4139
  %v4184 = vmul.f32 %v4139, %v4183
  %v4185 = vsub.f32 1.0, %v4184
  %v4186 = vmul.f32 %v4183, %v4185
  %v4187 = vadd.f32 %v4183, %v4186
  %vm4188 = vweird.f32 %v4139
  %vm4189 = vweird.f32 %v4183
  %vm4190 = vmor %vm4188, %vm4189
  %v4191 = vsel %vm4190, %v4183, %v4187
  %v4192 = vand.u32 2147483647, %v4139
  %vm4193 = vcmp.eq.f32.partialorder %v4192, 8.507059e+37
  %v4194 = vand.u32 %v4139, 2147483648
  %v4195 = vor.u32 1.1754944e-38, %v4194
  %v4196 = vsel %vm4193, %v4195, %v4191
  %v4197 = vmul.f32 1.0, %v4196
  %v4198 = vrcp.pop %v4140
  %v4199 = vmul.f32 %v4140, %v4198
  %v4200 = vsub.f32 1.0, %v4199
  %v4201 = vmul.f32 %v4198, %v4200
  %v4202 = vadd.f32 %v4198, %v4201
  %vm4203 = vweird.f32 %v4140
  %vm4204 = vweird.f32 %v4198
  %vm4205 = vmor %vm4203, %vm4204
  %v4206 = vsel %vm4205, %v4198, %v4202
  %v4207 = vand.u32 2147483647, %v4140
  %vm4208 = vcmp.eq.f32.partialorder %v4207, 8.507059e+37
  %v4209 = vand.u32 %v4140, 2147483648
  %v4210 = vor.u32 1.1754944e-38, %v4209
  %v4211 = vsel %vm4208, %v4210, %v4206
  %v4212 = vmul.f32 1.0, %v4211
  %v4213 = vrcp.pop %v4141
  %v4214 = vmul.f32 %v4141, %v4213
  %v4215 = vsub.f32 1.0, %v4214
  %v4216 = vmul.f32 %v4213, %v4215
  %v4217 = vadd.f32 %v4213, %v4216
  %vm4218 = vweird.f32 %v4141
  %vm4219 = vweird.f32 %v4213
  %vm4220 = vmor %vm4218, %vm4219
  %v4221 = vsel %vm4220, %v4213, %v4217
  %v4222 = vand.u32 2147483647, %v4141
  %vm4223 = vcmp.eq.f32.partialorder %v4222, 8.507059e+37
  %v4224 = vand.u32 %v4141, 2147483648
  %v4225 = vor.u32 1.1754944e-38, %v4224
  %v4226 = vsel %vm4223, %v4225, %v4221
  %v4227 = vmul.f32 1.0, %v4226
  %v4228 = vrcp.pop %v4142
  %v4229 = vmul.f32 %v4142, %v4228
  %v4230 = vsub.f32 1.0, %v4229
  %v4231 = vmul.f32 %v4228, %v4230
  %v4232 = vadd.f32 %v4228, %v4231
  %vm4233 = vweird.f32 %v4142
  %vm4234 = vweird.f32 %v4228
  %vm4235 = vmor %vm4233, %vm4234
  %v4236 = vsel %vm4235, %v4228, %v4232
  %v4237 = vand.u32 2147483647, %v4142
  %vm4238 = vcmp.eq.f32.partialorder %v4237, 8.507059e+37
  %v4239 = vand.u32 %v4142, 2147483648
  %v4240 = vor.u32 1.1754944e-38, %v4239
  %v4241 = vsel %vm4238, %v4240, %v4236
  %v4242 = vmul.f32 1.0, %v4241
  %v4243 = vrcp.pop %v4143
  %v4244 = vmul.f32 %v4143, %v4243
  %v4245 = vsub.f32 1.0, %v4244
  %v4246 = vmul.f32 %v4243, %v4245
  %v4247 = vadd.f32 %v4243, %v4246
  %vm4248 = vweird.f32 %v4143
  %vm4249 = vweird.f32 %v4243
  %vm4250 = vmor %vm4248, %vm4249
  %v4251 = vsel %vm4250, %v4243, %v4247
  %v4252 = vand.u32 2147483647, %v4143
  %vm4253 = vcmp.eq.f32.partialorder %v4252, 8.507059e+37
  %v4254 = vand.u32 %v4143, 2147483648
  %v4255 = vor.u32 1.1754944e-38, %v4254
  %v4256 = vsel %vm4253, %v4255, %v4251
  %v4257 = vmul.f32 1.0, %v4256
  %v4258 = vrcp.pop %v4144
  %v4259 = vmul.f32 %v4144, %v4258
  %v4260 = vsub.f32 1.0, %v4259
  %v4261 = vmul.f32 %v4258, %v4260
  %v4262 = vadd.f32 %v4258, %v4261
  %vm4263 = vweird.f32 %v4144
  %vm4264 = vweird.f32 %v4258
  %vm4265 = vmor %vm4263, %vm4264
  %v4266 = vsel %vm4265, %v4258, %v4262
  %v4267 = vand.u32 2147483647, %v4144
  %vm4268 = vcmp.eq.f32.partialorder %v4267, 8.507059e+37
  %v4269 = vand.u32 %v4144, 2147483648
  %v4270 = vor.u32 1.1754944e-38, %v4269
  %v4271 = vsel %vm4268, %v4270, %v4266
  %v4272 = vmul.f32 1.0, %v4271
  %v4273 = vrcp.pop %v4145
  %v4274 = vmul.f32 %v4145, %v4273
  %v4275 = vsub.f32 1.0, %v4274
  %v4276 = vmul.f32 %v4273, %v4275
  %v4277 = vadd.f32 %v4273, %v4276
  %vm4278 = vweird.f32 %v4145
  %vm4279 = vweird.f32 %v4273
  %vm4280 = vmor %vm4278, %vm4279
  %v4281 = vsel %vm4280, %v4273, %v4277
  %v4282 = vand.u32 2147483647, %v4145
  %vm4283 = vcmp.eq.f32.partialorder %v4282, 8.507059e+37
  %v4284 = vand.u32 %v4145, 2147483648
  %v4285 = vor.u32 1.1754944e-38, %v4284
  %v4286 = vsel %vm4283, %v4285, %v4281
  %v4287 = vmul.f32 1.0, %v4286
  %v4288 = vrcp.pop %v4146
  %v4289 = vmul.f32 %v4146, %v4288
  %v4290 = vsub.f32 1.0, %v4289
  %v4291 = vmul.f32 %v4288, %v4290
  %v4292 = vadd.f32 %v4288, %v4291
  %vm4293 = vweird.f32 %v4146
  %vm4294 = vweird.f32 %v4288
  %vm4295 = vmor %vm4293, %vm4294
  %v4296 = vsel %vm4295, %v4288, %v4292
  %v4297 = vand.u32 2147483647, %v4146
  %vm4298 = vcmp.eq.f32.partialorder %v4297, 8.507059e+37
  %v4299 = vand.u32 %v4146, 2147483648
  %v4300 = vor.u32 1.1754944e-38, %v4299
  %v4301 = vsel %vm4298, %v4300, %v4296
  %v4302 = vmul.f32 1.0, %v4301
  %v4303 = vrcp.pop %v4147
  %v4304 = vmul.f32 %v4147, %v4303
  %v4305 = vsub.f32 1.0, %v4304
  %v4306 = vmul.f32 %v4303, %v4305
  %v4307 = vadd.f32 %v4303, %v4306
  %vm4308 = vweird.f32 %v4147
  %vm4309 = vweird.f32 %v4303
  %vm4310 = vmor %vm4308, %vm4309
  %v4311 = vsel %vm4310, %v4303, %v4307
  %v4312 = vand.u32 2147483647, %v4147
  %vm4313 = vcmp.eq.f32.partialorder %v4312, 8.507059e+37
  %v4314 = vand.u32 %v4147, 2147483648
  %v4315 = vor.u32 1.1754944e-38, %v4314
  %v4316 = vsel %vm4313, %v4315, %v4311
  %v4317 = vmul.f32 1.0, %v4316
  %v4318 = vrcp.pop %v4148
  %v4319 = vmul.f32 %v4148, %v4318
  %v4320 = vsub.f32 1.0, %v4319
  %v4321 = vmul.f32 %v4318, %v4320
  %v4322 = vadd.f32 %v4318, %v4321
  %vm4323 = vweird.f32 %v4148
  %vm4324 = vweird.f32 %v4318
  %vm4325 = vmor %vm4323, %vm4324
  %v4326 = vsel %vm4325, %v4318, %v4322
  %v4327 = vand.u32 2147483647, %v4148
  %vm4328 = vcmp.eq.f32.partialorder %v4327, 8.507059e+37
  %v4329 = vand.u32 %v4148, 2147483648
  %v4330 = vor.u32 1.1754944e-38, %v4329
  %v4331 = vsel %vm4328, %v4330, %v4326
  %v4332 = vmul.f32 1.0, %v4331
  %v4333 = vrcp.pop %v4149
  %v4334 = vmul.f32 %v4149, %v4333
  %v4335 = vsub.f32 1.0, %v4334
  %v4336 = vmul.f32 %v4333, %v4335
  %v4337 = vadd.f32 %v4333, %v4336
  %vm4338 = vweird.f32 %v4149
  %vm4339 = vweird.f32 %v4333
  %vm4340 = vmor %vm4338, %vm4339
  %v4341 = vsel %vm4340, %v4333, %v4337
  %v4342 = vand.u32 2147483647, %v4149
  %vm4343 = vcmp.eq.f32.partialorder %v4342, 8.507059e+37
  %v4344 = vand.u32 %v4149, 2147483648
  %v4345 = vor.u32 1.1754944e-38, %v4344
  %v4346 = vsel %vm4343, %v4345, %v4341
  %v4347 = vmul.f32 1.0, %v4346
  %v4348 = vrcp.pop %v4150
  %v4349 = vmul.f32 %v4150, %v4348
  %v4350 = vsub.f32 1.0, %v4349
  %v4351 = vmul.f32 %v4348, %v4350
  %v4352 = vadd.f32 %v4348, %v4351
  %vm4353 = vweird.f32 %v4150
  %vm4354 = vweird.f32 %v4348
  %vm4355 = vmor %vm4353, %vm4354
  %v4356 = vsel %vm4355, %v4348, %v4352
  %v4357 = vand.u32 2147483647, %v4150
  %vm4358 = vcmp.eq.f32.partialorder %v4357, 8.507059e+37
  %v4359 = vand.u32 %v4150, 2147483648
  %v4360 = vor.u32 1.1754944e-38, %v4359
  %v4361 = vsel %vm4358, %v4360, %v4356
  %v4362 = vmul.f32 1.0, %v4361
  %v4363 = vrcp.pop %v4151
  %v4364 = vmul.f32 %v4151, %v4363
  %v4365 = vsub.f32 1.0, %v4364
  %v4366 = vmul.f32 %v4363, %v4365
  %v4367 = vadd.f32 %v4363, %v4366
  %vm4368 = vweird.f32 %v4151
  %vm4369 = vweird.f32 %v4363
  %vm4370 = vmor %vm4368, %vm4369
  %v4371 = vsel %vm4370, %v4363, %v4367
  %v4372 = vand.u32 2147483647, %v4151
  %vm4373 = vcmp.eq.f32.partialorder %v4372, 8.507059e+37
  %v4374 = vand.u32 %v4151, 2147483648
  %v4375 = vor.u32 1.1754944e-38, %v4374
  %v4376 = vsel %vm4373, %v4375, %v4371
  %v4377 = vmul.f32 1.0, %v4376
  %v4378 = vrcp.pop %v4152
  %v4379 = vmul.f32 %v4152, %v4378
  %v4380 = vsub.f32 1.0, %v4379
  %v4381 = vmul.f32 %v4378, %v4380
  %v4382 = vadd.f32 %v4378, %v4381
  %vm4383 = vweird.f32 %v4152
  %vm4384 = vweird.f32 %v4378
  %vm4385 = vmor %vm4383, %vm4384
  %v4386 = vsel %vm4385, %v4378, %v4382
  %v4387 = vand.u32 2147483647, %v4152
  %vm4388 = vcmp.eq.f32.partialorder %v4387, 8.507059e+37
  %v4389 = vand.u32 %v4152, 2147483648
  %v4390 = vor.u32 1.1754944e-38, %v4389
  %v4391 = vsel %vm4388, %v4390, %v4386
  %v4392 = vmul.f32 1.0, %v4391
  %v4393 = vrot.slane %v3721, 2
  %v4394 = vrot.slane %v3722, 2
  %v4395 = vrot.slane %v3723, 2
  %v4396 = vrot.slane %v3724, 2
  %v4397 = vrot.slane %v3725, 2
  %v4398 = vrot.slane %v3726, 2
  %v4399 = vrot.slane %v3727, 2
  %v4400 = vrot.slane %v3728, 2
  %v4401 = vrot.slane %v3729, 2
  %v4402 = vrot.slane %v3730, 2
  %v4403 = vrot.slane %v3731, 2
  %v4404 = vrot.slane %v3732, 2
  %v4405 = vrot.slane %v3733, 2
  %v4406 = vrot.slane %v3734, 2
  %v4407 = vrot.slane %v3735, 2
  %v4408 = vrot.slane %v3736, 2
  %v4425 = vtanh.pop %v4393
  %v4426 = vtanh.pop %v4394
  %v4427 = vtanh.pop %v4395
  %v4428 = vtanh.pop %v4396
  %v4429 = vtanh.pop %v4397
  %v4430 = vtanh.pop %v4398
  %v4431 = vtanh.pop %v4399
  %v4432 = vtanh.pop %v4400
  %v4433 = vtanh.pop %v4401
  %v4434 = vtanh.pop %v4402
  %v4435 = vtanh.pop %v4403
  %v4436 = vtanh.pop %v4404
  %v4437 = vtanh.pop %v4405
  %v4438 = vtanh.pop %v4406
  %v4439 = vtanh.pop %v4407
  %v4440 = vtanh.pop %v4408
  %v4441 = vrot.slane %v3721, 3
  %v4442 = vrot.slane %v3722, 3
  %v4443 = vrot.slane %v3723, 3
  %v4444 = vrot.slane %v3724, 3
  %v4445 = vrot.slane %v3725, 3
  %v4446 = vrot.slane %v3726, 3
  %v4447 = vrot.slane %v3727, 3
  %v4448 = vrot.slane %v3728, 3
  %v4449 = vrot.slane %v3729, 3
  %v4450 = vrot.slane %v3730, 3
  %v4451 = vrot.slane %v3731, 3
  %v4452 = vrot.slane %v3732, 3
  %v4453 = vrot.slane %v3733, 3
  %v4454 = vrot.slane %v3734, 3
  %v4455 = vrot.slane %v3735, 3
  %v4456 = vrot.slane %v3736, 3
  %v4473 = vxor.u32 %v4441, 2147483648
  %v4474 = vxor.u32 %v4442, 2147483648
  %v4475 = vxor.u32 %v4443, 2147483648
  %v4476 = vxor.u32 %v4444, 2147483648
  %v4477 = vxor.u32 %v4445, 2147483648
  %v4478 = vxor.u32 %v4446, 2147483648
  %v4479 = vxor.u32 %v4447, 2147483648
  %v4480 = vxor.u32 %v4448, 2147483648
  %v4481 = vxor.u32 %v4449, 2147483648
  %v4482 = vxor.u32 %v4450, 2147483648
  %v4483 = vxor.u32 %v4451, 2147483648
  %v4484 = vxor.u32 %v4452, 2147483648
  %v4485 = vxor.u32 %v4453, 2147483648
  %v4486 = vxor.u32 %v4454, 2147483648
  %v4487 = vxor.u32 %v4455, 2147483648
  %v4488 = vxor.u32 %v4456, 2147483648
  %v4489 = vmul.f32 %v4473, 1.442695
  %v4490 = vpow.pop %v4489
  %v4491 = vmul.f32 %v4474, 1.442695
  %v4492 = vpow.pop %v4491
  %v4493 = vmul.f32 %v4475, 1.442695
  %v4494 = vpow.pop %v4493
  %v4495 = vmul.f32 %v4476, 1.442695
  %v4496 = vpow.pop %v4495
  %v4497 = vmul.f32 %v4477, 1.442695
  %v4498 = vpow.pop %v4497
  %v4499 = vmul.f32 %v4478, 1.442695
  %v4500 = vpow.pop %v4499
  %v4501 = vmul.f32 %v4479, 1.442695
  %v4502 = vpow.pop %v4501
  %v4503 = vmul.f32 %v4480, 1.442695
  %v4504 = vpow.pop %v4503
  %v4505 = vmul.f32 %v4481, 1.442695
  %v4506 = vpow.pop %v4505
  %v4507 = vmul.f32 %v4482, 1.442695
  %v4508 = vpow.pop %v4507
  %v4509 = vmul.f32 %v4483, 1.442695
  %v4510 = vpow.pop %v4509
  %v4511 = vmul.f32 %v4484, 1.442695
  %v4512 = vpow.pop %v4511
  %v4513 = vmul.f32 %v4485, 1.442695
  %v4514 = vpow.pop %v4513
  %v4515 = vmul.f32 %v4486, 1.442695
  %v4516 = vpow.pop %v4515
  %v4517 = vmul.f32 %v4487, 1.442695
  %v4518 = vpow.pop %v4517
  %v4519 = vmul.f32 %v4488, 1.442695
  %v4520 = vpow.pop %v4519
  %v4521 = vadd.f32 %v4490, 1.0
  %v4522 = vadd.f32 %v4492, 1.0
  %v4523 = vadd.f32 %v4494, 1.0
  %v4524 = vadd.f32 %v4496, 1.0
  %v4525 = vadd.f32 %v4498, 1.0
  %v4526 = vadd.f32 %v4500, 1.0
  %v4527 = vadd.f32 %v4502, 1.0
  %v4528 = vadd.f32 %v4504, 1.0
  %v4529 = vadd.f32 %v4506, 1.0
  %v4530 = vadd.f32 %v4508, 1.0
  %v4531 = vadd.f32 %v4510, 1.0
  %v4532 = vadd.f32 %v4512, 1.0
  %v4533 = vadd.f32 %v4514, 1.0
  %v4534 = vadd.f32 %v4516, 1.0
  %v4535 = vadd.f32 %v4518, 1.0
  %v4536 = vadd.f32 %v4520, 1.0
  %v4537 = vrcp.pop %v4521
  %v4538 = vmul.f32 %v4521, %v4537
  %v4539 = vsub.f32 1.0, %v4538
  %v4540 = vmul.f32 %v4537, %v4539
  %v4541 = vadd.f32 %v4537, %v4540
  %vm4542 = vweird.f32 %v4521
  %vm4543 = vweird.f32 %v4537
  %vm4544 = vmor %vm4542, %vm4543
  %v4545 = vsel %vm4544, %v4537, %v4541
  %v4546 = vand.u32 2147483647, %v4521
  %vm4547 = vcmp.eq.f32.partialorder %v4546, 8.507059e+37
  %v4548 = vand.u32 %v4521, 2147483648
  %v4549 = vor.u32 1.1754944e-38, %v4548
  %v4550 = vsel %vm4547, %v4549, %v4545
  %v4551 = vmul.f32 1.0, %v4550
  %v4552 = vrcp.pop %v4522
  %v4553 = vmul.f32 %v4522, %v4552
  %v4554 = vsub.f32 1.0, %v4553
  %v4555 = vmul.f32 %v4552, %v4554
  %v4556 = vadd.f32 %v4552, %v4555
  %vm4557 = vweird.f32 %v4522
  %vm4558 = vweird.f32 %v4552
  %vm4559 = vmor %vm4557, %vm4558
  %v4560 = vsel %vm4559, %v4552, %v4556
  %v4561 = vand.u32 2147483647, %v4522
  %vm4562 = vcmp.eq.f32.partialorder %v4561, 8.507059e+37
  %v4563 = vand.u32 %v4522, 2147483648
  %v4564 = vor.u32 1.1754944e-38, %v4563
  %v4565 = vsel %vm4562, %v4564, %v4560
  %v4566 = vmul.f32 1.0, %v4565
  %v4567 = vrcp.pop %v4523
  %v4568 = vmul.f32 %v4523, %v4567
  %v4569 = vsub.f32 1.0, %v4568
  %v4570 = vmul.f32 %v4567, %v4569
  %v4571 = vadd.f32 %v4567, %v4570
  %vm4572 = vweird.f32 %v4523
  %vm4573 = vweird.f32 %v4567
  %vm4574 = vmor %vm4572, %vm4573
  %v4575 = vsel %vm4574, %v4567, %v4571
  %v4576 = vand.u32 2147483647, %v4523
  %vm4577 = vcmp.eq.f32.partialorder %v4576, 8.507059e+37
  %v4578 = vand.u32 %v4523, 2147483648
  %v4579 = vor.u32 1.1754944e-38, %v4578
  %v4580 = vsel %vm4577, %v4579, %v4575
  %v4581 = vmul.f32 1.0, %v4580
  %v4582 = vrcp.pop %v4524
  %v4583 = vmul.f32 %v4524, %v4582
  %v4584 = vsub.f32 1.0, %v4583
  %v4585 = vmul.f32 %v4582, %v4584
  %v4586 = vadd.f32 %v4582, %v4585
  %vm4587 = vweird.f32 %v4524
  %vm4588 = vweird.f32 %v4582
  %vm4589 = vmor %vm4587, %vm4588
  %v4590 = vsel %vm4589, %v4582, %v4586
  %v4591 = vand.u32 2147483647, %v4524
  %vm4592 = vcmp.eq.f32.partialorder %v4591, 8.507059e+37
  %v4593 = vand.u32 %v4524, 2147483648
  %v4594 = vor.u32 1.1754944e-38, %v4593
  %v4595 = vsel %vm4592, %v4594, %v4590
  %v4596 = vmul.f32 1.0, %v4595
  %v4597 = vrcp.pop %v4525
  %v4598 = vmul.f32 %v4525, %v4597
  %v4599 = vsub.f32 1.0, %v4598
  %v4600 = vmul.f32 %v4597, %v4599
  %v4601 = vadd.f32 %v4597, %v4600
  %vm4602 = vweird.f32 %v4525
  %vm4603 = vweird.f32 %v4597
  %vm4604 = vmor %vm4602, %vm4603
  %v4605 = vsel %vm4604, %v4597, %v4601
  %v4606 = vand.u32 2147483647, %v4525
  %vm4607 = vcmp.eq.f32.partialorder %v4606, 8.507059e+37
  %v4608 = vand.u32 %v4525, 2147483648
  %v4609 = vor.u32 1.1754944e-38, %v4608
  %v4610 = vsel %vm4607, %v4609, %v4605
  %v4611 = vmul.f32 1.0, %v4610
  %v4612 = vrcp.pop %v4526
  %v4613 = vmul.f32 %v4526, %v4612
  %v4614 = vsub.f32 1.0, %v4613
  %v4615 = vmul.f32 %v4612, %v4614
  %v4616 = vadd.f32 %v4612, %v4615
  %vm4617 = vweird.f32 %v4526
  %vm4618 = vweird.f32 %v4612
  %vm4619 = vmor %vm4617, %vm4618
  %v4620 = vsel %vm4619, %v4612, %v4616
  %v4621 = vand.u32 2147483647, %v4526
  %vm4622 = vcmp.eq.f32.partialorder %v4621, 8.507059e+37
  %v4623 = vand.u32 %v4526, 2147483648
  %v4624 = vor.u32 1.1754944e-38, %v4623
  %v4625 = vsel %vm4622, %v4624, %v4620
  %v4626 = vmul.f32 1.0, %v4625
  %v4627 = vrcp.pop %v4527
  %v4628 = vmul.f32 %v4527, %v4627
  %v4629 = vsub.f32 1.0, %v4628
  %v4630 = vmul.f32 %v4627, %v4629
  %v4631 = vadd.f32 %v4627, %v4630
  %vm4632 = vweird.f32 %v4527
  %vm4633 = vweird.f32 %v4627
  %vm4634 = vmor %vm4632, %vm4633
  %v4635 = vsel %vm4634, %v4627, %v4631
  %v4636 = vand.u32 2147483647, %v4527
  %vm4637 = vcmp.eq.f32.partialorder %v4636, 8.507059e+37
  %v4638 = vand.u32 %v4527, 2147483648
  %v4639 = vor.u32 1.1754944e-38, %v4638
  %v4640 = vsel %vm4637, %v4639, %v4635
  %v4641 = vmul.f32 1.0, %v4640
  %v4642 = vrcp.pop %v4528
  %v4643 = vmul.f32 %v4528, %v4642
  %v4644 = vsub.f32 1.0, %v4643
  %v4645 = vmul.f32 %v4642, %v4644
  %v4646 = vadd.f32 %v4642, %v4645
  %vm4647 = vweird.f32 %v4528
  %vm4648 = vweird.f32 %v4642
  %vm4649 = vmor %vm4647, %vm4648
  %v4650 = vsel %vm4649, %v4642, %v4646
  %v4651 = vand.u32 2147483647, %v4528
  %vm4652 = vcmp.eq.f32.partialorder %v4651, 8.507059e+37
  %v4653 = vand.u32 %v4528, 2147483648
  %v4654 = vor.u32 1.1754944e-38, %v4653
  %v4655 = vsel %vm4652, %v4654, %v4650
  %v4656 = vmul.f32 1.0, %v4655
  %v4657 = vrcp.pop %v4529
  %v4658 = vmul.f32 %v4529, %v4657
  %v4659 = vsub.f32 1.0, %v4658
  %v4660 = vmul.f32 %v4657, %v4659
  %v4661 = vadd.f32 %v4657, %v4660
  %vm4662 = vweird.f32 %v4529
  %vm4663 = vweird.f32 %v4657
  %vm4664 = vmor %vm4662, %vm4663
  %v4665 = vsel %vm4664, %v4657, %v4661
  %v4666 = vand.u32 2147483647, %v4529
  %vm4667 = vcmp.eq.f32.partialorder %v4666, 8.507059e+37
  %v4668 = vand.u32 %v4529, 2147483648
  %v4669 = vor.u32 1.1754944e-38, %v4668
  %v4670 = vsel %vm4667, %v4669, %v4665
  %v4671 = vmul.f32 1.0, %v4670
  %v4672 = vrcp.pop %v4530
  %v4673 = vmul.f32 %v4530, %v4672
  %v4674 = vsub.f32 1.0, %v4673
  %v4675 = vmul.f32 %v4672, %v4674
  %v4676 = vadd.f32 %v4672, %v4675
  %vm4677 = vweird.f32 %v4530
  %vm4678 = vweird.f32 %v4672
  %vm4679 = vmor %vm4677, %vm4678
  %v4680 = vsel %vm4679, %v4672, %v4676
  %v4681 = vand.u32 2147483647, %v4530
  %vm4682 = vcmp.eq.f32.partialorder %v4681, 8.507059e+37
  %v4683 = vand.u32 %v4530, 2147483648
  %v4684 = vor.u32 1.1754944e-38, %v4683
  %v4685 = vsel %vm4682, %v4684, %v4680
  %v4686 = vmul.f32 1.0, %v4685
  %v4687 = vrcp.pop %v4531
  %v4688 = vmul.f32 %v4531, %v4687
  %v4689 = vsub.f32 1.0, %v4688
  %v4690 = vmul.f32 %v4687, %v4689
  %v4691 = vadd.f32 %v4687, %v4690
  %vm4692 = vweird.f32 %v4531
  %vm4693 = vweird.f32 %v4687
  %vm4694 = vmor %vm4692, %vm4693
  %v4695 = vsel %vm4694, %v4687, %v4691
  %v4696 = vand.u32 2147483647, %v4531
  %vm4697 = vcmp.eq.f32.partialorder %v4696, 8.507059e+37
  %v4698 = vand.u32 %v4531, 2147483648
  %v4699 = vor.u32 1.1754944e-38, %v4698
  %v4700 = vsel %vm4697, %v4699, %v4695
  %v4701 = vmul.f32 1.0, %v4700
  %v4702 = vrcp.pop %v4532
  %v4703 = vmul.f32 %v4532, %v4702
  %v4704 = vsub.f32 1.0, %v4703
  %v4705 = vmul.f32 %v4702, %v4704
  %v4706 = vadd.f32 %v4702, %v4705
  %vm4707 = vweird.f32 %v4532
  %vm4708 = vweird.f32 %v4702
  %vm4709 = vmor %vm4707, %vm4708
  %v4710 = vsel %vm4709, %v4702, %v4706
  %v4711 = vand.u32 2147483647, %v4532
  %vm4712 = vcmp.eq.f32.partialorder %v4711, 8.507059e+37
  %v4713 = vand.u32 %v4532, 2147483648
  %v4714 = vor.u32 1.1754944e-38, %v4713
  %v4715 = vsel %vm4712, %v4714, %v4710
  %v4716 = vmul.f32 1.0, %v4715
  %v4717 = vrcp.pop %v4533
  %v4718 = vmul.f32 %v4533, %v4717
  %v4719 = vsub.f32 1.0, %v4718
  %v4720 = vmul.f32 %v4717, %v4719
  %v4721 = vadd.f32 %v4717, %v4720
  %vm4722 = vweird.f32 %v4533
  %vm4723 = vweird.f32 %v4717
  %vm4724 = vmor %vm4722, %vm4723
  %v4725 = vsel %vm4724, %v4717, %v4721
  %v4726 = vand.u32 2147483647, %v4533
  %vm4727 = vcmp.eq.f32.partialorder %v4726, 8.507059e+37
  %v4728 = vand.u32 %v4533, 2147483648
  %v4729 = vor.u32 1.1754944e-38, %v4728
  %v4730 = vsel %vm4727, %v4729, %v4725
  %v4731 = vmul.f32 1.0, %v4730
  %v4732 = vrcp.pop %v4534
  %v4733 = vmul.f32 %v4534, %v4732
  %v4734 = vsub.f32 1.0, %v4733
  %v4735 = vmul.f32 %v4732, %v4734
  %v4736 = vadd.f32 %v4732, %v4735
  %vm4737 = vweird.f32 %v4534
  %vm4738 = vweird.f32 %v4732
  %vm4739 = vmor %vm4737, %vm4738
  %v4740 = vsel %vm4739, %v4732, %v4736
  %v4741 = vand.u32 2147483647, %v4534
  %vm4742 = vcmp.eq.f32.partialorder %v4741, 8.507059e+37
  %v4743 = vand.u32 %v4534, 2147483648
  %v4744 = vor.u32 1.1754944e-38, %v4743
  %v4745 = vsel %vm4742, %v4744, %v4740
  %v4746 = vmul.f32 1.0, %v4745
  %v4747 = vrcp.pop %v4535
  %v4748 = vmul.f32 %v4535, %v4747
  %v4749 = vsub.f32 1.0, %v4748
  %v4750 = vmul.f32 %v4747, %v4749
  %v4751 = vadd.f32 %v4747, %v4750
  %vm4752 = vweird.f32 %v4535
  %vm4753 = vweird.f32 %v4747
  %vm4754 = vmor %vm4752, %vm4753
  %v4755 = vsel %vm4754, %v4747, %v4751
  %v4756 = vand.u32 2147483647, %v4535
  %vm4757 = vcmp.eq.f32.partialorder %v4756, 8.507059e+37
  %v4758 = vand.u32 %v4535, 2147483648
  %v4759 = vor.u32 1.1754944e-38, %v4758
  %v4760 = vsel %vm4757, %v4759, %v4755
  %v4761 = vmul.f32 1.0, %v4760
  %v4762 = vrcp.pop %v4536
  %v4763 = vmul.f32 %v4536, %v4762
  %v4764 = vsub.f32 1.0, %v4763
  %v4765 = vmul.f32 %v4762, %v4764
  %v4766 = vadd.f32 %v4762, %v4765
  %vm4767 = vweird.f32 %v4536
  %vm4768 = vweird.f32 %v4762
  %vm4769 = vmor %vm4767, %vm4768
  %v4770 = vsel %vm4769, %v4762, %v4766
  %v4771 = vand.u32 2147483647, %v4536
  %vm4772 = vcmp.eq.f32.partialorder %v4771, 8.507059e+37
  %v4773 = vand.u32 %v4536, 2147483648
  %v4774 = vor.u32 1.1754944e-38, %v4773
  %v4775 = vsel %vm4772, %v4774, %v4770
  %v4776 = vmul.f32 1.0, %v4775
  %v4777 = vmul.f32 %v4167, %v3334
  %v4778 = vmul.f32 %v4182, %v3335
  %v4779 = vmul.f32 %v4197, %v3336
  %v4780 = vmul.f32 %v4212, %v3337
  %v4781 = vmul.f32 %v4227, %v3338
  %v4782 = vmul.f32 %v4242, %v3339
  %v4783 = vmul.f32 %v4257, %v3340
  %v4784 = vmul.f32 %v4272, %v3341
  %v4785 = vmul.f32 %v4287, %v3342
  %v4786 = vmul.f32 %v4302, %v3343
  %v4787 = vmul.f32 %v4317, %v3344
  %v4788 = vmul.f32 %v4332, %v3345
  %v4789 = vmul.f32 %v4347, %v3346
  %v4790 = vmul.f32 %v4362, %v3347
  %v4791 = vmul.f32 %v4377, %v3348
  %v4792 = vmul.f32 %v4392, %v3349
  %v4793 = vmul.f32 %v3815, %v4425
  %v4794 = vmul.f32 %v3830, %v4426
  %v4795 = vmul.f32 %v3845, %v4427
  %v4796 = vmul.f32 %v3860, %v4428
  %v4797 = vmul.f32 %v3875, %v4429
  %v4798 = vmul.f32 %v3890, %v4430
  %v4799 = vmul.f32 %v3905, %v4431
  %v4800 = vmul.f32 %v3920, %v4432
  %v4801 = vmul.f32 %v3935, %v4433
  %v4802 = vmul.f32 %v3950, %v4434
  %v4803 = vmul.f32 %v3965, %v4435
  %v4804 = vmul.f32 %v3980, %v4436
  %v4805 = vmul.f32 %v3995, %v4437
  %v4806 = vmul.f32 %v4010, %v4438
  %v4807 = vmul.f32 %v4025, %v4439
  %v4808 = vmul.f32 %v4040, %v4440
  %v4809 = vadd.f32 %v4777, %v4793
  %v4810 = vadd.f32 %v4778, %v4794
  %v4811 = vadd.f32 %v4779, %v4795
  %v4812 = vadd.f32 %v4780, %v4796
  %v4813 = vadd.f32 %v4781, %v4797
  %v4814 = vadd.f32 %v4782, %v4798
  %v4815 = vadd.f32 %v4783, %v4799
  %v4816 = vadd.f32 %v4784, %v4800
  %v4817 = vadd.f32 %v4785, %v4801
  %v4818 = vadd.f32 %v4786, %v4802
  %v4819 = vadd.f32 %v4787, %v4803
  %v4820 = vadd.f32 %v4788, %v4804
  %v4821 = vadd.f32 %v4789, %v4805
  %v4822 = vadd.f32 %v4790, %v4806
  %v4823 = vadd.f32 %v4791, %v4807
  %v4824 = vadd.f32 %v4792, %v4808
  %v4825 = vtanh.pop %v4809
  %v4826 = vtanh.pop %v4810
  %v4827 = vtanh.pop %v4811
  %v4828 = vtanh.pop %v4812
  %v4829 = vtanh.pop %v4813
  %v4830 = vtanh.pop %v4814
  %v4831 = vtanh.pop %v4815
  %v4832 = vtanh.pop %v4816
  %v4833 = vtanh.pop %v4817
  %v4834 = vtanh.pop %v4818
  %v4835 = vtanh.pop %v4819
  %v4836 = vtanh.pop %v4820
  %v4837 = vtanh.pop %v4821
  %v4838 = vtanh.pop %v4822
  %v4839 = vtanh.pop %v4823
  %v4840 = vtanh.pop %v4824
  %v4841 = vmul.f32 %v4551, %v4825
  %v4842 = vmul.f32 %v4566, %v4826
  %v4843 = vmul.f32 %v4581, %v4827
  %v4844 = vmul.f32 %v4596, %v4828
  %v4845 = vmul.f32 %v4611, %v4829
  %v4846 = vmul.f32 %v4626, %v4830
  %v4847 = vmul.f32 %v4641, %v4831
  %v4848 = vmul.f32 %v4656, %v4832
  %v4849 = vmul.f32 %v4671, %v4833
  %v4850 = vmul.f32 %v4686, %v4834
  %v4851 = vmul.f32 %v4701, %v4835
  %v4852 = vmul.f32 %v4716, %v4836
  %v4853 = vmul.f32 %v4731, %v4837
  %v4854 = vmul.f32 %v4746, %v4838
  %v4855 = vmul.f32 %v4761, %v4839
  %v4856 = vmul.f32 %v4776, %v4840
  %4857 = vst [vmem:[%s4 + $0x2] sm:$0x1] %v4841
  %4858 = vst [vmem:[%s4 + $0xa] sm:$0x1] %v4842
  %4859 = vst [vmem:[%s4 + $0x12] sm:$0x1] %v4843
  %4860 = vst [vmem:[%s4 + $0x1a] sm:$0x1] %v4844
  %4861 = vst [vmem:[%s4 + $0x22] sm:$0x1] %v4845
  %4862 = vst [vmem:[%s4 + $0x2a] sm:$0x1] %v4846
  %4863 = vst [vmem:[%s4 + $0x32] sm:$0x1] %v4847
  %4864 = vst [vmem:[%s4 + $0x3a] sm:$0x1] %v4848
  %4865 = vst [vmem:[%s4 + $0x42] sm:$0x1] %v4849
  %4866 = vst [vmem:[%s4 + $0x4a] sm:$0x1] %v4850
  %4867 = vst [vmem:[%s4 + $0x52] sm:$0x1] %v4851
  %4868 = vst [vmem:[%s4 + $0x5a] sm:$0x1] %v4852
  %4869 = vst [vmem:[%s4 + $0x62] sm:$0x1] %v4853
  %4870 = vst [vmem:[%s4 + $0x6a] sm:$0x1] %v4854
  %4871 = vst [vmem:[%s4 + $0x72] sm:$0x1] %v4855
  %4872 = vst [vmem:[%s4 + $0x7a] sm:$0x1] %v4856
  %s4873 = scalar_lea.vmem [#allocation2], 3
  %v4874 = vld [vmem:[%s4873] ss:$8 sm:$0xf]
  %s4875 = scalar_lea.vmem [#allocation2], 35
  %v4876 = vld [vmem:[%s4875] ss:$8 sm:$0xf]
  %s4877 = scalar_lea.vmem [#allocation2], 67
  %v4878 = vld [vmem:[%s4877] ss:$8 sm:$0xf]
  %s4879 = scalar_lea.vmem [#allocation2], 99
  %v4880 = vld [vmem:[%s4879] ss:$8 sm:$0xf]
  %s4881 = scalar_lea.vmem [#allocation2], 131
  %v4882 = vld [vmem:[%s4881] ss:$8 sm:$0xf]
  %s4883 = scalar_lea.vmem [#allocation2], 163
  %v4884 = vld [vmem:[%s4883] ss:$8 sm:$0xf]
  %s4885 = scalar_lea.vmem [#allocation2], 195
  %v4886 = vld [vmem:[%s4885] ss:$8 sm:$0xf]
  %s4887 = scalar_lea.vmem [#allocation2], 227
  %v4888 = vld [vmem:[%s4887] ss:$8 sm:$0xf]
  %s4889 = scalar_lea.vmem [#allocation2], 259
  %v4890 = vld [vmem:[%s4889] ss:$8 sm:$0xf]
  %s4891 = scalar_lea.vmem [#allocation2], 291
  %v4892 = vld [vmem:[%s4891] ss:$8 sm:$0xf]
  %s4893 = scalar_lea.vmem [#allocation2], 323
  %v4894 = vld [vmem:[%s4893] ss:$8 sm:$0xf]
  %s4895 = scalar_lea.vmem [#allocation2], 355
  %v4896 = vld [vmem:[%s4895] ss:$8 sm:$0xf]
  %s4897 = scalar_lea.vmem [#allocation2], 387
  %v4898 = vld [vmem:[%s4897] ss:$8 sm:$0xf]
  %s4899 = scalar_lea.vmem [#allocation2], 419
  %v4900 = vld [vmem:[%s4899] ss:$8 sm:$0xf]
  %s4901 = scalar_lea.vmem [#allocation2], 451
  %v4902 = vld [vmem:[%s4901] ss:$8 sm:$0xf]
  %s4903 = scalar_lea.vmem [#allocation2], 483
  %v4904 = vld [vmem:[%s4903] ss:$8 sm:$0xf]
  %v4905 = vld [vmem:[%s2] sm:$0xff]
  %v4906 = vld [vmem:[%s2 + $0x8] sm:$0xff]
  %v4907 = vld [vmem:[%s2 + $0x10] sm:$0xff]
  %v4908 = vld [vmem:[%s2 + $0x18] sm:$0xff]
  %v4909 = vld [vmem:[%s2 + $0x20] sm:$0xff]
  %v4910 = vld [vmem:[%s2 + $0x28] sm:$0xff]
  %v4911 = vld [vmem:[%s2 + $0x30] sm:$0xff]
  %v4912 = vld [vmem:[%s2 + $0x38] sm:$0xff]
  %v4913 = vld [vmem:[%s2 + $0x40] sm:$0xff]
  %v4914 = vld [vmem:[%s2 + $0x48] sm:$0xff]
  %v4915 = vld [vmem:[%s2 + $0x50] sm:$0xff]
  %v4916 = vld [vmem:[%s2 + $0x58] sm:$0xff]
  %v4917 = vld [vmem:[%s2 + $0x60] sm:$0xff]
  %v4918 = vld [vmem:[%s2 + $0x68] sm:$0xff]
  %v4919 = vld [vmem:[%s2 + $0x70] sm:$0xff]
  %v4920 = vld [vmem:[%s2 + $0x78] sm:$0xff]
  %v4921 = vld [vmem:[%s2 + $0x80] sm:$0xff]
  %v4922 = vld [vmem:[%s2 + $0x88] sm:$0xff]
  %v4923 = vld [vmem:[%s2 + $0x90] sm:$0xff]
  %v4924 = vld [vmem:[%s2 + $0x98] sm:$0xff]
  %v4925 = vld [vmem:[%s2 + $0xa0] sm:$0xff]
  %v4926 = vld [vmem:[%s2 + $0xa8] sm:$0xff]
  %v4927 = vld [vmem:[%s2 + $0xb0] sm:$0xff]
  %v4928 = vld [vmem:[%s2 + $0xb8] sm:$0xff]
  %v4929 = vld [vmem:[%s2 + $0xc0] sm:$0xff]
  %v4930 = vld [vmem:[%s2 + $0xc8] sm:$0xff]
  %v4931 = vld [vmem:[%s2 + $0xd0] sm:$0xff]
  %v4932 = vld [vmem:[%s2 + $0xd8] sm:$0xff]
  %v4933 = vld [vmem:[%s2 + $0xe0] sm:$0xff]
  %v4934 = vld [vmem:[%s2 + $0xe8] sm:$0xff]
  %v4935 = vld [vmem:[%s2 + $0xf0] sm:$0xff]
  %v4936 = vld [vmem:[%s2 + $0xf8] sm:$0xff]
  %v4937 = vld [vmem:[%s2 + $0x100] sm:$0xff]
  %v4938 = vld [vmem:[%s2 + $0x108] sm:$0xff]
  %v4939 = vld [vmem:[%s2 + $0x110] sm:$0xff]
  %v4940 = vld [vmem:[%s2 + $0x118] sm:$0xff]
  %v4941 = vld [vmem:[%s2 + $0x120] sm:$0xff]
  %v4942 = vld [vmem:[%s2 + $0x128] sm:$0xff]
  %v4943 = vld [vmem:[%s2 + $0x130] sm:$0xff]
  %v4944 = vld [vmem:[%s2 + $0x138] sm:$0xff]
  %v4945 = vld [vmem:[%s2 + $0x140] sm:$0xff]
  %v4946 = vld [vmem:[%s2 + $0x148] sm:$0xff]
  %v4947 = vld [vmem:[%s2 + $0x150] sm:$0xff]
  %v4948 = vld [vmem:[%s2 + $0x158] sm:$0xff]
  %v4949 = vld [vmem:[%s2 + $0x160] sm:$0xff]
  %v4950 = vld [vmem:[%s2 + $0x168] sm:$0xff]
  %v4951 = vld [vmem:[%s2 + $0x170] sm:$0xff]
  %v4952 = vld [vmem:[%s2 + $0x178] sm:$0xff]
  %v4953 = vld [vmem:[%s2 + $0x180] sm:$0xff]
  %v4954 = vld [vmem:[%s2 + $0x188] sm:$0xff]
  %v4955 = vld [vmem:[%s2 + $0x190] sm:$0xff]
  %v4956 = vld [vmem:[%s2 + $0x198] sm:$0xff]
  %v4957 = vld [vmem:[%s2 + $0x1a0] sm:$0xff]
  %v4958 = vld [vmem:[%s2 + $0x1a8] sm:$0xff]
  %v4959 = vld [vmem:[%s2 + $0x1b0] sm:$0xff]
  %v4960 = vld [vmem:[%s2 + $0x1b8] sm:$0xff]
  %v4961 = vld [vmem:[%s2 + $0x1c0] sm:$0xff]
  %v4962 = vld [vmem:[%s2 + $0x1c8] sm:$0xff]
  %v4963 = vld [vmem:[%s2 + $0x1d0] sm:$0xff]
  %v4964 = vld [vmem:[%s2 + $0x1d8] sm:$0xff]
  %v4965 = vld [vmem:[%s2 + $0x1e0] sm:$0xff]
  %v4966 = vld [vmem:[%s2 + $0x1e8] sm:$0xff]
  %v4967 = vld [vmem:[%s2 + $0x1f0] sm:$0xff]
  %v4968 = vld [vmem:[%s2 + $0x1f8] sm:$0xff]
  %4985 = vst [vmem:[#allocation1] ss:$9 sm:$0xff] %v4841
  %s4986 = scalar_lea.vmem [#allocation1], 1
  %4987 = vst [vmem:[%s4986] ss:$9 sm:$0xff] %v4842
  %s4988 = scalar_lea.vmem [#allocation1], 2
  %4989 = vst [vmem:[%s4988] ss:$9 sm:$0xff] %v4843
  %s4990 = scalar_lea.vmem [#allocation1], 3
  %4991 = vst [vmem:[%s4990] ss:$9 sm:$0xff] %v4844
  %s4992 = scalar_lea.vmem [#allocation1], 4
  %4993 = vst [vmem:[%s4992] ss:$9 sm:$0xff] %v4845
  %s4994 = scalar_lea.vmem [#allocation1], 5
  %4995 = vst [vmem:[%s4994] ss:$9 sm:$0xff] %v4846
  %s4996 = scalar_lea.vmem [#allocation1], 6
  %4997 = vst [vmem:[%s4996] ss:$9 sm:$0xff] %v4847
  %s4998 = scalar_lea.vmem [#allocation1], 7
  %4999 = vst [vmem:[%s4998] ss:$9 sm:$0xff] %v4848
  %v5000 = vld [vmem:[#allocation1] sm:$0xff]
  %5001 = vst [vmem:[#allocation1] ss:$9 sm:$0xff] %v4849
  %5002 = vst [vmem:[%s4986] ss:$9 sm:$0xff] %v4850
  %5003 = vst [vmem:[%s4988] ss:$9 sm:$0xff] %v4851
  %5004 = vst [vmem:[%s4990] ss:$9 sm:$0xff] %v4852
  %5005 = vst [vmem:[%s4992] ss:$9 sm:$0xff] %v4853
  %5006 = vst [vmem:[%s4994] ss:$9 sm:$0xff] %v4854
  %5007 = vst [vmem:[%s4996] ss:$9 sm:$0xff] %v4855
  %5008 = vst [vmem:[%s4998] ss:$9 sm:$0xff] %v4856
  %v5009 = vld [vmem:[#allocation1] sm:$0xff]
  %5012 = vmatpush.msra.mxu0 %v4965
  %5013 = vmatpush.msra.mxu0 %v4961
  %5014 = vmatpush.msra.mxu0 %v4957
  %5015 = vmatpush.msra.mxu0 %v4953
  %5016 = vmatpush.msra.mxu0 %v4949
  %5017 = vmatpush.msra.mxu0 %v4945
  %5018 = vmatpush.msra.mxu0 %v4941
  %5019 = vmatpush.msra.mxu0 %v4937
  %5020 = vmatpush.msra.mxu0 %v4933
  %5021 = vmatpush.msra.mxu0 %v4929
  %5022 = vmatpush.msra.mxu0 %v4925
  %5023 = vmatpush.msra.mxu0 %v4921
  %5024 = vmatpush.msra.mxu0 %v4917
  %5025 = vmatpush.msra.mxu0 %v4913
  %5026 = vmatpush.msra.mxu0 %v4909
  %5027 = vmatpush.msra.mxu0 %v4905
  %5028 = vmatmul.f32.gmra.mxu0 %v5000
  %v5029 = vpop.f32.mrf.mxu0
  %v5030 = vadd.f32 0.0, %v5029
  %5031 = vmatmul.f32.gmra.mxu0 %v5009
  %v5032 = vpop.f32.mrf.mxu0
  %v5033 = vadd.f32 0.0, %v5032
  %5034 = vdwg.mxu0
  %5035 = vmatpush.msra.mxu0 %v4966
  %5036 = vmatpush.msra.mxu0 %v4962
  %5037 = vmatpush.msra.mxu0 %v4958
  %5038 = vmatpush.msra.mxu0 %v4954
  %5039 = vmatpush.msra.mxu0 %v4950
  %5040 = vmatpush.msra.mxu0 %v4946
  %5041 = vmatpush.msra.mxu0 %v4942
  %5042 = vmatpush.msra.mxu0 %v4938
  %5043 = vmatpush.msra.mxu0 %v4934
  %5044 = vmatpush.msra.mxu0 %v4930
  %5045 = vmatpush.msra.mxu0 %v4926
  %5046 = vmatpush.msra.mxu0 %v4922
  %5047 = vmatpush.msra.mxu0 %v4918
  %5048 = vmatpush.msra.mxu0 %v4914
  %5049 = vmatpush.msra.mxu0 %v4910
  %5050 = vmatpush.msra.mxu0 %v4906
  %5051 = vmatmul.f32.gmra.mxu0 %v5000
  %v5052 = vpop.f32.mrf.mxu0
  %v5053 = vadd.f32 0.0, %v5052
  %5054 = vmatmul.f32.gmra.mxu0 %v5009
  %v5055 = vpop.f32.mrf.mxu0
  %v5056 = vadd.f32 0.0, %v5055
  %5057 = vdwg.mxu0
  %5058 = vmatpush.msra.mxu0 %v4967
  %5059 = vmatpush.msra.mxu0 %v4963
  %5060 = vmatpush.msra.mxu0 %v4959
  %5061 = vmatpush.msra.mxu0 %v4955
  %5062 = vmatpush.msra.mxu0 %v4951
  %5063 = vmatpush.msra.mxu0 %v4947
  %5064 = vmatpush.msra.mxu0 %v4943
  %5065 = vmatpush.msra.mxu0 %v4939
  %5066 = vmatpush.msra.mxu0 %v4935
  %5067 = vmatpush.msra.mxu0 %v4931
  %5068 = vmatpush.msra.mxu0 %v4927
  %5069 = vmatpush.msra.mxu0 %v4923
  %5070 = vmatpush.msra.mxu0 %v4919
  %5071 = vmatpush.msra.mxu0 %v4915
  %5072 = vmatpush.msra.mxu0 %v4911
  %5073 = vmatpush.msra.mxu0 %v4907
  %5074 = vmatmul.f32.gmra.mxu0 %v5000
  %v5075 = vpop.f32.mrf.mxu0
  %v5076 = vadd.f32 0.0, %v5075
  %5077 = vmatmul.f32.gmra.mxu0 %v5009
  %v5078 = vpop.f32.mrf.mxu0
  %v5079 = vadd.f32 0.0, %v5078
  %5080 = vdwg.mxu0
  %5081 = vmatpush.msra.mxu0 %v4968
  %5082 = vmatpush.msra.mxu0 %v4964
  %5083 = vmatpush.msra.mxu0 %v4960
  %5084 = vmatpush.msra.mxu0 %v4956
  %5085 = vmatpush.msra.mxu0 %v4952
  %5086 = vmatpush.msra.mxu0 %v4948
  %5087 = vmatpush.msra.mxu0 %v4944
  %5088 = vmatpush.msra.mxu0 %v4940
  %5089 = vmatpush.msra.mxu0 %v4936
  %5090 = vmatpush.msra.mxu0 %v4932
  %5091 = vmatpush.msra.mxu0 %v4928
  %5092 = vmatpush.msra.mxu0 %v4924
  %5093 = vmatpush.msra.mxu0 %v4920
  %5094 = vmatpush.msra.mxu0 %v4916
  %5095 = vmatpush.msra.mxu0 %v4912
  %5096 = vmatpush.msra.mxu0 %v4908
  %5097 = vmatmul.f32.gmra.mxu0 %v5000
  %v5098 = vpop.f32.mrf.mxu0
  %v5099 = vadd.f32 0.0, %v5098
  %5100 = vmatmul.f32.gmra.mxu0 %v5009
  %v5101 = vpop.f32.mrf.mxu0
  %v5102 = vadd.f32 0.0, %v5101
  %5103 = vdwg.mxu0
  %v5112 = vrot.slane %v5053, 7
  %v5113 = vrot.slane %v5076, 6
  %v5114 = vrot.slane %v5099, 5
  %v5115 = vrot.slane %v5056, 7
  %v5116 = vrot.slane %v5079, 6
  %v5117 = vrot.slane %v5102, 5
  %v5118 = vsel %vm647, %v5030, %v5112
  %v5119 = vsel %vm649, %v5113, %v5114
  %v5120 = vsel %vm651, %v5118, %v5119
  %v5121 = vsel %vm653, %v5030, %v5112
  %v5122 = vsel %vm655, %v5113, %v5114
  %v5123 = vsel %vm657, %v5121, %v5122
  %v5124 = vrot.slane %v5123, 1
  %v5125 = vsel %vm649, %v5030, %v5112
  %v5126 = vsel %vm661, %v5113, %v5114
  %v5127 = vsel %vm663, %v5125, %v5126
  %v5128 = vrot.slane %v5127, 2
  %v5129 = vsel %vm655, %v5030, %v5112
  %v5130 = vsel %vm667, %v5113, %v5114
  %v5131 = vsel %vm669, %v5129, %v5130
  %v5132 = vrot.slane %v5131, 3
  %v5133 = vsel %vm661, %v5030, %v5112
  %v5134 = vsel %vm673, %v5113, %v5114
  %v5135 = vsel %vm675, %v5133, %v5134
  %v5136 = vrot.slane %v5135, 4
  %v5137 = vsel %vm667, %v5030, %v5112
  %v5138 = vsel %vm679, %v5114, %v5113
  %v5139 = vsel %vm681, %v5137, %v5138
  %v5140 = vrot.slane %v5139, 5
  %v5141 = vsel %vm673, %v5030, %v5112
  %v5142 = vsel %vm647, %v5113, %v5114
  %v5143 = vsel %vm686, %v5142, %v5141
  %v5144 = vrot.slane %v5143, 6
  %v5145 = vsel %vm679, %v5112, %v5030
  %v5146 = vsel %vm653, %v5113, %v5114
  %v5147 = vsel %vm691, %v5146, %v5145
  %v5148 = vrot.slane %v5147, 7
  %v5149 = vsel %vm647, %v5033, %v5115
  %v5150 = vsel %vm649, %v5116, %v5117
  %v5151 = vsel %vm651, %v5149, %v5150
  %v5152 = vsel %vm653, %v5033, %v5115
  %v5153 = vsel %vm655, %v5116, %v5117
  %v5154 = vsel %vm657, %v5152, %v5153
  %v5155 = vrot.slane %v5154, 1
  %v5156 = vsel %vm649, %v5033, %v5115
  %v5157 = vsel %vm661, %v5116, %v5117
  %v5158 = vsel %vm663, %v5156, %v5157
  %v5159 = vrot.slane %v5158, 2
  %v5160 = vsel %vm655, %v5033, %v5115
  %v5161 = vsel %vm667, %v5116, %v5117
  %v5162 = vsel %vm669, %v5160, %v5161
  %v5163 = vrot.slane %v5162, 3
  %v5164 = vsel %vm661, %v5033, %v5115
  %v5165 = vsel %vm673, %v5116, %v5117
  %v5166 = vsel %vm675, %v5164, %v5165
  %v5167 = vrot.slane %v5166, 4
  %v5168 = vsel %vm667, %v5033, %v5115
  %v5169 = vsel %vm679, %v5117, %v5116
  %v5170 = vsel %vm681, %v5168, %v5169
  %v5171 = vrot.slane %v5170, 5
  %v5172 = vsel %vm673, %v5033, %v5115
  %v5173 = vsel %vm647, %v5116, %v5117
  %v5174 = vsel %vm686, %v5173, %v5172
  %v5175 = vrot.slane %v5174, 6
  %v5176 = vsel %vm679, %v5115, %v5033
  %v5177 = vsel %vm653, %v5116, %v5117
  %v5178 = vsel %vm691, %v5177, %v5176
  %v5179 = vrot.slane %v5178, 7
  %v5196 = vadd.f32 %v4874, %v5120
  %v5197 = vadd.f32 %v4876, %v5124
  %v5198 = vadd.f32 %v4878, %v5128
  %v5199 = vadd.f32 %v4880, %v5132
  %v5200 = vadd.f32 %v4882, %v5136
  %v5201 = vadd.f32 %v4884, %v5140
  %v5202 = vadd.f32 %v4886, %v5144
  %v5203 = vadd.f32 %v4888, %v5148
  %v5204 = vadd.f32 %v4890, %v5151
  %v5205 = vadd.f32 %v4892, %v5155
  %v5206 = vadd.f32 %v4894, %v5159
  %v5207 = vadd.f32 %v4896, %v5163
  %v5208 = vadd.f32 %v4898, %v5167
  %v5209 = vadd.f32 %v4900, %v5171
  %v5210 = vadd.f32 %v4902, %v5175
  %v5211 = vadd.f32 %v4904, %v5179
  %v5212 = vxor.u32 %v5196, 2147483648
  %v5213 = vxor.u32 %v5197, 2147483648
  %v5214 = vxor.u32 %v5198, 2147483648
  %v5215 = vxor.u32 %v5199, 2147483648
  %v5216 = vxor.u32 %v5200, 2147483648
  %v5217 = vxor.u32 %v5201, 2147483648
  %v5218 = vxor.u32 %v5202, 2147483648
  %v5219 = vxor.u32 %v5203, 2147483648
  %v5220 = vxor.u32 %v5204, 2147483648
  %v5221 = vxor.u32 %v5205, 2147483648
  %v5222 = vxor.u32 %v5206, 2147483648
  %v5223 = vxor.u32 %v5207, 2147483648
  %v5224 = vxor.u32 %v5208, 2147483648
  %v5225 = vxor.u32 %v5209, 2147483648
  %v5226 = vxor.u32 %v5210, 2147483648
  %v5227 = vxor.u32 %v5211, 2147483648
  %v5228 = vmul.f32 %v5212, 1.442695
  %v5229 = vpow.pop %v5228
  %v5230 = vmul.f32 %v5213, 1.442695
  %v5231 = vpow.pop %v5230
  %v5232 = vmul.f32 %v5214, 1.442695
  %v5233 = vpow.pop %v5232
  %v5234 = vmul.f32 %v5215, 1.442695
  %v5235 = vpow.pop %v5234
  %v5236 = vmul.f32 %v5216, 1.442695
  %v5237 = vpow.pop %v5236
  %v5238 = vmul.f32 %v5217, 1.442695
  %v5239 = vpow.pop %v5238
  %v5240 = vmul.f32 %v5218, 1.442695
  %v5241 = vpow.pop %v5240
  %v5242 = vmul.f32 %v5219, 1.442695
  %v5243 = vpow.pop %v5242
  %v5244 = vmul.f32 %v5220, 1.442695
  %v5245 = vpow.pop %v5244
  %v5246 = vmul.f32 %v5221, 1.442695
  %v5247 = vpow.pop %v5246
  %v5248 = vmul.f32 %v5222, 1.442695
  %v5249 = vpow.pop %v5248
  %v5250 = vmul.f32 %v5223, 1.442695
  %v5251 = vpow.pop %v5250
  %v5252 = vmul.f32 %v5224, 1.442695
  %v5253 = vpow.pop %v5252
  %v5254 = vmul.f32 %v5225, 1.442695
  %v5255 = vpow.pop %v5254
  %v5256 = vmul.f32 %v5226, 1.442695
  %v5257 = vpow.pop %v5256
  %v5258 = vmul.f32 %v5227, 1.442695
  %v5259 = vpow.pop %v5258
  %v5260 = vadd.f32 %v5229, 1.0
  %v5261 = vadd.f32 %v5231, 1.0
  %v5262 = vadd.f32 %v5233, 1.0
  %v5263 = vadd.f32 %v5235, 1.0
  %v5264 = vadd.f32 %v5237, 1.0
  %v5265 = vadd.f32 %v5239, 1.0
  %v5266 = vadd.f32 %v5241, 1.0
  %v5267 = vadd.f32 %v5243, 1.0
  %v5268 = vadd.f32 %v5245, 1.0
  %v5269 = vadd.f32 %v5247, 1.0
  %v5270 = vadd.f32 %v5249, 1.0
  %v5271 = vadd.f32 %v5251, 1.0
  %v5272 = vadd.f32 %v5253, 1.0
  %v5273 = vadd.f32 %v5255, 1.0
  %v5274 = vadd.f32 %v5257, 1.0
  %v5275 = vadd.f32 %v5259, 1.0
  %v5276 = vrcp.pop %v5260
  %v5277 = vmul.f32 %v5260, %v5276
  %v5278 = vsub.f32 1.0, %v5277
  %v5279 = vmul.f32 %v5276, %v5278
  %v5280 = vadd.f32 %v5276, %v5279
  %vm5281 = vweird.f32 %v5260
  %vm5282 = vweird.f32 %v5276
  %vm5283 = vmor %vm5281, %vm5282
  %v5284 = vsel %vm5283, %v5276, %v5280
  %v5285 = vand.u32 2147483647, %v5260
  %vm5286 = vcmp.eq.f32.partialorder %v5285, 8.507059e+37
  %v5287 = vand.u32 %v5260, 2147483648
  %v5288 = vor.u32 1.1754944e-38, %v5287
  %v5289 = vsel %vm5286, %v5288, %v5284
  %v5290 = vmul.f32 1.0, %v5289
  %v5291 = vrcp.pop %v5261
  %v5292 = vmul.f32 %v5261, %v5291
  %v5293 = vsub.f32 1.0, %v5292
  %v5294 = vmul.f32 %v5291, %v5293
  %v5295 = vadd.f32 %v5291, %v5294
  %vm5296 = vweird.f32 %v5261
  %vm5297 = vweird.f32 %v5291
  %vm5298 = vmor %vm5296, %vm5297
  %v5299 = vsel %vm5298, %v5291, %v5295
  %v5300 = vand.u32 2147483647, %v5261
  %vm5301 = vcmp.eq.f32.partialorder %v5300, 8.507059e+37
  %v5302 = vand.u32 %v5261, 2147483648
  %v5303 = vor.u32 1.1754944e-38, %v5302
  %v5304 = vsel %vm5301, %v5303, %v5299
  %v5305 = vmul.f32 1.0, %v5304
  %v5306 = vrcp.pop %v5262
  %v5307 = vmul.f32 %v5262, %v5306
  %v5308 = vsub.f32 1.0, %v5307
  %v5309 = vmul.f32 %v5306, %v5308
  %v5310 = vadd.f32 %v5306, %v5309
  %vm5311 = vweird.f32 %v5262
  %vm5312 = vweird.f32 %v5306
  %vm5313 = vmor %vm5311, %vm5312
  %v5314 = vsel %vm5313, %v5306, %v5310
  %v5315 = vand.u32 2147483647, %v5262
  %vm5316 = vcmp.eq.f32.partialorder %v5315, 8.507059e+37
  %v5317 = vand.u32 %v5262, 2147483648
  %v5318 = vor.u32 1.1754944e-38, %v5317
  %v5319 = vsel %vm5316, %v5318, %v5314
  %v5320 = vmul.f32 1.0, %v5319
  %v5321 = vrcp.pop %v5263
  %v5322 = vmul.f32 %v5263, %v5321
  %v5323 = vsub.f32 1.0, %v5322
  %v5324 = vmul.f32 %v5321, %v5323
  %v5325 = vadd.f32 %v5321, %v5324
  %vm5326 = vweird.f32 %v5263
  %vm5327 = vweird.f32 %v5321
  %vm5328 = vmor %vm5326, %vm5327
  %v5329 = vsel %vm5328, %v5321, %v5325
  %v5330 = vand.u32 2147483647, %v5263
  %vm5331 = vcmp.eq.f32.partialorder %v5330, 8.507059e+37
  %v5332 = vand.u32 %v5263, 2147483648
  %v5333 = vor.u32 1.1754944e-38, %v5332
  %v5334 = vsel %vm5331, %v5333, %v5329
  %v5335 = vmul.f32 1.0, %v5334
  %v5336 = vrcp.pop %v5264
  %v5337 = vmul.f32 %v5264, %v5336
  %v5338 = vsub.f32 1.0, %v5337
  %v5339 = vmul.f32 %v5336, %v5338
  %v5340 = vadd.f32 %v5336, %v5339
  %vm5341 = vweird.f32 %v5264
  %vm5342 = vweird.f32 %v5336
  %vm5343 = vmor %vm5341, %vm5342
  %v5344 = vsel %vm5343, %v5336, %v5340
  %v5345 = vand.u32 2147483647, %v5264
  %vm5346 = vcmp.eq.f32.partialorder %v5345, 8.507059e+37
  %v5347 = vand.u32 %v5264, 2147483648
  %v5348 = vor.u32 1.1754944e-38, %v5347
  %v5349 = vsel %vm5346, %v5348, %v5344
  %v5350 = vmul.f32 1.0, %v5349
  %v5351 = vrcp.pop %v5265
  %v5352 = vmul.f32 %v5265, %v5351
  %v5353 = vsub.f32 1.0, %v5352
  %v5354 = vmul.f32 %v5351, %v5353
  %v5355 = vadd.f32 %v5351, %v5354
  %vm5356 = vweird.f32 %v5265
  %vm5357 = vweird.f32 %v5351
  %vm5358 = vmor %vm5356, %vm5357
  %v5359 = vsel %vm5358, %v5351, %v5355
  %v5360 = vand.u32 2147483647, %v5265
  %vm5361 = vcmp.eq.f32.partialorder %v5360, 8.507059e+37
  %v5362 = vand.u32 %v5265, 2147483648
  %v5363 = vor.u32 1.1754944e-38, %v5362
  %v5364 = vsel %vm5361, %v5363, %v5359
  %v5365 = vmul.f32 1.0, %v5364
  %v5366 = vrcp.pop %v5266
  %v5367 = vmul.f32 %v5266, %v5366
  %v5368 = vsub.f32 1.0, %v5367
  %v5369 = vmul.f32 %v5366, %v5368
  %v5370 = vadd.f32 %v5366, %v5369
  %vm5371 = vweird.f32 %v5266
  %vm5372 = vweird.f32 %v5366
  %vm5373 = vmor %vm5371, %vm5372
  %v5374 = vsel %vm5373, %v5366, %v5370
  %v5375 = vand.u32 2147483647, %v5266
  %vm5376 = vcmp.eq.f32.partialorder %v5375, 8.507059e+37
  %v5377 = vand.u32 %v5266, 2147483648
  %v5378 = vor.u32 1.1754944e-38, %v5377
  %v5379 = vsel %vm5376, %v5378, %v5374
  %v5380 = vmul.f32 1.0, %v5379
  %v5381 = vrcp.pop %v5267
  %v5382 = vmul.f32 %v5267, %v5381
  %v5383 = vsub.f32 1.0, %v5382
  %v5384 = vmul.f32 %v5381, %v5383
  %v5385 = vadd.f32 %v5381, %v5384
  %vm5386 = vweird.f32 %v5267
  %vm5387 = vweird.f32 %v5381
  %vm5388 = vmor %vm5386, %vm5387
  %v5389 = vsel %vm5388, %v5381, %v5385
  %v5390 = vand.u32 2147483647, %v5267
  %vm5391 = vcmp.eq.f32.partialorder %v5390, 8.507059e+37
  %v5392 = vand.u32 %v5267, 2147483648
  %v5393 = vor.u32 1.1754944e-38, %v5392
  %v5394 = vsel %vm5391, %v5393, %v5389
  %v5395 = vmul.f32 1.0, %v5394
  %v5396 = vrcp.pop %v5268
  %v5397 = vmul.f32 %v5268, %v5396
  %v5398 = vsub.f32 1.0, %v5397
  %v5399 = vmul.f32 %v5396, %v5398
  %v5400 = vadd.f32 %v5396, %v5399
  %vm5401 = vweird.f32 %v5268
  %vm5402 = vweird.f32 %v5396
  %vm5403 = vmor %vm5401, %vm5402
  %v5404 = vsel %vm5403, %v5396, %v5400
  %v5405 = vand.u32 2147483647, %v5268
  %vm5406 = vcmp.eq.f32.partialorder %v5405, 8.507059e+37
  %v5407 = vand.u32 %v5268, 2147483648
  %v5408 = vor.u32 1.1754944e-38, %v5407
  %v5409 = vsel %vm5406, %v5408, %v5404
  %v5410 = vmul.f32 1.0, %v5409
  %v5411 = vrcp.pop %v5269
  %v5412 = vmul.f32 %v5269, %v5411
  %v5413 = vsub.f32 1.0, %v5412
  %v5414 = vmul.f32 %v5411, %v5413
  %v5415 = vadd.f32 %v5411, %v5414
  %vm5416 = vweird.f32 %v5269
  %vm5417 = vweird.f32 %v5411
  %vm5418 = vmor %vm5416, %vm5417
  %v5419 = vsel %vm5418, %v5411, %v5415
  %v5420 = vand.u32 2147483647, %v5269
  %vm5421 = vcmp.eq.f32.partialorder %v5420, 8.507059e+37
  %v5422 = vand.u32 %v5269, 2147483648
  %v5423 = vor.u32 1.1754944e-38, %v5422
  %v5424 = vsel %vm5421, %v5423, %v5419
  %v5425 = vmul.f32 1.0, %v5424
  %v5426 = vrcp.pop %v5270
  %v5427 = vmul.f32 %v5270, %v5426
  %v5428 = vsub.f32 1.0, %v5427
  %v5429 = vmul.f32 %v5426, %v5428
  %v5430 = vadd.f32 %v5426, %v5429
  %vm5431 = vweird.f32 %v5270
  %vm5432 = vweird.f32 %v5426
  %vm5433 = vmor %vm5431, %vm5432
  %v5434 = vsel %vm5433, %v5426, %v5430
  %v5435 = vand.u32 2147483647, %v5270
  %vm5436 = vcmp.eq.f32.partialorder %v5435, 8.507059e+37
  %v5437 = vand.u32 %v5270, 2147483648
  %v5438 = vor.u32 1.1754944e-38, %v5437
  %v5439 = vsel %vm5436, %v5438, %v5434
  %v5440 = vmul.f32 1.0, %v5439
  %v5441 = vrcp.pop %v5271
  %v5442 = vmul.f32 %v5271, %v5441
  %v5443 = vsub.f32 1.0, %v5442
  %v5444 = vmul.f32 %v5441, %v5443
  %v5445 = vadd.f32 %v5441, %v5444
  %vm5446 = vweird.f32 %v5271
  %vm5447 = vweird.f32 %v5441
  %vm5448 = vmor %vm5446, %vm5447
  %v5449 = vsel %vm5448, %v5441, %v5445
  %v5450 = vand.u32 2147483647, %v5271
  %vm5451 = vcmp.eq.f32.partialorder %v5450, 8.507059e+37
  %v5452 = vand.u32 %v5271, 2147483648
  %v5453 = vor.u32 1.1754944e-38, %v5452
  %v5454 = vsel %vm5451, %v5453, %v5449
  %v5455 = vmul.f32 1.0, %v5454
  %v5456 = vrcp.pop %v5272
  %v5457 = vmul.f32 %v5272, %v5456
  %v5458 = vsub.f32 1.0, %v5457
  %v5459 = vmul.f32 %v5456, %v5458
  %v5460 = vadd.f32 %v5456, %v5459
  %vm5461 = vweird.f32 %v5272
  %vm5462 = vweird.f32 %v5456
  %vm5463 = vmor %vm5461, %vm5462
  %v5464 = vsel %vm5463, %v5456, %v5460
  %v5465 = vand.u32 2147483647, %v5272
  %vm5466 = vcmp.eq.f32.partialorder %v5465, 8.507059e+37
  %v5467 = vand.u32 %v5272, 2147483648
  %v5468 = vor.u32 1.1754944e-38, %v5467
  %v5469 = vsel %vm5466, %v5468, %v5464
  %v5470 = vmul.f32 1.0, %v5469
  %v5471 = vrcp.pop %v5273
  %v5472 = vmul.f32 %v5273, %v5471
  %v5473 = vsub.f32 1.0, %v5472
  %v5474 = vmul.f32 %v5471, %v5473
  %v5475 = vadd.f32 %v5471, %v5474
  %vm5476 = vweird.f32 %v5273
  %vm5477 = vweird.f32 %v5471
  %vm5478 = vmor %vm5476, %vm5477
  %v5479 = vsel %vm5478, %v5471, %v5475
  %v5480 = vand.u32 2147483647, %v5273
  %vm5481 = vcmp.eq.f32.partialorder %v5480, 8.507059e+37
  %v5482 = vand.u32 %v5273, 2147483648
  %v5483 = vor.u32 1.1754944e-38, %v5482
  %v5484 = vsel %vm5481, %v5483, %v5479
  %v5485 = vmul.f32 1.0, %v5484
  %v5486 = vrcp.pop %v5274
  %v5487 = vmul.f32 %v5274, %v5486
  %v5488 = vsub.f32 1.0, %v5487
  %v5489 = vmul.f32 %v5486, %v5488
  %v5490 = vadd.f32 %v5486, %v5489
  %vm5491 = vweird.f32 %v5274
  %vm5492 = vweird.f32 %v5486
  %vm5493 = vmor %vm5491, %vm5492
  %v5494 = vsel %vm5493, %v5486, %v5490
  %v5495 = vand.u32 2147483647, %v5274
  %vm5496 = vcmp.eq.f32.partialorder %v5495, 8.507059e+37
  %v5497 = vand.u32 %v5274, 2147483648
  %v5498 = vor.u32 1.1754944e-38, %v5497
  %v5499 = vsel %vm5496, %v5498, %v5494
  %v5500 = vmul.f32 1.0, %v5499
  %v5501 = vrcp.pop %v5275
  %v5502 = vmul.f32 %v5275, %v5501
  %v5503 = vsub.f32 1.0, %v5502
  %v5504 = vmul.f32 %v5501, %v5503
  %v5505 = vadd.f32 %v5501, %v5504
  %vm5506 = vweird.f32 %v5275
  %vm5507 = vweird.f32 %v5501
  %vm5508 = vmor %vm5506, %vm5507
  %v5509 = vsel %vm5508, %v5501, %v5505
  %v5510 = vand.u32 2147483647, %v5275
  %vm5511 = vcmp.eq.f32.partialorder %v5510, 8.507059e+37
  %v5512 = vand.u32 %v5275, 2147483648
  %v5513 = vor.u32 1.1754944e-38, %v5512
  %v5514 = vsel %vm5511, %v5513, %v5509
  %v5515 = vmul.f32 1.0, %v5514
  %v5532 = vrot.slane %v5196, 1
  %v5533 = vrot.slane %v5197, 1
  %v5534 = vrot.slane %v5198, 1
  %v5535 = vrot.slane %v5199, 1
  %v5536 = vrot.slane %v5200, 1
  %v5537 = vrot.slane %v5201, 1
  %v5538 = vrot.slane %v5202, 1
  %v5539 = vrot.slane %v5203, 1
  %v5540 = vrot.slane %v5204, 1
  %v5541 = vrot.slane %v5205, 1
  %v5542 = vrot.slane %v5206, 1
  %v5543 = vrot.slane %v5207, 1
  %v5544 = vrot.slane %v5208, 1
  %v5545 = vrot.slane %v5209, 1
  %v5546 = vrot.slane %v5210, 1
  %v5547 = vrot.slane %v5211, 1
  %v5564 = vxor.u32 %v5532, 2147483648
  %v5565 = vxor.u32 %v5533, 2147483648
  %v5566 = vxor.u32 %v5534, 2147483648
  %v5567 = vxor.u32 %v5535, 2147483648
  %v5568 = vxor.u32 %v5536, 2147483648
  %v5569 = vxor.u32 %v5537, 2147483648
  %v5570 = vxor.u32 %v5538, 2147483648
  %v5571 = vxor.u32 %v5539, 2147483648
  %v5572 = vxor.u32 %v5540, 2147483648
  %v5573 = vxor.u32 %v5541, 2147483648
  %v5574 = vxor.u32 %v5542, 2147483648
  %v5575 = vxor.u32 %v5543, 2147483648
  %v5576 = vxor.u32 %v5544, 2147483648
  %v5577 = vxor.u32 %v5545, 2147483648
  %v5578 = vxor.u32 %v5546, 2147483648
  %v5579 = vxor.u32 %v5547, 2147483648
  %v5580 = vmul.f32 %v5564, 1.442695
  %v5581 = vpow.pop %v5580
  %v5582 = vmul.f32 %v5565, 1.442695
  %v5583 = vpow.pop %v5582
  %v5584 = vmul.f32 %v5566, 1.442695
  %v5585 = vpow.pop %v5584
  %v5586 = vmul.f32 %v5567, 1.442695
  %v5587 = vpow.pop %v5586
  %v5588 = vmul.f32 %v5568, 1.442695
  %v5589 = vpow.pop %v5588
  %v5590 = vmul.f32 %v5569, 1.442695
  %v5591 = vpow.pop %v5590
  %v5592 = vmul.f32 %v5570, 1.442695
  %v5593 = vpow.pop %v5592
  %v5594 = vmul.f32 %v5571, 1.442695
  %v5595 = vpow.pop %v5594
  %v5596 = vmul.f32 %v5572, 1.442695
  %v5597 = vpow.pop %v5596
  %v5598 = vmul.f32 %v5573, 1.442695
  %v5599 = vpow.pop %v5598
  %v5600 = vmul.f32 %v5574, 1.442695
  %v5601 = vpow.pop %v5600
  %v5602 = vmul.f32 %v5575, 1.442695
  %v5603 = vpow.pop %v5602
  %v5604 = vmul.f32 %v5576, 1.442695
  %v5605 = vpow.pop %v5604
  %v5606 = vmul.f32 %v5577, 1.442695
  %v5607 = vpow.pop %v5606
  %v5608 = vmul.f32 %v5578, 1.442695
  %v5609 = vpow.pop %v5608
  %v5610 = vmul.f32 %v5579, 1.442695
  %v5611 = vpow.pop %v5610
  %v5612 = vadd.f32 %v5581, 1.0
  %v5613 = vadd.f32 %v5583, 1.0
  %v5614 = vadd.f32 %v5585, 1.0
  %v5615 = vadd.f32 %v5587, 1.0
  %v5616 = vadd.f32 %v5589, 1.0
  %v5617 = vadd.f32 %v5591, 1.0
  %v5618 = vadd.f32 %v5593, 1.0
  %v5619 = vadd.f32 %v5595, 1.0
  %v5620 = vadd.f32 %v5597, 1.0
  %v5621 = vadd.f32 %v5599, 1.0
  %v5622 = vadd.f32 %v5601, 1.0
  %v5623 = vadd.f32 %v5603, 1.0
  %v5624 = vadd.f32 %v5605, 1.0
  %v5625 = vadd.f32 %v5607, 1.0
  %v5626 = vadd.f32 %v5609, 1.0
  %v5627 = vadd.f32 %v5611, 1.0
  %v5628 = vrcp.pop %v5612
  %v5629 = vmul.f32 %v5612, %v5628
  %v5630 = vsub.f32 1.0, %v5629
  %v5631 = vmul.f32 %v5628, %v5630
  %v5632 = vadd.f32 %v5628, %v5631
  %vm5633 = vweird.f32 %v5612
  %vm5634 = vweird.f32 %v5628
  %vm5635 = vmor %vm5633, %vm5634
  %v5636 = vsel %vm5635, %v5628, %v5632
  %v5637 = vand.u32 2147483647, %v5612
  %vm5638 = vcmp.eq.f32.partialorder %v5637, 8.507059e+37
  %v5639 = vand.u32 %v5612, 2147483648
  %v5640 = vor.u32 1.1754944e-38, %v5639
  %v5641 = vsel %vm5638, %v5640, %v5636
  %v5642 = vmul.f32 1.0, %v5641
  %v5643 = vrcp.pop %v5613
  %v5644 = vmul.f32 %v5613, %v5643
  %v5645 = vsub.f32 1.0, %v5644
  %v5646 = vmul.f32 %v5643, %v5645
  %v5647 = vadd.f32 %v5643, %v5646
  %vm5648 = vweird.f32 %v5613
  %vm5649 = vweird.f32 %v5643
  %vm5650 = vmor %vm5648, %vm5649
  %v5651 = vsel %vm5650, %v5643, %v5647
  %v5652 = vand.u32 2147483647, %v5613
  %vm5653 = vcmp.eq.f32.partialorder %v5652, 8.507059e+37
  %v5654 = vand.u32 %v5613, 2147483648
  %v5655 = vor.u32 1.1754944e-38, %v5654
  %v5656 = vsel %vm5653, %v5655, %v5651
  %v5657 = vmul.f32 1.0, %v5656
  %v5658 = vrcp.pop %v5614
  %v5659 = vmul.f32 %v5614, %v5658
  %v5660 = vsub.f32 1.0, %v5659
  %v5661 = vmul.f32 %v5658, %v5660
  %v5662 = vadd.f32 %v5658, %v5661
  %vm5663 = vweird.f32 %v5614
  %vm5664 = vweird.f32 %v5658
  %vm5665 = vmor %vm5663, %vm5664
  %v5666 = vsel %vm5665, %v5658, %v5662
  %v5667 = vand.u32 2147483647, %v5614
  %vm5668 = vcmp.eq.f32.partialorder %v5667, 8.507059e+37
  %v5669 = vand.u32 %v5614, 2147483648
  %v5670 = vor.u32 1.1754944e-38, %v5669
  %v5671 = vsel %vm5668, %v5670, %v5666
  %v5672 = vmul.f32 1.0, %v5671
  %v5673 = vrcp.pop %v5615
  %v5674 = vmul.f32 %v5615, %v5673
  %v5675 = vsub.f32 1.0, %v5674
  %v5676 = vmul.f32 %v5673, %v5675
  %v5677 = vadd.f32 %v5673, %v5676
  %vm5678 = vweird.f32 %v5615
  %vm5679 = vweird.f32 %v5673
  %vm5680 = vmor %vm5678, %vm5679
  %v5681 = vsel %vm5680, %v5673, %v5677
  %v5682 = vand.u32 2147483647, %v5615
  %vm5683 = vcmp.eq.f32.partialorder %v5682, 8.507059e+37
  %v5684 = vand.u32 %v5615, 2147483648
  %v5685 = vor.u32 1.1754944e-38, %v5684
  %v5686 = vsel %vm5683, %v5685, %v5681
  %v5687 = vmul.f32 1.0, %v5686
  %v5688 = vrcp.pop %v5616
  %v5689 = vmul.f32 %v5616, %v5688
  %v5690 = vsub.f32 1.0, %v5689
  %v5691 = vmul.f32 %v5688, %v5690
  %v5692 = vadd.f32 %v5688, %v5691
  %vm5693 = vweird.f32 %v5616
  %vm5694 = vweird.f32 %v5688
  %vm5695 = vmor %vm5693, %vm5694
  %v5696 = vsel %vm5695, %v5688, %v5692
  %v5697 = vand.u32 2147483647, %v5616
  %vm5698 = vcmp.eq.f32.partialorder %v5697, 8.507059e+37
  %v5699 = vand.u32 %v5616, 2147483648
  %v5700 = vor.u32 1.1754944e-38, %v5699
  %v5701 = vsel %vm5698, %v5700, %v5696
  %v5702 = vmul.f32 1.0, %v5701
  %v5703 = vrcp.pop %v5617
  %v5704 = vmul.f32 %v5617, %v5703
  %v5705 = vsub.f32 1.0, %v5704
  %v5706 = vmul.f32 %v5703, %v5705
  %v5707 = vadd.f32 %v5703, %v5706
  %vm5708 = vweird.f32 %v5617
  %vm5709 = vweird.f32 %v5703
  %vm5710 = vmor %vm5708, %vm5709
  %v5711 = vsel %vm5710, %v5703, %v5707
  %v5712 = vand.u32 2147483647, %v5617
  %vm5713 = vcmp.eq.f32.partialorder %v5712, 8.507059e+37
  %v5714 = vand.u32 %v5617, 2147483648
  %v5715 = vor.u32 1.1754944e-38, %v5714
  %v5716 = vsel %vm5713, %v5715, %v5711
  %v5717 = vmul.f32 1.0, %v5716
  %v5718 = vrcp.pop %v5618
  %v5719 = vmul.f32 %v5618, %v5718
  %v5720 = vsub.f32 1.0, %v5719
  %v5721 = vmul.f32 %v5718, %v5720
  %v5722 = vadd.f32 %v5718, %v5721
  %vm5723 = vweird.f32 %v5618
  %vm5724 = vweird.f32 %v5718
  %vm5725 = vmor %vm5723, %vm5724
  %v5726 = vsel %vm5725, %v5718, %v5722
  %v5727 = vand.u32 2147483647, %v5618
  %vm5728 = vcmp.eq.f32.partialorder %v5727, 8.507059e+37
  %v5729 = vand.u32 %v5618, 2147483648
  %v5730 = vor.u32 1.1754944e-38, %v5729
  %v5731 = vsel %vm5728, %v5730, %v5726
  %v5732 = vmul.f32 1.0, %v5731
  %v5733 = vrcp.pop %v5619
  %v5734 = vmul.f32 %v5619, %v5733
  %v5735 = vsub.f32 1.0, %v5734
  %v5736 = vmul.f32 %v5733, %v5735
  %v5737 = vadd.f32 %v5733, %v5736
  %vm5738 = vweird.f32 %v5619
  %vm5739 = vweird.f32 %v5733
  %vm5740 = vmor %vm5738, %vm5739
  %v5741 = vsel %vm5740, %v5733, %v5737
  %v5742 = vand.u32 2147483647, %v5619
  %vm5743 = vcmp.eq.f32.partialorder %v5742, 8.507059e+37
  %v5744 = vand.u32 %v5619, 2147483648
  %v5745 = vor.u32 1.1754944e-38, %v5744
  %v5746 = vsel %vm5743, %v5745, %v5741
  %v5747 = vmul.f32 1.0, %v5746
  %v5748 = vrcp.pop %v5620
  %v5749 = vmul.f32 %v5620, %v5748
  %v5750 = vsub.f32 1.0, %v5749
  %v5751 = vmul.f32 %v5748, %v5750
  %v5752 = vadd.f32 %v5748, %v5751
  %vm5753 = vweird.f32 %v5620
  %vm5754 = vweird.f32 %v5748
  %vm5755 = vmor %vm5753, %vm5754
  %v5756 = vsel %vm5755, %v5748, %v5752
  %v5757 = vand.u32 2147483647, %v5620
  %vm5758 = vcmp.eq.f32.partialorder %v5757, 8.507059e+37
  %v5759 = vand.u32 %v5620, 2147483648
  %v5760 = vor.u32 1.1754944e-38, %v5759
  %v5761 = vsel %vm5758, %v5760, %v5756
  %v5762 = vmul.f32 1.0, %v5761
  %v5763 = vrcp.pop %v5621
  %v5764 = vmul.f32 %v5621, %v5763
  %v5765 = vsub.f32 1.0, %v5764
  %v5766 = vmul.f32 %v5763, %v5765
  %v5767 = vadd.f32 %v5763, %v5766
  %vm5768 = vweird.f32 %v5621
  %vm5769 = vweird.f32 %v5763
  %vm5770 = vmor %vm5768, %vm5769
  %v5771 = vsel %vm5770, %v5763, %v5767
  %v5772 = vand.u32 2147483647, %v5621
  %vm5773 = vcmp.eq.f32.partialorder %v5772, 8.507059e+37
  %v5774 = vand.u32 %v5621, 2147483648
  %v5775 = vor.u32 1.1754944e-38, %v5774
  %v5776 = vsel %vm5773, %v5775, %v5771
  %v5777 = vmul.f32 1.0, %v5776
  %v5778 = vrcp.pop %v5622
  %v5779 = vmul.f32 %v5622, %v5778
  %v5780 = vsub.f32 1.0, %v5779
  %v5781 = vmul.f32 %v5778, %v5780
  %v5782 = vadd.f32 %v5778, %v5781
  %vm5783 = vweird.f32 %v5622
  %vm5784 = vweird.f32 %v5778
  %vm5785 = vmor %vm5783, %vm5784
  %v5786 = vsel %vm5785, %v5778, %v5782
  %v5787 = vand.u32 2147483647, %v5622
  %vm5788 = vcmp.eq.f32.partialorder %v5787, 8.507059e+37
  %v5789 = vand.u32 %v5622, 2147483648
  %v5790 = vor.u32 1.1754944e-38, %v5789
  %v5791 = vsel %vm5788, %v5790, %v5786
  %v5792 = vmul.f32 1.0, %v5791
  %v5793 = vrcp.pop %v5623
  %v5794 = vmul.f32 %v5623, %v5793
  %v5795 = vsub.f32 1.0, %v5794
  %v5796 = vmul.f32 %v5793, %v5795
  %v5797 = vadd.f32 %v5793, %v5796
  %vm5798 = vweird.f32 %v5623
  %vm5799 = vweird.f32 %v5793
  %vm5800 = vmor %vm5798, %vm5799
  %v5801 = vsel %vm5800, %v5793, %v5797
  %v5802 = vand.u32 2147483647, %v5623
  %vm5803 = vcmp.eq.f32.partialorder %v5802, 8.507059e+37
  %v5804 = vand.u32 %v5623, 2147483648
  %v5805 = vor.u32 1.1754944e-38, %v5804
  %v5806 = vsel %vm5803, %v5805, %v5801
  %v5807 = vmul.f32 1.0, %v5806
  %v5808 = vrcp.pop %v5624
  %v5809 = vmul.f32 %v5624, %v5808
  %v5810 = vsub.f32 1.0, %v5809
  %v5811 = vmul.f32 %v5808, %v5810
  %v5812 = vadd.f32 %v5808, %v5811
  %vm5813 = vweird.f32 %v5624
  %vm5814 = vweird.f32 %v5808
  %vm5815 = vmor %vm5813, %vm5814
  %v5816 = vsel %vm5815, %v5808, %v5812
  %v5817 = vand.u32 2147483647, %v5624
  %vm5818 = vcmp.eq.f32.partialorder %v5817, 8.507059e+37
  %v5819 = vand.u32 %v5624, 2147483648
  %v5820 = vor.u32 1.1754944e-38, %v5819
  %v5821 = vsel %vm5818, %v5820, %v5816
  %v5822 = vmul.f32 1.0, %v5821
  %v5823 = vrcp.pop %v5625
  %v5824 = vmul.f32 %v5625, %v5823
  %v5825 = vsub.f32 1.0, %v5824
  %v5826 = vmul.f32 %v5823, %v5825
  %v5827 = vadd.f32 %v5823, %v5826
  %vm5828 = vweird.f32 %v5625
  %vm5829 = vweird.f32 %v5823
  %vm5830 = vmor %vm5828, %vm5829
  %v5831 = vsel %vm5830, %v5823, %v5827
  %v5832 = vand.u32 2147483647, %v5625
  %vm5833 = vcmp.eq.f32.partialorder %v5832, 8.507059e+37
  %v5834 = vand.u32 %v5625, 2147483648
  %v5835 = vor.u32 1.1754944e-38, %v5834
  %v5836 = vsel %vm5833, %v5835, %v5831
  %v5837 = vmul.f32 1.0, %v5836
  %v5838 = vrcp.pop %v5626
  %v5839 = vmul.f32 %v5626, %v5838
  %v5840 = vsub.f32 1.0, %v5839
  %v5841 = vmul.f32 %v5838, %v5840
  %v5842 = vadd.f32 %v5838, %v5841
  %vm5843 = vweird.f32 %v5626
  %vm5844 = vweird.f32 %v5838
  %vm5845 = vmor %vm5843, %vm5844
  %v5846 = vsel %vm5845, %v5838, %v5842
  %v5847 = vand.u32 2147483647, %v5626
  %vm5848 = vcmp.eq.f32.partialorder %v5847, 8.507059e+37
  %v5849 = vand.u32 %v5626, 2147483648
  %v5850 = vor.u32 1.1754944e-38, %v5849
  %v5851 = vsel %vm5848, %v5850, %v5846
  %v5852 = vmul.f32 1.0, %v5851
  %v5853 = vrcp.pop %v5627
  %v5854 = vmul.f32 %v5627, %v5853
  %v5855 = vsub.f32 1.0, %v5854
  %v5856 = vmul.f32 %v5853, %v5855
  %v5857 = vadd.f32 %v5853, %v5856
  %vm5858 = vweird.f32 %v5627
  %vm5859 = vweird.f32 %v5853
  %vm5860 = vmor %vm5858, %vm5859
  %v5861 = vsel %vm5860, %v5853, %v5857
  %v5862 = vand.u32 2147483647, %v5627
  %vm5863 = vcmp.eq.f32.partialorder %v5862, 8.507059e+37
  %v5864 = vand.u32 %v5627, 2147483648
  %v5865 = vor.u32 1.1754944e-38, %v5864
  %v5866 = vsel %vm5863, %v5865, %v5861
  %v5867 = vmul.f32 1.0, %v5866
  %v5868 = vrot.slane %v5196, 2
  %v5869 = vrot.slane %v5197, 2
  %v5870 = vrot.slane %v5198, 2
  %v5871 = vrot.slane %v5199, 2
  %v5872 = vrot.slane %v5200, 2
  %v5873 = vrot.slane %v5201, 2
  %v5874 = vrot.slane %v5202, 2
  %v5875 = vrot.slane %v5203, 2
  %v5876 = vrot.slane %v5204, 2
  %v5877 = vrot.slane %v5205, 2
  %v5878 = vrot.slane %v5206, 2
  %v5879 = vrot.slane %v5207, 2
  %v5880 = vrot.slane %v5208, 2
  %v5881 = vrot.slane %v5209, 2
  %v5882 = vrot.slane %v5210, 2
  %v5883 = vrot.slane %v5211, 2
  %v5900 = vtanh.pop %v5868
  %v5901 = vtanh.pop %v5869
  %v5902 = vtanh.pop %v5870
  %v5903 = vtanh.pop %v5871
  %v5904 = vtanh.pop %v5872
  %v5905 = vtanh.pop %v5873
  %v5906 = vtanh.pop %v5874
  %v5907 = vtanh.pop %v5875
  %v5908 = vtanh.pop %v5876
  %v5909 = vtanh.pop %v5877
  %v5910 = vtanh.pop %v5878
  %v5911 = vtanh.pop %v5879
  %v5912 = vtanh.pop %v5880
  %v5913 = vtanh.pop %v5881
  %v5914 = vtanh.pop %v5882
  %v5915 = vtanh.pop %v5883
  %v5916 = vrot.slane %v5196, 3
  %v5917 = vrot.slane %v5197, 3
  %v5918 = vrot.slane %v5198, 3
  %v5919 = vrot.slane %v5199, 3
  %v5920 = vrot.slane %v5200, 3
  %v5921 = vrot.slane %v5201, 3
  %v5922 = vrot.slane %v5202, 3
  %v5923 = vrot.slane %v5203, 3
  %v5924 = vrot.slane %v5204, 3
  %v5925 = vrot.slane %v5205, 3
  %v5926 = vrot.slane %v5206, 3
  %v5927 = vrot.slane %v5207, 3
  %v5928 = vrot.slane %v5208, 3
  %v5929 = vrot.slane %v5209, 3
  %v5930 = vrot.slane %v5210, 3
  %v5931 = vrot.slane %v5211, 3
  %v5948 = vxor.u32 %v5916, 2147483648
  %v5949 = vxor.u32 %v5917, 2147483648
  %v5950 = vxor.u32 %v5918, 2147483648
  %v5951 = vxor.u32 %v5919, 2147483648
  %v5952 = vxor.u32 %v5920, 2147483648
  %v5953 = vxor.u32 %v5921, 2147483648
  %v5954 = vxor.u32 %v5922, 2147483648
  %v5955 = vxor.u32 %v5923, 2147483648
  %v5956 = vxor.u32 %v5924, 2147483648
  %v5957 = vxor.u32 %v5925, 2147483648
  %v5958 = vxor.u32 %v5926, 2147483648
  %v5959 = vxor.u32 %v5927, 2147483648
  %v5960 = vxor.u32 %v5928, 2147483648
  %v5961 = vxor.u32 %v5929, 2147483648
  %v5962 = vxor.u32 %v5930, 2147483648
  %v5963 = vxor.u32 %v5931, 2147483648
  %v5964 = vmul.f32 %v5948, 1.442695
  %v5965 = vpow.pop %v5964
  %v5966 = vmul.f32 %v5949, 1.442695
  %v5967 = vpow.pop %v5966
  %v5968 = vmul.f32 %v5950, 1.442695
  %v5969 = vpow.pop %v5968
  %v5970 = vmul.f32 %v5951, 1.442695
  %v5971 = vpow.pop %v5970
  %v5972 = vmul.f32 %v5952, 1.442695
  %v5973 = vpow.pop %v5972
  %v5974 = vmul.f32 %v5953, 1.442695
  %v5975 = vpow.pop %v5974
  %v5976 = vmul.f32 %v5954, 1.442695
  %v5977 = vpow.pop %v5976
  %v5978 = vmul.f32 %v5955, 1.442695
  %v5979 = vpow.pop %v5978
  %v5980 = vmul.f32 %v5956, 1.442695
  %v5981 = vpow.pop %v5980
  %v5982 = vmul.f32 %v5957, 1.442695
  %v5983 = vpow.pop %v5982
  %v5984 = vmul.f32 %v5958, 1.442695
  %v5985 = vpow.pop %v5984
  %v5986 = vmul.f32 %v5959, 1.442695
  %v5987 = vpow.pop %v5986
  %v5988 = vmul.f32 %v5960, 1.442695
  %v5989 = vpow.pop %v5988
  %v5990 = vmul.f32 %v5961, 1.442695
  %v5991 = vpow.pop %v5990
  %v5992 = vmul.f32 %v5962, 1.442695
  %v5993 = vpow.pop %v5992
  %v5994 = vmul.f32 %v5963, 1.442695
  %v5995 = vpow.pop %v5994
  %v5996 = vadd.f32 %v5965, 1.0
  %v5997 = vadd.f32 %v5967, 1.0
  %v5998 = vadd.f32 %v5969, 1.0
  %v5999 = vadd.f32 %v5971, 1.0
  %v6000 = vadd.f32 %v5973, 1.0
  %v6001 = vadd.f32 %v5975, 1.0
  %v6002 = vadd.f32 %v5977, 1.0
  %v6003 = vadd.f32 %v5979, 1.0
  %v6004 = vadd.f32 %v5981, 1.0
  %v6005 = vadd.f32 %v5983, 1.0
  %v6006 = vadd.f32 %v5985, 1.0
  %v6007 = vadd.f32 %v5987, 1.0
  %v6008 = vadd.f32 %v5989, 1.0
  %v6009 = vadd.f32 %v5991, 1.0
  %v6010 = vadd.f32 %v5993, 1.0
  %v6011 = vadd.f32 %v5995, 1.0
  %v6012 = vrcp.pop %v5996
  %v6013 = vmul.f32 %v5996, %v6012
  %v6014 = vsub.f32 1.0, %v6013
  %v6015 = vmul.f32 %v6012, %v6014
  %v6016 = vadd.f32 %v6012, %v6015
  %vm6017 = vweird.f32 %v5996
  %vm6018 = vweird.f32 %v6012
  %vm6019 = vmor %vm6017, %vm6018
  %v6020 = vsel %vm6019, %v6012, %v6016
  %v6021 = vand.u32 2147483647, %v5996
  %vm6022 = vcmp.eq.f32.partialorder %v6021, 8.507059e+37
  %v6023 = vand.u32 %v5996, 2147483648
  %v6024 = vor.u32 1.1754944e-38, %v6023
  %v6025 = vsel %vm6022, %v6024, %v6020
  %v6026 = vmul.f32 1.0, %v6025
  %v6027 = vrcp.pop %v5997
  %v6028 = vmul.f32 %v5997, %v6027
  %v6029 = vsub.f32 1.0, %v6028
  %v6030 = vmul.f32 %v6027, %v6029
  %v6031 = vadd.f32 %v6027, %v6030
  %vm6032 = vweird.f32 %v5997
  %vm6033 = vweird.f32 %v6027
  %vm6034 = vmor %vm6032, %vm6033
  %v6035 = vsel %vm6034, %v6027, %v6031
  %v6036 = vand.u32 2147483647, %v5997
  %vm6037 = vcmp.eq.f32.partialorder %v6036, 8.507059e+37
  %v6038 = vand.u32 %v5997, 2147483648
  %v6039 = vor.u32 1.1754944e-38, %v6038
  %v6040 = vsel %vm6037, %v6039, %v6035
  %v6041 = vmul.f32 1.0, %v6040
  %v6042 = vrcp.pop %v5998
  %v6043 = vmul.f32 %v5998, %v6042
  %v6044 = vsub.f32 1.0, %v6043
  %v6045 = vmul.f32 %v6042, %v6044
  %v6046 = vadd.f32 %v6042, %v6045
  %vm6047 = vweird.f32 %v5998
  %vm6048 = vweird.f32 %v6042
  %vm6049 = vmor %vm6047, %vm6048
  %v6050 = vsel %vm6049, %v6042, %v6046
  %v6051 = vand.u32 2147483647, %v5998
  %vm6052 = vcmp.eq.f32.partialorder %v6051, 8.507059e+37
  %v6053 = vand.u32 %v5998, 2147483648
  %v6054 = vor.u32 1.1754944e-38, %v6053
  %v6055 = vsel %vm6052, %v6054, %v6050
  %v6056 = vmul.f32 1.0, %v6055
  %v6057 = vrcp.pop %v5999
  %v6058 = vmul.f32 %v5999, %v6057
  %v6059 = vsub.f32 1.0, %v6058
  %v6060 = vmul.f32 %v6057, %v6059
  %v6061 = vadd.f32 %v6057, %v6060
  %vm6062 = vweird.f32 %v5999
  %vm6063 = vweird.f32 %v6057
  %vm6064 = vmor %vm6062, %vm6063
  %v6065 = vsel %vm6064, %v6057, %v6061
  %v6066 = vand.u32 2147483647, %v5999
  %vm6067 = vcmp.eq.f32.partialorder %v6066, 8.507059e+37
  %v6068 = vand.u32 %v5999, 2147483648
  %v6069 = vor.u32 1.1754944e-38, %v6068
  %v6070 = vsel %vm6067, %v6069, %v6065
  %v6071 = vmul.f32 1.0, %v6070
  %v6072 = vrcp.pop %v6000
  %v6073 = vmul.f32 %v6000, %v6072
  %v6074 = vsub.f32 1.0, %v6073
  %v6075 = vmul.f32 %v6072, %v6074
  %v6076 = vadd.f32 %v6072, %v6075
  %vm6077 = vweird.f32 %v6000
  %vm6078 = vweird.f32 %v6072
  %vm6079 = vmor %vm6077, %vm6078
  %v6080 = vsel %vm6079, %v6072, %v6076
  %v6081 = vand.u32 2147483647, %v6000
  %vm6082 = vcmp.eq.f32.partialorder %v6081, 8.507059e+37
  %v6083 = vand.u32 %v6000, 2147483648
  %v6084 = vor.u32 1.1754944e-38, %v6083
  %v6085 = vsel %vm6082, %v6084, %v6080
  %v6086 = vmul.f32 1.0, %v6085
  %v6087 = vrcp.pop %v6001
  %v6088 = vmul.f32 %v6001, %v6087
  %v6089 = vsub.f32 1.0, %v6088
  %v6090 = vmul.f32 %v6087, %v6089
  %v6091 = vadd.f32 %v6087, %v6090
  %vm6092 = vweird.f32 %v6001
  %vm6093 = vweird.f32 %v6087
  %vm6094 = vmor %vm6092, %vm6093
  %v6095 = vsel %vm6094, %v6087, %v6091
  %v6096 = vand.u32 2147483647, %v6001
  %vm6097 = vcmp.eq.f32.partialorder %v6096, 8.507059e+37
  %v6098 = vand.u32 %v6001, 2147483648
  %v6099 = vor.u32 1.1754944e-38, %v6098
  %v6100 = vsel %vm6097, %v6099, %v6095
  %v6101 = vmul.f32 1.0, %v6100
  %v6102 = vrcp.pop %v6002
  %v6103 = vmul.f32 %v6002, %v6102
  %v6104 = vsub.f32 1.0, %v6103
  %v6105 = vmul.f32 %v6102, %v6104
  %v6106 = vadd.f32 %v6102, %v6105
  %vm6107 = vweird.f32 %v6002
  %vm6108 = vweird.f32 %v6102
  %vm6109 = vmor %vm6107, %vm6108
  %v6110 = vsel %vm6109, %v6102, %v6106
  %v6111 = vand.u32 2147483647, %v6002
  %vm6112 = vcmp.eq.f32.partialorder %v6111, 8.507059e+37
  %v6113 = vand.u32 %v6002, 2147483648
  %v6114 = vor.u32 1.1754944e-38, %v6113
  %v6115 = vsel %vm6112, %v6114, %v6110
  %v6116 = vmul.f32 1.0, %v6115
  %v6117 = vrcp.pop %v6003
  %v6118 = vmul.f32 %v6003, %v6117
  %v6119 = vsub.f32 1.0, %v6118
  %v6120 = vmul.f32 %v6117, %v6119
  %v6121 = vadd.f32 %v6117, %v6120
  %vm6122 = vweird.f32 %v6003
  %vm6123 = vweird.f32 %v6117
  %vm6124 = vmor %vm6122, %vm6123
  %v6125 = vsel %vm6124, %v6117, %v6121
  %v6126 = vand.u32 2147483647, %v6003
  %vm6127 = vcmp.eq.f32.partialorder %v6126, 8.507059e+37
  %v6128 = vand.u32 %v6003, 2147483648
  %v6129 = vor.u32 1.1754944e-38, %v6128
  %v6130 = vsel %vm6127, %v6129, %v6125
  %v6131 = vmul.f32 1.0, %v6130
  %v6132 = vrcp.pop %v6004
  %v6133 = vmul.f32 %v6004, %v6132
  %v6134 = vsub.f32 1.0, %v6133
  %v6135 = vmul.f32 %v6132, %v6134
  %v6136 = vadd.f32 %v6132, %v6135
  %vm6137 = vweird.f32 %v6004
  %vm6138 = vweird.f32 %v6132
  %vm6139 = vmor %vm6137, %vm6138
  %v6140 = vsel %vm6139, %v6132, %v6136
  %v6141 = vand.u32 2147483647, %v6004
  %vm6142 = vcmp.eq.f32.partialorder %v6141, 8.507059e+37
  %v6143 = vand.u32 %v6004, 2147483648
  %v6144 = vor.u32 1.1754944e-38, %v6143
  %v6145 = vsel %vm6142, %v6144, %v6140
  %v6146 = vmul.f32 1.0, %v6145
  %v6147 = vrcp.pop %v6005
  %v6148 = vmul.f32 %v6005, %v6147
  %v6149 = vsub.f32 1.0, %v6148
  %v6150 = vmul.f32 %v6147, %v6149
  %v6151 = vadd.f32 %v6147, %v6150
  %vm6152 = vweird.f32 %v6005
  %vm6153 = vweird.f32 %v6147
  %vm6154 = vmor %vm6152, %vm6153
  %v6155 = vsel %vm6154, %v6147, %v6151
  %v6156 = vand.u32 2147483647, %v6005
  %vm6157 = vcmp.eq.f32.partialorder %v6156, 8.507059e+37
  %v6158 = vand.u32 %v6005, 2147483648
  %v6159 = vor.u32 1.1754944e-38, %v6158
  %v6160 = vsel %vm6157, %v6159, %v6155
  %v6161 = vmul.f32 1.0, %v6160
  %v6162 = vrcp.pop %v6006
  %v6163 = vmul.f32 %v6006, %v6162
  %v6164 = vsub.f32 1.0, %v6163
  %v6165 = vmul.f32 %v6162, %v6164
  %v6166 = vadd.f32 %v6162, %v6165
  %vm6167 = vweird.f32 %v6006
  %vm6168 = vweird.f32 %v6162
  %vm6169 = vmor %vm6167, %vm6168
  %v6170 = vsel %vm6169, %v6162, %v6166
  %v6171 = vand.u32 2147483647, %v6006
  %vm6172 = vcmp.eq.f32.partialorder %v6171, 8.507059e+37
  %v6173 = vand.u32 %v6006, 2147483648
  %v6174 = vor.u32 1.1754944e-38, %v6173
  %v6175 = vsel %vm6172, %v6174, %v6170
  %v6176 = vmul.f32 1.0, %v6175
  %v6177 = vrcp.pop %v6007
  %v6178 = vmul.f32 %v6007, %v6177
  %v6179 = vsub.f32 1.0, %v6178
  %v6180 = vmul.f32 %v6177, %v6179
  %v6181 = vadd.f32 %v6177, %v6180
  %vm6182 = vweird.f32 %v6007
  %vm6183 = vweird.f32 %v6177
  %vm6184 = vmor %vm6182, %vm6183
  %v6185 = vsel %vm6184, %v6177, %v6181
  %v6186 = vand.u32 2147483647, %v6007
  %vm6187 = vcmp.eq.f32.partialorder %v6186, 8.507059e+37
  %v6188 = vand.u32 %v6007, 2147483648
  %v6189 = vor.u32 1.1754944e-38, %v6188
  %v6190 = vsel %vm6187, %v6189, %v6185
  %v6191 = vmul.f32 1.0, %v6190
  %v6192 = vrcp.pop %v6008
  %v6193 = vmul.f32 %v6008, %v6192
  %v6194 = vsub.f32 1.0, %v6193
  %v6195 = vmul.f32 %v6192, %v6194
  %v6196 = vadd.f32 %v6192, %v6195
  %vm6197 = vweird.f32 %v6008
  %vm6198 = vweird.f32 %v6192
  %vm6199 = vmor %vm6197, %vm6198
  %v6200 = vsel %vm6199, %v6192, %v6196
  %v6201 = vand.u32 2147483647, %v6008
  %vm6202 = vcmp.eq.f32.partialorder %v6201, 8.507059e+37
  %v6203 = vand.u32 %v6008, 2147483648
  %v6204 = vor.u32 1.1754944e-38, %v6203
  %v6205 = vsel %vm6202, %v6204, %v6200
  %v6206 = vmul.f32 1.0, %v6205
  %v6207 = vrcp.pop %v6009
  %v6208 = vmul.f32 %v6009, %v6207
  %v6209 = vsub.f32 1.0, %v6208
  %v6210 = vmul.f32 %v6207, %v6209
  %v6211 = vadd.f32 %v6207, %v6210
  %vm6212 = vweird.f32 %v6009
  %vm6213 = vweird.f32 %v6207
  %vm6214 = vmor %vm6212, %vm6213
  %v6215 = vsel %vm6214, %v6207, %v6211
  %v6216 = vand.u32 2147483647, %v6009
  %vm6217 = vcmp.eq.f32.partialorder %v6216, 8.507059e+37
  %v6218 = vand.u32 %v6009, 2147483648
  %v6219 = vor.u32 1.1754944e-38, %v6218
  %v6220 = vsel %vm6217, %v6219, %v6215
  %v6221 = vmul.f32 1.0, %v6220
  %v6222 = vrcp.pop %v6010
  %v6223 = vmul.f32 %v6010, %v6222
  %v6224 = vsub.f32 1.0, %v6223
  %v6225 = vmul.f32 %v6222, %v6224
  %v6226 = vadd.f32 %v6222, %v6225
  %vm6227 = vweird.f32 %v6010
  %vm6228 = vweird.f32 %v6222
  %vm6229 = vmor %vm6227, %vm6228
  %v6230 = vsel %vm6229, %v6222, %v6226
  %v6231 = vand.u32 2147483647, %v6010
  %vm6232 = vcmp.eq.f32.partialorder %v6231, 8.507059e+37
  %v6233 = vand.u32 %v6010, 2147483648
  %v6234 = vor.u32 1.1754944e-38, %v6233
  %v6235 = vsel %vm6232, %v6234, %v6230
  %v6236 = vmul.f32 1.0, %v6235
  %v6237 = vrcp.pop %v6011
  %v6238 = vmul.f32 %v6011, %v6237
  %v6239 = vsub.f32 1.0, %v6238
  %v6240 = vmul.f32 %v6237, %v6239
  %v6241 = vadd.f32 %v6237, %v6240
  %vm6242 = vweird.f32 %v6011
  %vm6243 = vweird.f32 %v6237
  %vm6244 = vmor %vm6242, %vm6243
  %v6245 = vsel %vm6244, %v6237, %v6241
  %v6246 = vand.u32 2147483647, %v6011
  %vm6247 = vcmp.eq.f32.partialorder %v6246, 8.507059e+37
  %v6248 = vand.u32 %v6011, 2147483648
  %v6249 = vor.u32 1.1754944e-38, %v6248
  %v6250 = vsel %vm6247, %v6249, %v6245
  %v6251 = vmul.f32 1.0, %v6250
  %v6252 = vmul.f32 %v5642, %v4809
  %v6253 = vmul.f32 %v5657, %v4810
  %v6254 = vmul.f32 %v5672, %v4811
  %v6255 = vmul.f32 %v5687, %v4812
  %v6256 = vmul.f32 %v5702, %v4813
  %v6257 = vmul.f32 %v5717, %v4814
  %v6258 = vmul.f32 %v5732, %v4815
  %v6259 = vmul.f32 %v5747, %v4816
  %v6260 = vmul.f32 %v5762, %v4817
  %v6261 = vmul.f32 %v5777, %v4818
  %v6262 = vmul.f32 %v5792, %v4819
  %v6263 = vmul.f32 %v5807, %v4820
  %v6264 = vmul.f32 %v5822, %v4821
  %v6265 = vmul.f32 %v5837, %v4822
  %v6266 = vmul.f32 %v5852, %v4823
  %v6267 = vmul.f32 %v5867, %v4824
  %v6268 = vmul.f32 %v5290, %v5900
  %v6269 = vmul.f32 %v5305, %v5901
  %v6270 = vmul.f32 %v5320, %v5902
  %v6271 = vmul.f32 %v5335, %v5903
  %v6272 = vmul.f32 %v5350, %v5904
  %v6273 = vmul.f32 %v5365, %v5905
  %v6274 = vmul.f32 %v5380, %v5906
  %v6275 = vmul.f32 %v5395, %v5907
  %v6276 = vmul.f32 %v5410, %v5908
  %v6277 = vmul.f32 %v5425, %v5909
  %v6278 = vmul.f32 %v5440, %v5910
  %v6279 = vmul.f32 %v5455, %v5911
  %v6280 = vmul.f32 %v5470, %v5912
  %v6281 = vmul.f32 %v5485, %v5913
  %v6282 = vmul.f32 %v5500, %v5914
  %v6283 = vmul.f32 %v5515, %v5915
  %v6284 = vadd.f32 %v6252, %v6268
  %v6285 = vadd.f32 %v6253, %v6269
  %v6286 = vadd.f32 %v6254, %v6270
  %v6287 = vadd.f32 %v6255, %v6271
  %v6288 = vadd.f32 %v6256, %v6272
  %v6289 = vadd.f32 %v6257, %v6273
  %v6290 = vadd.f32 %v6258, %v6274
  %v6291 = vadd.f32 %v6259, %v6275
  %v6292 = vadd.f32 %v6260, %v6276
  %v6293 = vadd.f32 %v6261, %v6277
  %v6294 = vadd.f32 %v6262, %v6278
  %v6295 = vadd.f32 %v6263, %v6279
  %v6296 = vadd.f32 %v6264, %v6280
  %v6297 = vadd.f32 %v6265, %v6281
  %v6298 = vadd.f32 %v6266, %v6282
  %v6299 = vadd.f32 %v6267, %v6283
  %v6300 = vtanh.pop %v6284
  %v6301 = vtanh.pop %v6285
  %v6302 = vtanh.pop %v6286
  %v6303 = vtanh.pop %v6287
  %v6304 = vtanh.pop %v6288
  %v6305 = vtanh.pop %v6289
  %v6306 = vtanh.pop %v6290
  %v6307 = vtanh.pop %v6291
  %v6308 = vtanh.pop %v6292
  %v6309 = vtanh.pop %v6293
  %v6310 = vtanh.pop %v6294
  %v6311 = vtanh.pop %v6295
  %v6312 = vtanh.pop %v6296
  %v6313 = vtanh.pop %v6297
  %v6314 = vtanh.pop %v6298
  %v6315 = vtanh.pop %v6299
  %v6316 = vmul.f32 %v6026, %v6300
  %v6317 = vmul.f32 %v6041, %v6301
  %v6318 = vmul.f32 %v6056, %v6302
  %v6319 = vmul.f32 %v6071, %v6303
  %v6320 = vmul.f32 %v6086, %v6304
  %v6321 = vmul.f32 %v6101, %v6305
  %v6322 = vmul.f32 %v6116, %v6306
  %v6323 = vmul.f32 %v6131, %v6307
  %v6324 = vmul.f32 %v6146, %v6308
  %v6325 = vmul.f32 %v6161, %v6309
  %v6326 = vmul.f32 %v6176, %v6310
  %v6327 = vmul.f32 %v6191, %v6311
  %v6328 = vmul.f32 %v6206, %v6312
  %v6329 = vmul.f32 %v6221, %v6313
  %v6330 = vmul.f32 %v6236, %v6314
  %v6331 = vmul.f32 %v6251, %v6315
  %6332 = vst [vmem:[%s4 + $0x3] sm:$0x1] %v6316
  %6333 = vst [vmem:[%s4 + $0xb] sm:$0x1] %v6317
  %6334 = vst [vmem:[%s4 + $0x13] sm:$0x1] %v6318
  %6335 = vst [vmem:[%s4 + $0x1b] sm:$0x1] %v6319
  %6336 = vst [vmem:[%s4 + $0x23] sm:$0x1] %v6320
  %6337 = vst [vmem:[%s4 + $0x2b] sm:$0x1] %v6321
  %6338 = vst [vmem:[%s4 + $0x33] sm:$0x1] %v6322
  %6339 = vst [vmem:[%s4 + $0x3b] sm:$0x1] %v6323
  %6340 = vst [vmem:[%s4 + $0x43] sm:$0x1] %v6324
  %6341 = vst [vmem:[%s4 + $0x4b] sm:$0x1] %v6325
  %6342 = vst [vmem:[%s4 + $0x53] sm:$0x1] %v6326
  %6343 = vst [vmem:[%s4 + $0x5b] sm:$0x1] %v6327
  %6344 = vst [vmem:[%s4 + $0x63] sm:$0x1] %v6328
  %6345 = vst [vmem:[%s4 + $0x6b] sm:$0x1] %v6329
  %6346 = vst [vmem:[%s4 + $0x73] sm:$0x1] %v6330
  %6347 = vst [vmem:[%s4 + $0x7b] sm:$0x1] %v6331
  %s6348 = scalar_lea.vmem [#allocation2], 4
  %v6349 = vld [vmem:[%s6348] ss:$8 sm:$0xf]
  %s6350 = scalar_lea.vmem [#allocation2], 36
  %v6351 = vld [vmem:[%s6350] ss:$8 sm:$0xf]
  %s6352 = scalar_lea.vmem [#allocation2], 68
  %v6353 = vld [vmem:[%s6352] ss:$8 sm:$0xf]
  %s6354 = scalar_lea.vmem [#allocation2], 100
  %v6355 = vld [vmem:[%s6354] ss:$8 sm:$0xf]
  %s6356 = scalar_lea.vmem [#allocation2], 132
  %v6357 = vld [vmem:[%s6356] ss:$8 sm:$0xf]
  %s6358 = scalar_lea.vmem [#allocation2], 164
  %v6359 = vld [vmem:[%s6358] ss:$8 sm:$0xf]
  %s6360 = scalar_lea.vmem [#allocation2], 196
  %v6361 = vld [vmem:[%s6360] ss:$8 sm:$0xf]
  %s6362 = scalar_lea.vmem [#allocation2], 228
  %v6363 = vld [vmem:[%s6362] ss:$8 sm:$0xf]
  %s6364 = scalar_lea.vmem [#allocation2], 260
  %v6365 = vld [vmem:[%s6364] ss:$8 sm:$0xf]
  %s6366 = scalar_lea.vmem [#allocation2], 292
  %v6367 = vld [vmem:[%s6366] ss:$8 sm:$0xf]
  %s6368 = scalar_lea.vmem [#allocation2], 324
  %v6369 = vld [vmem:[%s6368] ss:$8 sm:$0xf]
  %s6370 = scalar_lea.vmem [#allocation2], 356
  %v6371 = vld [vmem:[%s6370] ss:$8 sm:$0xf]
  %s6372 = scalar_lea.vmem [#allocation2], 388
  %v6373 = vld [vmem:[%s6372] ss:$8 sm:$0xf]
  %s6374 = scalar_lea.vmem [#allocation2], 420
  %v6375 = vld [vmem:[%s6374] ss:$8 sm:$0xf]
  %s6376 = scalar_lea.vmem [#allocation2], 452
  %v6377 = vld [vmem:[%s6376] ss:$8 sm:$0xf]
  %s6378 = scalar_lea.vmem [#allocation2], 484
  %v6379 = vld [vmem:[%s6378] ss:$8 sm:$0xf]
  %v6380 = vld [vmem:[%s2] sm:$0xff]
  %v6381 = vld [vmem:[%s2 + $0x8] sm:$0xff]
  %v6382 = vld [vmem:[%s2 + $0x10] sm:$0xff]
  %v6383 = vld [vmem:[%s2 + $0x18] sm:$0xff]
  %v6384 = vld [vmem:[%s2 + $0x20] sm:$0xff]
  %v6385 = vld [vmem:[%s2 + $0x28] sm:$0xff]
  %v6386 = vld [vmem:[%s2 + $0x30] sm:$0xff]
  %v6387 = vld [vmem:[%s2 + $0x38] sm:$0xff]
  %v6388 = vld [vmem:[%s2 + $0x40] sm:$0xff]
  %v6389 = vld [vmem:[%s2 + $0x48] sm:$0xff]
  %v6390 = vld [vmem:[%s2 + $0x50] sm:$0xff]
  %v6391 = vld [vmem:[%s2 + $0x58] sm:$0xff]
  %v6392 = vld [vmem:[%s2 + $0x60] sm:$0xff]
  %v6393 = vld [vmem:[%s2 + $0x68] sm:$0xff]
  %v6394 = vld [vmem:[%s2 + $0x70] sm:$0xff]
  %v6395 = vld [vmem:[%s2 + $0x78] sm:$0xff]
  %v6396 = vld [vmem:[%s2 + $0x80] sm:$0xff]
  %v6397 = vld [vmem:[%s2 + $0x88] sm:$0xff]
  %v6398 = vld [vmem:[%s2 + $0x90] sm:$0xff]
  %v6399 = vld [vmem:[%s2 + $0x98] sm:$0xff]
  %v6400 = vld [vmem:[%s2 + $0xa0] sm:$0xff]
  %v6401 = vld [vmem:[%s2 + $0xa8] sm:$0xff]
  %v6402 = vld [vmem:[%s2 + $0xb0] sm:$0xff]
  %v6403 = vld [vmem:[%s2 + $0xb8] sm:$0xff]
  %v6404 = vld [vmem:[%s2 + $0xc0] sm:$0xff]
  %v6405 = vld [vmem:[%s2 + $0xc8] sm:$0xff]
  %v6406 = vld [vmem:[%s2 + $0xd0] sm:$0xff]
  %v6407 = vld [vmem:[%s2 + $0xd8] sm:$0xff]
  %v6408 = vld [vmem:[%s2 + $0xe0] sm:$0xff]
  %v6409 = vld [vmem:[%s2 + $0xe8] sm:$0xff]
  %v6410 = vld [vmem:[%s2 + $0xf0] sm:$0xff]
  %v6411 = vld [vmem:[%s2 + $0xf8] sm:$0xff]
  %v6412 = vld [vmem:[%s2 + $0x100] sm:$0xff]
  %v6413 = vld [vmem:[%s2 + $0x108] sm:$0xff]
  %v6414 = vld [vmem:[%s2 + $0x110] sm:$0xff]
  %v6415 = vld [vmem:[%s2 + $0x118] sm:$0xff]
  %v6416 = vld [vmem:[%s2 + $0x120] sm:$0xff]
  %v6417 = vld [vmem:[%s2 + $0x128] sm:$0xff]
  %v6418 = vld [vmem:[%s2 + $0x130] sm:$0xff]
  %v6419 = vld [vmem:[%s2 + $0x138] sm:$0xff]
  %v6420 = vld [vmem:[%s2 + $0x140] sm:$0xff]
  %v6421 = vld [vmem:[%s2 + $0x148] sm:$0xff]
  %v6422 = vld [vmem:[%s2 + $0x150] sm:$0xff]
  %v6423 = vld [vmem:[%s2 + $0x158] sm:$0xff]
  %v6424 = vld [vmem:[%s2 + $0x160] sm:$0xff]
  %v6425 = vld [vmem:[%s2 + $0x168] sm:$0xff]
  %v6426 = vld [vmem:[%s2 + $0x170] sm:$0xff]
  %v6427 = vld [vmem:[%s2 + $0x178] sm:$0xff]
  %v6428 = vld [vmem:[%s2 + $0x180] sm:$0xff]
  %v6429 = vld [vmem:[%s2 + $0x188] sm:$0xff]
  %v6430 = vld [vmem:[%s2 + $0x190] sm:$0xff]
  %v6431 = vld [vmem:[%s2 + $0x198] sm:$0xff]
  %v6432 = vld [vmem:[%s2 + $0x1a0] sm:$0xff]
  %v6433 = vld [vmem:[%s2 + $0x1a8] sm:$0xff]
  %v6434 = vld [vmem:[%s2 + $0x1b0] sm:$0xff]
  %v6435 = vld [vmem:[%s2 + $0x1b8] sm:$0xff]
  %v6436 = vld [vmem:[%s2 + $0x1c0] sm:$0xff]
  %v6437 = vld [vmem:[%s2 + $0x1c8] sm:$0xff]
  %v6438 = vld [vmem:[%s2 + $0x1d0] sm:$0xff]
  %v6439 = vld [vmem:[%s2 + $0x1d8] sm:$0xff]
  %v6440 = vld [vmem:[%s2 + $0x1e0] sm:$0xff]
  %v6441 = vld [vmem:[%s2 + $0x1e8] sm:$0xff]
  %v6442 = vld [vmem:[%s2 + $0x1f0] sm:$0xff]
  %v6443 = vld [vmem:[%s2 + $0x1f8] sm:$0xff]
  %6460 = vst [vmem:[#allocation1] ss:$9 sm:$0xff] %v6316
  %s6461 = scalar_lea.vmem [#allocation1], 1
  %6462 = vst [vmem:[%s6461] ss:$9 sm:$0xff] %v6317
  %s6463 = scalar_lea.vmem [#allocation1], 2
  %6464 = vst [vmem:[%s6463] ss:$9 sm:$0xff] %v6318
  %s6465 = scalar_lea.vmem [#allocation1], 3
  %6466 = vst [vmem:[%s6465] ss:$9 sm:$0xff] %v6319
  %s6467 = scalar_lea.vmem [#allocation1], 4
  %6468 = vst [vmem:[%s6467] ss:$9 sm:$0xff] %v6320
  %s6469 = scalar_lea.vmem [#allocation1], 5
  %6470 = vst [vmem:[%s6469] ss:$9 sm:$0xff] %v6321
  %s6471 = scalar_lea.vmem [#allocation1], 6
  %6472 = vst [vmem:[%s6471] ss:$9 sm:$0xff] %v6322
  %s6473 = scalar_lea.vmem [#allocation1], 7
  %6474 = vst [vmem:[%s6473] ss:$9 sm:$0xff] %v6323
  %v6475 = vld [vmem:[#allocation1] sm:$0xff]
  %6476 = vst [vmem:[#allocation1] ss:$9 sm:$0xff] %v6324
  %6477 = vst [vmem:[%s6461] ss:$9 sm:$0xff] %v6325
  %6478 = vst [vmem:[%s6463] ss:$9 sm:$0xff] %v6326
  %6479 = vst [vmem:[%s6465] ss:$9 sm:$0xff] %v6327
  %6480 = vst [vmem:[%s6467] ss:$9 sm:$0xff] %v6328
  %6481 = vst [vmem:[%s6469] ss:$9 sm:$0xff] %v6329
  %6482 = vst [vmem:[%s6471] ss:$9 sm:$0xff] %v6330
  %6483 = vst [vmem:[%s6473] ss:$9 sm:$0xff] %v6331
  %v6484 = vld [vmem:[#allocation1] sm:$0xff]
  %6487 = vmatpush.msra.mxu0 %v6440
  %6488 = vmatpush.msra.mxu0 %v6436
  %6489 = vmatpush.msra.mxu0 %v6432
  %6490 = vmatpush.msra.mxu0 %v6428
  %6491 = vmatpush.msra.mxu0 %v6424
  %6492 = vmatpush.msra.mxu0 %v6420
  %6493 = vmatpush.msra.mxu0 %v6416
  %6494 = vmatpush.msra.mxu0 %v6412
  %6495 = vmatpush.msra.mxu0 %v6408
  %6496 = vmatpush.msra.mxu0 %v6404
  %6497 = vmatpush.msra.mxu0 %v6400
  %6498 = vmatpush.msra.mxu0 %v6396
  %6499 = vmatpush.msra.mxu0 %v6392
  %6500 = vmatpush.msra.mxu0 %v6388
  %6501 = vmatpush.msra.mxu0 %v6384
  %6502 = vmatpush.msra.mxu0 %v6380
  %6503 = vmatmul.f32.gmra.mxu0 %v6475
  %v6504 = vpop.f32.mrf.mxu0
  %v6505 = vadd.f32 0.0, %v6504
  %6506 = vmatmul.f32.gmra.mxu0 %v6484
  %v6507 = vpop.f32.mrf.mxu0
  %v6508 = vadd.f32 0.0, %v6507
  %6509 = vdwg.mxu0
  %6510 = vmatpush.msra.mxu0 %v6441
  %6511 = vmatpush.msra.mxu0 %v6437
  %6512 = vmatpush.msra.mxu0 %v6433
  %6513 = vmatpush.msra.mxu0 %v6429
  %6514 = vmatpush.msra.mxu0 %v6425
  %6515 = vmatpush.msra.mxu0 %v6421
  %6516 = vmatpush.msra.mxu0 %v6417
  %6517 = vmatpush.msra.mxu0 %v6413
  %6518 = vmatpush.msra.mxu0 %v6409
  %6519 = vmatpush.msra.mxu0 %v6405
  %6520 = vmatpush.msra.mxu0 %v6401
  %6521 = vmatpush.msra.mxu0 %v6397
  %6522 = vmatpush.msra.mxu0 %v6393
  %6523 = vmatpush.msra.mxu0 %v6389
  %6524 = vmatpush.msra.mxu0 %v6385
  %6525 = vmatpush.msra.mxu0 %v6381
  %6526 = vmatmul.f32.gmra.mxu0 %v6475
  %v6527 = vpop.f32.mrf.mxu0
  %v6528 = vadd.f32 0.0, %v6527
  %6529 = vmatmul.f32.gmra.mxu0 %v6484
  %v6530 = vpop.f32.mrf.mxu0
  %v6531 = vadd.f32 0.0, %v6530
  %6532 = vdwg.mxu0
  %6533 = vmatpush.msra.mxu0 %v6442
  %6534 = vmatpush.msra.mxu0 %v6438
  %6535 = vmatpush.msra.mxu0 %v6434
  %6536 = vmatpush.msra.mxu0 %v6430
  %6537 = vmatpush.msra.mxu0 %v6426
  %6538 = vmatpush.msra.mxu0 %v6422
  %6539 = vmatpush.msra.mxu0 %v6418
  %6540 = vmatpush.msra.mxu0 %v6414
  %6541 = vmatpush.msra.mxu0 %v6410
  %6542 = vmatpush.msra.mxu0 %v6406
  %6543 = vmatpush.msra.mxu0 %v6402
  %6544 = vmatpush.msra.mxu0 %v6398
  %6545 = vmatpush.msra.mxu0 %v6394
  %6546 = vmatpush.msra.mxu0 %v6390
  %6547 = vmatpush.msra.mxu0 %v6386
  %6548 = vmatpush.msra.mxu0 %v6382
  %6549 = vmatmul.f32.gmra.mxu0 %v6475
  %v6550 = vpop.f32.mrf.mxu0
  %v6551 = vadd.f32 0.0, %v6550
  %6552 = vmatmul.f32.gmra.mxu0 %v6484
  %v6553 = vpop.f32.mrf.mxu0
  %v6554 = vadd.f32 0.0, %v6553
  %6555 = vdwg.mxu0
  %6556 = vmatpush.msra.mxu0 %v6443
  %6557 = vmatpush.msra.mxu0 %v6439
  %6558 = vmatpush.msra.mxu0 %v6435
  %6559 = vmatpush.msra.mxu0 %v6431
  %6560 = vmatpush.msra.mxu0 %v6427
  %6561 = vmatpush.msra.mxu0 %v6423
  %6562 = vmatpush.msra.mxu0 %v6419
  %6563 = vmatpush.msra.mxu0 %v6415
  %6564 = vmatpush.msra.mxu0 %v6411
  %6565 = vmatpush.msra.mxu0 %v6407
  %6566 = vmatpush.msra.mxu0 %v6403
  %6567 = vmatpush.msra.mxu0 %v6399
  %6568 = vmatpush.msra.mxu0 %v6395
  %6569 = vmatpush.msra.mxu0 %v6391
  %6570 = vmatpush.msra.mxu0 %v6387
  %6571 = vmatpush.msra.mxu0 %v6383
  %6572 = vmatmul.f32.gmra.mxu0 %v6475
  %v6573 = vpop.f32.mrf.mxu0
  %v6574 = vadd.f32 0.0, %v6573
  %6575 = vmatmul.f32.gmra.mxu0 %v6484
  %v6576 = vpop.f32.mrf.mxu0
  %v6577 = vadd.f32 0.0, %v6576
  %6578 = vdwg.mxu0
  %v6587 = vrot.slane %v6528, 7
  %v6588 = vrot.slane %v6551, 6
  %v6589 = vrot.slane %v6574, 5
  %v6590 = vrot.slane %v6531, 7
  %v6591 = vrot.slane %v6554, 6
  %v6592 = vrot.slane %v6577, 5
  %v6593 = vsel %vm647, %v6505, %v6587
  %v6594 = vsel %vm649, %v6588, %v6589
  %v6595 = vsel %vm651, %v6593, %v6594
  %v6596 = vsel %vm653, %v6505, %v6587
  %v6597 = vsel %vm655, %v6588, %v6589
  %v6598 = vsel %vm657, %v6596, %v6597
  %v6599 = vrot.slane %v6598, 1
  %v6600 = vsel %vm649, %v6505, %v6587
  %v6601 = vsel %vm661, %v6588, %v6589
  %v6602 = vsel %vm663, %v6600, %v6601
  %v6603 = vrot.slane %v6602, 2
  %v6604 = vsel %vm655, %v6505, %v6587
  %v6605 = vsel %vm667, %v6588, %v6589
  %v6606 = vsel %vm669, %v6604, %v6605
  %v6607 = vrot.slane %v6606, 3
  %v6608 = vsel %vm661, %v6505, %v6587
  %v6609 = vsel %vm673, %v6588, %v6589
  %v6610 = vsel %vm675, %v6608, %v6609
  %v6611 = vrot.slane %v6610, 4
  %v6612 = vsel %vm667, %v6505, %v6587
  %v6613 = vsel %vm679, %v6589, %v6588
  %v6614 = vsel %vm681, %v6612, %v6613
  %v6615 = vrot.slane %v6614, 5
  %v6616 = vsel %vm673, %v6505, %v6587
  %v6617 = vsel %vm647, %v6588, %v6589
  %v6618 = vsel %vm686, %v6617, %v6616
  %v6619 = vrot.slane %v6618, 6
  %v6620 = vsel %vm679, %v6587, %v6505
  %v6621 = vsel %vm653, %v6588, %v6589
  %v6622 = vsel %vm691, %v6621, %v6620
  %v6623 = vrot.slane %v6622, 7
  %v6624 = vsel %vm647, %v6508, %v6590
  %v6625 = vsel %vm649, %v6591, %v6592
  %v6626 = vsel %vm651, %v6624, %v6625
  %v6627 = vsel %vm653, %v6508, %v6590
  %v6628 = vsel %vm655, %v6591, %v6592
  %v6629 = vsel %vm657, %v6627, %v6628
  %v6630 = vrot.slane %v6629, 1
  %v6631 = vsel %vm649, %v6508, %v6590
  %v6632 = vsel %vm661, %v6591, %v6592
  %v6633 = vsel %vm663, %v6631, %v6632
  %v6634 = vrot.slane %v6633, 2
  %v6635 = vsel %vm655, %v6508, %v6590
  %v6636 = vsel %vm667, %v6591, %v6592
  %v6637 = vsel %vm669, %v6635, %v6636
  %v6638 = vrot.slane %v6637, 3
  %v6639 = vsel %vm661, %v6508, %v6590
  %v6640 = vsel %vm673, %v6591, %v6592
  %v6641 = vsel %vm675, %v6639, %v6640
  %v6642 = vrot.slane %v6641, 4
  %v6643 = vsel %vm667, %v6508, %v6590
  %v6644 = vsel %vm679, %v6592, %v6591
  %v6645 = vsel %vm681, %v6643, %v6644
  %v6646 = vrot.slane %v6645, 5
  %v6647 = vsel %vm673, %v6508, %v6590
  %v6648 = vsel %vm647, %v6591, %v6592
  %v6649 = vsel %vm686, %v6648, %v6647
  %v6650 = vrot.slane %v6649, 6
  %v6651 = vsel %vm679, %v6590, %v6508
  %v6652 = vsel %vm653, %v6591, %v6592
  %v6653 = vsel %vm691, %v6652, %v6651
  %v6654 = vrot.slane %v6653, 7
  %v6671 = vadd.f32 %v6349, %v6595
  %v6672 = vadd.f32 %v6351, %v6599
  %v6673 = vadd.f32 %v6353, %v6603
  %v6674 = vadd.f32 %v6355, %v6607
  %v6675 = vadd.f32 %v6357, %v6611
  %v6676 = vadd.f32 %v6359, %v6615
  %v6677 = vadd.f32 %v6361, %v6619
  %v6678 = vadd.f32 %v6363, %v6623
  %v6679 = vadd.f32 %v6365, %v6626
  %v6680 = vadd.f32 %v6367, %v6630
  %v6681 = vadd.f32 %v6369, %v6634
  %v6682 = vadd.f32 %v6371, %v6638
  %v6683 = vadd.f32 %v6373, %v6642
  %v6684 = vadd.f32 %v6375, %v6646
  %v6685 = vadd.f32 %v6377, %v6650
  %v6686 = vadd.f32 %v6379, %v6654
  %v6687 = vxor.u32 %v6671, 2147483648
  %v6688 = vxor.u32 %v6672, 2147483648
  %v6689 = vxor.u32 %v6673, 2147483648
  %v6690 = vxor.u32 %v6674, 2147483648
  %v6691 = vxor.u32 %v6675, 2147483648
  %v6692 = vxor.u32 %v6676, 2147483648
  %v6693 = vxor.u32 %v6677, 2147483648
  %v6694 = vxor.u32 %v6678, 2147483648
  %v6695 = vxor.u32 %v6679, 2147483648
  %v6696 = vxor.u32 %v6680, 2147483648
  %v6697 = vxor.u32 %v6681, 2147483648
  %v6698 = vxor.u32 %v6682, 2147483648
  %v6699 = vxor.u32 %v6683, 2147483648
  %v6700 = vxor.u32 %v6684, 2147483648
  %v6701 = vxor.u32 %v6685, 2147483648
  %v6702 = vxor.u32 %v6686, 2147483648
  %v6703 = vmul.f32 %v6687, 1.442695
  %v6704 = vpow.pop %v6703
  %v6705 = vmul.f32 %v6688, 1.442695
  %v6706 = vpow.pop %v6705
  %v6707 = vmul.f32 %v6689, 1.442695
  %v6708 = vpow.pop %v6707
  %v6709 = vmul.f32 %v6690, 1.442695
  %v6710 = vpow.pop %v6709
  %v6711 = vmul.f32 %v6691, 1.442695
  %v6712 = vpow.pop %v6711
  %v6713 = vmul.f32 %v6692, 1.442695
  %v6714 = vpow.pop %v6713
  %v6715 = vmul.f32 %v6693, 1.442695
  %v6716 = vpow.pop %v6715
  %v6717 = vmul.f32 %v6694, 1.442695
  %v6718 = vpow.pop %v6717
  %v6719 = vmul.f32 %v6695, 1.442695
  %v6720 = vpow.pop %v6719
  %v6721 = vmul.f32 %v6696, 1.442695
  %v6722 = vpow.pop %v6721
  %v6723 = vmul.f32 %v6697, 1.442695
  %v6724 = vpow.pop %v6723
  %v6725 = vmul.f32 %v6698, 1.442695
  %v6726 = vpow.pop %v6725
  %v6727 = vmul.f32 %v6699, 1.442695
  %v6728 = vpow.pop %v6727
  %v6729 = vmul.f32 %v6700, 1.442695
  %v6730 = vpow.pop %v6729
  %v6731 = vmul.f32 %v6701, 1.442695
  %v6732 = vpow.pop %v6731
  %v6733 = vmul.f32 %v6702, 1.442695
  %v6734 = vpow.pop %v6733
  %v6735 = vadd.f32 %v6704, 1.0
  %v6736 = vadd.f32 %v6706, 1.0
  %v6737 = vadd.f32 %v6708, 1.0
  %v6738 = vadd.f32 %v6710, 1.0
  %v6739 = vadd.f32 %v6712, 1.0
  %v6740 = vadd.f32 %v6714, 1.0
  %v6741 = vadd.f32 %v6716, 1.0
  %v6742 = vadd.f32 %v6718, 1.0
  %v6743 = vadd.f32 %v6720, 1.0
  %v6744 = vadd.f32 %v6722, 1.0
  %v6745 = vadd.f32 %v6724, 1.0
  %v6746 = vadd.f32 %v6726, 1.0
  %v6747 = vadd.f32 %v6728, 1.0
  %v6748 = vadd.f32 %v6730, 1.0
  %v6749 = vadd.f32 %v6732, 1.0
  %v6750 = vadd.f32 %v6734, 1.0
  %v6751 = vrcp.pop %v6735
  %v6752 = vmul.f32 %v6735, %v6751
  %v6753 = vsub.f32 1.0, %v6752
  %v6754 = vmul.f32 %v6751, %v6753
  %v6755 = vadd.f32 %v6751, %v6754
  %vm6756 = vweird.f32 %v6735
  %vm6757 = vweird.f32 %v6751
  %vm6758 = vmor %vm6756, %vm6757
  %v6759 = vsel %vm6758, %v6751, %v6755
  %v6760 = vand.u32 2147483647, %v6735
  %vm6761 = vcmp.eq.f32.partialorder %v6760, 8.507059e+37
  %v6762 = vand.u32 %v6735, 2147483648
  %v6763 = vor.u32 1.1754944e-38, %v6762
  %v6764 = vsel %vm6761, %v6763, %v6759
  %v6765 = vmul.f32 1.0, %v6764
  %v6766 = vrcp.pop %v6736
  %v6767 = vmul.f32 %v6736, %v6766
  %v6768 = vsub.f32 1.0, %v6767
  %v6769 = vmul.f32 %v6766, %v6768
  %v6770 = vadd.f32 %v6766, %v6769
  %vm6771 = vweird.f32 %v6736
  %vm6772 = vweird.f32 %v6766
  %vm6773 = vmor %vm6771, %vm6772
  %v6774 = vsel %vm6773, %v6766, %v6770
  %v6775 = vand.u32 2147483647, %v6736
  %vm6776 = vcmp.eq.f32.partialorder %v6775, 8.507059e+37
  %v6777 = vand.u32 %v6736, 2147483648
  %v6778 = vor.u32 1.1754944e-38, %v6777
  %v6779 = vsel %vm6776, %v6778, %v6774
  %v6780 = vmul.f32 1.0, %v6779
  %v6781 = vrcp.pop %v6737
  %v6782 = vmul.f32 %v6737, %v6781
  %v6783 = vsub.f32 1.0, %v6782
  %v6784 = vmul.f32 %v6781, %v6783
  %v6785 = vadd.f32 %v6781, %v6784
  %vm6786 = vweird.f32 %v6737
  %vm6787 = vweird.f32 %v6781
  %vm6788 = vmor %vm6786, %vm6787
  %v6789 = vsel %vm6788, %v6781, %v6785
  %v6790 = vand.u32 2147483647, %v6737
  %vm6791 = vcmp.eq.f32.partialorder %v6790, 8.507059e+37
  %v6792 = vand.u32 %v6737, 2147483648
  %v6793 = vor.u32 1.1754944e-38, %v6792
  %v6794 = vsel %vm6791, %v6793, %v6789
  %v6795 = vmul.f32 1.0, %v6794
  %v6796 = vrcp.pop %v6738
  %v6797 = vmul.f32 %v6738, %v6796
  %v6798 = vsub.f32 1.0, %v6797
  %v6799 = vmul.f32 %v6796, %v6798
  %v6800 = vadd.f32 %v6796, %v6799
  %vm6801 = vweird.f32 %v6738
  %vm6802 = vweird.f32 %v6796
  %vm6803 = vmor %vm6801, %vm6802
  %v6804 = vsel %vm6803, %v6796, %v6800
  %v6805 = vand.u32 2147483647, %v6738
  %vm6806 = vcmp.eq.f32.partialorder %v6805, 8.507059e+37
  %v6807 = vand.u32 %v6738, 2147483648
  %v6808 = vor.u32 1.1754944e-38, %v6807
  %v6809 = vsel %vm6806, %v6808, %v6804
  %v6810 = vmul.f32 1.0, %v6809
  %v6811 = vrcp.pop %v6739
  %v6812 = vmul.f32 %v6739, %v6811
  %v6813 = vsub.f32 1.0, %v6812
  %v6814 = vmul.f32 %v6811, %v6813
  %v6815 = vadd.f32 %v6811, %v6814
  %vm6816 = vweird.f32 %v6739
  %vm6817 = vweird.f32 %v6811
  %vm6818 = vmor %vm6816, %vm6817
  %v6819 = vsel %vm6818, %v6811, %v6815
  %v6820 = vand.u32 2147483647, %v6739
  %vm6821 = vcmp.eq.f32.partialorder %v6820, 8.507059e+37
  %v6822 = vand.u32 %v6739, 2147483648
  %v6823 = vor.u32 1.1754944e-38, %v6822
  %v6824 = vsel %vm6821, %v6823, %v6819
  %v6825 = vmul.f32 1.0, %v6824
  %v6826 = vrcp.pop %v6740
  %v6827 = vmul.f32 %v6740, %v6826
  %v6828 = vsub.f32 1.0, %v6827
  %v6829 = vmul.f32 %v6826, %v6828
  %v6830 = vadd.f32 %v6826, %v6829
  %vm6831 = vweird.f32 %v6740
  %vm6832 = vweird.f32 %v6826
  %vm6833 = vmor %vm6831, %vm6832
  %v6834 = vsel %vm6833, %v6826, %v6830
  %v6835 = vand.u32 2147483647, %v6740
  %vm6836 = vcmp.eq.f32.partialorder %v6835, 8.507059e+37
  %v6837 = vand.u32 %v6740, 2147483648
  %v6838 = vor.u32 1.1754944e-38, %v6837
  %v6839 = vsel %vm6836, %v6838, %v6834
  %v6840 = vmul.f32 1.0, %v6839
  %v6841 = vrcp.pop %v6741
  %v6842 = vmul.f32 %v6741, %v6841
  %v6843 = vsub.f32 1.0, %v6842
  %v6844 = vmul.f32 %v6841, %v6843
  %v6845 = vadd.f32 %v6841, %v6844
  %vm6846 = vweird.f32 %v6741
  %vm6847 = vweird.f32 %v6841
  %vm6848 = vmor %vm6846, %vm6847
  %v6849 = vsel %vm6848, %v6841, %v6845
  %v6850 = vand.u32 2147483647, %v6741
  %vm6851 = vcmp.eq.f32.partialorder %v6850, 8.507059e+37
  %v6852 = vand.u32 %v6741, 2147483648
  %v6853 = vor.u32 1.1754944e-38, %v6852
  %v6854 = vsel %vm6851, %v6853, %v6849
  %v6855 = vmul.f32 1.0, %v6854
  %v6856 = vrcp.pop %v6742
  %v6857 = vmul.f32 %v6742, %v6856
  %v6858 = vsub.f32 1.0, %v6857
  %v6859 = vmul.f32 %v6856, %v6858
  %v6860 = vadd.f32 %v6856, %v6859
  %vm6861 = vweird.f32 %v6742
  %vm6862 = vweird.f32 %v6856
  %vm6863 = vmor %vm6861, %vm6862
  %v6864 = vsel %vm6863, %v6856, %v6860
  %v6865 = vand.u32 2147483647, %v6742
  %vm6866 = vcmp.eq.f32.partialorder %v6865, 8.507059e+37
  %v6867 = vand.u32 %v6742, 2147483648
  %v6868 = vor.u32 1.1754944e-38, %v6867
  %v6869 = vsel %vm6866, %v6868, %v6864
  %v6870 = vmul.f32 1.0, %v6869
  %v6871 = vrcp.pop %v6743
  %v6872 = vmul.f32 %v6743, %v6871
  %v6873 = vsub.f32 1.0, %v6872
  %v6874 = vmul.f32 %v6871, %v6873
  %v6875 = vadd.f32 %v6871, %v6874
  %vm6876 = vweird.f32 %v6743
  %vm6877 = vweird.f32 %v6871
  %vm6878 = vmor %vm6876, %vm6877
  %v6879 = vsel %vm6878, %v6871, %v6875
  %v6880 = vand.u32 2147483647, %v6743
  %vm6881 = vcmp.eq.f32.partialorder %v6880, 8.507059e+37
  %v6882 = vand.u32 %v6743, 2147483648
  %v6883 = vor.u32 1.1754944e-38, %v6882
  %v6884 = vsel %vm6881, %v6883, %v6879
  %v6885 = vmul.f32 1.0, %v6884
  %v6886 = vrcp.pop %v6744
  %v6887 = vmul.f32 %v6744, %v6886
  %v6888 = vsub.f32 1.0, %v6887
  %v6889 = vmul.f32 %v6886, %v6888
  %v6890 = vadd.f32 %v6886, %v6889
  %vm6891 = vweird.f32 %v6744
  %vm6892 = vweird.f32 %v6886
  %vm6893 = vmor %vm6891, %vm6892
  %v6894 = vsel %vm6893, %v6886, %v6890
  %v6895 = vand.u32 2147483647, %v6744
  %vm6896 = vcmp.eq.f32.partialorder %v6895, 8.507059e+37
  %v6897 = vand.u32 %v6744, 2147483648
  %v6898 = vor.u32 1.1754944e-38, %v6897
  %v6899 = vsel %vm6896, %v6898, %v6894
  %v6900 = vmul.f32 1.0, %v6899
  %v6901 = vrcp.pop %v6745
  %v6902 = vmul.f32 %v6745, %v6901
  %v6903 = vsub.f32 1.0, %v6902
  %v6904 = vmul.f32 %v6901, %v6903
  %v6905 = vadd.f32 %v6901, %v6904
  %vm6906 = vweird.f32 %v6745
  %vm6907 = vweird.f32 %v6901
  %vm6908 = vmor %vm6906, %vm6907
  %v6909 = vsel %vm6908, %v6901, %v6905
  %v6910 = vand.u32 2147483647, %v6745
  %vm6911 = vcmp.eq.f32.partialorder %v6910, 8.507059e+37
  %v6912 = vand.u32 %v6745, 2147483648
  %v6913 = vor.u32 1.1754944e-38, %v6912
  %v6914 = vsel %vm6911, %v6913, %v6909
  %v6915 = vmul.f32 1.0, %v6914
  %v6916 = vrcp.pop %v6746
  %v6917 = vmul.f32 %v6746, %v6916
  %v6918 = vsub.f32 1.0, %v6917
  %v6919 = vmul.f32 %v6916, %v6918
  %v6920 = vadd.f32 %v6916, %v6919
  %vm6921 = vweird.f32 %v6746
  %vm6922 = vweird.f32 %v6916
  %vm6923 = vmor %vm6921, %vm6922
  %v6924 = vsel %vm6923, %v6916, %v6920
  %v6925 = vand.u32 2147483647, %v6746
  %vm6926 = vcmp.eq.f32.partialorder %v6925, 8.507059e+37
  %v6927 = vand.u32 %v6746, 2147483648
  %v6928 = vor.u32 1.1754944e-38, %v6927
  %v6929 = vsel %vm6926, %v6928, %v6924
  %v6930 = vmul.f32 1.0, %v6929
  %v6931 = vrcp.pop %v6747
  %v6932 = vmul.f32 %v6747, %v6931
  %v6933 = vsub.f32 1.0, %v6932
  %v6934 = vmul.f32 %v6931, %v6933
  %v6935 = vadd.f32 %v6931, %v6934
  %vm6936 = vweird.f32 %v6747
  %vm6937 = vweird.f32 %v6931
  %vm6938 = vmor %vm6936, %vm6937
  %v6939 = vsel %vm6938, %v6931, %v6935
  %v6940 = vand.u32 2147483647, %v6747
  %vm6941 = vcmp.eq.f32.partialorder %v6940, 8.507059e+37
  %v6942 = vand.u32 %v6747, 2147483648
  %v6943 = vor.u32 1.1754944e-38, %v6942
  %v6944 = vsel %vm6941, %v6943, %v6939
  %v6945 = vmul.f32 1.0, %v6944
  %v6946 = vrcp.pop %v6748
  %v6947 = vmul.f32 %v6748, %v6946
  %v6948 = vsub.f32 1.0, %v6947
  %v6949 = vmul.f32 %v6946, %v6948
  %v6950 = vadd.f32 %v6946, %v6949
  %vm6951 = vweird.f32 %v6748
  %vm6952 = vweird.f32 %v6946
  %vm6953 = vmor %vm6951, %vm6952
  %v6954 = vsel %vm6953, %v6946, %v6950
  %v6955 = vand.u32 2147483647, %v6748
  %vm6956 = vcmp.eq.f32.partialorder %v6955, 8.507059e+37
  %v6957 = vand.u32 %v6748, 2147483648
  %v6958 = vor.u32 1.1754944e-38, %v6957
  %v6959 = vsel %vm6956, %v6958, %v6954
  %v6960 = vmul.f32 1.0, %v6959
  %v6961 = vrcp.pop %v6749
  %v6962 = vmul.f32 %v6749, %v6961
  %v6963 = vsub.f32 1.0, %v6962
  %v6964 = vmul.f32 %v6961, %v6963
  %v6965 = vadd.f32 %v6961, %v6964
  %vm6966 = vweird.f32 %v6749
  %vm6967 = vweird.f32 %v6961
  %vm6968 = vmor %vm6966, %vm6967
  %v6969 = vsel %vm6968, %v6961, %v6965
  %v6970 = vand.u32 2147483647, %v6749
  %vm6971 = vcmp.eq.f32.partialorder %v6970, 8.507059e+37
  %v6972 = vand.u32 %v6749, 2147483648
  %v6973 = vor.u32 1.1754944e-38, %v6972
  %v6974 = vsel %vm6971, %v6973, %v6969
  %v6975 = vmul.f32 1.0, %v6974
  %v6976 = vrcp.pop %v6750
  %v6977 = vmul.f32 %v6750, %v6976
  %v6978 = vsub.f32 1.0, %v6977
  %v6979 = vmul.f32 %v6976, %v6978
  %v6980 = vadd.f32 %v6976, %v6979
  %vm6981 = vweird.f32 %v6750
  %vm6982 = vweird.f32 %v6976
  %vm6983 = vmor %vm6981, %vm6982
  %v6984 = vsel %vm6983, %v6976, %v6980
  %v6985 = vand.u32 2147483647, %v6750
  %vm6986 = vcmp.eq.f32.partialorder %v6985, 8.507059e+37
  %v6987 = vand.u32 %v6750, 2147483648
  %v6988 = vor.u32 1.1754944e-38, %v6987
  %v6989 = vsel %vm6986, %v6988, %v6984
  %v6990 = vmul.f32 1.0, %v6989
  %v7007 = vrot.slane %v6671, 1
  %v7008 = vrot.slane %v6672, 1
  %v7009 = vrot.slane %v6673, 1
  %v7010 = vrot.slane %v6674, 1
  %v7011 = vrot.slane %v6675, 1
  %v7012 = vrot.slane %v6676, 1
  %v7013 = vrot.slane %v6677, 1
  %v7014 = vrot.slane %v6678, 1
  %v7015 = vrot.slane %v6679, 1
  %v7016 = vrot.slane %v6680, 1
  %v7017 = vrot.slane %v6681, 1
  %v7018 = vrot.slane %v6682, 1
  %v7019 = vrot.slane %v6683, 1
  %v7020 = vrot.slane %v6684, 1
  %v7021 = vrot.slane %v6685, 1
  %v7022 = vrot.slane %v6686, 1
  %v7039 = vxor.u32 %v7007, 2147483648
  %v7040 = vxor.u32 %v7008, 2147483648
  %v7041 = vxor.u32 %v7009, 2147483648
  %v7042 = vxor.u32 %v7010, 2147483648
  %v7043 = vxor.u32 %v7011, 2147483648
  %v7044 = vxor.u32 %v7012, 2147483648
  %v7045 = vxor.u32 %v7013, 2147483648
  %v7046 = vxor.u32 %v7014, 2147483648
  %v7047 = vxor.u32 %v7015, 2147483648
  %v7048 = vxor.u32 %v7016, 2147483648
  %v7049 = vxor.u32 %v7017, 2147483648
  %v7050 = vxor.u32 %v7018, 2147483648
  %v7051 = vxor.u32 %v7019, 2147483648
  %v7052 = vxor.u32 %v7020, 2147483648
  %v7053 = vxor.u32 %v7021, 2147483648
  %v7054 = vxor.u32 %v7022, 2147483648
  %v7055 = vmul.f32 %v7039, 1.442695
  %v7056 = vpow.pop %v7055
  %v7057 = vmul.f32 %v7040, 1.442695
  %v7058 = vpow.pop %v7057
  %v7059 = vmul.f32 %v7041, 1.442695
  %v7060 = vpow.pop %v7059
  %v7061 = vmul.f32 %v7042, 1.442695
  %v7062 = vpow.pop %v7061
  %v7063 = vmul.f32 %v7043, 1.442695
  %v7064 = vpow.pop %v7063
  %v7065 = vmul.f32 %v7044, 1.442695
  %v7066 = vpow.pop %v7065
  %v7067 = vmul.f32 %v7045, 1.442695
  %v7068 = vpow.pop %v7067
  %v7069 = vmul.f32 %v7046, 1.442695
  %v7070 = vpow.pop %v7069
  %v7071 = vmul.f32 %v7047, 1.442695
  %v7072 = vpow.pop %v7071
  %v7073 = vmul.f32 %v7048, 1.442695
  %v7074 = vpow.pop %v7073
  %v7075 = vmul.f32 %v7049, 1.442695
  %v7076 = vpow.pop %v7075
  %v7077 = vmul.f32 %v7050, 1.442695
  %v7078 = vpow.pop %v7077
  %v7079 = vmul.f32 %v7051, 1.442695
  %v7080 = vpow.pop %v7079
  %v7081 = vmul.f32 %v7052, 1.442695
  %v7082 = vpow.pop %v7081
  %v7083 = vmul.f32 %v7053, 1.442695
  %v7084 = vpow.pop %v7083
  %v7085 = vmul.f32 %v7054, 1.442695
  %v7086 = vpow.pop %v7085
  %v7087 = vadd.f32 %v7056, 1.0
  %v7088 = vadd.f32 %v7058, 1.0
  %v7089 = vadd.f32 %v7060, 1.0
  %v7090 = vadd.f32 %v7062, 1.0
  %v7091 = vadd.f32 %v7064, 1.0
  %v7092 = vadd.f32 %v7066, 1.0
  %v7093 = vadd.f32 %v7068, 1.0
  %v7094 = vadd.f32 %v7070, 1.0
  %v7095 = vadd.f32 %v7072, 1.0
  %v7096 = vadd.f32 %v7074, 1.0
  %v7097 = vadd.f32 %v7076, 1.0
  %v7098 = vadd.f32 %v7078, 1.0
  %v7099 = vadd.f32 %v7080, 1.0
  %v7100 = vadd.f32 %v7082, 1.0
  %v7101 = vadd.f32 %v7084, 1.0
  %v7102 = vadd.f32 %v7086, 1.0
  %v7103 = vrcp.pop %v7087
  %v7104 = vmul.f32 %v7087, %v7103
  %v7105 = vsub.f32 1.0, %v7104
  %v7106 = vmul.f32 %v7103, %v7105
  %v7107 = vadd.f32 %v7103, %v7106
  %vm7108 = vweird.f32 %v7087
  %vm7109 = vweird.f32 %v7103
  %vm7110 = vmor %vm7108, %vm7109
  %v7111 = vsel %vm7110, %v7103, %v7107
  %v7112 = vand.u32 2147483647, %v7087
  %vm7113 = vcmp.eq.f32.partialorder %v7112, 8.507059e+37
  %v7114 = vand.u32 %v7087, 2147483648
  %v7115 = vor.u32 1.1754944e-38, %v7114
  %v7116 = vsel %vm7113, %v7115, %v7111
  %v7117 = vmul.f32 1.0, %v7116
  %v7118 = vrcp.pop %v7088
  %v7119 = vmul.f32 %v7088, %v7118
  %v7120 = vsub.f32 1.0, %v7119
  %v7121 = vmul.f32 %v7118, %v7120
  %v7122 = vadd.f32 %v7118, %v7121
  %vm7123 = vweird.f32 %v7088
  %vm7124 = vweird.f32 %v7118
  %vm7125 = vmor %vm7123, %vm7124
  %v7126 = vsel %vm7125, %v7118, %v7122
  %v7127 = vand.u32 2147483647, %v7088
  %vm7128 = vcmp.eq.f32.partialorder %v7127, 8.507059e+37
  %v7129 = vand.u32 %v7088, 2147483648
  %v7130 = vor.u32 1.1754944e-38, %v7129
  %v7131 = vsel %vm7128, %v7130, %v7126
  %v7132 = vmul.f32 1.0, %v7131
  %v7133 = vrcp.pop %v7089
  %v7134 = vmul.f32 %v7089, %v7133
  %v7135 = vsub.f32 1.0, %v7134
  %v7136 = vmul.f32 %v7133, %v7135
  %v7137 = vadd.f32 %v7133, %v7136
  %vm7138 = vweird.f32 %v7089
  %vm7139 = vweird.f32 %v7133
  %vm7140 = vmor %vm7138, %vm7139
  %v7141 = vsel %vm7140, %v7133, %v7137
  %v7142 = vand.u32 2147483647, %v7089
  %vm7143 = vcmp.eq.f32.partialorder %v7142, 8.507059e+37
  %v7144 = vand.u32 %v7089, 2147483648
  %v7145 = vor.u32 1.1754944e-38, %v7144
  %v7146 = vsel %vm7143, %v7145, %v7141
  %v7147 = vmul.f32 1.0, %v7146
  %v7148 = vrcp.pop %v7090
  %v7149 = vmul.f32 %v7090, %v7148
  %v7150 = vsub.f32 1.0, %v7149
  %v7151 = vmul.f32 %v7148, %v7150
  %v7152 = vadd.f32 %v7148, %v7151
  %vm7153 = vweird.f32 %v7090
  %vm7154 = vweird.f32 %v7148
  %vm7155 = vmor %vm7153, %vm7154
  %v7156 = vsel %vm7155, %v7148, %v7152
  %v7157 = vand.u32 2147483647, %v7090
  %vm7158 = vcmp.eq.f32.partialorder %v7157, 8.507059e+37
  %v7159 = vand.u32 %v7090, 2147483648
  %v7160 = vor.u32 1.1754944e-38, %v7159
  %v7161 = vsel %vm7158, %v7160, %v7156
  %v7162 = vmul.f32 1.0, %v7161
  %v7163 = vrcp.pop %v7091
  %v7164 = vmul.f32 %v7091, %v7163
  %v7165 = vsub.f32 1.0, %v7164
  %v7166 = vmul.f32 %v7163, %v7165
  %v7167 = vadd.f32 %v7163, %v7166
  %vm7168 = vweird.f32 %v7091
  %vm7169 = vweird.f32 %v7163
  %vm7170 = vmor %vm7168, %vm7169
  %v7171 = vsel %vm7170, %v7163, %v7167
  %v7172 = vand.u32 2147483647, %v7091
  %vm7173 = vcmp.eq.f32.partialorder %v7172, 8.507059e+37
  %v7174 = vand.u32 %v7091, 2147483648
  %v7175 = vor.u32 1.1754944e-38, %v7174
  %v7176 = vsel %vm7173, %v7175, %v7171
  %v7177 = vmul.f32 1.0, %v7176
  %v7178 = vrcp.pop %v7092
  %v7179 = vmul.f32 %v7092, %v7178
  %v7180 = vsub.f32 1.0, %v7179
  %v7181 = vmul.f32 %v7178, %v7180
  %v7182 = vadd.f32 %v7178, %v7181
  %vm7183 = vweird.f32 %v7092
  %vm7184 = vweird.f32 %v7178
  %vm7185 = vmor %vm7183, %vm7184
  %v7186 = vsel %vm7185, %v7178, %v7182
  %v7187 = vand.u32 2147483647, %v7092
  %vm7188 = vcmp.eq.f32.partialorder %v7187, 8.507059e+37
  %v7189 = vand.u32 %v7092, 2147483648
  %v7190 = vor.u32 1.1754944e-38, %v7189
  %v7191 = vsel %vm7188, %v7190, %v7186
  %v7192 = vmul.f32 1.0, %v7191
  %v7193 = vrcp.pop %v7093
  %v7194 = vmul.f32 %v7093, %v7193
  %v7195 = vsub.f32 1.0, %v7194
  %v7196 = vmul.f32 %v7193, %v7195
  %v7197 = vadd.f32 %v7193, %v7196
  %vm7198 = vweird.f32 %v7093
  %vm7199 = vweird.f32 %v7193
  %vm7200 = vmor %vm7198, %vm7199
  %v7201 = vsel %vm7200, %v7193, %v7197
  %v7202 = vand.u32 2147483647, %v7093
  %vm7203 = vcmp.eq.f32.partialorder %v7202, 8.507059e+37
  %v7204 = vand.u32 %v7093, 2147483648
  %v7205 = vor.u32 1.1754944e-38, %v7204
  %v7206 = vsel %vm7203, %v7205, %v7201
  %v7207 = vmul.f32 1.0, %v7206
  %v7208 = vrcp.pop %v7094
  %v7209 = vmul.f32 %v7094, %v7208
  %v7210 = vsub.f32 1.0, %v7209
  %v7211 = vmul.f32 %v7208, %v7210
  %v7212 = vadd.f32 %v7208, %v7211
  %vm7213 = vweird.f32 %v7094
  %vm7214 = vweird.f32 %v7208
  %vm7215 = vmor %vm7213, %vm7214
  %v7216 = vsel %vm7215, %v7208, %v7212
  %v7217 = vand.u32 2147483647, %v7094
  %vm7218 = vcmp.eq.f32.partialorder %v7217, 8.507059e+37
  %v7219 = vand.u32 %v7094, 2147483648
  %v7220 = vor.u32 1.1754944e-38, %v7219
  %v7221 = vsel %vm7218, %v7220, %v7216
  %v7222 = vmul.f32 1.0, %v7221
  %v7223 = vrcp.pop %v7095
  %v7224 = vmul.f32 %v7095, %v7223
  %v7225 = vsub.f32 1.0, %v7224
  %v7226 = vmul.f32 %v7223, %v7225
  %v7227 = vadd.f32 %v7223, %v7226
  %vm7228 = vweird.f32 %v7095
  %vm7229 = vweird.f32 %v7223
  %vm7230 = vmor %vm7228, %vm7229
  %v7231 = vsel %vm7230, %v7223, %v7227
  %v7232 = vand.u32 2147483647, %v7095
  %vm7233 = vcmp.eq.f32.partialorder %v7232, 8.507059e+37
  %v7234 = vand.u32 %v7095, 2147483648
  %v7235 = vor.u32 1.1754944e-38, %v7234
  %v7236 = vsel %vm7233, %v7235, %v7231
  %v7237 = vmul.f32 1.0, %v7236
  %v7238 = vrcp.pop %v7096
  %v7239 = vmul.f32 %v7096, %v7238
  %v7240 = vsub.f32 1.0, %v7239
  %v7241 = vmul.f32 %v7238, %v7240
  %v7242 = vadd.f32 %v7238, %v7241
  %vm7243 = vweird.f32 %v7096
  %vm7244 = vweird.f32 %v7238
  %vm7245 = vmor %vm7243, %vm7244
  %v7246 = vsel %vm7245, %v7238, %v7242
  %v7247 = vand.u32 2147483647, %v7096
  %vm7248 = vcmp.eq.f32.partialorder %v7247, 8.507059e+37
  %v7249 = vand.u32 %v7096, 2147483648
  %v7250 = vor.u32 1.1754944e-38, %v7249
  %v7251 = vsel %vm7248, %v7250, %v7246
  %v7252 = vmul.f32 1.0, %v7251
  %v7253 = vrcp.pop %v7097
  %v7254 = vmul.f32 %v7097, %v7253
  %v7255 = vsub.f32 1.0, %v7254
  %v7256 = vmul.f32 %v7253, %v7255
  %v7257 = vadd.f32 %v7253, %v7256
  %vm7258 = vweird.f32 %v7097
  %vm7259 = vweird.f32 %v7253
  %vm7260 = vmor %vm7258, %vm7259
  %v7261 = vsel %vm7260, %v7253, %v7257
  %v7262 = vand.u32 2147483647, %v7097
  %vm7263 = vcmp.eq.f32.partialorder %v7262, 8.507059e+37
  %v7264 = vand.u32 %v7097, 2147483648
  %v7265 = vor.u32 1.1754944e-38, %v7264
  %v7266 = vsel %vm7263, %v7265, %v7261
  %v7267 = vmul.f32 1.0, %v7266
  %v7268 = vrcp.pop %v7098
  %v7269 = vmul.f32 %v7098, %v7268
  %v7270 = vsub.f32 1.0, %v7269
  %v7271 = vmul.f32 %v7268, %v7270
  %v7272 = vadd.f32 %v7268, %v7271
  %vm7273 = vweird.f32 %v7098
  %vm7274 = vweird.f32 %v7268
  %vm7275 = vmor %vm7273, %vm7274
  %v7276 = vsel %vm7275, %v7268, %v7272
  %v7277 = vand.u32 2147483647, %v7098
  %vm7278 = vcmp.eq.f32.partialorder %v7277, 8.507059e+37
  %v7279 = vand.u32 %v7098, 2147483648
  %v7280 = vor.u32 1.1754944e-38, %v7279
  %v7281 = vsel %vm7278, %v7280, %v7276
  %v7282 = vmul.f32 1.0, %v7281
  %v7283 = vrcp.pop %v7099
  %v7284 = vmul.f32 %v7099, %v7283
  %v7285 = vsub.f32 1.0, %v7284
  %v7286 = vmul.f32 %v7283, %v7285
  %v7287 = vadd.f32 %v7283, %v7286
  %vm7288 = vweird.f32 %v7099
  %vm7289 = vweird.f32 %v7283
  %vm7290 = vmor %vm7288, %vm7289
  %v7291 = vsel %vm7290, %v7283, %v7287
  %v7292 = vand.u32 2147483647, %v7099
  %vm7293 = vcmp.eq.f32.partialorder %v7292, 8.507059e+37
  %v7294 = vand.u32 %v7099, 2147483648
  %v7295 = vor.u32 1.1754944e-38, %v7294
  %v7296 = vsel %vm7293, %v7295, %v7291
  %v7297 = vmul.f32 1.0, %v7296
  %v7298 = vrcp.pop %v7100
  %v7299 = vmul.f32 %v7100, %v7298
  %v7300 = vsub.f32 1.0, %v7299
  %v7301 = vmul.f32 %v7298, %v7300
  %v7302 = vadd.f32 %v7298, %v7301
  %vm7303 = vweird.f32 %v7100
  %vm7304 = vweird.f32 %v7298
  %vm7305 = vmor %vm7303, %vm7304
  %v7306 = vsel %vm7305, %v7298, %v7302
  %v7307 = vand.u32 2147483647, %v7100
  %vm7308 = vcmp.eq.f32.partialorder %v7307, 8.507059e+37
  %v7309 = vand.u32 %v7100, 2147483648
  %v7310 = vor.u32 1.1754944e-38, %v7309
  %v7311 = vsel %vm7308, %v7310, %v7306
  %v7312 = vmul.f32 1.0, %v7311
  %v7313 = vrcp.pop %v7101
  %v7314 = vmul.f32 %v7101, %v7313
  %v7315 = vsub.f32 1.0, %v7314
  %v7316 = vmul.f32 %v7313, %v7315
  %v7317 = vadd.f32 %v7313, %v7316
  %vm7318 = vweird.f32 %v7101
  %vm7319 = vweird.f32 %v7313
  %vm7320 = vmor %vm7318, %vm7319
  %v7321 = vsel %vm7320, %v7313, %v7317
  %v7322 = vand.u32 2147483647, %v7101
  %vm7323 = vcmp.eq.f32.partialorder %v7322, 8.507059e+37
  %v7324 = vand.u32 %v7101, 2147483648
  %v7325 = vor.u32 1.1754944e-38, %v7324
  %v7326 = vsel %vm7323, %v7325, %v7321
  %v7327 = vmul.f32 1.0, %v7326
  %v7328 = vrcp.pop %v7102
  %v7329 = vmul.f32 %v7102, %v7328
  %v7330 = vsub.f32 1.0, %v7329
  %v7331 = vmul.f32 %v7328, %v7330
  %v7332 = vadd.f32 %v7328, %v7331
  %vm7333 = vweird.f32 %v7102
  %vm7334 = vweird.f32 %v7328
  %vm7335 = vmor %vm7333, %vm7334
  %v7336 = vsel %vm7335, %v7328, %v7332
  %v7337 = vand.u32 2147483647, %v7102
  %vm7338 = vcmp.eq.f32.partialorder %v7337, 8.507059e+37
  %v7339 = vand.u32 %v7102, 2147483648
  %v7340 = vor.u32 1.1754944e-38, %v7339
  %v7341 = vsel %vm7338, %v7340, %v7336
  %v7342 = vmul.f32 1.0, %v7341
  %v7343 = vrot.slane %v6671, 2
  %v7344 = vrot.slane %v6672, 2
  %v7345 = vrot.slane %v6673, 2
  %v7346 = vrot.slane %v6674, 2
  %v7347 = vrot.slane %v6675, 2
  %v7348 = vrot.slane %v6676, 2
  %v7349 = vrot.slane %v6677, 2
  %v7350 = vrot.slane %v6678, 2
  %v7351 = vrot.slane %v6679, 2
  %v7352 = vrot.slane %v6680, 2
  %v7353 = vrot.slane %v6681, 2
  %v7354 = vrot.slane %v6682, 2
  %v7355 = vrot.slane %v6683, 2
  %v7356 = vrot.slane %v6684, 2
  %v7357 = vrot.slane %v6685, 2
  %v7358 = vrot.slane %v6686, 2
  %v7375 = vtanh.pop %v7343
  %v7376 = vtanh.pop %v7344
  %v7377 = vtanh.pop %v7345
  %v7378 = vtanh.pop %v7346
  %v7379 = vtanh.pop %v7347
  %v7380 = vtanh.pop %v7348
  %v7381 = vtanh.pop %v7349
  %v7382 = vtanh.pop %v7350
  %v7383 = vtanh.pop %v7351
  %v7384 = vtanh.pop %v7352
  %v7385 = vtanh.pop %v7353
  %v7386 = vtanh.pop %v7354
  %v7387 = vtanh.pop %v7355
  %v7388 = vtanh.pop %v7356
  %v7389 = vtanh.pop %v7357
  %v7390 = vtanh.pop %v7358
  %v7391 = vrot.slane %v6671, 3
  %v7392 = vrot.slane %v6672, 3
  %v7393 = vrot.slane %v6673, 3
  %v7394 = vrot.slane %v6674, 3
  %v7395 = vrot.slane %v6675, 3
  %v7396 = vrot.slane %v6676, 3
  %v7397 = vrot.slane %v6677, 3
  %v7398 = vrot.slane %v6678, 3
  %v7399 = vrot.slane %v6679, 3
  %v7400 = vrot.slane %v6680, 3
  %v7401 = vrot.slane %v6681, 3
  %v7402 = vrot.slane %v6682, 3
  %v7403 = vrot.slane %v6683, 3
  %v7404 = vrot.slane %v6684, 3
  %v7405 = vrot.slane %v6685, 3
  %v7406 = vrot.slane %v6686, 3
  %v7423 = vxor.u32 %v7391, 2147483648
  %v7424 = vxor.u32 %v7392, 2147483648
  %v7425 = vxor.u32 %v7393, 2147483648
  %v7426 = vxor.u32 %v7394, 2147483648
  %v7427 = vxor.u32 %v7395, 2147483648
  %v7428 = vxor.u32 %v7396, 2147483648
  %v7429 = vxor.u32 %v7397, 2147483648
  %v7430 = vxor.u32 %v7398, 2147483648
  %v7431 = vxor.u32 %v7399, 2147483648
  %v7432 = vxor.u32 %v7400, 2147483648
  %v7433 = vxor.u32 %v7401, 2147483648
  %v7434 = vxor.u32 %v7402, 2147483648
  %v7435 = vxor.u32 %v7403, 2147483648
  %v7436 = vxor.u32 %v7404, 2147483648
  %v7437 = vxor.u32 %v7405, 2147483648
  %v7438 = vxor.u32 %v7406, 2147483648
  %v7439 = vmul.f32 %v7423, 1.442695
  %v7440 = vpow.pop %v7439
  %v7441 = vmul.f32 %v7424, 1.442695
  %v7442 = vpow.pop %v7441
  %v7443 = vmul.f32 %v7425, 1.442695
  %v7444 = vpow.pop %v7443
  %v7445 = vmul.f32 %v7426, 1.442695
  %v7446 = vpow.pop %v7445
  %v7447 = vmul.f32 %v7427, 1.442695
  %v7448 = vpow.pop %v7447
  %v7449 = vmul.f32 %v7428, 1.442695
  %v7450 = vpow.pop %v7449
  %v7451 = vmul.f32 %v7429, 1.442695
  %v7452 = vpow.pop %v7451
  %v7453 = vmul.f32 %v7430, 1.442695
  %v7454 = vpow.pop %v7453
  %v7455 = vmul.f32 %v7431, 1.442695
  %v7456 = vpow.pop %v7455
  %v7457 = vmul.f32 %v7432, 1.442695
  %v7458 = vpow.pop %v7457
  %v7459 = vmul.f32 %v7433, 1.442695
  %v7460 = vpow.pop %v7459
  %v7461 = vmul.f32 %v7434, 1.442695
  %v7462 = vpow.pop %v7461
  %v7463 = vmul.f32 %v7435, 1.442695
  %v7464 = vpow.pop %v7463
  %v7465 = vmul.f32 %v7436, 1.442695
  %v7466 = vpow.pop %v7465
  %v7467 = vmul.f32 %v7437, 1.442695
  %v7468 = vpow.pop %v7467
  %v7469 = vmul.f32 %v7438, 1.442695
  %v7470 = vpow.pop %v7469
  %v7471 = vadd.f32 %v7440, 1.0
  %v7472 = vadd.f32 %v7442, 1.0
  %v7473 = vadd.f32 %v7444, 1.0
  %v7474 = vadd.f32 %v7446, 1.0
  %v7475 = vadd.f32 %v7448, 1.0
  %v7476 = vadd.f32 %v7450, 1.0
  %v7477 = vadd.f32 %v7452, 1.0
  %v7478 = vadd.f32 %v7454, 1.0
  %v7479 = vadd.f32 %v7456, 1.0
  %v7480 = vadd.f32 %v7458, 1.0
  %v7481 = vadd.f32 %v7460, 1.0
  %v7482 = vadd.f32 %v7462, 1.0
  %v7483 = vadd.f32 %v7464, 1.0
  %v7484 = vadd.f32 %v7466, 1.0
  %v7485 = vadd.f32 %v7468, 1.0
  %v7486 = vadd.f32 %v7470, 1.0
  %v7487 = vrcp.pop %v7471
  %v7488 = vmul.f32 %v7471, %v7487
  %v7489 = vsub.f32 1.0, %v7488
  %v7490 = vmul.f32 %v7487, %v7489
  %v7491 = vadd.f32 %v7487, %v7490
  %vm7492 = vweird.f32 %v7471
  %vm7493 = vweird.f32 %v7487
  %vm7494 = vmor %vm7492, %vm7493
  %v7495 = vsel %vm7494, %v7487, %v7491
  %v7496 = vand.u32 2147483647, %v7471
  %vm7497 = vcmp.eq.f32.partialorder %v7496, 8.507059e+37
  %v7498 = vand.u32 %v7471, 2147483648
  %v7499 = vor.u32 1.1754944e-38, %v7498
  %v7500 = vsel %vm7497, %v7499, %v7495
  %v7501 = vmul.f32 1.0, %v7500
  %v7502 = vrcp.pop %v7472
  %v7503 = vmul.f32 %v7472, %v7502
  %v7504 = vsub.f32 1.0, %v7503
  %v7505 = vmul.f32 %v7502, %v7504
  %v7506 = vadd.f32 %v7502, %v7505
  %vm7507 = vweird.f32 %v7472
  %vm7508 = vweird.f32 %v7502
  %vm7509 = vmor %vm7507, %vm7508
  %v7510 = vsel %vm7509, %v7502, %v7506
  %v7511 = vand.u32 2147483647, %v7472
  %vm7512 = vcmp.eq.f32.partialorder %v7511, 8.507059e+37
  %v7513 = vand.u32 %v7472, 2147483648
  %v7514 = vor.u32 1.1754944e-38, %v7513
  %v7515 = vsel %vm7512, %v7514, %v7510
  %v7516 = vmul.f32 1.0, %v7515
  %v7517 = vrcp.pop %v7473
  %v7518 = vmul.f32 %v7473, %v7517
  %v7519 = vsub.f32 1.0, %v7518
  %v7520 = vmul.f32 %v7517, %v7519
  %v7521 = vadd.f32 %v7517, %v7520
  %vm7522 = vweird.f32 %v7473
  %vm7523 = vweird.f32 %v7517
  %vm7524 = vmor %vm7522, %vm7523
  %v7525 = vsel %vm7524, %v7517, %v7521
  %v7526 = vand.u32 2147483647, %v7473
  %vm7527 = vcmp.eq.f32.partialorder %v7526, 8.507059e+37
  %v7528 = vand.u32 %v7473, 2147483648
  %v7529 = vor.u32 1.1754944e-38, %v7528
  %v7530 = vsel %vm7527, %v7529, %v7525
  %v7531 = vmul.f32 1.0, %v7530
  %v7532 = vrcp.pop %v7474
  %v7533 = vmul.f32 %v7474, %v7532
  %v7534 = vsub.f32 1.0, %v7533
  %v7535 = vmul.f32 %v7532, %v7534
  %v7536 = vadd.f32 %v7532, %v7535
  %vm7537 = vweird.f32 %v7474
  %vm7538 = vweird.f32 %v7532
  %vm7539 = vmor %vm7537, %vm7538
  %v7540 = vsel %vm7539, %v7532, %v7536
  %v7541 = vand.u32 2147483647, %v7474
  %vm7542 = vcmp.eq.f32.partialorder %v7541, 8.507059e+37
  %v7543 = vand.u32 %v7474, 2147483648
  %v7544 = vor.u32 1.1754944e-38, %v7543
  %v7545 = vsel %vm7542, %v7544, %v7540
  %v7546 = vmul.f32 1.0, %v7545
  %v7547 = vrcp.pop %v7475
  %v7548 = vmul.f32 %v7475, %v7547
  %v7549 = vsub.f32 1.0, %v7548
  %v7550 = vmul.f32 %v7547, %v7549
  %v7551 = vadd.f32 %v7547, %v7550
  %vm7552 = vweird.f32 %v7475
  %vm7553 = vweird.f32 %v7547
  %vm7554 = vmor %vm7552, %vm7553
  %v7555 = vsel %vm7554, %v7547, %v7551
  %v7556 = vand.u32 2147483647, %v7475
  %vm7557 = vcmp.eq.f32.partialorder %v7556, 8.507059e+37
  %v7558 = vand.u32 %v7475, 2147483648
  %v7559 = vor.u32 1.1754944e-38, %v7558
  %v7560 = vsel %vm7557, %v7559, %v7555
  %v7561 = vmul.f32 1.0, %v7560
  %v7562 = vrcp.pop %v7476
  %v7563 = vmul.f32 %v7476, %v7562
  %v7564 = vsub.f32 1.0, %v7563
  %v7565 = vmul.f32 %v7562, %v7564
  %v7566 = vadd.f32 %v7562, %v7565
  %vm7567 = vweird.f32 %v7476
  %vm7568 = vweird.f32 %v7562
  %vm7569 = vmor %vm7567, %vm7568
  %v7570 = vsel %vm7569, %v7562, %v7566
  %v7571 = vand.u32 2147483647, %v7476
  %vm7572 = vcmp.eq.f32.partialorder %v7571, 8.507059e+37
  %v7573 = vand.u32 %v7476, 2147483648
  %v7574 = vor.u32 1.1754944e-38, %v7573
  %v7575 = vsel %vm7572, %v7574, %v7570
  %v7576 = vmul.f32 1.0, %v7575
  %v7577 = vrcp.pop %v7477
  %v7578 = vmul.f32 %v7477, %v7577
  %v7579 = vsub.f32 1.0, %v7578
  %v7580 = vmul.f32 %v7577, %v7579
  %v7581 = vadd.f32 %v7577, %v7580
  %vm7582 = vweird.f32 %v7477
  %vm7583 = vweird.f32 %v7577
  %vm7584 = vmor %vm7582, %vm7583
  %v7585 = vsel %vm7584, %v7577, %v7581
  %v7586 = vand.u32 2147483647, %v7477
  %vm7587 = vcmp.eq.f32.partialorder %v7586, 8.507059e+37
  %v7588 = vand.u32 %v7477, 2147483648
  %v7589 = vor.u32 1.1754944e-38, %v7588
  %v7590 = vsel %vm7587, %v7589, %v7585
  %v7591 = vmul.f32 1.0, %v7590
  %v7592 = vrcp.pop %v7478
  %v7593 = vmul.f32 %v7478, %v7592
  %v7594 = vsub.f32 1.0, %v7593
  %v7595 = vmul.f32 %v7592, %v7594
  %v7596 = vadd.f32 %v7592, %v7595
  %vm7597 = vweird.f32 %v7478
  %vm7598 = vweird.f32 %v7592
  %vm7599 = vmor %vm7597, %vm7598
  %v7600 = vsel %vm7599, %v7592, %v7596
  %v7601 = vand.u32 2147483647, %v7478
  %vm7602 = vcmp.eq.f32.partialorder %v7601, 8.507059e+37
  %v7603 = vand.u32 %v7478, 2147483648
  %v7604 = vor.u32 1.1754944e-38, %v7603
  %v7605 = vsel %vm7602, %v7604, %v7600
  %v7606 = vmul.f32 1.0, %v7605
  %v7607 = vrcp.pop %v7479
  %v7608 = vmul.f32 %v7479, %v7607
  %v7609 = vsub.f32 1.0, %v7608
  %v7610 = vmul.f32 %v7607, %v7609
  %v7611 = vadd.f32 %v7607, %v7610
  %vm7612 = vweird.f32 %v7479
  %vm7613 = vweird.f32 %v7607
  %vm7614 = vmor %vm7612, %vm7613
  %v7615 = vsel %vm7614, %v7607, %v7611
  %v7616 = vand.u32 2147483647, %v7479
  %vm7617 = vcmp.eq.f32.partialorder %v7616, 8.507059e+37
  %v7618 = vand.u32 %v7479, 2147483648
  %v7619 = vor.u32 1.1754944e-38, %v7618
  %v7620 = vsel %vm7617, %v7619, %v7615
  %v7621 = vmul.f32 1.0, %v7620
  %v7622 = vrcp.pop %v7480
  %v7623 = vmul.f32 %v7480, %v7622
  %v7624 = vsub.f32 1.0, %v7623
  %v7625 = vmul.f32 %v7622, %v7624
  %v7626 = vadd.f32 %v7622, %v7625
  %vm7627 = vweird.f32 %v7480
  %vm7628 = vweird.f32 %v7622
  %vm7629 = vmor %vm7627, %vm7628
  %v7630 = vsel %vm7629, %v7622, %v7626
  %v7631 = vand.u32 2147483647, %v7480
  %vm7632 = vcmp.eq.f32.partialorder %v7631, 8.507059e+37
  %v7633 = vand.u32 %v7480, 2147483648
  %v7634 = vor.u32 1.1754944e-38, %v7633
  %v7635 = vsel %vm7632, %v7634, %v7630
  %v7636 = vmul.f32 1.0, %v7635
  %v7637 = vrcp.pop %v7481
  %v7638 = vmul.f32 %v7481, %v7637
  %v7639 = vsub.f32 1.0, %v7638
  %v7640 = vmul.f32 %v7637, %v7639
  %v7641 = vadd.f32 %v7637, %v7640
  %vm7642 = vweird.f32 %v7481
  %vm7643 = vweird.f32 %v7637
  %vm7644 = vmor %vm7642, %vm7643
  %v7645 = vsel %vm7644, %v7637, %v7641
  %v7646 = vand.u32 2147483647, %v7481
  %vm7647 = vcmp.eq.f32.partialorder %v7646, 8.507059e+37
  %v7648 = vand.u32 %v7481, 2147483648
  %v7649 = vor.u32 1.1754944e-38, %v7648
  %v7650 = vsel %vm7647, %v7649, %v7645
  %v7651 = vmul.f32 1.0, %v7650
  %v7652 = vrcp.pop %v7482
  %v7653 = vmul.f32 %v7482, %v7652
  %v7654 = vsub.f32 1.0, %v7653
  %v7655 = vmul.f32 %v7652, %v7654
  %v7656 = vadd.f32 %v7652, %v7655
  %vm7657 = vweird.f32 %v7482
  %vm7658 = vweird.f32 %v7652
  %vm7659 = vmor %vm7657, %vm7658
  %v7660 = vsel %vm7659, %v7652, %v7656
  %v7661 = vand.u32 2147483647, %v7482
  %vm7662 = vcmp.eq.f32.partialorder %v7661, 8.507059e+37
  %v7663 = vand.u32 %v7482, 2147483648
  %v7664 = vor.u32 1.1754944e-38, %v7663
  %v7665 = vsel %vm7662, %v7664, %v7660
  %v7666 = vmul.f32 1.0, %v7665
  %v7667 = vrcp.pop %v7483
  %v7668 = vmul.f32 %v7483, %v7667
  %v7669 = vsub.f32 1.0, %v7668
  %v7670 = vmul.f32 %v7667, %v7669
  %v7671 = vadd.f32 %v7667, %v7670
  %vm7672 = vweird.f32 %v7483
  %vm7673 = vweird.f32 %v7667
  %vm7674 = vmor %vm7672, %vm7673
  %v7675 = vsel %vm7674, %v7667, %v7671
  %v7676 = vand.u32 2147483647, %v7483
  %vm7677 = vcmp.eq.f32.partialorder %v7676, 8.507059e+37
  %v7678 = vand.u32 %v7483, 2147483648
  %v7679 = vor.u32 1.1754944e-38, %v7678
  %v7680 = vsel %vm7677, %v7679, %v7675
  %v7681 = vmul.f32 1.0, %v7680
  %v7682 = vrcp.pop %v7484
  %v7683 = vmul.f32 %v7484, %v7682
  %v7684 = vsub.f32 1.0, %v7683
  %v7685 = vmul.f32 %v7682, %v7684
  %v7686 = vadd.f32 %v7682, %v7685
  %vm7687 = vweird.f32 %v7484
  %vm7688 = vweird.f32 %v7682
  %vm7689 = vmor %vm7687, %vm7688
  %v7690 = vsel %vm7689, %v7682, %v7686
  %v7691 = vand.u32 2147483647, %v7484
  %vm7692 = vcmp.eq.f32.partialorder %v7691, 8.507059e+37
  %v7693 = vand.u32 %v7484, 2147483648
  %v7694 = vor.u32 1.1754944e-38, %v7693
  %v7695 = vsel %vm7692, %v7694, %v7690
  %v7696 = vmul.f32 1.0, %v7695
  %v7697 = vrcp.pop %v7485
  %v7698 = vmul.f32 %v7485, %v7697
  %v7699 = vsub.f32 1.0, %v7698
  %v7700 = vmul.f32 %v7697, %v7699
  %v7701 = vadd.f32 %v7697, %v7700
  %vm7702 = vweird.f32 %v7485
  %vm7703 = vweird.f32 %v7697
  %vm7704 = vmor %vm7702, %vm7703
  %v7705 = vsel %vm7704, %v7697, %v7701
  %v7706 = vand.u32 2147483647, %v7485
  %vm7707 = vcmp.eq.f32.partialorder %v7706, 8.507059e+37
  %v7708 = vand.u32 %v7485, 2147483648
  %v7709 = vor.u32 1.1754944e-38, %v7708
  %v7710 = vsel %vm7707, %v7709, %v7705
  %v7711 = vmul.f32 1.0, %v7710
  %v7712 = vrcp.pop %v7486
  %v7713 = vmul.f32 %v7486, %v7712
  %v7714 = vsub.f32 1.0, %v7713
  %v7715 = vmul.f32 %v7712, %v7714
  %v7716 = vadd.f32 %v7712, %v7715
  %vm7717 = vweird.f32 %v7486
  %vm7718 = vweird.f32 %v7712
  %vm7719 = vmor %vm7717, %vm7718
  %v7720 = vsel %vm7719, %v7712, %v7716
  %v7721 = vand.u32 2147483647, %v7486
  %vm7722 = vcmp.eq.f32.partialorder %v7721, 8.507059e+37
  %v7723 = vand.u32 %v7486, 2147483648
  %v7724 = vor.u32 1.1754944e-38, %v7723
  %v7725 = vsel %vm7722, %v7724, %v7720
  %v7726 = vmul.f32 1.0, %v7725
  %v7727 = vmul.f32 %v7117, %v6284
  %v7728 = vmul.f32 %v7132, %v6285
  %v7729 = vmul.f32 %v7147, %v6286
  %v7730 = vmul.f32 %v7162, %v6287
  %v7731 = vmul.f32 %v7177, %v6288
  %v7732 = vmul.f32 %v7192, %v6289
  %v7733 = vmul.f32 %v7207, %v6290
  %v7734 = vmul.f32 %v7222, %v6291
  %v7735 = vmul.f32 %v7237, %v6292
  %v7736 = vmul.f32 %v7252, %v6293
  %v7737 = vmul.f32 %v7267, %v6294
  %v7738 = vmul.f32 %v7282, %v6295
  %v7739 = vmul.f32 %v7297, %v6296
  %v7740 = vmul.f32 %v7312, %v6297
  %v7741 = vmul.f32 %v7327, %v6298
  %v7742 = vmul.f32 %v7342, %v6299
  %v7743 = vmul.f32 %v6765, %v7375
  %v7744 = vmul.f32 %v6780, %v7376
  %v7745 = vmul.f32 %v6795, %v7377
  %v7746 = vmul.f32 %v6810, %v7378
  %v7747 = vmul.f32 %v6825, %v7379
  %v7748 = vmul.f32 %v6840, %v7380
  %v7749 = vmul.f32 %v6855, %v7381
  %v7750 = vmul.f32 %v6870, %v7382
  %v7751 = vmul.f32 %v6885, %v7383
  %v7752 = vmul.f32 %v6900, %v7384
  %v7753 = vmul.f32 %v6915, %v7385
  %v7754 = vmul.f32 %v6930, %v7386
  %v7755 = vmul.f32 %v6945, %v7387
  %v7756 = vmul.f32 %v6960, %v7388
  %v7757 = vmul.f32 %v6975, %v7389
  %v7758 = vmul.f32 %v6990, %v7390
  %v7759 = vadd.f32 %v7727, %v7743
  %v7760 = vadd.f32 %v7728, %v7744
  %v7761 = vadd.f32 %v7729, %v7745
  %v7762 = vadd.f32 %v7730, %v7746
  %v7763 = vadd.f32 %v7731, %v7747
  %v7764 = vadd.f32 %v7732, %v7748
  %v7765 = vadd.f32 %v7733, %v7749
  %v7766 = vadd.f32 %v7734, %v7750
  %v7767 = vadd.f32 %v7735, %v7751
  %v7768 = vadd.f32 %v7736, %v7752
  %v7769 = vadd.f32 %v7737, %v7753
  %v7770 = vadd.f32 %v7738, %v7754
  %v7771 = vadd.f32 %v7739, %v7755
  %v7772 = vadd.f32 %v7740, %v7756
  %v7773 = vadd.f32 %v7741, %v7757
  %v7774 = vadd.f32 %v7742, %v7758
  %v7775 = vtanh.pop %v7759
  %v7776 = vtanh.pop %v7760
  %v7777 = vtanh.pop %v7761
  %v7778 = vtanh.pop %v7762
  %v7779 = vtanh.pop %v7763
  %v7780 = vtanh.pop %v7764
  %v7781 = vtanh.pop %v7765
  %v7782 = vtanh.pop %v7766
  %v7783 = vtanh.pop %v7767
  %v7784 = vtanh.pop %v7768
  %v7785 = vtanh.pop %v7769
  %v7786 = vtanh.pop %v7770
  %v7787 = vtanh.pop %v7771
  %v7788 = vtanh.pop %v7772
  %v7789 = vtanh.pop %v7773
  %v7790 = vtanh.pop %v7774
  %v7791 = vmul.f32 %v7501, %v7775
  %v7792 = vmul.f32 %v7516, %v7776
  %v7793 = vmul.f32 %v7531, %v7777
  %v7794 = vmul.f32 %v7546, %v7778
  %v7795 = vmul.f32 %v7561, %v7779
  %v7796 = vmul.f32 %v7576, %v7780
  %v7797 = vmul.f32 %v7591, %v7781
  %v7798 = vmul.f32 %v7606, %v7782
  %v7799 = vmul.f32 %v7621, %v7783
  %v7800 = vmul.f32 %v7636, %v7784
  %v7801 = vmul.f32 %v7651, %v7785
  %v7802 = vmul.f32 %v7666, %v7786
  %v7803 = vmul.f32 %v7681, %v7787
  %v7804 = vmul.f32 %v7696, %v7788
  %v7805 = vmul.f32 %v7711, %v7789
  %v7806 = vmul.f32 %v7726, %v7790
  %7807 = vst [vmem:[%s4 + $0x4] sm:$0x1] %v7791
  %7808 = vst [vmem:[%s4 + $0xc] sm:$0x1] %v7792
  %7809 = vst [vmem:[%s4 + $0x14] sm:$0x1] %v7793
  %7810 = vst [vmem:[%s4 + $0x1c] sm:$0x1] %v7794
  %7811 = vst [vmem:[%s4 + $0x24] sm:$0x1] %v7795
  %7812 = vst [vmem:[%s4 + $0x2c] sm:$0x1] %v7796
  %7813 = vst [vmem:[%s4 + $0x34] sm:$0x1] %v7797
  %7814 = vst [vmem:[%s4 + $0x3c] sm:$0x1] %v7798
  %7815 = vst [vmem:[%s4 + $0x44] sm:$0x1] %v7799
  %7816 = vst [vmem:[%s4 + $0x4c] sm:$0x1] %v7800
  %7817 = vst [vmem:[%s4 + $0x54] sm:$0x1] %v7801
  %7818 = vst [vmem:[%s4 + $0x5c] sm:$0x1] %v7802
  %7819 = vst [vmem:[%s4 + $0x64] sm:$0x1] %v7803
  %7820 = vst [vmem:[%s4 + $0x6c] sm:$0x1] %v7804
  %7821 = vst [vmem:[%s4 + $0x74] sm:$0x1] %v7805
  %7822 = vst [vmem:[%s4 + $0x7c] sm:$0x1] %v7806
  %s7823 = scalar_lea.vmem [#allocation2], 5
  %v7824 = vld [vmem:[%s7823] ss:$8 sm:$0xf]
  %s7825 = scalar_lea.vmem [#allocation2], 37
  %v7826 = vld [vmem:[%s7825] ss:$8 sm:$0xf]
  %s7827 = scalar_lea.vmem [#allocation2], 69
  %v7828 = vld [vmem:[%s7827] ss:$8 sm:$0xf]
  %s7829 = scalar_lea.vmem [#allocation2], 101
  %v7830 = vld [vmem:[%s7829] ss:$8 sm:$0xf]
  %s7831 = scalar_lea.vmem [#allocation2], 133
  %v7832 = vld [vmem:[%s7831] ss:$8 sm:$0xf]
  %s7833 = scalar_lea.vmem [#allocation2], 165
  %v7834 = vld [vmem:[%s7833] ss:$8 sm:$0xf]
  %s7835 = scalar_lea.vmem [#allocation2], 197
  %v7836 = vld [vmem:[%s7835] ss:$8 sm:$0xf]
  %s7837 = scalar_lea.vmem [#allocation2], 229
  %v7838 = vld [vmem:[%s7837] ss:$8 sm:$0xf]
  %s7839 = scalar_lea.vmem [#allocation2], 261
  %v7840 = vld [vmem:[%s7839] ss:$8 sm:$0xf]
  %s7841 = scalar_lea.vmem [#allocation2], 293
  %v7842 = vld [vmem:[%s7841] ss:$8 sm:$0xf]
  %s7843 = scalar_lea.vmem [#allocation2], 325
  %v7844 = vld [vmem:[%s7843] ss:$8 sm:$0xf]
  %s7845 = scalar_lea.vmem [#allocation2], 357
  %v7846 = vld [vmem:[%s7845] ss:$8 sm:$0xf]
  %s7847 = scalar_lea.vmem [#allocation2], 389
  %v7848 = vld [vmem:[%s7847] ss:$8 sm:$0xf]
  %s7849 = scalar_lea.vmem [#allocation2], 421
  %v7850 = vld [vmem:[%s7849] ss:$8 sm:$0xf]
  %s7851 = scalar_lea.vmem [#allocation2], 453
  %v7852 = vld [vmem:[%s7851] ss:$8 sm:$0xf]
  %s7853 = scalar_lea.vmem [#allocation2], 485
  %v7854 = vld [vmem:[%s7853] ss:$8 sm:$0xf]
  %v7855 = vld [vmem:[%s2] sm:$0xff]
  %v7856 = vld [vmem:[%s2 + $0x8] sm:$0xff]
  %v7857 = vld [vmem:[%s2 + $0x10] sm:$0xff]
  %v7858 = vld [vmem:[%s2 + $0x18] sm:$0xff]
  %v7859 = vld [vmem:[%s2 + $0x20] sm:$0xff]
  %v7860 = vld [vmem:[%s2 + $0x28] sm:$0xff]
  %v7861 = vld [vmem:[%s2 + $0x30] sm:$0xff]
  %v7862 = vld [vmem:[%s2 + $0x38] sm:$0xff]
  %v7863 = vld [vmem:[%s2 + $0x40] sm:$0xff]
  %v7864 = vld [vmem:[%s2 + $0x48] sm:$0xff]
  %v7865 = vld [vmem:[%s2 + $0x50] sm:$0xff]
  %v7866 = vld [vmem:[%s2 + $0x58] sm:$0xff]
  %v7867 = vld [vmem:[%s2 + $0x60] sm:$0xff]
  %v7868 = vld [vmem:[%s2 + $0x68] sm:$0xff]
  %v7869 = vld [vmem:[%s2 + $0x70] sm:$0xff]
  %v7870 = vld [vmem:[%s2 + $0x78] sm:$0xff]
  %v7871 = vld [vmem:[%s2 + $0x80] sm:$0xff]
  %v7872 = vld [vmem:[%s2 + $0x88] sm:$0xff]
  %v7873 = vld [vmem:[%s2 + $0x90] sm:$0xff]
  %v7874 = vld [vmem:[%s2 + $0x98] sm:$0xff]
  %v7875 = vld [vmem:[%s2 + $0xa0] sm:$0xff]
  %v7876 = vld [vmem:[%s2 + $0xa8] sm:$0xff]
  %v7877 = vld [vmem:[%s2 + $0xb0] sm:$0xff]
  %v7878 = vld [vmem:[%s2 + $0xb8] sm:$0xff]
  %v7879 = vld [vmem:[%s2 + $0xc0] sm:$0xff]
  %v7880 = vld [vmem:[%s2 + $0xc8] sm:$0xff]
  %v7881 = vld [vmem:[%s2 + $0xd0] sm:$0xff]
  %v7882 = vld [vmem:[%s2 + $0xd8] sm:$0xff]
  %v7883 = vld [vmem:[%s2 + $0xe0] sm:$0xff]
  %v7884 = vld [vmem:[%s2 + $0xe8] sm:$0xff]
  %v7885 = vld [vmem:[%s2 + $0xf0] sm:$0xff]
  %v7886 = vld [vmem:[%s2 + $0xf8] sm:$0xff]
  %v7887 = vld [vmem:[%s2 + $0x100] sm:$0xff]
  %v7888 = vld [vmem:[%s2 + $0x108] sm:$0xff]
  %v7889 = vld [vmem:[%s2 + $0x110] sm:$0xff]
  %v7890 = vld [vmem:[%s2 + $0x118] sm:$0xff]
  %v7891 = vld [vmem:[%s2 + $0x120] sm:$0xff]
  %v7892 = vld [vmem:[%s2 + $0x128] sm:$0xff]
  %v7893 = vld [vmem:[%s2 + $0x130] sm:$0xff]
  %v7894 = vld [vmem:[%s2 + $0x138] sm:$0xff]
  %v7895 = vld [vmem:[%s2 + $0x140] sm:$0xff]
  %v7896 = vld [vmem:[%s2 + $0x148] sm:$0xff]
  %v7897 = vld [vmem:[%s2 + $0x150] sm:$0xff]
  %v7898 = vld [vmem:[%s2 + $0x158] sm:$0xff]
  %v7899 = vld [vmem:[%s2 + $0x160] sm:$0xff]
  %v7900 = vld [vmem:[%s2 + $0x168] sm:$0xff]
  %v7901 = vld [vmem:[%s2 + $0x170] sm:$0xff]
  %v7902 = vld [vmem:[%s2 + $0x178] sm:$0xff]
  %v7903 = vld [vmem:[%s2 + $0x180] sm:$0xff]
  %v7904 = vld [vmem:[%s2 + $0x188] sm:$0xff]
  %v7905 = vld [vmem:[%s2 + $0x190] sm:$0xff]
  %v7906 = vld [vmem:[%s2 + $0x198] sm:$0xff]
  %v7907 = vld [vmem:[%s2 + $0x1a0] sm:$0xff]
  %v7908 = vld [vmem:[%s2 + $0x1a8] sm:$0xff]
  %v7909 = vld [vmem:[%s2 + $0x1b0] sm:$0xff]
  %v7910 = vld [vmem:[%s2 + $0x1b8] sm:$0xff]
  %v7911 = vld [vmem:[%s2 + $0x1c0] sm:$0xff]
  %v7912 = vld [vmem:[%s2 + $0x1c8] sm:$0xff]
  %v7913 = vld [vmem:[%s2 + $0x1d0] sm:$0xff]
  %v7914 = vld [vmem:[%s2 + $0x1d8] sm:$0xff]
  %v7915 = vld [vmem:[%s2 + $0x1e0] sm:$0xff]
  %v7916 = vld [vmem:[%s2 + $0x1e8] sm:$0xff]
  %v7917 = vld [vmem:[%s2 + $0x1f0] sm:$0xff]
  %v7918 = vld [vmem:[%s2 + $0x1f8] sm:$0xff]
  %7935 = vst [vmem:[#allocation1] ss:$9 sm:$0xff] %v7791
  %s7936 = scalar_lea.vmem [#allocation1], 1
  %7937 = vst [vmem:[%s7936] ss:$9 sm:$0xff] %v7792
  %s7938 = scalar_lea.vmem [#allocation1], 2
  %7939 = vst [vmem:[%s7938] ss:$9 sm:$0xff] %v7793
  %s7940 = scalar_lea.vmem [#allocation1], 3
  %7941 = vst [vmem:[%s7940] ss:$9 sm:$0xff] %v7794
  %s7942 = scalar_lea.vmem [#allocation1], 4
  %7943 = vst [vmem:[%s7942] ss:$9 sm:$0xff] %v7795
  %s7944 = scalar_lea.vmem [#allocation1], 5
  %7945 = vst [vmem:[%s7944] ss:$9 sm:$0xff] %v7796
  %s7946 = scalar_lea.vmem [#allocation1], 6
  %7947 = vst [vmem:[%s7946] ss:$9 sm:$0xff] %v7797
  %s7948 = scalar_lea.vmem [#allocation1], 7
  %7949 = vst [vmem:[%s7948] ss:$9 sm:$0xff] %v7798
  %v7950 = vld [vmem:[#allocation1] sm:$0xff]
  %7951 = vst [vmem:[#allocation1] ss:$9 sm:$0xff] %v7799
  %7952 = vst [vmem:[%s7936] ss:$9 sm:$0xff] %v7800
  %7953 = vst [vmem:[%s7938] ss:$9 sm:$0xff] %v7801
  %7954 = vst [vmem:[%s7940] ss:$9 sm:$0xff] %v7802
  %7955 = vst [vmem:[%s7942] ss:$9 sm:$0xff] %v7803
  %7956 = vst [vmem:[%s7944] ss:$9 sm:$0xff] %v7804
  %7957 = vst [vmem:[%s7946] ss:$9 sm:$0xff] %v7805
  %7958 = vst [vmem:[%s7948] ss:$9 sm:$0xff] %v7806
  %v7959 = vld [vmem:[#allocation1] sm:$0xff]
  %7962 = vmatpush.msra.mxu0 %v7915
  %7963 = vmatpush.msra.mxu0 %v7911
  %7964 = vmatpush.msra.mxu0 %v7907
  %7965 = vmatpush.msra.mxu0 %v7903
  %7966 = vmatpush.msra.mxu0 %v7899
  %7967 = vmatpush.msra.mxu0 %v7895
  %7968 = vmatpush.msra.mxu0 %v7891
  %7969 = vmatpush.msra.mxu0 %v7887
  %7970 = vmatpush.msra.mxu0 %v7883
  %7971 = vmatpush.msra.mxu0 %v7879
  %7972 = vmatpush.msra.mxu0 %v7875
  %7973 = vmatpush.msra.mxu0 %v7871
  %7974 = vmatpush.msra.mxu0 %v7867
  %7975 = vmatpush.msra.mxu0 %v7863
  %7976 = vmatpush.msra.mxu0 %v7859
  %7977 = vmatpush.msra.mxu0 %v7855
  %7978 = vmatmul.f32.gmra.mxu0 %v7950
  %v7979 = vpop.f32.mrf.mxu0
  %v7980 = vadd.f32 0.0, %v7979
  %7981 = vmatmul.f32.gmra.mxu0 %v7959
  %v7982 = vpop.f32.mrf.mxu0
  %v7983 = vadd.f32 0.0, %v7982
  %7984 = vdwg.mxu0
  %7985 = vmatpush.msra.mxu0 %v7916
  %7986 = vmatpush.msra.mxu0 %v7912
  %7987 = vmatpush.msra.mxu0 %v7908
  %7988 = vmatpush.msra.mxu0 %v7904
  %7989 = vmatpush.msra.mxu0 %v7900
  %7990 = vmatpush.msra.mxu0 %v7896
  %7991 = vmatpush.msra.mxu0 %v7892
  %7992 = vmatpush.msra.mxu0 %v7888
  %7993 = vmatpush.msra.mxu0 %v7884
  %7994 = vmatpush.msra.mxu0 %v7880
  %7995 = vmatpush.msra.mxu0 %v7876
  %7996 = vmatpush.msra.mxu0 %v7872
  %7997 = vmatpush.msra.mxu0 %v7868
  %7998 = vmatpush.msra.mxu0 %v7864
  %7999 = vmatpush.msra.mxu0 %v7860
  %8000 = vmatpush.msra.mxu0 %v7856
  %8001 = vmatmul.f32.gmra.mxu0 %v7950
  %v8002 = vpop.f32.mrf.mxu0
  %v8003 = vadd.f32 0.0, %v8002
  %8004 = vmatmul.f32.gmra.mxu0 %v7959
  %v8005 = vpop.f32.mrf.mxu0
  %v8006 = vadd.f32 0.0, %v8005
  %8007 = vdwg.mxu0
  %8008 = vmatpush.msra.mxu0 %v7917
  %8009 = vmatpush.msra.mxu0 %v7913
  %8010 = vmatpush.msra.mxu0 %v7909
  %8011 = vmatpush.msra.mxu0 %v7905
  %8012 = vmatpush.msra.mxu0 %v7901
  %8013 = vmatpush.msra.mxu0 %v7897
  %8014 = vmatpush.msra.mxu0 %v7893
  %8015 = vmatpush.msra.mxu0 %v7889
  %8016 = vmatpush.msra.mxu0 %v7885
  %8017 = vmatpush.msra.mxu0 %v7881
  %8018 = vmatpush.msra.mxu0 %v7877
  %8019 = vmatpush.msra.mxu0 %v7873
  %8020 = vmatpush.msra.mxu0 %v7869
  %8021 = vmatpush.msra.mxu0 %v7865
  %8022 = vmatpush.msra.mxu0 %v7861
  %8023 = vmatpush.msra.mxu0 %v7857
  %8024 = vmatmul.f32.gmra.mxu0 %v7950
  %v8025 = vpop.f32.mrf.mxu0
  %v8026 = vadd.f32 0.0, %v8025
  %8027 = vmatmul.f32.gmra.mxu0 %v7959
  %v8028 = vpop.f32.mrf.mxu0
  %v8029 = vadd.f32 0.0, %v8028
  %8030 = vdwg.mxu0
  %8031 = vmatpush.msra.mxu0 %v7918
  %8032 = vmatpush.msra.mxu0 %v7914
  %8033 = vmatpush.msra.mxu0 %v7910
  %8034 = vmatpush.msra.mxu0 %v7906
  %8035 = vmatpush.msra.mxu0 %v7902
  %8036 = vmatpush.msra.mxu0 %v7898
  %8037 = vmatpush.msra.mxu0 %v7894
  %8038 = vmatpush.msra.mxu0 %v7890
  %8039 = vmatpush.msra.mxu0 %v7886
  %8040 = vmatpush.msra.mxu0 %v7882
  %8041 = vmatpush.msra.mxu0 %v7878
  %8042 = vmatpush.msra.mxu0 %v7874
  %8043 = vmatpush.msra.mxu0 %v7870
  %8044 = vmatpush.msra.mxu0 %v7866
  %8045 = vmatpush.msra.mxu0 %v7862
  %8046 = vmatpush.msra.mxu0 %v7858
  %8047 = vmatmul.f32.gmra.mxu0 %v7950
  %v8048 = vpop.f32.mrf.mxu0
  %v8049 = vadd.f32 0.0, %v8048
  %8050 = vmatmul.f32.gmra.mxu0 %v7959
  %v8051 = vpop.f32.mrf.mxu0
  %v8052 = vadd.f32 0.0, %v8051
  %8053 = vdwg.mxu0
  %v8062 = vrot.slane %v8003, 7
  %v8063 = vrot.slane %v8026, 6
  %v8064 = vrot.slane %v8049, 5
  %v8065 = vrot.slane %v8006, 7
  %v8066 = vrot.slane %v8029, 6
  %v8067 = vrot.slane %v8052, 5
  %v8068 = vsel %vm647, %v7980, %v8062
  %v8069 = vsel %vm649, %v8063, %v8064
  %v8070 = vsel %vm651, %v8068, %v8069
  %v8071 = vsel %vm653, %v7980, %v8062
  %v8072 = vsel %vm655, %v8063, %v8064
  %v8073 = vsel %vm657, %v8071, %v8072
  %v8074 = vrot.slane %v8073, 1
  %v8075 = vsel %vm649, %v7980, %v8062
  %v8076 = vsel %vm661, %v8063, %v8064
  %v8077 = vsel %vm663, %v8075, %v8076
  %v8078 = vrot.slane %v8077, 2
  %v8079 = vsel %vm655, %v7980, %v8062
  %v8080 = vsel %vm667, %v8063, %v8064
  %v8081 = vsel %vm669, %v8079, %v8080
  %v8082 = vrot.slane %v8081, 3
  %v8083 = vsel %vm661, %v7980, %v8062
  %v8084 = vsel %vm673, %v8063, %v8064
  %v8085 = vsel %vm675, %v8083, %v8084
  %v8086 = vrot.slane %v8085, 4
  %v8087 = vsel %vm667, %v7980, %v8062
  %v8088 = vsel %vm679, %v8064, %v8063
  %v8089 = vsel %vm681, %v8087, %v8088
  %v8090 = vrot.slane %v8089, 5
  %v8091 = vsel %vm673, %v7980, %v8062
  %v8092 = vsel %vm647, %v8063, %v8064
  %v8093 = vsel %vm686, %v8092, %v8091
  %v8094 = vrot.slane %v8093, 6
  %v8095 = vsel %vm679, %v8062, %v7980
  %v8096 = vsel %vm653, %v8063, %v8064
  %v8097 = vsel %vm691, %v8096, %v8095
  %v8098 = vrot.slane %v8097, 7
  %v8099 = vsel %vm647, %v7983, %v8065
  %v8100 = vsel %vm649, %v8066, %v8067
  %v8101 = vsel %vm651, %v8099, %v8100
  %v8102 = vsel %vm653, %v7983, %v8065
  %v8103 = vsel %vm655, %v8066, %v8067
  %v8104 = vsel %vm657, %v8102, %v8103
  %v8105 = vrot.slane %v8104, 1
  %v8106 = vsel %vm649, %v7983, %v8065
  %v8107 = vsel %vm661, %v8066, %v8067
  %v8108 = vsel %vm663, %v8106, %v8107
  %v8109 = vrot.slane %v8108, 2
  %v8110 = vsel %vm655, %v7983, %v8065
  %v8111 = vsel %vm667, %v8066, %v8067
  %v8112 = vsel %vm669, %v8110, %v8111
  %v8113 = vrot.slane %v8112, 3
  %v8114 = vsel %vm661, %v7983, %v8065
  %v8115 = vsel %vm673, %v8066, %v8067
  %v8116 = vsel %vm675, %v8114, %v8115
  %v8117 = vrot.slane %v8116, 4
  %v8118 = vsel %vm667, %v7983, %v8065
  %v8119 = vsel %vm679, %v8067, %v8066
  %v8120 = vsel %vm681, %v8118, %v8119
  %v8121 = vrot.slane %v8120, 5
  %v8122 = vsel %vm673, %v7983, %v8065
  %v8123 = vsel %vm647, %v8066, %v8067
  %v8124 = vsel %vm686, %v8123, %v8122
  %v8125 = vrot.slane %v8124, 6
  %v8126 = vsel %vm679, %v8065, %v7983
  %v8127 = vsel %vm653, %v8066, %v8067
  %v8128 = vsel %vm691, %v8127, %v8126
  %v8129 = vrot.slane %v8128, 7
  %v8146 = vadd.f32 %v7824, %v8070
  %v8147 = vadd.f32 %v7826, %v8074
  %v8148 = vadd.f32 %v7828, %v8078
  %v8149 = vadd.f32 %v7830, %v8082
  %v8150 = vadd.f32 %v7832, %v8086
  %v8151 = vadd.f32 %v7834, %v8090
  %v8152 = vadd.f32 %v7836, %v8094
  %v8153 = vadd.f32 %v7838, %v8098
  %v8154 = vadd.f32 %v7840, %v8101
  %v8155 = vadd.f32 %v7842, %v8105
  %v8156 = vadd.f32 %v7844, %v8109
  %v8157 = vadd.f32 %v7846, %v8113
  %v8158 = vadd.f32 %v7848, %v8117
  %v8159 = vadd.f32 %v7850, %v8121
  %v8160 = vadd.f32 %v7852, %v8125
  %v8161 = vadd.f32 %v7854, %v8129
  %v8162 = vxor.u32 %v8146, 2147483648
  %v8163 = vxor.u32 %v8147, 2147483648
  %v8164 = vxor.u32 %v8148, 2147483648
  %v8165 = vxor.u32 %v8149, 2147483648
  %v8166 = vxor.u32 %v8150, 2147483648
  %v8167 = vxor.u32 %v8151, 2147483648
  %v8168 = vxor.u32 %v8152, 2147483648
  %v8169 = vxor.u32 %v8153, 2147483648
  %v8170 = vxor.u32 %v8154, 2147483648
  %v8171 = vxor.u32 %v8155, 2147483648
  %v8172 = vxor.u32 %v8156, 2147483648
  %v8173 = vxor.u32 %v8157, 2147483648
  %v8174 = vxor.u32 %v8158, 2147483648
  %v8175 = vxor.u32 %v8159, 2147483648
  %v8176 = vxor.u32 %v8160, 2147483648
  %v8177 = vxor.u32 %v8161, 2147483648
  %v8178 = vmul.f32 %v8162, 1.442695
  %v8179 = vpow.pop %v8178
  %v8180 = vmul.f32 %v8163, 1.442695
  %v8181 = vpow.pop %v8180
  %v8182 = vmul.f32 %v8164, 1.442695
  %v8183 = vpow.pop %v8182
  %v8184 = vmul.f32 %v8165, 1.442695
  %v8185 = vpow.pop %v8184
  %v8186 = vmul.f32 %v8166, 1.442695
  %v8187 = vpow.pop %v8186
  %v8188 = vmul.f32 %v8167, 1.442695
  %v8189 = vpow.pop %v8188
  %v8190 = vmul.f32 %v8168, 1.442695
  %v8191 = vpow.pop %v8190
  %v8192 = vmul.f32 %v8169, 1.442695
  %v8193 = vpow.pop %v8192
  %v8194 = vmul.f32 %v8170, 1.442695
  %v8195 = vpow.pop %v8194
  %v8196 = vmul.f32 %v8171, 1.442695
  %v8197 = vpow.pop %v8196
  %v8198 = vmul.f32 %v8172, 1.442695
  %v8199 = vpow.pop %v8198
  %v8200 = vmul.f32 %v8173, 1.442695
  %v8201 = vpow.pop %v8200
  %v8202 = vmul.f32 %v8174, 1.442695
  %v8203 = vpow.pop %v8202
  %v8204 = vmul.f32 %v8175, 1.442695
  %v8205 = vpow.pop %v8204
  %v8206 = vmul.f32 %v8176, 1.442695
  %v8207 = vpow.pop %v8206
  %v8208 = vmul.f32 %v8177, 1.442695
  %v8209 = vpow.pop %v8208
  %v8210 = vadd.f32 %v8179, 1.0
  %v8211 = vadd.f32 %v8181, 1.0
  %v8212 = vadd.f32 %v8183, 1.0
  %v8213 = vadd.f32 %v8185, 1.0
  %v8214 = vadd.f32 %v8187, 1.0
  %v8215 = vadd.f32 %v8189, 1.0
  %v8216 = vadd.f32 %v8191, 1.0
  %v8217 = vadd.f32 %v8193, 1.0
  %v8218 = vadd.f32 %v8195, 1.0
  %v8219 = vadd.f32 %v8197, 1.0
  %v8220 = vadd.f32 %v8199, 1.0
  %v8221 = vadd.f32 %v8201, 1.0
  %v8222 = vadd.f32 %v8203, 1.0
  %v8223 = vadd.f32 %v8205, 1.0
  %v8224 = vadd.f32 %v8207, 1.0
  %v8225 = vadd.f32 %v8209, 1.0
  %v8226 = vrcp.pop %v8210
  %v8227 = vmul.f32 %v8210, %v8226
  %v8228 = vsub.f32 1.0, %v8227
  %v8229 = vmul.f32 %v8226, %v8228
  %v8230 = vadd.f32 %v8226, %v8229
  %vm8231 = vweird.f32 %v8210
  %vm8232 = vweird.f32 %v8226
  %vm8233 = vmor %vm8231, %vm8232
  %v8234 = vsel %vm8233, %v8226, %v8230
  %v8235 = vand.u32 2147483647, %v8210
  %vm8236 = vcmp.eq.f32.partialorder %v8235, 8.507059e+37
  %v8237 = vand.u32 %v8210, 2147483648
  %v8238 = vor.u32 1.1754944e-38, %v8237
  %v8239 = vsel %vm8236, %v8238, %v8234
  %v8240 = vmul.f32 1.0, %v8239
  %v8241 = vrcp.pop %v8211
  %v8242 = vmul.f32 %v8211, %v8241
  %v8243 = vsub.f32 1.0, %v8242
  %v8244 = vmul.f32 %v8241, %v8243
  %v8245 = vadd.f32 %v8241, %v8244
  %vm8246 = vweird.f32 %v8211
  %vm8247 = vweird.f32 %v8241
  %vm8248 = vmor %vm8246, %vm8247
  %v8249 = vsel %vm8248, %v8241, %v8245
  %v8250 = vand.u32 2147483647, %v8211
  %vm8251 = vcmp.eq.f32.partialorder %v8250, 8.507059e+37
  %v8252 = vand.u32 %v8211, 2147483648
  %v8253 = vor.u32 1.1754944e-38, %v8252
  %v8254 = vsel %vm8251, %v8253, %v8249
  %v8255 = vmul.f32 1.0, %v8254
  %v8256 = vrcp.pop %v8212
  %v8257 = vmul.f32 %v8212, %v8256
  %v8258 = vsub.f32 1.0, %v8257
  %v8259 = vmul.f32 %v8256, %v8258
  %v8260 = vadd.f32 %v8256, %v8259
  %vm8261 = vweird.f32 %v8212
  %vm8262 = vweird.f32 %v8256
  %vm8263 = vmor %vm8261, %vm8262
  %v8264 = vsel %vm8263, %v8256, %v8260
  %v8265 = vand.u32 2147483647, %v8212
  %vm8266 = vcmp.eq.f32.partialorder %v8265, 8.507059e+37
  %v8267 = vand.u32 %v8212, 2147483648
  %v8268 = vor.u32 1.1754944e-38, %v8267
  %v8269 = vsel %vm8266, %v8268, %v8264
  %v8270 = vmul.f32 1.0, %v8269
  %v8271 = vrcp.pop %v8213
  %v8272 = vmul.f32 %v8213, %v8271
  %v8273 = vsub.f32 1.0, %v8272
  %v8274 = vmul.f32 %v8271, %v8273
  %v8275 = vadd.f32 %v8271, %v8274
  %vm8276 = vweird.f32 %v8213
  %vm8277 = vweird.f32 %v8271
  %vm8278 = vmor %vm8276, %vm8277
  %v8279 = vsel %vm8278, %v8271, %v8275
  %v8280 = vand.u32 2147483647, %v8213
  %vm8281 = vcmp.eq.f32.partialorder %v8280, 8.507059e+37
  %v8282 = vand.u32 %v8213, 2147483648
  %v8283 = vor.u32 1.1754944e-38, %v8282
  %v8284 = vsel %vm8281, %v8283, %v8279
  %v8285 = vmul.f32 1.0, %v8284
  %v8286 = vrcp.pop %v8214
  %v8287 = vmul.f32 %v8214, %v8286
  %v8288 = vsub.f32 1.0, %v8287
  %v8289 = vmul.f32 %v8286, %v8288
  %v8290 = vadd.f32 %v8286, %v8289
  %vm8291 = vweird.f32 %v8214
  %vm8292 = vweird.f32 %v8286
  %vm8293 = vmor %vm8291, %vm8292
  %v8294 = vsel %vm8293, %v8286, %v8290
  %v8295 = vand.u32 2147483647, %v8214
  %vm8296 = vcmp.eq.f32.partialorder %v8295, 8.507059e+37
  %v8297 = vand.u32 %v8214, 2147483648
  %v8298 = vor.u32 1.1754944e-38, %v8297
  %v8299 = vsel %vm8296, %v8298, %v8294
  %v8300 = vmul.f32 1.0, %v8299
  %v8301 = vrcp.pop %v8215
  %v8302 = vmul.f32 %v8215, %v8301
  %v8303 = vsub.f32 1.0, %v8302
  %v8304 = vmul.f32 %v8301, %v8303
  %v8305 = vadd.f32 %v8301, %v8304
  %vm8306 = vweird.f32 %v8215
  %vm8307 = vweird.f32 %v8301
  %vm8308 = vmor %vm8306, %vm8307
  %v8309 = vsel %vm8308, %v8301, %v8305
  %v8310 = vand.u32 2147483647, %v8215
  %vm8311 = vcmp.eq.f32.partialorder %v8310, 8.507059e+37
  %v8312 = vand.u32 %v8215, 2147483648
  %v8313 = vor.u32 1.1754944e-38, %v8312
  %v8314 = vsel %vm8311, %v8313, %v8309
  %v8315 = vmul.f32 1.0, %v8314
  %v8316 = vrcp.pop %v8216
  %v8317 = vmul.f32 %v8216, %v8316
  %v8318 = vsub.f32 1.0, %v8317
  %v8319 = vmul.f32 %v8316, %v8318
  %v8320 = vadd.f32 %v8316, %v8319
  %vm8321 = vweird.f32 %v8216
  %vm8322 = vweird.f32 %v8316
  %vm8323 = vmor %vm8321, %vm8322
  %v8324 = vsel %vm8323, %v8316, %v8320
  %v8325 = vand.u32 2147483647, %v8216
  %vm8326 = vcmp.eq.f32.partialorder %v8325, 8.507059e+37
  %v8327 = vand.u32 %v8216, 2147483648
  %v8328 = vor.u32 1.1754944e-38, %v8327
  %v8329 = vsel %vm8326, %v8328, %v8324
  %v8330 = vmul.f32 1.0, %v8329
  %v8331 = vrcp.pop %v8217
  %v8332 = vmul.f32 %v8217, %v8331
  %v8333 = vsub.f32 1.0, %v8332
  %v8334 = vmul.f32 %v8331, %v8333
  %v8335 = vadd.f32 %v8331, %v8334
  %vm8336 = vweird.f32 %v8217
  %vm8337 = vweird.f32 %v8331
  %vm8338 = vmor %vm8336, %vm8337
  %v8339 = vsel %vm8338, %v8331, %v8335
  %v8340 = vand.u32 2147483647, %v8217
  %vm8341 = vcmp.eq.f32.partialorder %v8340, 8.507059e+37
  %v8342 = vand.u32 %v8217, 2147483648
  %v8343 = vor.u32 1.1754944e-38, %v8342
  %v8344 = vsel %vm8341, %v8343, %v8339
  %v8345 = vmul.f32 1.0, %v8344
  %v8346 = vrcp.pop %v8218
  %v8347 = vmul.f32 %v8218, %v8346
  %v8348 = vsub.f32 1.0, %v8347
  %v8349 = vmul.f32 %v8346, %v8348
  %v8350 = vadd.f32 %v8346, %v8349
  %vm8351 = vweird.f32 %v8218
  %vm8352 = vweird.f32 %v8346
  %vm8353 = vmor %vm8351, %vm8352
  %v8354 = vsel %vm8353, %v8346, %v8350
  %v8355 = vand.u32 2147483647, %v8218
  %vm8356 = vcmp.eq.f32.partialorder %v8355, 8.507059e+37
  %v8357 = vand.u32 %v8218, 2147483648
  %v8358 = vor.u32 1.1754944e-38, %v8357
  %v8359 = vsel %vm8356, %v8358, %v8354
  %v8360 = vmul.f32 1.0, %v8359
  %v8361 = vrcp.pop %v8219
  %v8362 = vmul.f32 %v8219, %v8361
  %v8363 = vsub.f32 1.0, %v8362
  %v8364 = vmul.f32 %v8361, %v8363
  %v8365 = vadd.f32 %v8361, %v8364
  %vm8366 = vweird.f32 %v8219
  %vm8367 = vweird.f32 %v8361
  %vm8368 = vmor %vm8366, %vm8367
  %v8369 = vsel %vm8368, %v8361, %v8365
  %v8370 = vand.u32 2147483647, %v8219
  %vm8371 = vcmp.eq.f32.partialorder %v8370, 8.507059e+37
  %v8372 = vand.u32 %v8219, 2147483648
  %v8373 = vor.u32 1.1754944e-38, %v8372
  %v8374 = vsel %vm8371, %v8373, %v8369
  %v8375 = vmul.f32 1.0, %v8374
  %v8376 = vrcp.pop %v8220
  %v8377 = vmul.f32 %v8220, %v8376
  %v8378 = vsub.f32 1.0, %v8377
  %v8379 = vmul.f32 %v8376, %v8378
  %v8380 = vadd.f32 %v8376, %v8379
  %vm8381 = vweird.f32 %v8220
  %vm8382 = vweird.f32 %v8376
  %vm8383 = vmor %vm8381, %vm8382
  %v8384 = vsel %vm8383, %v8376, %v8380
  %v8385 = vand.u32 2147483647, %v8220
  %vm8386 = vcmp.eq.f32.partialorder %v8385, 8.507059e+37
  %v8387 = vand.u32 %v8220, 2147483648
  %v8388 = vor.u32 1.1754944e-38, %v8387
  %v8389 = vsel %vm8386, %v8388, %v8384
  %v8390 = vmul.f32 1.0, %v8389
  %v8391 = vrcp.pop %v8221
  %v8392 = vmul.f32 %v8221, %v8391
  %v8393 = vsub.f32 1.0, %v8392
  %v8394 = vmul.f32 %v8391, %v8393
  %v8395 = vadd.f32 %v8391, %v8394
  %vm8396 = vweird.f32 %v8221
  %vm8397 = vweird.f32 %v8391
  %vm8398 = vmor %vm8396, %vm8397
  %v8399 = vsel %vm8398, %v8391, %v8395
  %v8400 = vand.u32 2147483647, %v8221
  %vm8401 = vcmp.eq.f32.partialorder %v8400, 8.507059e+37
  %v8402 = vand.u32 %v8221, 2147483648
  %v8403 = vor.u32 1.1754944e-38, %v8402
  %v8404 = vsel %vm8401, %v8403, %v8399
  %v8405 = vmul.f32 1.0, %v8404
  %v8406 = vrcp.pop %v8222
  %v8407 = vmul.f32 %v8222, %v8406
  %v8408 = vsub.f32 1.0, %v8407
  %v8409 = vmul.f32 %v8406, %v8408
  %v8410 = vadd.f32 %v8406, %v8409
  %vm8411 = vweird.f32 %v8222
  %vm8412 = vweird.f32 %v8406
  %vm8413 = vmor %vm8411, %vm8412
  %v8414 = vsel %vm8413, %v8406, %v8410
  %v8415 = vand.u32 2147483647, %v8222
  %vm8416 = vcmp.eq.f32.partialorder %v8415, 8.507059e+37
  %v8417 = vand.u32 %v8222, 2147483648
  %v8418 = vor.u32 1.1754944e-38, %v8417
  %v8419 = vsel %vm8416, %v8418, %v8414
  %v8420 = vmul.f32 1.0, %v8419
  %v8421 = vrcp.pop %v8223
  %v8422 = vmul.f32 %v8223, %v8421
  %v8423 = vsub.f32 1.0, %v8422
  %v8424 = vmul.f32 %v8421, %v8423
  %v8425 = vadd.f32 %v8421, %v8424
  %vm8426 = vweird.f32 %v8223
  %vm8427 = vweird.f32 %v8421
  %vm8428 = vmor %vm8426, %vm8427
  %v8429 = vsel %vm8428, %v8421, %v8425
  %v8430 = vand.u32 2147483647, %v8223
  %vm8431 = vcmp.eq.f32.partialorder %v8430, 8.507059e+37
  %v8432 = vand.u32 %v8223, 2147483648
  %v8433 = vor.u32 1.1754944e-38, %v8432
  %v8434 = vsel %vm8431, %v8433, %v8429
  %v8435 = vmul.f32 1.0, %v8434
  %v8436 = vrcp.pop %v8224
  %v8437 = vmul.f32 %v8224, %v8436
  %v8438 = vsub.f32 1.0, %v8437
  %v8439 = vmul.f32 %v8436, %v8438
  %v8440 = vadd.f32 %v8436, %v8439
  %vm8441 = vweird.f32 %v8224
  %vm8442 = vweird.f32 %v8436
  %vm8443 = vmor %vm8441, %vm8442
  %v8444 = vsel %vm8443, %v8436, %v8440
  %v8445 = vand.u32 2147483647, %v8224
  %vm8446 = vcmp.eq.f32.partialorder %v8445, 8.507059e+37
  %v8447 = vand.u32 %v8224, 2147483648
  %v8448 = vor.u32 1.1754944e-38, %v8447
  %v8449 = vsel %vm8446, %v8448, %v8444
  %v8450 = vmul.f32 1.0, %v8449
  %v8451 = vrcp.pop %v8225
  %v8452 = vmul.f32 %v8225, %v8451
  %v8453 = vsub.f32 1.0, %v8452
  %v8454 = vmul.f32 %v8451, %v8453
  %v8455 = vadd.f32 %v8451, %v8454
  %vm8456 = vweird.f32 %v8225
  %vm8457 = vweird.f32 %v8451
  %vm8458 = vmor %vm8456, %vm8457
  %v8459 = vsel %vm8458, %v8451, %v8455
  %v8460 = vand.u32 2147483647, %v8225
  %vm8461 = vcmp.eq.f32.partialorder %v8460, 8.507059e+37
  %v8462 = vand.u32 %v8225, 2147483648
  %v8463 = vor.u32 1.1754944e-38, %v8462
  %v8464 = vsel %vm8461, %v8463, %v8459
  %v8465 = vmul.f32 1.0, %v8464
  %v8482 = vrot.slane %v8146, 1
  %v8483 = vrot.slane %v8147, 1
  %v8484 = vrot.slane %v8148, 1
  %v8485 = vrot.slane %v8149, 1
  %v8486 = vrot.slane %v8150, 1
  %v8487 = vrot.slane %v8151, 1
  %v8488 = vrot.slane %v8152, 1
  %v8489 = vrot.slane %v8153, 1
  %v8490 = vrot.slane %v8154, 1
  %v8491 = vrot.slane %v8155, 1
  %v8492 = vrot.slane %v8156, 1
  %v8493 = vrot.slane %v8157, 1
  %v8494 = vrot.slane %v8158, 1
  %v8495 = vrot.slane %v8159, 1
  %v8496 = vrot.slane %v8160, 1
  %v8497 = vrot.slane %v8161, 1
  %v8514 = vxor.u32 %v8482, 2147483648
  %v8515 = vxor.u32 %v8483, 2147483648
  %v8516 = vxor.u32 %v8484, 2147483648
  %v8517 = vxor.u32 %v8485, 2147483648
  %v8518 = vxor.u32 %v8486, 2147483648
  %v8519 = vxor.u32 %v8487, 2147483648
  %v8520 = vxor.u32 %v8488, 2147483648
  %v8521 = vxor.u32 %v8489, 2147483648
  %v8522 = vxor.u32 %v8490, 2147483648
  %v8523 = vxor.u32 %v8491, 2147483648
  %v8524 = vxor.u32 %v8492, 2147483648
  %v8525 = vxor.u32 %v8493, 2147483648
  %v8526 = vxor.u32 %v8494, 2147483648
  %v8527 = vxor.u32 %v8495, 2147483648
  %v8528 = vxor.u32 %v8496, 2147483648
  %v8529 = vxor.u32 %v8497, 2147483648
  %v8530 = vmul.f32 %v8514, 1.442695
  %v8531 = vpow.pop %v8530
  %v8532 = vmul.f32 %v8515, 1.442695
  %v8533 = vpow.pop %v8532
  %v8534 = vmul.f32 %v8516, 1.442695
  %v8535 = vpow.pop %v8534
  %v8536 = vmul.f32 %v8517, 1.442695
  %v8537 = vpow.pop %v8536
  %v8538 = vmul.f32 %v8518, 1.442695
  %v8539 = vpow.pop %v8538
  %v8540 = vmul.f32 %v8519, 1.442695
  %v8541 = vpow.pop %v8540
  %v8542 = vmul.f32 %v8520, 1.442695
  %v8543 = vpow.pop %v8542
  %v8544 = vmul.f32 %v8521, 1.442695
  %v8545 = vpow.pop %v8544
  %v8546 = vmul.f32 %v8522, 1.442695
  %v8547 = vpow.pop %v8546
  %v8548 = vmul.f32 %v8523, 1.442695
  %v8549 = vpow.pop %v8548
  %v8550 = vmul.f32 %v8524, 1.442695
  %v8551 = vpow.pop %v8550
  %v8552 = vmul.f32 %v8525, 1.442695
  %v8553 = vpow.pop %v8552
  %v8554 = vmul.f32 %v8526, 1.442695
  %v8555 = vpow.pop %v8554
  %v8556 = vmul.f32 %v8527, 1.442695
  %v8557 = vpow.pop %v8556
  %v8558 = vmul.f32 %v8528, 1.442695
  %v8559 = vpow.pop %v8558
  %v8560 = vmul.f32 %v8529, 1.442695
  %v8561 = vpow.pop %v8560
  %v8562 = vadd.f32 %v8531, 1.0
  %v8563 = vadd.f32 %v8533, 1.0
  %v8564 = vadd.f32 %v8535, 1.0
  %v8565 = vadd.f32 %v8537, 1.0
  %v8566 = vadd.f32 %v8539, 1.0
  %v8567 = vadd.f32 %v8541, 1.0
  %v8568 = vadd.f32 %v8543, 1.0
  %v8569 = vadd.f32 %v8545, 1.0
  %v8570 = vadd.f32 %v8547, 1.0
  %v8571 = vadd.f32 %v8549, 1.0
  %v8572 = vadd.f32 %v8551, 1.0
  %v8573 = vadd.f32 %v8553, 1.0
  %v8574 = vadd.f32 %v8555, 1.0
  %v8575 = vadd.f32 %v8557, 1.0
  %v8576 = vadd.f32 %v8559, 1.0
  %v8577 = vadd.f32 %v8561, 1.0
  %v8578 = vrcp.pop %v8562
  %v8579 = vmul.f32 %v8562, %v8578
  %v8580 = vsub.f32 1.0, %v8579
  %v8581 = vmul.f32 %v8578, %v8580
  %v8582 = vadd.f32 %v8578, %v8581
  %vm8583 = vweird.f32 %v8562
  %vm8584 = vweird.f32 %v8578
  %vm8585 = vmor %vm8583, %vm8584
  %v8586 = vsel %vm8585, %v8578, %v8582
  %v8587 = vand.u32 2147483647, %v8562
  %vm8588 = vcmp.eq.f32.partialorder %v8587, 8.507059e+37
  %v8589 = vand.u32 %v8562, 2147483648
  %v8590 = vor.u32 1.1754944e-38, %v8589
  %v8591 = vsel %vm8588, %v8590, %v8586
  %v8592 = vmul.f32 1.0, %v8591
  %v8593 = vrcp.pop %v8563
  %v8594 = vmul.f32 %v8563, %v8593
  %v8595 = vsub.f32 1.0, %v8594
  %v8596 = vmul.f32 %v8593, %v8595
  %v8597 = vadd.f32 %v8593, %v8596
  %vm8598 = vweird.f32 %v8563
  %vm8599 = vweird.f32 %v8593
  %vm8600 = vmor %vm8598, %vm8599
  %v8601 = vsel %vm8600, %v8593, %v8597
  %v8602 = vand.u32 2147483647, %v8563
  %vm8603 = vcmp.eq.f32.partialorder %v8602, 8.507059e+37
  %v8604 = vand.u32 %v8563, 2147483648
  %v8605 = vor.u32 1.1754944e-38, %v8604
  %v8606 = vsel %vm8603, %v8605, %v8601
  %v8607 = vmul.f32 1.0, %v8606
  %v8608 = vrcp.pop %v8564
  %v8609 = vmul.f32 %v8564, %v8608
  %v8610 = vsub.f32 1.0, %v8609
  %v8611 = vmul.f32 %v8608, %v8610
  %v8612 = vadd.f32 %v8608, %v8611
  %vm8613 = vweird.f32 %v8564
  %vm8614 = vweird.f32 %v8608
  %vm8615 = vmor %vm8613, %vm8614
  %v8616 = vsel %vm8615, %v8608, %v8612
  %v8617 = vand.u32 2147483647, %v8564
  %vm8618 = vcmp.eq.f32.partialorder %v8617, 8.507059e+37
  %v8619 = vand.u32 %v8564, 2147483648
  %v8620 = vor.u32 1.1754944e-38, %v8619
  %v8621 = vsel %vm8618, %v8620, %v8616
  %v8622 = vmul.f32 1.0, %v8621
  %v8623 = vrcp.pop %v8565
  %v8624 = vmul.f32 %v8565, %v8623
  %v8625 = vsub.f32 1.0, %v8624
  %v8626 = vmul.f32 %v8623, %v8625
  %v8627 = vadd.f32 %v8623, %v8626
  %vm8628 = vweird.f32 %v8565
  %vm8629 = vweird.f32 %v8623
  %vm8630 = vmor %vm8628, %vm8629
  %v8631 = vsel %vm8630, %v8623, %v8627
  %v8632 = vand.u32 2147483647, %v8565
  %vm8633 = vcmp.eq.f32.partialorder %v8632, 8.507059e+37
  %v8634 = vand.u32 %v8565, 2147483648
  %v8635 = vor.u32 1.1754944e-38, %v8634
  %v8636 = vsel %vm8633, %v8635, %v8631
  %v8637 = vmul.f32 1.0, %v8636
  %v8638 = vrcp.pop %v8566
  %v8639 = vmul.f32 %v8566, %v8638
  %v8640 = vsub.f32 1.0, %v8639
  %v8641 = vmul.f32 %v8638, %v8640
  %v8642 = vadd.f32 %v8638, %v8641
  %vm8643 = vweird.f32 %v8566
  %vm8644 = vweird.f32 %v8638
  %vm8645 = vmor %vm8643, %vm8644
  %v8646 = vsel %vm8645, %v8638, %v8642
  %v8647 = vand.u32 2147483647, %v8566
  %vm8648 = vcmp.eq.f32.partialorder %v8647, 8.507059e+37
  %v8649 = vand.u32 %v8566, 2147483648
  %v8650 = vor.u32 1.1754944e-38, %v8649
  %v8651 = vsel %vm8648, %v8650, %v8646
  %v8652 = vmul.f32 1.0, %v8651
  %v8653 = vrcp.pop %v8567
  %v8654 = vmul.f32 %v8567, %v8653
  %v8655 = vsub.f32 1.0, %v8654
  %v8656 = vmul.f32 %v8653, %v8655
  %v8657 = vadd.f32 %v8653, %v8656
  %vm8658 = vweird.f32 %v8567
  %vm8659 = vweird.f32 %v8653
  %vm8660 = vmor %vm8658, %vm8659
  %v8661 = vsel %vm8660, %v8653, %v8657
  %v8662 = vand.u32 2147483647, %v8567
  %vm8663 = vcmp.eq.f32.partialorder %v8662, 8.507059e+37
  %v8664 = vand.u32 %v8567, 2147483648
  %v8665 = vor.u32 1.1754944e-38, %v8664
  %v8666 = vsel %vm8663, %v8665, %v8661
  %v8667 = vmul.f32 1.0, %v8666
  %v8668 = vrcp.pop %v8568
  %v8669 = vmul.f32 %v8568, %v8668
  %v8670 = vsub.f32 1.0, %v8669
  %v8671 = vmul.f32 %v8668, %v8670
  %v8672 = vadd.f32 %v8668, %v8671
  %vm8673 = vweird.f32 %v8568
  %vm8674 = vweird.f32 %v8668
  %vm8675 = vmor %vm8673, %vm8674
  %v8676 = vsel %vm8675, %v8668, %v8672
  %v8677 = vand.u32 2147483647, %v8568
  %vm8678 = vcmp.eq.f32.partialorder %v8677, 8.507059e+37
  %v8679 = vand.u32 %v8568, 2147483648
  %v8680 = vor.u32 1.1754944e-38, %v8679
  %v8681 = vsel %vm8678, %v8680, %v8676
  %v8682 = vmul.f32 1.0, %v8681
  %v8683 = vrcp.pop %v8569
  %v8684 = vmul.f32 %v8569, %v8683
  %v8685 = vsub.f32 1.0, %v8684
  %v8686 = vmul.f32 %v8683, %v8685
  %v8687 = vadd.f32 %v8683, %v8686
  %vm8688 = vweird.f32 %v8569
  %vm8689 = vweird.f32 %v8683
  %vm8690 = vmor %vm8688, %vm8689
  %v8691 = vsel %vm8690, %v8683, %v8687
  %v8692 = vand.u32 2147483647, %v8569
  %vm8693 = vcmp.eq.f32.partialorder %v8692, 8.507059e+37
  %v8694 = vand.u32 %v8569, 2147483648
  %v8695 = vor.u32 1.1754944e-38, %v8694
  %v8696 = vsel %vm8693, %v8695, %v8691
  %v8697 = vmul.f32 1.0, %v8696
  %v8698 = vrcp.pop %v8570
  %v8699 = vmul.f32 %v8570, %v8698
  %v8700 = vsub.f32 1.0, %v8699
  %v8701 = vmul.f32 %v8698, %v8700
  %v8702 = vadd.f32 %v8698, %v8701
  %vm8703 = vweird.f32 %v8570
  %vm8704 = vweird.f32 %v8698
  %vm8705 = vmor %vm8703, %vm8704
  %v8706 = vsel %vm8705, %v8698, %v8702
  %v8707 = vand.u32 2147483647, %v8570
  %vm8708 = vcmp.eq.f32.partialorder %v8707, 8.507059e+37
  %v8709 = vand.u32 %v8570, 2147483648
  %v8710 = vor.u32 1.1754944e-38, %v8709
  %v8711 = vsel %vm8708, %v8710, %v8706
  %v8712 = vmul.f32 1.0, %v8711
  %v8713 = vrcp.pop %v8571
  %v8714 = vmul.f32 %v8571, %v8713
  %v8715 = vsub.f32 1.0, %v8714
  %v8716 = vmul.f32 %v8713, %v8715
  %v8717 = vadd.f32 %v8713, %v8716
  %vm8718 = vweird.f32 %v8571
  %vm8719 = vweird.f32 %v8713
  %vm8720 = vmor %vm8718, %vm8719
  %v8721 = vsel %vm8720, %v8713, %v8717
  %v8722 = vand.u32 2147483647, %v8571
  %vm8723 = vcmp.eq.f32.partialorder %v8722, 8.507059e+37
  %v8724 = vand.u32 %v8571, 2147483648
  %v8725 = vor.u32 1.1754944e-38, %v8724
  %v8726 = vsel %vm8723, %v8725, %v8721
  %v8727 = vmul.f32 1.0, %v8726
  %v8728 = vrcp.pop %v8572
  %v8729 = vmul.f32 %v8572, %v8728
  %v8730 = vsub.f32 1.0, %v8729
  %v8731 = vmul.f32 %v8728, %v8730
  %v8732 = vadd.f32 %v8728, %v8731
  %vm8733 = vweird.f32 %v8572
  %vm8734 = vweird.f32 %v8728
  %vm8735 = vmor %vm8733, %vm8734
  %v8736 = vsel %vm8735, %v8728, %v8732
  %v8737 = vand.u32 2147483647, %v8572
  %vm8738 = vcmp.eq.f32.partialorder %v8737, 8.507059e+37
  %v8739 = vand.u32 %v8572, 2147483648
  %v8740 = vor.u32 1.1754944e-38, %v8739
  %v8741 = vsel %vm8738, %v8740, %v8736
  %v8742 = vmul.f32 1.0, %v8741
  %v8743 = vrcp.pop %v8573
  %v8744 = vmul.f32 %v8573, %v8743
  %v8745 = vsub.f32 1.0, %v8744
  %v8746 = vmul.f32 %v8743, %v8745
  %v8747 = vadd.f32 %v8743, %v8746
  %vm8748 = vweird.f32 %v8573
  %vm8749 = vweird.f32 %v8743
  %vm8750 = vmor %vm8748, %vm8749
  %v8751 = vsel %vm8750, %v8743, %v8747
  %v8752 = vand.u32 2147483647, %v8573
  %vm8753 = vcmp.eq.f32.partialorder %v8752, 8.507059e+37
  %v8754 = vand.u32 %v8573, 2147483648
  %v8755 = vor.u32 1.1754944e-38, %v8754
  %v8756 = vsel %vm8753, %v8755, %v8751
  %v8757 = vmul.f32 1.0, %v8756
  %v8758 = vrcp.pop %v8574
  %v8759 = vmul.f32 %v8574, %v8758
  %v8760 = vsub.f32 1.0, %v8759
  %v8761 = vmul.f32 %v8758, %v8760
  %v8762 = vadd.f32 %v8758, %v8761
  %vm8763 = vweird.f32 %v8574
  %vm8764 = vweird.f32 %v8758
  %vm8765 = vmor %vm8763, %vm8764
  %v8766 = vsel %vm8765, %v8758, %v8762
  %v8767 = vand.u32 2147483647, %v8574
  %vm8768 = vcmp.eq.f32.partialorder %v8767, 8.507059e+37
  %v8769 = vand.u32 %v8574, 2147483648
  %v8770 = vor.u32 1.1754944e-38, %v8769
  %v8771 = vsel %vm8768, %v8770, %v8766
  %v8772 = vmul.f32 1.0, %v8771
  %v8773 = vrcp.pop %v8575
  %v8774 = vmul.f32 %v8575, %v8773
  %v8775 = vsub.f32 1.0, %v8774
  %v8776 = vmul.f32 %v8773, %v8775
  %v8777 = vadd.f32 %v8773, %v8776
  %vm8778 = vweird.f32 %v8575
  %vm8779 = vweird.f32 %v8773
  %vm8780 = vmor %vm8778, %vm8779
  %v8781 = vsel %vm8780, %v8773, %v8777
  %v8782 = vand.u32 2147483647, %v8575
  %vm8783 = vcmp.eq.f32.partialorder %v8782, 8.507059e+37
  %v8784 = vand.u32 %v8575, 2147483648
  %v8785 = vor.u32 1.1754944e-38, %v8784
  %v8786 = vsel %vm8783, %v8785, %v8781
  %v8787 = vmul.f32 1.0, %v8786
  %v8788 = vrcp.pop %v8576
  %v8789 = vmul.f32 %v8576, %v8788
  %v8790 = vsub.f32 1.0, %v8789
  %v8791 = vmul.f32 %v8788, %v8790
  %v8792 = vadd.f32 %v8788, %v8791
  %vm8793 = vweird.f32 %v8576
  %vm8794 = vweird.f32 %v8788
  %vm8795 = vmor %vm8793, %vm8794
  %v8796 = vsel %vm8795, %v8788, %v8792
  %v8797 = vand.u32 2147483647, %v8576
  %vm8798 = vcmp.eq.f32.partialorder %v8797, 8.507059e+37
  %v8799 = vand.u32 %v8576, 2147483648
  %v8800 = vor.u32 1.1754944e-38, %v8799
  %v8801 = vsel %vm8798, %v8800, %v8796
  %v8802 = vmul.f32 1.0, %v8801
  %v8803 = vrcp.pop %v8577
  %v8804 = vmul.f32 %v8577, %v8803
  %v8805 = vsub.f32 1.0, %v8804
  %v8806 = vmul.f32 %v8803, %v8805
  %v8807 = vadd.f32 %v8803, %v8806
  %vm8808 = vweird.f32 %v8577
  %vm8809 = vweird.f32 %v8803
  %vm8810 = vmor %vm8808, %vm8809
  %v8811 = vsel %vm8810, %v8803, %v8807
  %v8812 = vand.u32 2147483647, %v8577
  %vm8813 = vcmp.eq.f32.partialorder %v8812, 8.507059e+37
  %v8814 = vand.u32 %v8577, 2147483648
  %v8815 = vor.u32 1.1754944e-38, %v8814
  %v8816 = vsel %vm8813, %v8815, %v8811
  %v8817 = vmul.f32 1.0, %v8816
  %v8818 = vrot.slane %v8146, 2
  %v8819 = vrot.slane %v8147, 2
  %v8820 = vrot.slane %v8148, 2
  %v8821 = vrot.slane %v8149, 2
  %v8822 = vrot.slane %v8150, 2
  %v8823 = vrot.slane %v8151, 2
  %v8824 = vrot.slane %v8152, 2
  %v8825 = vrot.slane %v8153, 2
  %v8826 = vrot.slane %v8154, 2
  %v8827 = vrot.slane %v8155, 2
  %v8828 = vrot.slane %v8156, 2
  %v8829 = vrot.slane %v8157, 2
  %v8830 = vrot.slane %v8158, 2
  %v8831 = vrot.slane %v8159, 2
  %v8832 = vrot.slane %v8160, 2
  %v8833 = vrot.slane %v8161, 2
  %v8850 = vtanh.pop %v8818
  %v8851 = vtanh.pop %v8819
  %v8852 = vtanh.pop %v8820
  %v8853 = vtanh.pop %v8821
  %v8854 = vtanh.pop %v8822
  %v8855 = vtanh.pop %v8823
  %v8856 = vtanh.pop %v8824
  %v8857 = vtanh.pop %v8825
  %v8858 = vtanh.pop %v8826
  %v8859 = vtanh.pop %v8827
  %v8860 = vtanh.pop %v8828
  %v8861 = vtanh.pop %v8829
  %v8862 = vtanh.pop %v8830
  %v8863 = vtanh.pop %v8831
  %v8864 = vtanh.pop %v8832
  %v8865 = vtanh.pop %v8833
  %v8866 = vrot.slane %v8146, 3
  %v8867 = vrot.slane %v8147, 3
  %v8868 = vrot.slane %v8148, 3
  %v8869 = vrot.slane %v8149, 3
  %v8870 = vrot.slane %v8150, 3
  %v8871 = vrot.slane %v8151, 3
  %v8872 = vrot.slane %v8152, 3
  %v8873 = vrot.slane %v8153, 3
  %v8874 = vrot.slane %v8154, 3
  %v8875 = vrot.slane %v8155, 3
  %v8876 = vrot.slane %v8156, 3
  %v8877 = vrot.slane %v8157, 3
  %v8878 = vrot.slane %v8158, 3
  %v8879 = vrot.slane %v8159, 3
  %v8880 = vrot.slane %v8160, 3
  %v8881 = vrot.slane %v8161, 3
  %v8898 = vxor.u32 %v8866, 2147483648
  %v8899 = vxor.u32 %v8867, 2147483648
  %v8900 = vxor.u32 %v8868, 2147483648
  %v8901 = vxor.u32 %v8869, 2147483648
  %v8902 = vxor.u32 %v8870, 2147483648
  %v8903 = vxor.u32 %v8871, 2147483648
  %v8904 = vxor.u32 %v8872, 2147483648
  %v8905 = vxor.u32 %v8873, 2147483648
  %v8906 = vxor.u32 %v8874, 2147483648
  %v8907 = vxor.u32 %v8875, 2147483648
  %v8908 = vxor.u32 %v8876, 2147483648
  %v8909 = vxor.u32 %v8877, 2147483648
  %v8910 = vxor.u32 %v8878, 2147483648
  %v8911 = vxor.u32 %v8879, 2147483648
  %v8912 = vxor.u32 %v8880, 2147483648
  %v8913 = vxor.u32 %v8881, 2147483648
  %v8914 = vmul.f32 %v8898, 1.442695
  %v8915 = vpow.pop %v8914
  %v8916 = vmul.f32 %v8899, 1.442695
  %v8917 = vpow.pop %v8916
  %v8918 = vmul.f32 %v8900, 1.442695
  %v8919 = vpow.pop %v8918
  %v8920 = vmul.f32 %v8901, 1.442695
  %v8921 = vpow.pop %v8920
  %v8922 = vmul.f32 %v8902, 1.442695
  %v8923 = vpow.pop %v8922
  %v8924 = vmul.f32 %v8903, 1.442695
  %v8925 = vpow.pop %v8924
  %v8926 = vmul.f32 %v8904, 1.442695
  %v8927 = vpow.pop %v8926
  %v8928 = vmul.f32 %v8905, 1.442695
  %v8929 = vpow.pop %v8928
  %v8930 = vmul.f32 %v8906, 1.442695
  %v8931 = vpow.pop %v8930
  %v8932 = vmul.f32 %v8907, 1.442695
  %v8933 = vpow.pop %v8932
  %v8934 = vmul.f32 %v8908, 1.442695
  %v8935 = vpow.pop %v8934
  %v8936 = vmul.f32 %v8909, 1.442695
  %v8937 = vpow.pop %v8936
  %v8938 = vmul.f32 %v8910, 1.442695
  %v8939 = vpow.pop %v8938
  %v8940 = vmul.f32 %v8911, 1.442695
  %v8941 = vpow.pop %v8940
  %v8942 = vmul.f32 %v8912, 1.442695
  %v8943 = vpow.pop %v8942
  %v8944 = vmul.f32 %v8913, 1.442695
  %v8945 = vpow.pop %v8944
  %v8946 = vadd.f32 %v8915, 1.0
  %v8947 = vadd.f32 %v8917, 1.0
  %v8948 = vadd.f32 %v8919, 1.0
  %v8949 = vadd.f32 %v8921, 1.0
  %v8950 = vadd.f32 %v8923, 1.0
  %v8951 = vadd.f32 %v8925, 1.0
  %v8952 = vadd.f32 %v8927, 1.0
  %v8953 = vadd.f32 %v8929, 1.0
  %v8954 = vadd.f32 %v8931, 1.0
  %v8955 = vadd.f32 %v8933, 1.0
  %v8956 = vadd.f32 %v8935, 1.0
  %v8957 = vadd.f32 %v8937, 1.0
  %v8958 = vadd.f32 %v8939, 1.0
  %v8959 = vadd.f32 %v8941, 1.0
  %v8960 = vadd.f32 %v8943, 1.0
  %v8961 = vadd.f32 %v8945, 1.0
  %v8962 = vrcp.pop %v8946
  %v8963 = vmul.f32 %v8946, %v8962
  %v8964 = vsub.f32 1.0, %v8963
  %v8965 = vmul.f32 %v8962, %v8964
  %v8966 = vadd.f32 %v8962, %v8965
  %vm8967 = vweird.f32 %v8946
  %vm8968 = vweird.f32 %v8962
  %vm8969 = vmor %vm8967, %vm8968
  %v8970 = vsel %vm8969, %v8962, %v8966
  %v8971 = vand.u32 2147483647, %v8946
  %vm8972 = vcmp.eq.f32.partialorder %v8971, 8.507059e+37
  %v8973 = vand.u32 %v8946, 2147483648
  %v8974 = vor.u32 1.1754944e-38, %v8973
  %v8975 = vsel %vm8972, %v8974, %v8970
  %v8976 = vmul.f32 1.0, %v8975
  %v8977 = vrcp.pop %v8947
  %v8978 = vmul.f32 %v8947, %v8977
  %v8979 = vsub.f32 1.0, %v8978
  %v8980 = vmul.f32 %v8977, %v8979
  %v8981 = vadd.f32 %v8977, %v8980
  %vm8982 = vweird.f32 %v8947
  %vm8983 = vweird.f32 %v8977
  %vm8984 = vmor %vm8982, %vm8983
  %v8985 = vsel %vm8984, %v8977, %v8981
  %v8986 = vand.u32 2147483647, %v8947
  %vm8987 = vcmp.eq.f32.partialorder %v8986, 8.507059e+37
  %v8988 = vand.u32 %v8947, 2147483648
  %v8989 = vor.u32 1.1754944e-38, %v8988
  %v8990 = vsel %vm8987, %v8989, %v8985
  %v8991 = vmul.f32 1.0, %v8990
  %v8992 = vrcp.pop %v8948
  %v8993 = vmul.f32 %v8948, %v8992
  %v8994 = vsub.f32 1.0, %v8993
  %v8995 = vmul.f32 %v8992, %v8994
  %v8996 = vadd.f32 %v8992, %v8995
  %vm8997 = vweird.f32 %v8948
  %vm8998 = vweird.f32 %v8992
  %vm8999 = vmor %vm8997, %vm8998
  %v9000 = vsel %vm8999, %v8992, %v8996
  %v9001 = vand.u32 2147483647, %v8948
  %vm9002 = vcmp.eq.f32.partialorder %v9001, 8.507059e+37
  %v9003 = vand.u32 %v8948, 2147483648
  %v9004 = vor.u32 1.1754944e-38, %v9003
  %v9005 = vsel %vm9002, %v9004, %v9000
  %v9006 = vmul.f32 1.0, %v9005
  %v9007 = vrcp.pop %v8949
  %v9008 = vmul.f32 %v8949, %v9007
  %v9009 = vsub.f32 1.0, %v9008
  %v9010 = vmul.f32 %v9007, %v9009
  %v9011 = vadd.f32 %v9007, %v9010
  %vm9012 = vweird.f32 %v8949
  %vm9013 = vweird.f32 %v9007
  %vm9014 = vmor %vm9012, %vm9013
  %v9015 = vsel %vm9014, %v9007, %v9011
  %v9016 = vand.u32 2147483647, %v8949
  %vm9017 = vcmp.eq.f32.partialorder %v9016, 8.507059e+37
  %v9018 = vand.u32 %v8949, 2147483648
  %v9019 = vor.u32 1.1754944e-38, %v9018
  %v9020 = vsel %vm9017, %v9019, %v9015
  %v9021 = vmul.f32 1.0, %v9020
  %v9022 = vrcp.pop %v8950
  %v9023 = vmul.f32 %v8950, %v9022
  %v9024 = vsub.f32 1.0, %v9023
  %v9025 = vmul.f32 %v9022, %v9024
  %v9026 = vadd.f32 %v9022, %v9025
  %vm9027 = vweird.f32 %v8950
  %vm9028 = vweird.f32 %v9022
  %vm9029 = vmor %vm9027, %vm9028
  %v9030 = vsel %vm9029, %v9022, %v9026
  %v9031 = vand.u32 2147483647, %v8950
  %vm9032 = vcmp.eq.f32.partialorder %v9031, 8.507059e+37
  %v9033 = vand.u32 %v8950, 2147483648
  %v9034 = vor.u32 1.1754944e-38, %v9033
  %v9035 = vsel %vm9032, %v9034, %v9030
  %v9036 = vmul.f32 1.0, %v9035
  %v9037 = vrcp.pop %v8951
  %v9038 = vmul.f32 %v8951, %v9037
  %v9039 = vsub.f32 1.0, %v9038
  %v9040 = vmul.f32 %v9037, %v9039
  %v9041 = vadd.f32 %v9037, %v9040
  %vm9042 = vweird.f32 %v8951
  %vm9043 = vweird.f32 %v9037
  %vm9044 = vmor %vm9042, %vm9043
  %v9045 = vsel %vm9044, %v9037, %v9041
  %v9046 = vand.u32 2147483647, %v8951
  %vm9047 = vcmp.eq.f32.partialorder %v9046, 8.507059e+37
  %v9048 = vand.u32 %v8951, 2147483648
  %v9049 = vor.u32 1.1754944e-38, %v9048
  %v9050 = vsel %vm9047, %v9049, %v9045
  %v9051 = vmul.f32 1.0, %v9050
  %v9052 = vrcp.pop %v8952
  %v9053 = vmul.f32 %v8952, %v9052
  %v9054 = vsub.f32 1.0, %v9053
  %v9055 = vmul.f32 %v9052, %v9054
  %v9056 = vadd.f32 %v9052, %v9055
  %vm9057 = vweird.f32 %v8952
  %vm9058 = vweird.f32 %v9052
  %vm9059 = vmor %vm9057, %vm9058
  %v9060 = vsel %vm9059, %v9052, %v9056
  %v9061 = vand.u32 2147483647, %v8952
  %vm9062 = vcmp.eq.f32.partialorder %v9061, 8.507059e+37
  %v9063 = vand.u32 %v8952, 2147483648
  %v9064 = vor.u32 1.1754944e-38, %v9063
  %v9065 = vsel %vm9062, %v9064, %v9060
  %v9066 = vmul.f32 1.0, %v9065
  %v9067 = vrcp.pop %v8953
  %v9068 = vmul.f32 %v8953, %v9067
  %v9069 = vsub.f32 1.0, %v9068
  %v9070 = vmul.f32 %v9067, %v9069
  %v9071 = vadd.f32 %v9067, %v9070
  %vm9072 = vweird.f32 %v8953
  %vm9073 = vweird.f32 %v9067
  %vm9074 = vmor %vm9072, %vm9073
  %v9075 = vsel %vm9074, %v9067, %v9071
  %v9076 = vand.u32 2147483647, %v8953
  %vm9077 = vcmp.eq.f32.partialorder %v9076, 8.507059e+37
  %v9078 = vand.u32 %v8953, 2147483648
  %v9079 = vor.u32 1.1754944e-38, %v9078
  %v9080 = vsel %vm9077, %v9079, %v9075
  %v9081 = vmul.f32 1.0, %v9080
  %v9082 = vrcp.pop %v8954
  %v9083 = vmul.f32 %v8954, %v9082
  %v9084 = vsub.f32 1.0, %v9083
  %v9085 = vmul.f32 %v9082, %v9084
  %v9086 = vadd.f32 %v9082, %v9085
  %vm9087 = vweird.f32 %v8954
  %vm9088 = vweird.f32 %v9082
  %vm9089 = vmor %vm9087, %vm9088
  %v9090 = vsel %vm9089, %v9082, %v9086
  %v9091 = vand.u32 2147483647, %v8954
  %vm9092 = vcmp.eq.f32.partialorder %v9091, 8.507059e+37
  %v9093 = vand.u32 %v8954, 2147483648
  %v9094 = vor.u32 1.1754944e-38, %v9093
  %v9095 = vsel %vm9092, %v9094, %v9090
  %v9096 = vmul.f32 1.0, %v9095
  %v9097 = vrcp.pop %v8955
  %v9098 = vmul.f32 %v8955, %v9097
  %v9099 = vsub.f32 1.0, %v9098
  %v9100 = vmul.f32 %v9097, %v9099
  %v9101 = vadd.f32 %v9097, %v9100
  %vm9102 = vweird.f32 %v8955
  %vm9103 = vweird.f32 %v9097
  %vm9104 = vmor %vm9102, %vm9103
  %v9105 = vsel %vm9104, %v9097, %v9101
  %v9106 = vand.u32 2147483647, %v8955
  %vm9107 = vcmp.eq.f32.partialorder %v9106, 8.507059e+37
  %v9108 = vand.u32 %v8955, 2147483648
  %v9109 = vor.u32 1.1754944e-38, %v9108
  %v9110 = vsel %vm9107, %v9109, %v9105
  %v9111 = vmul.f32 1.0, %v9110
  %v9112 = vrcp.pop %v8956
  %v9113 = vmul.f32 %v8956, %v9112
  %v9114 = vsub.f32 1.0, %v9113
  %v9115 = vmul.f32 %v9112, %v9114
  %v9116 = vadd.f32 %v9112, %v9115
  %vm9117 = vweird.f32 %v8956
  %vm9118 = vweird.f32 %v9112
  %vm9119 = vmor %vm9117, %vm9118
  %v9120 = vsel %vm9119, %v9112, %v9116
  %v9121 = vand.u32 2147483647, %v8956
  %vm9122 = vcmp.eq.f32.partialorder %v9121, 8.507059e+37
  %v9123 = vand.u32 %v8956, 2147483648
  %v9124 = vor.u32 1.1754944e-38, %v9123
  %v9125 = vsel %vm9122, %v9124, %v9120
  %v9126 = vmul.f32 1.0, %v9125
  %v9127 = vrcp.pop %v8957
  %v9128 = vmul.f32 %v8957, %v9127
  %v9129 = vsub.f32 1.0, %v9128
  %v9130 = vmul.f32 %v9127, %v9129
  %v9131 = vadd.f32 %v9127, %v9130
  %vm9132 = vweird.f32 %v8957
  %vm9133 = vweird.f32 %v9127
  %vm9134 = vmor %vm9132, %vm9133
  %v9135 = vsel %vm9134, %v9127, %v9131
  %v9136 = vand.u32 2147483647, %v8957
  %vm9137 = vcmp.eq.f32.partialorder %v9136, 8.507059e+37
  %v9138 = vand.u32 %v8957, 2147483648
  %v9139 = vor.u32 1.1754944e-38, %v9138
  %v9140 = vsel %vm9137, %v9139, %v9135
  %v9141 = vmul.f32 1.0, %v9140
  %v9142 = vrcp.pop %v8958
  %v9143 = vmul.f32 %v8958, %v9142
  %v9144 = vsub.f32 1.0, %v9143
  %v9145 = vmul.f32 %v9142, %v9144
  %v9146 = vadd.f32 %v9142, %v9145
  %vm9147 = vweird.f32 %v8958
  %vm9148 = vweird.f32 %v9142
  %vm9149 = vmor %vm9147, %vm9148
  %v9150 = vsel %vm9149, %v9142, %v9146
  %v9151 = vand.u32 2147483647, %v8958
  %vm9152 = vcmp.eq.f32.partialorder %v9151, 8.507059e+37
  %v9153 = vand.u32 %v8958, 2147483648
  %v9154 = vor.u32 1.1754944e-38, %v9153
  %v9155 = vsel %vm9152, %v9154, %v9150
  %v9156 = vmul.f32 1.0, %v9155
  %v9157 = vrcp.pop %v8959
  %v9158 = vmul.f32 %v8959, %v9157
  %v9159 = vsub.f32 1.0, %v9158
  %v9160 = vmul.f32 %v9157, %v9159
  %v9161 = vadd.f32 %v9157, %v9160
  %vm9162 = vweird.f32 %v8959
  %vm9163 = vweird.f32 %v9157
  %vm9164 = vmor %vm9162, %vm9163
  %v9165 = vsel %vm9164, %v9157, %v9161
  %v9166 = vand.u32 2147483647, %v8959
  %vm9167 = vcmp.eq.f32.partialorder %v9166, 8.507059e+37
  %v9168 = vand.u32 %v8959, 2147483648
  %v9169 = vor.u32 1.1754944e-38, %v9168
  %v9170 = vsel %vm9167, %v9169, %v9165
  %v9171 = vmul.f32 1.0, %v9170
  %v9172 = vrcp.pop %v8960
  %v9173 = vmul.f32 %v8960, %v9172
  %v9174 = vsub.f32 1.0, %v9173
  %v9175 = vmul.f32 %v9172, %v9174
  %v9176 = vadd.f32 %v9172, %v9175
  %vm9177 = vweird.f32 %v8960
  %vm9178 = vweird.f32 %v9172
  %vm9179 = vmor %vm9177, %vm9178
  %v9180 = vsel %vm9179, %v9172, %v9176
  %v9181 = vand.u32 2147483647, %v8960
  %vm9182 = vcmp.eq.f32.partialorder %v9181, 8.507059e+37
  %v9183 = vand.u32 %v8960, 2147483648
  %v9184 = vor.u32 1.1754944e-38, %v9183
  %v9185 = vsel %vm9182, %v9184, %v9180
  %v9186 = vmul.f32 1.0, %v9185
  %v9187 = vrcp.pop %v8961
  %v9188 = vmul.f32 %v8961, %v9187
  %v9189 = vsub.f32 1.0, %v9188
  %v9190 = vmul.f32 %v9187, %v9189
  %v9191 = vadd.f32 %v9187, %v9190
  %vm9192 = vweird.f32 %v8961
  %vm9193 = vweird.f32 %v9187
  %vm9194 = vmor %vm9192, %vm9193
  %v9195 = vsel %vm9194, %v9187, %v9191
  %v9196 = vand.u32 2147483647, %v8961
  %vm9197 = vcmp.eq.f32.partialorder %v9196, 8.507059e+37
  %v9198 = vand.u32 %v8961, 2147483648
  %v9199 = vor.u32 1.1754944e-38, %v9198
  %v9200 = vsel %vm9197, %v9199, %v9195
  %v9201 = vmul.f32 1.0, %v9200
  %v9202 = vmul.f32 %v8592, %v7759
  %v9203 = vmul.f32 %v8607, %v7760
  %v9204 = vmul.f32 %v8622, %v7761
  %v9205 = vmul.f32 %v8637, %v7762
  %v9206 = vmul.f32 %v8652, %v7763
  %v9207 = vmul.f32 %v8667, %v7764
  %v9208 = vmul.f32 %v8682, %v7765
  %v9209 = vmul.f32 %v8697, %v7766
  %v9210 = vmul.f32 %v8712, %v7767
  %v9211 = vmul.f32 %v8727, %v7768
  %v9212 = vmul.f32 %v8742, %v7769
  %v9213 = vmul.f32 %v8757, %v7770
  %v9214 = vmul.f32 %v8772, %v7771
  %v9215 = vmul.f32 %v8787, %v7772
  %v9216 = vmul.f32 %v8802, %v7773
  %v9217 = vmul.f32 %v8817, %v7774
  %v9218 = vmul.f32 %v8240, %v8850
  %v9219 = vmul.f32 %v8255, %v8851
  %v9220 = vmul.f32 %v8270, %v8852
  %v9221 = vmul.f32 %v8285, %v8853
  %v9222 = vmul.f32 %v8300, %v8854
  %v9223 = vmul.f32 %v8315, %v8855
  %v9224 = vmul.f32 %v8330, %v8856
  %v9225 = vmul.f32 %v8345, %v8857
  %v9226 = vmul.f32 %v8360, %v8858
  %v9227 = vmul.f32 %v8375, %v8859
  %v9228 = vmul.f32 %v8390, %v8860
  %v9229 = vmul.f32 %v8405, %v8861
  %v9230 = vmul.f32 %v8420, %v8862
  %v9231 = vmul.f32 %v8435, %v8863
  %v9232 = vmul.f32 %v8450, %v8864
  %v9233 = vmul.f32 %v8465, %v8865
  %v9234 = vadd.f32 %v9202, %v9218
  %v9235 = vadd.f32 %v9203, %v9219
  %v9236 = vadd.f32 %v9204, %v9220
  %v9237 = vadd.f32 %v9205, %v9221
  %v9238 = vadd.f32 %v9206, %v9222
  %v9239 = vadd.f32 %v9207, %v9223
  %v9240 = vadd.f32 %v9208, %v9224
  %v9241 = vadd.f32 %v9209, %v9225
  %v9242 = vadd.f32 %v9210, %v9226
  %v9243 = vadd.f32 %v9211, %v9227
  %v9244 = vadd.f32 %v9212, %v9228
  %v9245 = vadd.f32 %v9213, %v9229
  %v9246 = vadd.f32 %v9214, %v9230
  %v9247 = vadd.f32 %v9215, %v9231
  %v9248 = vadd.f32 %v9216, %v9232
  %v9249 = vadd.f32 %v9217, %v9233
  %v9250 = vtanh.pop %v9234
  %v9251 = vtanh.pop %v9235
  %v9252 = vtanh.pop %v9236
  %v9253 = vtanh.pop %v9237
  %v9254 = vtanh.pop %v9238
  %v9255 = vtanh.pop %v9239
  %v9256 = vtanh.pop %v9240
  %v9257 = vtanh.pop %v9241
  %v9258 = vtanh.pop %v9242
  %v9259 = vtanh.pop %v9243
  %v9260 = vtanh.pop %v9244
  %v9261 = vtanh.pop %v9245
  %v9262 = vtanh.pop %v9246
  %v9263 = vtanh.pop %v9247
  %v9264 = vtanh.pop %v9248
  %v9265 = vtanh.pop %v9249
  %v9266 = vmul.f32 %v8976, %v9250
  %v9267 = vmul.f32 %v8991, %v9251
  %v9268 = vmul.f32 %v9006, %v9252
  %v9269 = vmul.f32 %v9021, %v9253
  %v9270 = vmul.f32 %v9036, %v9254
  %v9271 = vmul.f32 %v9051, %v9255
  %v9272 = vmul.f32 %v9066, %v9256
  %v9273 = vmul.f32 %v9081, %v9257
  %v9274 = vmul.f32 %v9096, %v9258
  %v9275 = vmul.f32 %v9111, %v9259
  %v9276 = vmul.f32 %v9126, %v9260
  %v9277 = vmul.f32 %v9141, %v9261
  %v9278 = vmul.f32 %v9156, %v9262
  %v9279 = vmul.f32 %v9171, %v9263
  %v9280 = vmul.f32 %v9186, %v9264
  %v9281 = vmul.f32 %v9201, %v9265
  %9282 = vst [vmem:[%s4 + $0x5] sm:$0x1] %v9266
  %9283 = vst [vmem:[%s4 + $0xd] sm:$0x1] %v9267
  %9284 = vst [vmem:[%s4 + $0x15] sm:$0x1] %v9268
  %9285 = vst [vmem:[%s4 + $0x1d] sm:$0x1] %v9269
  %9286 = vst [vmem:[%s4 + $0x25] sm:$0x1] %v9270
  %9287 = vst [vmem:[%s4 + $0x2d] sm:$0x1] %v9271
  %9288 = vst [vmem:[%s4 + $0x35] sm:$0x1] %v9272
  %9289 = vst [vmem:[%s4 + $0x3d] sm:$0x1] %v9273
  %9290 = vst [vmem:[%s4 + $0x45] sm:$0x1] %v9274
  %9291 = vst [vmem:[%s4 + $0x4d] sm:$0x1] %v9275
  %9292 = vst [vmem:[%s4 + $0x55] sm:$0x1] %v9276
  %9293 = vst [vmem:[%s4 + $0x5d] sm:$0x1] %v9277
  %9294 = vst [vmem:[%s4 + $0x65] sm:$0x1] %v9278
  %9295 = vst [vmem:[%s4 + $0x6d] sm:$0x1] %v9279
  %9296 = vst [vmem:[%s4 + $0x75] sm:$0x1] %v9280
  %9297 = vst [vmem:[%s4 + $0x7d] sm:$0x1] %v9281
  %s9298 = scalar_lea.vmem [#allocation2], 6
  %v9299 = vld [vmem:[%s9298] ss:$8 sm:$0xf]
  %s9300 = scalar_lea.vmem [#allocation2], 38
  %v9301 = vld [vmem:[%s9300] ss:$8 sm:$0xf]
  %s9302 = scalar_lea.vmem [#allocation2], 70
  %v9303 = vld [vmem:[%s9302] ss:$8 sm:$0xf]
  %s9304 = scalar_lea.vmem [#allocation2], 102
  %v9305 = vld [vmem:[%s9304] ss:$8 sm:$0xf]
  %s9306 = scalar_lea.vmem [#allocation2], 134
  %v9307 = vld [vmem:[%s9306] ss:$8 sm:$0xf]
  %s9308 = scalar_lea.vmem [#allocation2], 166
  %v9309 = vld [vmem:[%s9308] ss:$8 sm:$0xf]
  %s9310 = scalar_lea.vmem [#allocation2], 198
  %v9311 = vld [vmem:[%s9310] ss:$8 sm:$0xf]
  %s9312 = scalar_lea.vmem [#allocation2], 230
  %v9313 = vld [vmem:[%s9312] ss:$8 sm:$0xf]
  %s9314 = scalar_lea.vmem [#allocation2], 262
  %v9315 = vld [vmem:[%s9314] ss:$8 sm:$0xf]
  %s9316 = scalar_lea.vmem [#allocation2], 294
  %v9317 = vld [vmem:[%s9316] ss:$8 sm:$0xf]
  %s9318 = scalar_lea.vmem [#allocation2], 326
  %v9319 = vld [vmem:[%s9318] ss:$8 sm:$0xf]
  %s9320 = scalar_lea.vmem [#allocation2], 358
  %v9321 = vld [vmem:[%s9320] ss:$8 sm:$0xf]
  %s9322 = scalar_lea.vmem [#allocation2], 390
  %v9323 = vld [vmem:[%s9322] ss:$8 sm:$0xf]
  %s9324 = scalar_lea.vmem [#allocation2], 422
  %v9325 = vld [vmem:[%s9324] ss:$8 sm:$0xf]
  %s9326 = scalar_lea.vmem [#allocation2], 454
  %v9327 = vld [vmem:[%s9326] ss:$8 sm:$0xf]
  %s9328 = scalar_lea.vmem [#allocation2], 486
  %v9329 = vld [vmem:[%s9328] ss:$8 sm:$0xf]
  %v9330 = vld [vmem:[%s2] sm:$0xff]
  %v9331 = vld [vmem:[%s2 + $0x8] sm:$0xff]
  %v9332 = vld [vmem:[%s2 + $0x10] sm:$0xff]
  %v9333 = vld [vmem:[%s2 + $0x18] sm:$0xff]
  %v9334 = vld [vmem:[%s2 + $0x20] sm:$0xff]
  %v9335 = vld [vmem:[%s2 + $0x28] sm:$0xff]
  %v9336 = vld [vmem:[%s2 + $0x30] sm:$0xff]
  %v9337 = vld [vmem:[%s2 + $0x38] sm:$0xff]
  %v9338 = vld [vmem:[%s2 + $0x40] sm:$0xff]
  %v9339 = vld [vmem:[%s2 + $0x48] sm:$0xff]
  %v9340 = vld [vmem:[%s2 + $0x50] sm:$0xff]
  %v9341 = vld [vmem:[%s2 + $0x58] sm:$0xff]
  %v9342 = vld [vmem:[%s2 + $0x60] sm:$0xff]
  %v9343 = vld [vmem:[%s2 + $0x68] sm:$0xff]
  %v9344 = vld [vmem:[%s2 + $0x70] sm:$0xff]
  %v9345 = vld [vmem:[%s2 + $0x78] sm:$0xff]
  %v9346 = vld [vmem:[%s2 + $0x80] sm:$0xff]
  %v9347 = vld [vmem:[%s2 + $0x88] sm:$0xff]
  %v9348 = vld [vmem:[%s2 + $0x90] sm:$0xff]
  %v9349 = vld [vmem:[%s2 + $0x98] sm:$0xff]
  %v9350 = vld [vmem:[%s2 + $0xa0] sm:$0xff]
  %v9351 = vld [vmem:[%s2 + $0xa8] sm:$0xff]
  %v9352 = vld [vmem:[%s2 + $0xb0] sm:$0xff]
  %v9353 = vld [vmem:[%s2 + $0xb8] sm:$0xff]
  %v9354 = vld [vmem:[%s2 + $0xc0] sm:$0xff]
  %v9355 = vld [vmem:[%s2 + $0xc8] sm:$0xff]
  %v9356 = vld [vmem:[%s2 + $0xd0] sm:$0xff]
  %v9357 = vld [vmem:[%s2 + $0xd8] sm:$0xff]
  %v9358 = vld [vmem:[%s2 + $0xe0] sm:$0xff]
  %v9359 = vld [vmem:[%s2 + $0xe8] sm:$0xff]
  %v9360 = vld [vmem:[%s2 + $0xf0] sm:$0xff]
  %v9361 = vld [vmem:[%s2 + $0xf8] sm:$0xff]
  %v9362 = vld [vmem:[%s2 + $0x100] sm:$0xff]
  %v9363 = vld [vmem:[%s2 + $0x108] sm:$0xff]
  %v9364 = vld [vmem:[%s2 + $0x110] sm:$0xff]
  %v9365 = vld [vmem:[%s2 + $0x118] sm:$0xff]
  %v9366 = vld [vmem:[%s2 + $0x120] sm:$0xff]
  %v9367 = vld [vmem:[%s2 + $0x128] sm:$0xff]
  %v9368 = vld [vmem:[%s2 + $0x130] sm:$0xff]
  %v9369 = vld [vmem:[%s2 + $0x138] sm:$0xff]
  %v9370 = vld [vmem:[%s2 + $0x140] sm:$0xff]
  %v9371 = vld [vmem:[%s2 + $0x148] sm:$0xff]
  %v9372 = vld [vmem:[%s2 + $0x150] sm:$0xff]
  %v9373 = vld [vmem:[%s2 + $0x158] sm:$0xff]
  %v9374 = vld [vmem:[%s2 + $0x160] sm:$0xff]
  %v9375 = vld [vmem:[%s2 + $0x168] sm:$0xff]
  %v9376 = vld [vmem:[%s2 + $0x170] sm:$0xff]
  %v9377 = vld [vmem:[%s2 + $0x178] sm:$0xff]
  %v9378 = vld [vmem:[%s2 + $0x180] sm:$0xff]
  %v9379 = vld [vmem:[%s2 + $0x188] sm:$0xff]
  %v9380 = vld [vmem:[%s2 + $0x190] sm:$0xff]
  %v9381 = vld [vmem:[%s2 + $0x198] sm:$0xff]
  %v9382 = vld [vmem:[%s2 + $0x1a0] sm:$0xff]
  %v9383 = vld [vmem:[%s2 + $0x1a8] sm:$0xff]
  %v9384 = vld [vmem:[%s2 + $0x1b0] sm:$0xff]
  %v9385 = vld [vmem:[%s2 + $0x1b8] sm:$0xff]
  %v9386 = vld [vmem:[%s2 + $0x1c0] sm:$0xff]
  %v9387 = vld [vmem:[%s2 + $0x1c8] sm:$0xff]
  %v9388 = vld [vmem:[%s2 + $0x1d0] sm:$0xff]
  %v9389 = vld [vmem:[%s2 + $0x1d8] sm:$0xff]
  %v9390 = vld [vmem:[%s2 + $0x1e0] sm:$0xff]
  %v9391 = vld [vmem:[%s2 + $0x1e8] sm:$0xff]
  %v9392 = vld [vmem:[%s2 + $0x1f0] sm:$0xff]
  %v9393 = vld [vmem:[%s2 + $0x1f8] sm:$0xff]
  %9410 = vst [vmem:[#allocation1] ss:$9 sm:$0xff] %v9266
  %s9411 = scalar_lea.vmem [#allocation1], 1
  %9412 = vst [vmem:[%s9411] ss:$9 sm:$0xff] %v9267
  %s9413 = scalar_lea.vmem [#allocation1], 2
  %9414 = vst [vmem:[%s9413] ss:$9 sm:$0xff] %v9268
  %s9415 = scalar_lea.vmem [#allocation1], 3
  %9416 = vst [vmem:[%s9415] ss:$9 sm:$0xff] %v9269
  %s9417 = scalar_lea.vmem [#allocation1], 4
  %9418 = vst [vmem:[%s9417] ss:$9 sm:$0xff] %v9270
  %s9419 = scalar_lea.vmem [#allocation1], 5
  %9420 = vst [vmem:[%s9419] ss:$9 sm:$0xff] %v9271
  %s9421 = scalar_lea.vmem [#allocation1], 6
  %9422 = vst [vmem:[%s9421] ss:$9 sm:$0xff] %v9272
  %s9423 = scalar_lea.vmem [#allocation1], 7
  %9424 = vst [vmem:[%s9423] ss:$9 sm:$0xff] %v9273
  %v9425 = vld [vmem:[#allocation1] sm:$0xff]
  %9426 = vst [vmem:[#allocation1] ss:$9 sm:$0xff] %v9274
  %9427 = vst [vmem:[%s9411] ss:$9 sm:$0xff] %v9275
  %9428 = vst [vmem:[%s9413] ss:$9 sm:$0xff] %v9276
  %9429 = vst [vmem:[%s9415] ss:$9 sm:$0xff] %v9277
  %9430 = vst [vmem:[%s9417] ss:$9 sm:$0xff] %v9278
  %9431 = vst [vmem:[%s9419] ss:$9 sm:$0xff] %v9279
  %9432 = vst [vmem:[%s9421] ss:$9 sm:$0xff] %v9280
  %9433 = vst [vmem:[%s9423] ss:$9 sm:$0xff] %v9281
  %v9434 = vld [vmem:[#allocation1] sm:$0xff]
  %9437 = vmatpush.msra.mxu0 %v9390
  %9438 = vmatpush.msra.mxu0 %v9386
  %9439 = vmatpush.msra.mxu0 %v9382
  %9440 = vmatpush.msra.mxu0 %v9378
  %9441 = vmatpush.msra.mxu0 %v9374
  %9442 = vmatpush.msra.mxu0 %v9370
  %9443 = vmatpush.msra.mxu0 %v9366
  %9444 = vmatpush.msra.mxu0 %v9362
  %9445 = vmatpush.msra.mxu0 %v9358
  %9446 = vmatpush.msra.mxu0 %v9354
  %9447 = vmatpush.msra.mxu0 %v9350
  %9448 = vmatpush.msra.mxu0 %v9346
  %9449 = vmatpush.msra.mxu0 %v9342
  %9450 = vmatpush.msra.mxu0 %v9338
  %9451 = vmatpush.msra.mxu0 %v9334
  %9452 = vmatpush.msra.mxu0 %v9330
  %9453 = vmatmul.f32.gmra.mxu0 %v9425
  %v9454 = vpop.f32.mrf.mxu0
  %v9455 = vadd.f32 0.0, %v9454
  %9456 = vmatmul.f32.gmra.mxu0 %v9434
  %v9457 = vpop.f32.mrf.mxu0
  %v9458 = vadd.f32 0.0, %v9457
  %9459 = vdwg.mxu0
  %9460 = vmatpush.msra.mxu0 %v9391
  %9461 = vmatpush.msra.mxu0 %v9387
  %9462 = vmatpush.msra.mxu0 %v9383
  %9463 = vmatpush.msra.mxu0 %v9379
  %9464 = vmatpush.msra.mxu0 %v9375
  %9465 = vmatpush.msra.mxu0 %v9371
  %9466 = vmatpush.msra.mxu0 %v9367
  %9467 = vmatpush.msra.mxu0 %v9363
  %9468 = vmatpush.msra.mxu0 %v9359
  %9469 = vmatpush.msra.mxu0 %v9355
  %9470 = vmatpush.msra.mxu0 %v9351
  %9471 = vmatpush.msra.mxu0 %v9347
  %9472 = vmatpush.msra.mxu0 %v9343
  %9473 = vmatpush.msra.mxu0 %v9339
  %9474 = vmatpush.msra.mxu0 %v9335
  %9475 = vmatpush.msra.mxu0 %v9331
  %9476 = vmatmul.f32.gmra.mxu0 %v9425
  %v9477 = vpop.f32.mrf.mxu0
  %v9478 = vadd.f32 0.0, %v9477
  %9479 = vmatmul.f32.gmra.mxu0 %v9434
  %v9480 = vpop.f32.mrf.mxu0
  %v9481 = vadd.f32 0.0, %v9480
  %9482 = vdwg.mxu0
  %9483 = vmatpush.msra.mxu0 %v9392
  %9484 = vmatpush.msra.mxu0 %v9388
  %9485 = vmatpush.msra.mxu0 %v9384
  %9486 = vmatpush.msra.mxu0 %v9380
  %9487 = vmatpush.msra.mxu0 %v9376
  %9488 = vmatpush.msra.mxu0 %v9372
  %9489 = vmatpush.msra.mxu0 %v9368
  %9490 = vmatpush.msra.mxu0 %v9364
  %9491 = vmatpush.msra.mxu0 %v9360
  %9492 = vmatpush.msra.mxu0 %v9356
  %9493 = vmatpush.msra.mxu0 %v9352
  %9494 = vmatpush.msra.mxu0 %v9348
  %9495 = vmatpush.msra.mxu0 %v9344
  %9496 = vmatpush.msra.mxu0 %v9340
  %9497 = vmatpush.msra.mxu0 %v9336
  %9498 = vmatpush.msra.mxu0 %v9332
  %9499 = vmatmul.f32.gmra.mxu0 %v9425
  %v9500 = vpop.f32.mrf.mxu0
  %v9501 = vadd.f32 0.0, %v9500
  %9502 = vmatmul.f32.gmra.mxu0 %v9434
  %v9503 = vpop.f32.mrf.mxu0
  %v9504 = vadd.f32 0.0, %v9503
  %9505 = vdwg.mxu0
  %9506 = vmatpush.msra.mxu0 %v9393
  %9507 = vmatpush.msra.mxu0 %v9389
  %9508 = vmatpush.msra.mxu0 %v9385
  %9509 = vmatpush.msra.mxu0 %v9381
  %9510 = vmatpush.msra.mxu0 %v9377
  %9511 = vmatpush.msra.mxu0 %v9373
  %9512 = vmatpush.msra.mxu0 %v9369
  %9513 = vmatpush.msra.mxu0 %v9365
  %9514 = vmatpush.msra.mxu0 %v9361
  %9515 = vmatpush.msra.mxu0 %v9357
  %9516 = vmatpush.msra.mxu0 %v9353
  %9517 = vmatpush.msra.mxu0 %v9349
  %9518 = vmatpush.msra.mxu0 %v9345
  %9519 = vmatpush.msra.mxu0 %v9341
  %9520 = vmatpush.msra.mxu0 %v9337
  %9521 = vmatpush.msra.mxu0 %v9333
  %9522 = vmatmul.f32.gmra.mxu0 %v9425
  %v9523 = vpop.f32.mrf.mxu0
  %v9524 = vadd.f32 0.0, %v9523
  %9525 = vmatmul.f32.gmra.mxu0 %v9434
  %v9526 = vpop.f32.mrf.mxu0
  %v9527 = vadd.f32 0.0, %v9526
  %9528 = vdwg.mxu0
  %v9537 = vrot.slane %v9478, 7
  %v9538 = vrot.slane %v9501, 6
  %v9539 = vrot.slane %v9524, 5
  %v9540 = vrot.slane %v9481, 7
  %v9541 = vrot.slane %v9504, 6
  %v9542 = vrot.slane %v9527, 5
  %v9543 = vsel %vm647, %v9455, %v9537
  %v9544 = vsel %vm649, %v9538, %v9539
  %v9545 = vsel %vm651, %v9543, %v9544
  %v9546 = vsel %vm653, %v9455, %v9537
  %v9547 = vsel %vm655, %v9538, %v9539
  %v9548 = vsel %vm657, %v9546, %v9547
  %v9549 = vrot.slane %v9548, 1
  %v9550 = vsel %vm649, %v9455, %v9537
  %v9551 = vsel %vm661, %v9538, %v9539
  %v9552 = vsel %vm663, %v9550, %v9551
  %v9553 = vrot.slane %v9552, 2
  %v9554 = vsel %vm655, %v9455, %v9537
  %v9555 = vsel %vm667, %v9538, %v9539
  %v9556 = vsel %vm669, %v9554, %v9555
  %v9557 = vrot.slane %v9556, 3
  %v9558 = vsel %vm661, %v9455, %v9537
  %v9559 = vsel %vm673, %v9538, %v9539
  %v9560 = vsel %vm675, %v9558, %v9559
  %v9561 = vrot.slane %v9560, 4
  %v9562 = vsel %vm667, %v9455, %v9537
  %v9563 = vsel %vm679, %v9539, %v9538
  %v9564 = vsel %vm681, %v9562, %v9563
  %v9565 = vrot.slane %v9564, 5
  %v9566 = vsel %vm673, %v9455, %v9537
  %v9567 = vsel %vm647, %v9538, %v9539
  %v9568 = vsel %vm686, %v9567, %v9566
  %v9569 = vrot.slane %v9568, 6
  %v9570 = vsel %vm679, %v9537, %v9455
  %v9571 = vsel %vm653, %v9538, %v9539
  %v9572 = vsel %vm691, %v9571, %v9570
  %v9573 = vrot.slane %v9572, 7
  %v9574 = vsel %vm647, %v9458, %v9540
  %v9575 = vsel %vm649, %v9541, %v9542
  %v9576 = vsel %vm651, %v9574, %v9575
  %v9577 = vsel %vm653, %v9458, %v9540
  %v9578 = vsel %vm655, %v9541, %v9542
  %v9579 = vsel %vm657, %v9577, %v9578
  %v9580 = vrot.slane %v9579, 1
  %v9581 = vsel %vm649, %v9458, %v9540
  %v9582 = vsel %vm661, %v9541, %v9542
  %v9583 = vsel %vm663, %v9581, %v9582
  %v9584 = vrot.slane %v9583, 2
  %v9585 = vsel %vm655, %v9458, %v9540
  %v9586 = vsel %vm667, %v9541, %v9542
  %v9587 = vsel %vm669, %v9585, %v9586
  %v9588 = vrot.slane %v9587, 3
  %v9589 = vsel %vm661, %v9458, %v9540
  %v9590 = vsel %vm673, %v9541, %v9542
  %v9591 = vsel %vm675, %v9589, %v9590
  %v9592 = vrot.slane %v9591, 4
  %v9593 = vsel %vm667, %v9458, %v9540
  %v9594 = vsel %vm679, %v9542, %v9541
  %v9595 = vsel %vm681, %v9593, %v9594
  %v9596 = vrot.slane %v9595, 5
  %v9597 = vsel %vm673, %v9458, %v9540
  %v9598 = vsel %vm647, %v9541, %v9542
  %v9599 = vsel %vm686, %v9598, %v9597
  %v9600 = vrot.slane %v9599, 6
  %v9601 = vsel %vm679, %v9540, %v9458
  %v9602 = vsel %vm653, %v9541, %v9542
  %v9603 = vsel %vm691, %v9602, %v9601
  %v9604 = vrot.slane %v9603, 7
  %v9621 = vadd.f32 %v9299, %v9545
  %v9622 = vadd.f32 %v9301, %v9549
  %v9623 = vadd.f32 %v9303, %v9553
  %v9624 = vadd.f32 %v9305, %v9557
  %v9625 = vadd.f32 %v9307, %v9561
  %v9626 = vadd.f32 %v9309, %v9565
  %v9627 = vadd.f32 %v9311, %v9569
  %v9628 = vadd.f32 %v9313, %v9573
  %v9629 = vadd.f32 %v9315, %v9576
  %v9630 = vadd.f32 %v9317, %v9580
  %v9631 = vadd.f32 %v9319, %v9584
  %v9632 = vadd.f32 %v9321, %v9588
  %v9633 = vadd.f32 %v9323, %v9592
  %v9634 = vadd.f32 %v9325, %v9596
  %v9635 = vadd.f32 %v9327, %v9600
  %v9636 = vadd.f32 %v9329, %v9604
  %v9637 = vxor.u32 %v9621, 2147483648
  %v9638 = vxor.u32 %v9622, 2147483648
  %v9639 = vxor.u32 %v9623, 2147483648
  %v9640 = vxor.u32 %v9624, 2147483648
  %v9641 = vxor.u32 %v9625, 2147483648
  %v9642 = vxor.u32 %v9626, 2147483648
  %v9643 = vxor.u32 %v9627, 2147483648
  %v9644 = vxor.u32 %v9628, 2147483648
  %v9645 = vxor.u32 %v9629, 2147483648
  %v9646 = vxor.u32 %v9630, 2147483648
  %v9647 = vxor.u32 %v9631, 2147483648
  %v9648 = vxor.u32 %v9632, 2147483648
  %v9649 = vxor.u32 %v9633, 2147483648
  %v9650 = vxor.u32 %v9634, 2147483648
  %v9651 = vxor.u32 %v9635, 2147483648
  %v9652 = vxor.u32 %v9636, 2147483648
  %v9653 = vmul.f32 %v9637, 1.442695
  %v9654 = vpow.pop %v9653
  %v9655 = vmul.f32 %v9638, 1.442695
  %v9656 = vpow.pop %v9655
  %v9657 = vmul.f32 %v9639, 1.442695
  %v9658 = vpow.pop %v9657
  %v9659 = vmul.f32 %v9640, 1.442695
  %v9660 = vpow.pop %v9659
  %v9661 = vmul.f32 %v9641, 1.442695
  %v9662 = vpow.pop %v9661
  %v9663 = vmul.f32 %v9642, 1.442695
  %v9664 = vpow.pop %v9663
  %v9665 = vmul.f32 %v9643, 1.442695
  %v9666 = vpow.pop %v9665
  %v9667 = vmul.f32 %v9644, 1.442695
  %v9668 = vpow.pop %v9667
  %v9669 = vmul.f32 %v9645, 1.442695
  %v9670 = vpow.pop %v9669
  %v9671 = vmul.f32 %v9646, 1.442695
  %v9672 = vpow.pop %v9671
  %v9673 = vmul.f32 %v9647, 1.442695
  %v9674 = vpow.pop %v9673
  %v9675 = vmul.f32 %v9648, 1.442695
  %v9676 = vpow.pop %v9675
  %v9677 = vmul.f32 %v9649, 1.442695
  %v9678 = vpow.pop %v9677
  %v9679 = vmul.f32 %v9650, 1.442695
  %v9680 = vpow.pop %v9679
  %v9681 = vmul.f32 %v9651, 1.442695
  %v9682 = vpow.pop %v9681
  %v9683 = vmul.f32 %v9652, 1.442695
  %v9684 = vpow.pop %v9683
  %v9685 = vadd.f32 %v9654, 1.0
  %v9686 = vadd.f32 %v9656, 1.0
  %v9687 = vadd.f32 %v9658, 1.0
  %v9688 = vadd.f32 %v9660, 1.0
  %v9689 = vadd.f32 %v9662, 1.0
  %v9690 = vadd.f32 %v9664, 1.0
  %v9691 = vadd.f32 %v9666, 1.0
  %v9692 = vadd.f32 %v9668, 1.0
  %v9693 = vadd.f32 %v9670, 1.0
  %v9694 = vadd.f32 %v9672, 1.0
  %v9695 = vadd.f32 %v9674, 1.0
  %v9696 = vadd.f32 %v9676, 1.0
  %v9697 = vadd.f32 %v9678, 1.0
  %v9698 = vadd.f32 %v9680, 1.0
  %v9699 = vadd.f32 %v9682, 1.0
  %v9700 = vadd.f32 %v9684, 1.0
  %v9701 = vrcp.pop %v9685
  %v9702 = vmul.f32 %v9685, %v9701
  %v9703 = vsub.f32 1.0, %v9702
  %v9704 = vmul.f32 %v9701, %v9703
  %v9705 = vadd.f32 %v9701, %v9704
  %vm9706 = vweird.f32 %v9685
  %vm9707 = vweird.f32 %v9701
  %vm9708 = vmor %vm9706, %vm9707
  %v9709 = vsel %vm9708, %v9701, %v9705
  %v9710 = vand.u32 2147483647, %v9685
  %vm9711 = vcmp.eq.f32.partialorder %v9710, 8.507059e+37
  %v9712 = vand.u32 %v9685, 2147483648
  %v9713 = vor.u32 1.1754944e-38, %v9712
  %v9714 = vsel %vm9711, %v9713, %v9709
  %v9715 = vmul.f32 1.0, %v9714
  %v9716 = vrcp.pop %v9686
  %v9717 = vmul.f32 %v9686, %v9716
  %v9718 = vsub.f32 1.0, %v9717
  %v9719 = vmul.f32 %v9716, %v9718
  %v9720 = vadd.f32 %v9716, %v9719
  %vm9721 = vweird.f32 %v9686
  %vm9722 = vweird.f32 %v9716
  %vm9723 = vmor %vm9721, %vm9722
  %v9724 = vsel %vm9723, %v9716, %v9720
  %v9725 = vand.u32 2147483647, %v9686
  %vm9726 = vcmp.eq.f32.partialorder %v9725, 8.507059e+37
  %v9727 = vand.u32 %v9686, 2147483648
  %v9728 = vor.u32 1.1754944e-38, %v9727
  %v9729 = vsel %vm9726, %v9728, %v9724
  %v9730 = vmul.f32 1.0, %v9729
  %v9731 = vrcp.pop %v9687
  %v9732 = vmul.f32 %v9687, %v9731
  %v9733 = vsub.f32 1.0, %v9732
  %v9734 = vmul.f32 %v9731, %v9733
  %v9735 = vadd.f32 %v9731, %v9734
  %vm9736 = vweird.f32 %v9687
  %vm9737 = vweird.f32 %v9731
  %vm9738 = vmor %vm9736, %vm9737
  %v9739 = vsel %vm9738, %v9731, %v9735
  %v9740 = vand.u32 2147483647, %v9687
  %vm9741 = vcmp.eq.f32.partialorder %v9740, 8.507059e+37
  %v9742 = vand.u32 %v9687, 2147483648
  %v9743 = vor.u32 1.1754944e-38, %v9742
  %v9744 = vsel %vm9741, %v9743, %v9739
  %v9745 = vmul.f32 1.0, %v9744
  %v9746 = vrcp.pop %v9688
  %v9747 = vmul.f32 %v9688, %v9746
  %v9748 = vsub.f32 1.0, %v9747
  %v9749 = vmul.f32 %v9746, %v9748
  %v9750 = vadd.f32 %v9746, %v9749
  %vm9751 = vweird.f32 %v9688
  %vm9752 = vweird.f32 %v9746
  %vm9753 = vmor %vm9751, %vm9752
  %v9754 = vsel %vm9753, %v9746, %v9750
  %v9755 = vand.u32 2147483647, %v9688
  %vm9756 = vcmp.eq.f32.partialorder %v9755, 8.507059e+37
  %v9757 = vand.u32 %v9688, 2147483648
  %v9758 = vor.u32 1.1754944e-38, %v9757
  %v9759 = vsel %vm9756, %v9758, %v9754
  %v9760 = vmul.f32 1.0, %v9759
  %v9761 = vrcp.pop %v9689
  %v9762 = vmul.f32 %v9689, %v9761
  %v9763 = vsub.f32 1.0, %v9762
  %v9764 = vmul.f32 %v9761, %v9763
  %v9765 = vadd.f32 %v9761, %v9764
  %vm9766 = vweird.f32 %v9689
  %vm9767 = vweird.f32 %v9761
  %vm9768 = vmor %vm9766, %vm9767
  %v9769 = vsel %vm9768, %v9761, %v9765
  %v9770 = vand.u32 2147483647, %v9689
  %vm9771 = vcmp.eq.f32.partialorder %v9770, 8.507059e+37
  %v9772 = vand.u32 %v9689, 2147483648
  %v9773 = vor.u32 1.1754944e-38, %v9772
  %v9774 = vsel %vm9771, %v9773, %v9769
  %v9775 = vmul.f32 1.0, %v9774
  %v9776 = vrcp.pop %v9690
  %v9777 = vmul.f32 %v9690, %v9776
  %v9778 = vsub.f32 1.0, %v9777
  %v9779 = vmul.f32 %v9776, %v9778
  %v9780 = vadd.f32 %v9776, %v9779
  %vm9781 = vweird.f32 %v9690
  %vm9782 = vweird.f32 %v9776
  %vm9783 = vmor %vm9781, %vm9782
  %v9784 = vsel %vm9783, %v9776, %v9780
  %v9785 = vand.u32 2147483647, %v9690
  %vm9786 = vcmp.eq.f32.partialorder %v9785, 8.507059e+37
  %v9787 = vand.u32 %v9690, 2147483648
  %v9788 = vor.u32 1.1754944e-38, %v9787
  %v9789 = vsel %vm9786, %v9788, %v9784
  %v9790 = vmul.f32 1.0, %v9789
  %v9791 = vrcp.pop %v9691
  %v9792 = vmul.f32 %v9691, %v9791
  %v9793 = vsub.f32 1.0, %v9792
  %v9794 = vmul.f32 %v9791, %v9793
  %v9795 = vadd.f32 %v9791, %v9794
  %vm9796 = vweird.f32 %v9691
  %vm9797 = vweird.f32 %v9791
  %vm9798 = vmor %vm9796, %vm9797
  %v9799 = vsel %vm9798, %v9791, %v9795
  %v9800 = vand.u32 2147483647, %v9691
  %vm9801 = vcmp.eq.f32.partialorder %v9800, 8.507059e+37
  %v9802 = vand.u32 %v9691, 2147483648
  %v9803 = vor.u32 1.1754944e-38, %v9802
  %v9804 = vsel %vm9801, %v9803, %v9799
  %v9805 = vmul.f32 1.0, %v9804
  %v9806 = vrcp.pop %v9692
  %v9807 = vmul.f32 %v9692, %v9806
  %v9808 = vsub.f32 1.0, %v9807
  %v9809 = vmul.f32 %v9806, %v9808
  %v9810 = vadd.f32 %v9806, %v9809
  %vm9811 = vweird.f32 %v9692
  %vm9812 = vweird.f32 %v9806
  %vm9813 = vmor %vm9811, %vm9812
  %v9814 = vsel %vm9813, %v9806, %v9810
  %v9815 = vand.u32 2147483647, %v9692
  %vm9816 = vcmp.eq.f32.partialorder %v9815, 8.507059e+37
  %v9817 = vand.u32 %v9692, 2147483648
  %v9818 = vor.u32 1.1754944e-38, %v9817
  %v9819 = vsel %vm9816, %v9818, %v9814
  %v9820 = vmul.f32 1.0, %v9819
  %v9821 = vrcp.pop %v9693
  %v9822 = vmul.f32 %v9693, %v9821
  %v9823 = vsub.f32 1.0, %v9822
  %v9824 = vmul.f32 %v9821, %v9823
  %v9825 = vadd.f32 %v9821, %v9824
  %vm9826 = vweird.f32 %v9693
  %vm9827 = vweird.f32 %v9821
  %vm9828 = vmor %vm9826, %vm9827
  %v9829 = vsel %vm9828, %v9821, %v9825
  %v9830 = vand.u32 2147483647, %v9693
  %vm9831 = vcmp.eq.f32.partialorder %v9830, 8.507059e+37
  %v9832 = vand.u32 %v9693, 2147483648
  %v9833 = vor.u32 1.1754944e-38, %v9832
  %v9834 = vsel %vm9831, %v9833, %v9829
  %v9835 = vmul.f32 1.0, %v9834
  %v9836 = vrcp.pop %v9694
  %v9837 = vmul.f32 %v9694, %v9836
  %v9838 = vsub.f32 1.0, %v9837
  %v9839 = vmul.f32 %v9836, %v9838
  %v9840 = vadd.f32 %v9836, %v9839
  %vm9841 = vweird.f32 %v9694
  %vm9842 = vweird.f32 %v9836
  %vm9843 = vmor %vm9841, %vm9842
  %v9844 = vsel %vm9843, %v9836, %v9840
  %v9845 = vand.u32 2147483647, %v9694
  %vm9846 = vcmp.eq.f32.partialorder %v9845, 8.507059e+37
  %v9847 = vand.u32 %v9694, 2147483648
  %v9848 = vor.u32 1.1754944e-38, %v9847
  %v9849 = vsel %vm9846, %v9848, %v9844
  %v9850 = vmul.f32 1.0, %v9849
  %v9851 = vrcp.pop %v9695
  %v9852 = vmul.f32 %v9695, %v9851
  %v9853 = vsub.f32 1.0, %v9852
  %v9854 = vmul.f32 %v9851, %v9853
  %v9855 = vadd.f32 %v9851, %v9854
  %vm9856 = vweird.f32 %v9695
  %vm9857 = vweird.f32 %v9851
  %vm9858 = vmor %vm9856, %vm9857
  %v9859 = vsel %vm9858, %v9851, %v9855
  %v9860 = vand.u32 2147483647, %v9695
  %vm9861 = vcmp.eq.f32.partialorder %v9860, 8.507059e+37
  %v9862 = vand.u32 %v9695, 2147483648
  %v9863 = vor.u32 1.1754944e-38, %v9862
  %v9864 = vsel %vm9861, %v9863, %v9859
  %v9865 = vmul.f32 1.0, %v9864
  %v9866 = vrcp.pop %v9696
  %v9867 = vmul.f32 %v9696, %v9866
  %v9868 = vsub.f32 1.0, %v9867
  %v9869 = vmul.f32 %v9866, %v9868
  %v9870 = vadd.f32 %v9866, %v9869
  %vm9871 = vweird.f32 %v9696
  %vm9872 = vweird.f32 %v9866
  %vm9873 = vmor %vm9871, %vm9872
  %v9874 = vsel %vm9873, %v9866, %v9870
  %v9875 = vand.u32 2147483647, %v9696
  %vm9876 = vcmp.eq.f32.partialorder %v9875, 8.507059e+37
  %v9877 = vand.u32 %v9696, 2147483648
  %v9878 = vor.u32 1.1754944e-38, %v9877
  %v9879 = vsel %vm9876, %v9878, %v9874
  %v9880 = vmul.f32 1.0, %v9879
  %v9881 = vrcp.pop %v9697
  %v9882 = vmul.f32 %v9697, %v9881
  %v9883 = vsub.f32 1.0, %v9882
  %v9884 = vmul.f32 %v9881, %v9883
  %v9885 = vadd.f32 %v9881, %v9884
  %vm9886 = vweird.f32 %v9697
  %vm9887 = vweird.f32 %v9881
  %vm9888 = vmor %vm9886, %vm9887
  %v9889 = vsel %vm9888, %v9881, %v9885
  %v9890 = vand.u32 2147483647, %v9697
  %vm9891 = vcmp.eq.f32.partialorder %v9890, 8.507059e+37
  %v9892 = vand.u32 %v9697, 2147483648
  %v9893 = vor.u32 1.1754944e-38, %v9892
  %v9894 = vsel %vm9891, %v9893, %v9889
  %v9895 = vmul.f32 1.0, %v9894
  %v9896 = vrcp.pop %v9698
  %v9897 = vmul.f32 %v9698, %v9896
  %v9898 = vsub.f32 1.0, %v9897
  %v9899 = vmul.f32 %v9896, %v9898
  %v9900 = vadd.f32 %v9896, %v9899
  %vm9901 = vweird.f32 %v9698
  %vm9902 = vweird.f32 %v9896
  %vm9903 = vmor %vm9901, %vm9902
  %v9904 = vsel %vm9903, %v9896, %v9900
  %v9905 = vand.u32 2147483647, %v9698
  %vm9906 = vcmp.eq.f32.partialorder %v9905, 8.507059e+37
  %v9907 = vand.u32 %v9698, 2147483648
  %v9908 = vor.u32 1.1754944e-38, %v9907
  %v9909 = vsel %vm9906, %v9908, %v9904
  %v9910 = vmul.f32 1.0, %v9909
  %v9911 = vrcp.pop %v9699
  %v9912 = vmul.f32 %v9699, %v9911
  %v9913 = vsub.f32 1.0, %v9912
  %v9914 = vmul.f32 %v9911, %v9913
  %v9915 = vadd.f32 %v9911, %v9914
  %vm9916 = vweird.f32 %v9699
  %vm9917 = vweird.f32 %v9911
  %vm9918 = vmor %vm9916, %vm9917
  %v9919 = vsel %vm9918, %v9911, %v9915
  %v9920 = vand.u32 2147483647, %v9699
  %vm9921 = vcmp.eq.f32.partialorder %v9920, 8.507059e+37
  %v9922 = vand.u32 %v9699, 2147483648
  %v9923 = vor.u32 1.1754944e-38, %v9922
  %v9924 = vsel %vm9921, %v9923, %v9919
  %v9925 = vmul.f32 1.0, %v9924
  %v9926 = vrcp.pop %v9700
  %v9927 = vmul.f32 %v9700, %v9926
  %v9928 = vsub.f32 1.0, %v9927
  %v9929 = vmul.f32 %v9926, %v9928
  %v9930 = vadd.f32 %v9926, %v9929
  %vm9931 = vweird.f32 %v9700
  %vm9932 = vweird.f32 %v9926
  %vm9933 = vmor %vm9931, %vm9932
  %v9934 = vsel %vm9933, %v9926, %v9930
  %v9935 = vand.u32 2147483647, %v9700
  %vm9936 = vcmp.eq.f32.partialorder %v9935, 8.507059e+37
  %v9937 = vand.u32 %v9700, 2147483648
  %v9938 = vor.u32 1.1754944e-38, %v9937
  %v9939 = vsel %vm9936, %v9938, %v9934
  %v9940 = vmul.f32 1.0, %v9939
  %v9957 = vrot.slane %v9621, 1
  %v9958 = vrot.slane %v9622, 1
  %v9959 = vrot.slane %v9623, 1
  %v9960 = vrot.slane %v9624, 1
  %v9961 = vrot.slane %v9625, 1
  %v9962 = vrot.slane %v9626, 1
  %v9963 = vrot.slane %v9627, 1
  %v9964 = vrot.slane %v9628, 1
  %v9965 = vrot.slane %v9629, 1
  %v9966 = vrot.slane %v9630, 1
  %v9967 = vrot.slane %v9631, 1
  %v9968 = vrot.slane %v9632, 1
  %v9969 = vrot.slane %v9633, 1
  %v9970 = vrot.slane %v9634, 1
  %v9971 = vrot.slane %v9635, 1
  %v9972 = vrot.slane %v9636, 1
  %v9989 = vxor.u32 %v9957, 2147483648
  %v9990 = vxor.u32 %v9958, 2147483648
  %v9991 = vxor.u32 %v9959, 2147483648
  %v9992 = vxor.u32 %v9960, 2147483648
  %v9993 = vxor.u32 %v9961, 2147483648
  %v9994 = vxor.u32 %v9962, 2147483648
  %v9995 = vxor.u32 %v9963, 2147483648
  %v9996 = vxor.u32 %v9964, 2147483648
  %v9997 = vxor.u32 %v9965, 2147483648
  %v9998 = vxor.u32 %v9966, 2147483648
  %v9999 = vxor.u32 %v9967, 2147483648
  %v10000 = vxor.u32 %v9968, 2147483648
  %v10001 = vxor.u32 %v9969, 2147483648
  %v10002 = vxor.u32 %v9970, 2147483648
  %v10003 = vxor.u32 %v9971, 2147483648
  %v10004 = vxor.u32 %v9972, 2147483648
  %v10005 = vmul.f32 %v9989, 1.442695
  %v10006 = vpow.pop %v10005
  %v10007 = vmul.f32 %v9990, 1.442695
  %v10008 = vpow.pop %v10007
  %v10009 = vmul.f32 %v9991, 1.442695
  %v10010 = vpow.pop %v10009
  %v10011 = vmul.f32 %v9992, 1.442695
  %v10012 = vpow.pop %v10011
  %v10013 = vmul.f32 %v9993, 1.442695
  %v10014 = vpow.pop %v10013
  %v10015 = vmul.f32 %v9994, 1.442695
  %v10016 = vpow.pop %v10015
  %v10017 = vmul.f32 %v9995, 1.442695
  %v10018 = vpow.pop %v10017
  %v10019 = vmul.f32 %v9996, 1.442695
  %v10020 = vpow.pop %v10019
  %v10021 = vmul.f32 %v9997, 1.442695
  %v10022 = vpow.pop %v10021
  %v10023 = vmul.f32 %v9998, 1.442695
  %v10024 = vpow.pop %v10023
  %v10025 = vmul.f32 %v9999, 1.442695
  %v10026 = vpow.pop %v10025
  %v10027 = vmul.f32 %v10000, 1.442695
  %v10028 = vpow.pop %v10027
  %v10029 = vmul.f32 %v10001, 1.442695
  %v10030 = vpow.pop %v10029
  %v10031 = vmul.f32 %v10002, 1.442695
  %v10032 = vpow.pop %v10031
  %v10033 = vmul.f32 %v10003, 1.442695
  %v10034 = vpow.pop %v10033
  %v10035 = vmul.f32 %v10004, 1.442695
  %v10036 = vpow.pop %v10035
  %v10037 = vadd.f32 %v10006, 1.0
  %v10038 = vadd.f32 %v10008, 1.0
  %v10039 = vadd.f32 %v10010, 1.0
  %v10040 = vadd.f32 %v10012, 1.0
  %v10041 = vadd.f32 %v10014, 1.0
  %v10042 = vadd.f32 %v10016, 1.0
  %v10043 = vadd.f32 %v10018, 1.0
  %v10044 = vadd.f32 %v10020, 1.0
  %v10045 = vadd.f32 %v10022, 1.0
  %v10046 = vadd.f32 %v10024, 1.0
  %v10047 = vadd.f32 %v10026, 1.0
  %v10048 = vadd.f32 %v10028, 1.0
  %v10049 = vadd.f32 %v10030, 1.0
  %v10050 = vadd.f32 %v10032, 1.0
  %v10051 = vadd.f32 %v10034, 1.0
  %v10052 = vadd.f32 %v10036, 1.0
  %v10053 = vrcp.pop %v10037
  %v10054 = vmul.f32 %v10037, %v10053
  %v10055 = vsub.f32 1.0, %v10054
  %v10056 = vmul.f32 %v10053, %v10055
  %v10057 = vadd.f32 %v10053, %v10056
  %vm10058 = vweird.f32 %v10037
  %vm10059 = vweird.f32 %v10053
  %vm10060 = vmor %vm10058, %vm10059
  %v10061 = vsel %vm10060, %v10053, %v10057
  %v10062 = vand.u32 2147483647, %v10037
  %vm10063 = vcmp.eq.f32.partialorder %v10062, 8.507059e+37
  %v10064 = vand.u32 %v10037, 2147483648
  %v10065 = vor.u32 1.1754944e-38, %v10064
  %v10066 = vsel %vm10063, %v10065, %v10061
  %v10067 = vmul.f32 1.0, %v10066
  %v10068 = vrcp.pop %v10038
  %v10069 = vmul.f32 %v10038, %v10068
  %v10070 = vsub.f32 1.0, %v10069
  %v10071 = vmul.f32 %v10068, %v10070
  %v10072 = vadd.f32 %v10068, %v10071
  %vm10073 = vweird.f32 %v10038
  %vm10074 = vweird.f32 %v10068
  %vm10075 = vmor %vm10073, %vm10074
  %v10076 = vsel %vm10075, %v10068, %v10072
  %v10077 = vand.u32 2147483647, %v10038
  %vm10078 = vcmp.eq.f32.partialorder %v10077, 8.507059e+37
  %v10079 = vand.u32 %v10038, 2147483648
  %v10080 = vor.u32 1.1754944e-38, %v10079
  %v10081 = vsel %vm10078, %v10080, %v10076
  %v10082 = vmul.f32 1.0, %v10081
  %v10083 = vrcp.pop %v10039
  %v10084 = vmul.f32 %v10039, %v10083
  %v10085 = vsub.f32 1.0, %v10084
  %v10086 = vmul.f32 %v10083, %v10085
  %v10087 = vadd.f32 %v10083, %v10086
  %vm10088 = vweird.f32 %v10039
  %vm10089 = vweird.f32 %v10083
  %vm10090 = vmor %vm10088, %vm10089
  %v10091 = vsel %vm10090, %v10083, %v10087
  %v10092 = vand.u32 2147483647, %v10039
  %vm10093 = vcmp.eq.f32.partialorder %v10092, 8.507059e+37
  %v10094 = vand.u32 %v10039, 2147483648
  %v10095 = vor.u32 1.1754944e-38, %v10094
  %v10096 = vsel %vm10093, %v10095, %v10091
  %v10097 = vmul.f32 1.0, %v10096
  %v10098 = vrcp.pop %v10040
  %v10099 = vmul.f32 %v10040, %v10098
  %v10100 = vsub.f32 1.0, %v10099
  %v10101 = vmul.f32 %v10098, %v10100
  %v10102 = vadd.f32 %v10098, %v10101
  %vm10103 = vweird.f32 %v10040
  %vm10104 = vweird.f32 %v10098
  %vm10105 = vmor %vm10103, %vm10104
  %v10106 = vsel %vm10105, %v10098, %v10102
  %v10107 = vand.u32 2147483647, %v10040
  %vm10108 = vcmp.eq.f32.partialorder %v10107, 8.507059e+37
  %v10109 = vand.u32 %v10040, 2147483648
  %v10110 = vor.u32 1.1754944e-38, %v10109
  %v10111 = vsel %vm10108, %v10110, %v10106
  %v10112 = vmul.f32 1.0, %v10111
  %v10113 = vrcp.pop %v10041
  %v10114 = vmul.f32 %v10041, %v10113
  %v10115 = vsub.f32 1.0, %v10114
  %v10116 = vmul.f32 %v10113, %v10115
  %v10117 = vadd.f32 %v10113, %v10116
  %vm10118 = vweird.f32 %v10041
  %vm10119 = vweird.f32 %v10113
  %vm10120 = vmor %vm10118, %vm10119
  %v10121 = vsel %vm10120, %v10113, %v10117
  %v10122 = vand.u32 2147483647, %v10041
  %vm10123 = vcmp.eq.f32.partialorder %v10122, 8.507059e+37
  %v10124 = vand.u32 %v10041, 2147483648
  %v10125 = vor.u32 1.1754944e-38, %v10124
  %v10126 = vsel %vm10123, %v10125, %v10121
  %v10127 = vmul.f32 1.0, %v10126
  %v10128 = vrcp.pop %v10042
  %v10129 = vmul.f32 %v10042, %v10128
  %v10130 = vsub.f32 1.0, %v10129
  %v10131 = vmul.f32 %v10128, %v10130
  %v10132 = vadd.f32 %v10128, %v10131
  %vm10133 = vweird.f32 %v10042
  %vm10134 = vweird.f32 %v10128
  %vm10135 = vmor %vm10133, %vm10134
  %v10136 = vsel %vm10135, %v10128, %v10132
  %v10137 = vand.u32 2147483647, %v10042
  %vm10138 = vcmp.eq.f32.partialorder %v10137, 8.507059e+37
  %v10139 = vand.u32 %v10042, 2147483648
  %v10140 = vor.u32 1.1754944e-38, %v10139
  %v10141 = vsel %vm10138, %v10140, %v10136
  %v10142 = vmul.f32 1.0, %v10141
  %v10143 = vrcp.pop %v10043
  %v10144 = vmul.f32 %v10043, %v10143
  %v10145 = vsub.f32 1.0, %v10144
  %v10146 = vmul.f32 %v10143, %v10145
  %v10147 = vadd.f32 %v10143, %v10146
  %vm10148 = vweird.f32 %v10043
  %vm10149 = vweird.f32 %v10143
  %vm10150 = vmor %vm10148, %vm10149
  %v10151 = vsel %vm10150, %v10143, %v10147
  %v10152 = vand.u32 2147483647, %v10043
  %vm10153 = vcmp.eq.f32.partialorder %v10152, 8.507059e+37
  %v10154 = vand.u32 %v10043, 2147483648
  %v10155 = vor.u32 1.1754944e-38, %v10154
  %v10156 = vsel %vm10153, %v10155, %v10151
  %v10157 = vmul.f32 1.0, %v10156
  %v10158 = vrcp.pop %v10044
  %v10159 = vmul.f32 %v10044, %v10158
  %v10160 = vsub.f32 1.0, %v10159
  %v10161 = vmul.f32 %v10158, %v10160
  %v10162 = vadd.f32 %v10158, %v10161
  %vm10163 = vweird.f32 %v10044
  %vm10164 = vweird.f32 %v10158
  %vm10165 = vmor %vm10163, %vm10164
  %v10166 = vsel %vm10165, %v10158, %v10162
  %v10167 = vand.u32 2147483647, %v10044
  %vm10168 = vcmp.eq.f32.partialorder %v10167, 8.507059e+37
  %v10169 = vand.u32 %v10044, 2147483648
  %v10170 = vor.u32 1.1754944e-38, %v10169
  %v10171 = vsel %vm10168, %v10170, %v10166
  %v10172 = vmul.f32 1.0, %v10171
  %v10173 = vrcp.pop %v10045
  %v10174 = vmul.f32 %v10045, %v10173
  %v10175 = vsub.f32 1.0, %v10174
  %v10176 = vmul.f32 %v10173, %v10175
  %v10177 = vadd.f32 %v10173, %v10176
  %vm10178 = vweird.f32 %v10045
  %vm10179 = vweird.f32 %v10173
  %vm10180 = vmor %vm10178, %vm10179
  %v10181 = vsel %vm10180, %v10173, %v10177
  %v10182 = vand.u32 2147483647, %v10045
  %vm10183 = vcmp.eq.f32.partialorder %v10182, 8.507059e+37
  %v10184 = vand.u32 %v10045, 2147483648
  %v10185 = vor.u32 1.1754944e-38, %v10184
  %v10186 = vsel %vm10183, %v10185, %v10181
  %v10187 = vmul.f32 1.0, %v10186
  %v10188 = vrcp.pop %v10046
  %v10189 = vmul.f32 %v10046, %v10188
  %v10190 = vsub.f32 1.0, %v10189
  %v10191 = vmul.f32 %v10188, %v10190
  %v10192 = vadd.f32 %v10188, %v10191
  %vm10193 = vweird.f32 %v10046
  %vm10194 = vweird.f32 %v10188
  %vm10195 = vmor %vm10193, %vm10194
  %v10196 = vsel %vm10195, %v10188, %v10192
  %v10197 = vand.u32 2147483647, %v10046
  %vm10198 = vcmp.eq.f32.partialorder %v10197, 8.507059e+37
  %v10199 = vand.u32 %v10046, 2147483648
  %v10200 = vor.u32 1.1754944e-38, %v10199
  %v10201 = vsel %vm10198, %v10200, %v10196
  %v10202 = vmul.f32 1.0, %v10201
  %v10203 = vrcp.pop %v10047
  %v10204 = vmul.f32 %v10047, %v10203
  %v10205 = vsub.f32 1.0, %v10204
  %v10206 = vmul.f32 %v10203, %v10205
  %v10207 = vadd.f32 %v10203, %v10206
  %vm10208 = vweird.f32 %v10047
  %vm10209 = vweird.f32 %v10203
  %vm10210 = vmor %vm10208, %vm10209
  %v10211 = vsel %vm10210, %v10203, %v10207
  %v10212 = vand.u32 2147483647, %v10047
  %vm10213 = vcmp.eq.f32.partialorder %v10212, 8.507059e+37
  %v10214 = vand.u32 %v10047, 2147483648
  %v10215 = vor.u32 1.1754944e-38, %v10214
  %v10216 = vsel %vm10213, %v10215, %v10211
  %v10217 = vmul.f32 1.0, %v10216
  %v10218 = vrcp.pop %v10048
  %v10219 = vmul.f32 %v10048, %v10218
  %v10220 = vsub.f32 1.0, %v10219
  %v10221 = vmul.f32 %v10218, %v10220
  %v10222 = vadd.f32 %v10218, %v10221
  %vm10223 = vweird.f32 %v10048
  %vm10224 = vweird.f32 %v10218
  %vm10225 = vmor %vm10223, %vm10224
  %v10226 = vsel %vm10225, %v10218, %v10222
  %v10227 = vand.u32 2147483647, %v10048
  %vm10228 = vcmp.eq.f32.partialorder %v10227, 8.507059e+37
  %v10229 = vand.u32 %v10048, 2147483648
  %v10230 = vor.u32 1.1754944e-38, %v10229
  %v10231 = vsel %vm10228, %v10230, %v10226
  %v10232 = vmul.f32 1.0, %v10231
  %v10233 = vrcp.pop %v10049
  %v10234 = vmul.f32 %v10049, %v10233
  %v10235 = vsub.f32 1.0, %v10234
  %v10236 = vmul.f32 %v10233, %v10235
  %v10237 = vadd.f32 %v10233, %v10236
  %vm10238 = vweird.f32 %v10049
  %vm10239 = vweird.f32 %v10233
  %vm10240 = vmor %vm10238, %vm10239
  %v10241 = vsel %vm10240, %v10233, %v10237
  %v10242 = vand.u32 2147483647, %v10049
  %vm10243 = vcmp.eq.f32.partialorder %v10242, 8.507059e+37
  %v10244 = vand.u32 %v10049, 2147483648
  %v10245 = vor.u32 1.1754944e-38, %v10244
  %v10246 = vsel %vm10243, %v10245, %v10241
  %v10247 = vmul.f32 1.0, %v10246
  %v10248 = vrcp.pop %v10050
  %v10249 = vmul.f32 %v10050, %v10248
  %v10250 = vsub.f32 1.0, %v10249
  %v10251 = vmul.f32 %v10248, %v10250
  %v10252 = vadd.f32 %v10248, %v10251
  %vm10253 = vweird.f32 %v10050
  %vm10254 = vweird.f32 %v10248
  %vm10255 = vmor %vm10253, %vm10254
  %v10256 = vsel %vm10255, %v10248, %v10252
  %v10257 = vand.u32 2147483647, %v10050
  %vm10258 = vcmp.eq.f32.partialorder %v10257, 8.507059e+37
  %v10259 = vand.u32 %v10050, 2147483648
  %v10260 = vor.u32 1.1754944e-38, %v10259
  %v10261 = vsel %vm10258, %v10260, %v10256
  %v10262 = vmul.f32 1.0, %v10261
  %v10263 = vrcp.pop %v10051
  %v10264 = vmul.f32 %v10051, %v10263
  %v10265 = vsub.f32 1.0, %v10264
  %v10266 = vmul.f32 %v10263, %v10265
  %v10267 = vadd.f32 %v10263, %v10266
  %vm10268 = vweird.f32 %v10051
  %vm10269 = vweird.f32 %v10263
  %vm10270 = vmor %vm10268, %vm10269
  %v10271 = vsel %vm10270, %v10263, %v10267
  %v10272 = vand.u32 2147483647, %v10051
  %vm10273 = vcmp.eq.f32.partialorder %v10272, 8.507059e+37
  %v10274 = vand.u32 %v10051, 2147483648
  %v10275 = vor.u32 1.1754944e-38, %v10274
  %v10276 = vsel %vm10273, %v10275, %v10271
  %v10277 = vmul.f32 1.0, %v10276
  %v10278 = vrcp.pop %v10052
  %v10279 = vmul.f32 %v10052, %v10278
  %v10280 = vsub.f32 1.0, %v10279
  %v10281 = vmul.f32 %v10278, %v10280
  %v10282 = vadd.f32 %v10278, %v10281
  %vm10283 = vweird.f32 %v10052
  %vm10284 = vweird.f32 %v10278
  %vm10285 = vmor %vm10283, %vm10284
  %v10286 = vsel %vm10285, %v10278, %v10282
  %v10287 = vand.u32 2147483647, %v10052
  %vm10288 = vcmp.eq.f32.partialorder %v10287, 8.507059e+37
  %v10289 = vand.u32 %v10052, 2147483648
  %v10290 = vor.u32 1.1754944e-38, %v10289
  %v10291 = vsel %vm10288, %v10290, %v10286
  %v10292 = vmul.f32 1.0, %v10291
  %v10293 = vrot.slane %v9621, 2
  %v10294 = vrot.slane %v9622, 2
  %v10295 = vrot.slane %v9623, 2
  %v10296 = vrot.slane %v9624, 2
  %v10297 = vrot.slane %v9625, 2
  %v10298 = vrot.slane %v9626, 2
  %v10299 = vrot.slane %v9627, 2
  %v10300 = vrot.slane %v9628, 2
  %v10301 = vrot.slane %v9629, 2
  %v10302 = vrot.slane %v9630, 2
  %v10303 = vrot.slane %v9631, 2
  %v10304 = vrot.slane %v9632, 2
  %v10305 = vrot.slane %v9633, 2
  %v10306 = vrot.slane %v9634, 2
  %v10307 = vrot.slane %v9635, 2
  %v10308 = vrot.slane %v9636, 2
  %v10325 = vtanh.pop %v10293
  %v10326 = vtanh.pop %v10294
  %v10327 = vtanh.pop %v10295
  %v10328 = vtanh.pop %v10296
  %v10329 = vtanh.pop %v10297
  %v10330 = vtanh.pop %v10298
  %v10331 = vtanh.pop %v10299
  %v10332 = vtanh.pop %v10300
  %v10333 = vtanh.pop %v10301
  %v10334 = vtanh.pop %v10302
  %v10335 = vtanh.pop %v10303
  %v10336 = vtanh.pop %v10304
  %v10337 = vtanh.pop %v10305
  %v10338 = vtanh.pop %v10306
  %v10339 = vtanh.pop %v10307
  %v10340 = vtanh.pop %v10308
  %v10341 = vrot.slane %v9621, 3
  %v10342 = vrot.slane %v9622, 3
  %v10343 = vrot.slane %v9623, 3
  %v10344 = vrot.slane %v9624, 3
  %v10345 = vrot.slane %v9625, 3
  %v10346 = vrot.slane %v9626, 3
  %v10347 = vrot.slane %v9627, 3
  %v10348 = vrot.slane %v9628, 3
  %v10349 = vrot.slane %v9629, 3
  %v10350 = vrot.slane %v9630, 3
  %v10351 = vrot.slane %v9631, 3
  %v10352 = vrot.slane %v9632, 3
  %v10353 = vrot.slane %v9633, 3
  %v10354 = vrot.slane %v9634, 3
  %v10355 = vrot.slane %v9635, 3
  %v10356 = vrot.slane %v9636, 3
  %v10373 = vxor.u32 %v10341, 2147483648
  %v10374 = vxor.u32 %v10342, 2147483648
  %v10375 = vxor.u32 %v10343, 2147483648
  %v10376 = vxor.u32 %v10344, 2147483648
  %v10377 = vxor.u32 %v10345, 2147483648
  %v10378 = vxor.u32 %v10346, 2147483648
  %v10379 = vxor.u32 %v10347, 2147483648
  %v10380 = vxor.u32 %v10348, 2147483648
  %v10381 = vxor.u32 %v10349, 2147483648
  %v10382 = vxor.u32 %v10350, 2147483648
  %v10383 = vxor.u32 %v10351, 2147483648
  %v10384 = vxor.u32 %v10352, 2147483648
  %v10385 = vxor.u32 %v10353, 2147483648
  %v10386 = vxor.u32 %v10354, 2147483648
  %v10387 = vxor.u32 %v10355, 2147483648
  %v10388 = vxor.u32 %v10356, 2147483648
  %v10389 = vmul.f32 %v10373, 1.442695
  %v10390 = vpow.pop %v10389
  %v10391 = vmul.f32 %v10374, 1.442695
  %v10392 = vpow.pop %v10391
  %v10393 = vmul.f32 %v10375, 1.442695
  %v10394 = vpow.pop %v10393
  %v10395 = vmul.f32 %v10376, 1.442695
  %v10396 = vpow.pop %v10395
  %v10397 = vmul.f32 %v10377, 1.442695
  %v10398 = vpow.pop %v10397
  %v10399 = vmul.f32 %v10378, 1.442695
  %v10400 = vpow.pop %v10399
  %v10401 = vmul.f32 %v10379, 1.442695
  %v10402 = vpow.pop %v10401
  %v10403 = vmul.f32 %v10380, 1.442695
  %v10404 = vpow.pop %v10403
  %v10405 = vmul.f32 %v10381, 1.442695
  %v10406 = vpow.pop %v10405
  %v10407 = vmul.f32 %v10382, 1.442695
  %v10408 = vpow.pop %v10407
  %v10409 = vmul.f32 %v10383, 1.442695
  %v10410 = vpow.pop %v10409
  %v10411 = vmul.f32 %v10384, 1.442695
  %v10412 = vpow.pop %v10411
  %v10413 = vmul.f32 %v10385, 1.442695
  %v10414 = vpow.pop %v10413
  %v10415 = vmul.f32 %v10386, 1.442695
  %v10416 = vpow.pop %v10415
  %v10417 = vmul.f32 %v10387, 1.442695
  %v10418 = vpow.pop %v10417
  %v10419 = vmul.f32 %v10388, 1.442695
  %v10420 = vpow.pop %v10419
  %v10421 = vadd.f32 %v10390, 1.0
  %v10422 = vadd.f32 %v10392, 1.0
  %v10423 = vadd.f32 %v10394, 1.0
  %v10424 = vadd.f32 %v10396, 1.0
  %v10425 = vadd.f32 %v10398, 1.0
  %v10426 = vadd.f32 %v10400, 1.0
  %v10427 = vadd.f32 %v10402, 1.0
  %v10428 = vadd.f32 %v10404, 1.0
  %v10429 = vadd.f32 %v10406, 1.0
  %v10430 = vadd.f32 %v10408, 1.0
  %v10431 = vadd.f32 %v10410, 1.0
  %v10432 = vadd.f32 %v10412, 1.0
  %v10433 = vadd.f32 %v10414, 1.0
  %v10434 = vadd.f32 %v10416, 1.0
  %v10435 = vadd.f32 %v10418, 1.0
  %v10436 = vadd.f32 %v10420, 1.0
  %v10437 = vrcp.pop %v10421
  %v10438 = vmul.f32 %v10421, %v10437
  %v10439 = vsub.f32 1.0, %v10438
  %v10440 = vmul.f32 %v10437, %v10439
  %v10441 = vadd.f32 %v10437, %v10440
  %vm10442 = vweird.f32 %v10421
  %vm10443 = vweird.f32 %v10437
  %vm10444 = vmor %vm10442, %vm10443
  %v10445 = vsel %vm10444, %v10437, %v10441
  %v10446 = vand.u32 2147483647, %v10421
  %vm10447 = vcmp.eq.f32.partialorder %v10446, 8.507059e+37
  %v10448 = vand.u32 %v10421, 2147483648
  %v10449 = vor.u32 1.1754944e-38, %v10448
  %v10450 = vsel %vm10447, %v10449, %v10445
  %v10451 = vmul.f32 1.0, %v10450
  %v10452 = vrcp.pop %v10422
  %v10453 = vmul.f32 %v10422, %v10452
  %v10454 = vsub.f32 1.0, %v10453
  %v10455 = vmul.f32 %v10452, %v10454
  %v10456 = vadd.f32 %v10452, %v10455
  %vm10457 = vweird.f32 %v10422
  %vm10458 = vweird.f32 %v10452
  %vm10459 = vmor %vm10457, %vm10458
  %v10460 = vsel %vm10459, %v10452, %v10456
  %v10461 = vand.u32 2147483647, %v10422
  %vm10462 = vcmp.eq.f32.partialorder %v10461, 8.507059e+37
  %v10463 = vand.u32 %v10422, 2147483648
  %v10464 = vor.u32 1.1754944e-38, %v10463
  %v10465 = vsel %vm10462, %v10464, %v10460
  %v10466 = vmul.f32 1.0, %v10465
  %v10467 = vrcp.pop %v10423
  %v10468 = vmul.f32 %v10423, %v10467
  %v10469 = vsub.f32 1.0, %v10468
  %v10470 = vmul.f32 %v10467, %v10469
  %v10471 = vadd.f32 %v10467, %v10470
  %vm10472 = vweird.f32 %v10423
  %vm10473 = vweird.f32 %v10467
  %vm10474 = vmor %vm10472, %vm10473
  %v10475 = vsel %vm10474, %v10467, %v10471
  %v10476 = vand.u32 2147483647, %v10423
  %vm10477 = vcmp.eq.f32.partialorder %v10476, 8.507059e+37
  %v10478 = vand.u32 %v10423, 2147483648
  %v10479 = vor.u32 1.1754944e-38, %v10478
  %v10480 = vsel %vm10477, %v10479, %v10475
  %v10481 = vmul.f32 1.0, %v10480
  %v10482 = vrcp.pop %v10424
  %v10483 = vmul.f32 %v10424, %v10482
  %v10484 = vsub.f32 1.0, %v10483
  %v10485 = vmul.f32 %v10482, %v10484
  %v10486 = vadd.f32 %v10482, %v10485
  %vm10487 = vweird.f32 %v10424
  %vm10488 = vweird.f32 %v10482
  %vm10489 = vmor %vm10487, %vm10488
  %v10490 = vsel %vm10489, %v10482, %v10486
  %v10491 = vand.u32 2147483647, %v10424
  %vm10492 = vcmp.eq.f32.partialorder %v10491, 8.507059e+37
  %v10493 = vand.u32 %v10424, 2147483648
  %v10494 = vor.u32 1.1754944e-38, %v10493
  %v10495 = vsel %vm10492, %v10494, %v10490
  %v10496 = vmul.f32 1.0, %v10495
  %v10497 = vrcp.pop %v10425
  %v10498 = vmul.f32 %v10425, %v10497
  %v10499 = vsub.f32 1.0, %v10498
  %v10500 = vmul.f32 %v10497, %v10499
  %v10501 = vadd.f32 %v10497, %v10500
  %vm10502 = vweird.f32 %v10425
  %vm10503 = vweird.f32 %v10497
  %vm10504 = vmor %vm10502, %vm10503
  %v10505 = vsel %vm10504, %v10497, %v10501
  %v10506 = vand.u32 2147483647, %v10425
  %vm10507 = vcmp.eq.f32.partialorder %v10506, 8.507059e+37
  %v10508 = vand.u32 %v10425, 2147483648
  %v10509 = vor.u32 1.1754944e-38, %v10508
  %v10510 = vsel %vm10507, %v10509, %v10505
  %v10511 = vmul.f32 1.0, %v10510
  %v10512 = vrcp.pop %v10426
  %v10513 = vmul.f32 %v10426, %v10512
  %v10514 = vsub.f32 1.0, %v10513
  %v10515 = vmul.f32 %v10512, %v10514
  %v10516 = vadd.f32 %v10512, %v10515
  %vm10517 = vweird.f32 %v10426
  %vm10518 = vweird.f32 %v10512
  %vm10519 = vmor %vm10517, %vm10518
  %v10520 = vsel %vm10519, %v10512, %v10516
  %v10521 = vand.u32 2147483647, %v10426
  %vm10522 = vcmp.eq.f32.partialorder %v10521, 8.507059e+37
  %v10523 = vand.u32 %v10426, 2147483648
  %v10524 = vor.u32 1.1754944e-38, %v10523
  %v10525 = vsel %vm10522, %v10524, %v10520
  %v10526 = vmul.f32 1.0, %v10525
  %v10527 = vrcp.pop %v10427
  %v10528 = vmul.f32 %v10427, %v10527
  %v10529 = vsub.f32 1.0, %v10528
  %v10530 = vmul.f32 %v10527, %v10529
  %v10531 = vadd.f32 %v10527, %v10530
  %vm10532 = vweird.f32 %v10427
  %vm10533 = vweird.f32 %v10527
  %vm10534 = vmor %vm10532, %vm10533
  %v10535 = vsel %vm10534, %v10527, %v10531
  %v10536 = vand.u32 2147483647, %v10427
  %vm10537 = vcmp.eq.f32.partialorder %v10536, 8.507059e+37
  %v10538 = vand.u32 %v10427, 2147483648
  %v10539 = vor.u32 1.1754944e-38, %v10538
  %v10540 = vsel %vm10537, %v10539, %v10535
  %v10541 = vmul.f32 1.0, %v10540
  %v10542 = vrcp.pop %v10428
  %v10543 = vmul.f32 %v10428, %v10542
  %v10544 = vsub.f32 1.0, %v10543
  %v10545 = vmul.f32 %v10542, %v10544
  %v10546 = vadd.f32 %v10542, %v10545
  %vm10547 = vweird.f32 %v10428
  %vm10548 = vweird.f32 %v10542
  %vm10549 = vmor %vm10547, %vm10548
  %v10550 = vsel %vm10549, %v10542, %v10546
  %v10551 = vand.u32 2147483647, %v10428
  %vm10552 = vcmp.eq.f32.partialorder %v10551, 8.507059e+37
  %v10553 = vand.u32 %v10428, 2147483648
  %v10554 = vor.u32 1.1754944e-38, %v10553
  %v10555 = vsel %vm10552, %v10554, %v10550
  %v10556 = vmul.f32 1.0, %v10555
  %v10557 = vrcp.pop %v10429
  %v10558 = vmul.f32 %v10429, %v10557
  %v10559 = vsub.f32 1.0, %v10558
  %v10560 = vmul.f32 %v10557, %v10559
  %v10561 = vadd.f32 %v10557, %v10560
  %vm10562 = vweird.f32 %v10429
  %vm10563 = vweird.f32 %v10557
  %vm10564 = vmor %vm10562, %vm10563
  %v10565 = vsel %vm10564, %v10557, %v10561
  %v10566 = vand.u32 2147483647, %v10429
  %vm10567 = vcmp.eq.f32.partialorder %v10566, 8.507059e+37
  %v10568 = vand.u32 %v10429, 2147483648
  %v10569 = vor.u32 1.1754944e-38, %v10568
  %v10570 = vsel %vm10567, %v10569, %v10565
  %v10571 = vmul.f32 1.0, %v10570
  %v10572 = vrcp.pop %v10430
  %v10573 = vmul.f32 %v10430, %v10572
  %v10574 = vsub.f32 1.0, %v10573
  %v10575 = vmul.f32 %v10572, %v10574
  %v10576 = vadd.f32 %v10572, %v10575
  %vm10577 = vweird.f32 %v10430
  %vm10578 = vweird.f32 %v10572
  %vm10579 = vmor %vm10577, %vm10578
  %v10580 = vsel %vm10579, %v10572, %v10576
  %v10581 = vand.u32 2147483647, %v10430
  %vm10582 = vcmp.eq.f32.partialorder %v10581, 8.507059e+37
  %v10583 = vand.u32 %v10430, 2147483648
  %v10584 = vor.u32 1.1754944e-38, %v10583
  %v10585 = vsel %vm10582, %v10584, %v10580
  %v10586 = vmul.f32 1.0, %v10585
  %v10587 = vrcp.pop %v10431
  %v10588 = vmul.f32 %v10431, %v10587
  %v10589 = vsub.f32 1.0, %v10588
  %v10590 = vmul.f32 %v10587, %v10589
  %v10591 = vadd.f32 %v10587, %v10590
  %vm10592 = vweird.f32 %v10431
  %vm10593 = vweird.f32 %v10587
  %vm10594 = vmor %vm10592, %vm10593
  %v10595 = vsel %vm10594, %v10587, %v10591
  %v10596 = vand.u32 2147483647, %v10431
  %vm10597 = vcmp.eq.f32.partialorder %v10596, 8.507059e+37
  %v10598 = vand.u32 %v10431, 2147483648
  %v10599 = vor.u32 1.1754944e-38, %v10598
  %v10600 = vsel %vm10597, %v10599, %v10595
  %v10601 = vmul.f32 1.0, %v10600
  %v10602 = vrcp.pop %v10432
  %v10603 = vmul.f32 %v10432, %v10602
  %v10604 = vsub.f32 1.0, %v10603
  %v10605 = vmul.f32 %v10602, %v10604
  %v10606 = vadd.f32 %v10602, %v10605
  %vm10607 = vweird.f32 %v10432
  %vm10608 = vweird.f32 %v10602
  %vm10609 = vmor %vm10607, %vm10608
  %v10610 = vsel %vm10609, %v10602, %v10606
  %v10611 = vand.u32 2147483647, %v10432
  %vm10612 = vcmp.eq.f32.partialorder %v10611, 8.507059e+37
  %v10613 = vand.u32 %v10432, 2147483648
  %v10614 = vor.u32 1.1754944e-38, %v10613
  %v10615 = vsel %vm10612, %v10614, %v10610
  %v10616 = vmul.f32 1.0, %v10615
  %v10617 = vrcp.pop %v10433
  %v10618 = vmul.f32 %v10433, %v10617
  %v10619 = vsub.f32 1.0, %v10618
  %v10620 = vmul.f32 %v10617, %v10619
  %v10621 = vadd.f32 %v10617, %v10620
  %vm10622 = vweird.f32 %v10433
  %vm10623 = vweird.f32 %v10617
  %vm10624 = vmor %vm10622, %vm10623
  %v10625 = vsel %vm10624, %v10617, %v10621
  %v10626 = vand.u32 2147483647, %v10433
  %vm10627 = vcmp.eq.f32.partialorder %v10626, 8.507059e+37
  %v10628 = vand.u32 %v10433, 2147483648
  %v10629 = vor.u32 1.1754944e-38, %v10628
  %v10630 = vsel %vm10627, %v10629, %v10625
  %v10631 = vmul.f32 1.0, %v10630
  %v10632 = vrcp.pop %v10434
  %v10633 = vmul.f32 %v10434, %v10632
  %v10634 = vsub.f32 1.0, %v10633
  %v10635 = vmul.f32 %v10632, %v10634
  %v10636 = vadd.f32 %v10632, %v10635
  %vm10637 = vweird.f32 %v10434
  %vm10638 = vweird.f32 %v10632
  %vm10639 = vmor %vm10637, %vm10638
  %v10640 = vsel %vm10639, %v10632, %v10636
  %v10641 = vand.u32 2147483647, %v10434
  %vm10642 = vcmp.eq.f32.partialorder %v10641, 8.507059e+37
  %v10643 = vand.u32 %v10434, 2147483648
  %v10644 = vor.u32 1.1754944e-38, %v10643
  %v10645 = vsel %vm10642, %v10644, %v10640
  %v10646 = vmul.f32 1.0, %v10645
  %v10647 = vrcp.pop %v10435
  %v10648 = vmul.f32 %v10435, %v10647
  %v10649 = vsub.f32 1.0, %v10648
  %v10650 = vmul.f32 %v10647, %v10649
  %v10651 = vadd.f32 %v10647, %v10650
  %vm10652 = vweird.f32 %v10435
  %vm10653 = vweird.f32 %v10647
  %vm10654 = vmor %vm10652, %vm10653
  %v10655 = vsel %vm10654, %v10647, %v10651
  %v10656 = vand.u32 2147483647, %v10435
  %vm10657 = vcmp.eq.f32.partialorder %v10656, 8.507059e+37
  %v10658 = vand.u32 %v10435, 2147483648
  %v10659 = vor.u32 1.1754944e-38, %v10658
  %v10660 = vsel %vm10657, %v10659, %v10655
  %v10661 = vmul.f32 1.0, %v10660
  %v10662 = vrcp.pop %v10436
  %v10663 = vmul.f32 %v10436, %v10662
  %v10664 = vsub.f32 1.0, %v10663
  %v10665 = vmul.f32 %v10662, %v10664
  %v10666 = vadd.f32 %v10662, %v10665
  %vm10667 = vweird.f32 %v10436
  %vm10668 = vweird.f32 %v10662
  %vm10669 = vmor %vm10667, %vm10668
  %v10670 = vsel %vm10669, %v10662, %v10666
  %v10671 = vand.u32 2147483647, %v10436
  %vm10672 = vcmp.eq.f32.partialorder %v10671, 8.507059e+37
  %v10673 = vand.u32 %v10436, 2147483648
  %v10674 = vor.u32 1.1754944e-38, %v10673
  %v10675 = vsel %vm10672, %v10674, %v10670
  %v10676 = vmul.f32 1.0, %v10675
  %v10677 = vmul.f32 %v10067, %v9234
  %v10678 = vmul.f32 %v10082, %v9235
  %v10679 = vmul.f32 %v10097, %v9236
  %v10680 = vmul.f32 %v10112, %v9237
  %v10681 = vmul.f32 %v10127, %v9238
  %v10682 = vmul.f32 %v10142, %v9239
  %v10683 = vmul.f32 %v10157, %v9240
  %v10684 = vmul.f32 %v10172, %v9241
  %v10685 = vmul.f32 %v10187, %v9242
  %v10686 = vmul.f32 %v10202, %v9243
  %v10687 = vmul.f32 %v10217, %v9244
  %v10688 = vmul.f32 %v10232, %v9245
  %v10689 = vmul.f32 %v10247, %v9246
  %v10690 = vmul.f32 %v10262, %v9247
  %v10691 = vmul.f32 %v10277, %v9248
  %v10692 = vmul.f32 %v10292, %v9249
  %v10693 = vmul.f32 %v9715, %v10325
  %v10694 = vmul.f32 %v9730, %v10326
  %v10695 = vmul.f32 %v9745, %v10327
  %v10696 = vmul.f32 %v9760, %v10328
  %v10697 = vmul.f32 %v9775, %v10329
  %v10698 = vmul.f32 %v9790, %v10330
  %v10699 = vmul.f32 %v9805, %v10331
  %v10700 = vmul.f32 %v9820, %v10332
  %v10701 = vmul.f32 %v9835, %v10333
  %v10702 = vmul.f32 %v9850, %v10334
  %v10703 = vmul.f32 %v9865, %v10335
  %v10704 = vmul.f32 %v9880, %v10336
  %v10705 = vmul.f32 %v9895, %v10337
  %v10706 = vmul.f32 %v9910, %v10338
  %v10707 = vmul.f32 %v9925, %v10339
  %v10708 = vmul.f32 %v9940, %v10340
  %v10709 = vadd.f32 %v10677, %v10693
  %v10710 = vadd.f32 %v10678, %v10694
  %v10711 = vadd.f32 %v10679, %v10695
  %v10712 = vadd.f32 %v10680, %v10696
  %v10713 = vadd.f32 %v10681, %v10697
  %v10714 = vadd.f32 %v10682, %v10698
  %v10715 = vadd.f32 %v10683, %v10699
  %v10716 = vadd.f32 %v10684, %v10700
  %v10717 = vadd.f32 %v10685, %v10701
  %v10718 = vadd.f32 %v10686, %v10702
  %v10719 = vadd.f32 %v10687, %v10703
  %v10720 = vadd.f32 %v10688, %v10704
  %v10721 = vadd.f32 %v10689, %v10705
  %v10722 = vadd.f32 %v10690, %v10706
  %v10723 = vadd.f32 %v10691, %v10707
  %v10724 = vadd.f32 %v10692, %v10708
  %v10725 = vtanh.pop %v10709
  %v10726 = vtanh.pop %v10710
  %v10727 = vtanh.pop %v10711
  %v10728 = vtanh.pop %v10712
  %v10729 = vtanh.pop %v10713
  %v10730 = vtanh.pop %v10714
  %v10731 = vtanh.pop %v10715
  %v10732 = vtanh.pop %v10716
  %v10733 = vtanh.pop %v10717
  %v10734 = vtanh.pop %v10718
  %v10735 = vtanh.pop %v10719
  %v10736 = vtanh.pop %v10720
  %v10737 = vtanh.pop %v10721
  %v10738 = vtanh.pop %v10722
  %v10739 = vtanh.pop %v10723
  %v10740 = vtanh.pop %v10724
  %v10741 = vmul.f32 %v10451, %v10725
  %v10742 = vmul.f32 %v10466, %v10726
  %v10743 = vmul.f32 %v10481, %v10727
  %v10744 = vmul.f32 %v10496, %v10728
  %v10745 = vmul.f32 %v10511, %v10729
  %v10746 = vmul.f32 %v10526, %v10730
  %v10747 = vmul.f32 %v10541, %v10731
  %v10748 = vmul.f32 %v10556, %v10732
  %v10749 = vmul.f32 %v10571, %v10733
  %v10750 = vmul.f32 %v10586, %v10734
  %v10751 = vmul.f32 %v10601, %v10735
  %v10752 = vmul.f32 %v10616, %v10736
  %v10753 = vmul.f32 %v10631, %v10737
  %v10754 = vmul.f32 %v10646, %v10738
  %v10755 = vmul.f32 %v10661, %v10739
  %v10756 = vmul.f32 %v10676, %v10740
  %10757 = vst [vmem:[%s4 + $0x6] sm:$0x1] %v10741
  %10758 = vst [vmem:[%s4 + $0xe] sm:$0x1] %v10742
  %10759 = vst [vmem:[%s4 + $0x16] sm:$0x1] %v10743
  %10760 = vst [vmem:[%s4 + $0x1e] sm:$0x1] %v10744
  %10761 = vst [vmem:[%s4 + $0x26] sm:$0x1] %v10745
  %10762 = vst [vmem:[%s4 + $0x2e] sm:$0x1] %v10746
  %10763 = vst [vmem:[%s4 + $0x36] sm:$0x1] %v10747
  %10764 = vst [vmem:[%s4 + $0x3e] sm:$0x1] %v10748
  %10765 = vst [vmem:[%s4 + $0x46] sm:$0x1] %v10749
  %10766 = vst [vmem:[%s4 + $0x4e] sm:$0x1] %v10750
  %10767 = vst [vmem:[%s4 + $0x56] sm:$0x1] %v10751
  %10768 = vst [vmem:[%s4 + $0x5e] sm:$0x1] %v10752
  %10769 = vst [vmem:[%s4 + $0x66] sm:$0x1] %v10753
  %10770 = vst [vmem:[%s4 + $0x6e] sm:$0x1] %v10754
  %10771 = vst [vmem:[%s4 + $0x76] sm:$0x1] %v10755
  %10772 = vst [vmem:[%s4 + $0x7e] sm:$0x1] %v10756
  %s10773 = scalar_lea.vmem [#allocation2], 7
  %v10774 = vld [vmem:[%s10773] ss:$8 sm:$0xf]
  %s10775 = scalar_lea.vmem [#allocation2], 39
  %v10776 = vld [vmem:[%s10775] ss:$8 sm:$0xf]
  %s10777 = scalar_lea.vmem [#allocation2], 71
  %v10778 = vld [vmem:[%s10777] ss:$8 sm:$0xf]
  %s10779 = scalar_lea.vmem [#allocation2], 103
  %v10780 = vld [vmem:[%s10779] ss:$8 sm:$0xf]
  %s10781 = scalar_lea.vmem [#allocation2], 135
  %v10782 = vld [vmem:[%s10781] ss:$8 sm:$0xf]
  %s10783 = scalar_lea.vmem [#allocation2], 167
  %v10784 = vld [vmem:[%s10783] ss:$8 sm:$0xf]
  %s10785 = scalar_lea.vmem [#allocation2], 199
  %v10786 = vld [vmem:[%s10785] ss:$8 sm:$0xf]
  %s10787 = scalar_lea.vmem [#allocation2], 231
  %v10788 = vld [vmem:[%s10787] ss:$8 sm:$0xf]
  %s10789 = scalar_lea.vmem [#allocation2], 263
  %v10790 = vld [vmem:[%s10789] ss:$8 sm:$0xf]
  %s10791 = scalar_lea.vmem [#allocation2], 295
  %v10792 = vld [vmem:[%s10791] ss:$8 sm:$0xf]
  %s10793 = scalar_lea.vmem [#allocation2], 327
  %v10794 = vld [vmem:[%s10793] ss:$8 sm:$0xf]
  %s10795 = scalar_lea.vmem [#allocation2], 359
  %v10796 = vld [vmem:[%s10795] ss:$8 sm:$0xf]
  %s10797 = scalar_lea.vmem [#allocation2], 391
  %v10798 = vld [vmem:[%s10797] ss:$8 sm:$0xf]
  %s10799 = scalar_lea.vmem [#allocation2], 423
  %v10800 = vld [vmem:[%s10799] ss:$8 sm:$0xf]
  %s10801 = scalar_lea.vmem [#allocation2], 455
  %v10802 = vld [vmem:[%s10801] ss:$8 sm:$0xf]
  %s10803 = scalar_lea.vmem [#allocation2], 487
  %v10804 = vld [vmem:[%s10803] ss:$8 sm:$0xf]
  %v10805 = vld [vmem:[%s2] sm:$0xff]
  %v10806 = vld [vmem:[%s2 + $0x8] sm:$0xff]
  %v10807 = vld [vmem:[%s2 + $0x10] sm:$0xff]
  %v10808 = vld [vmem:[%s2 + $0x18] sm:$0xff]
  %v10809 = vld [vmem:[%s2 + $0x20] sm:$0xff]
  %v10810 = vld [vmem:[%s2 + $0x28] sm:$0xff]
  %v10811 = vld [vmem:[%s2 + $0x30] sm:$0xff]
  %v10812 = vld [vmem:[%s2 + $0x38] sm:$0xff]
  %v10813 = vld [vmem:[%s2 + $0x40] sm:$0xff]
  %v10814 = vld [vmem:[%s2 + $0x48] sm:$0xff]
  %v10815 = vld [vmem:[%s2 + $0x50] sm:$0xff]
  %v10816 = vld [vmem:[%s2 + $0x58] sm:$0xff]
  %v10817 = vld [vmem:[%s2 + $0x60] sm:$0xff]
  %v10818 = vld [vmem:[%s2 + $0x68] sm:$0xff]
  %v10819 = vld [vmem:[%s2 + $0x70] sm:$0xff]
  %v10820 = vld [vmem:[%s2 + $0x78] sm:$0xff]
  %v10821 = vld [vmem:[%s2 + $0x80] sm:$0xff]
  %v10822 = vld [vmem:[%s2 + $0x88] sm:$0xff]
  %v10823 = vld [vmem:[%s2 + $0x90] sm:$0xff]
  %v10824 = vld [vmem:[%s2 + $0x98] sm:$0xff]
  %v10825 = vld [vmem:[%s2 + $0xa0] sm:$0xff]
  %v10826 = vld [vmem:[%s2 + $0xa8] sm:$0xff]
  %v10827 = vld [vmem:[%s2 + $0xb0] sm:$0xff]
  %v10828 = vld [vmem:[%s2 + $0xb8] sm:$0xff]
  %v10829 = vld [vmem:[%s2 + $0xc0] sm:$0xff]
  %v10830 = vld [vmem:[%s2 + $0xc8] sm:$0xff]
  %v10831 = vld [vmem:[%s2 + $0xd0] sm:$0xff]
  %v10832 = vld [vmem:[%s2 + $0xd8] sm:$0xff]
  %v10833 = vld [vmem:[%s2 + $0xe0] sm:$0xff]
  %v10834 = vld [vmem:[%s2 + $0xe8] sm:$0xff]
  %v10835 = vld [vmem:[%s2 + $0xf0] sm:$0xff]
  %v10836 = vld [vmem:[%s2 + $0xf8] sm:$0xff]
  %v10837 = vld [vmem:[%s2 + $0x100] sm:$0xff]
  %v10838 = vld [vmem:[%s2 + $0x108] sm:$0xff]
  %v10839 = vld [vmem:[%s2 + $0x110] sm:$0xff]
  %v10840 = vld [vmem:[%s2 + $0x118] sm:$0xff]
  %v10841 = vld [vmem:[%s2 + $0x120] sm:$0xff]
  %v10842 = vld [vmem:[%s2 + $0x128] sm:$0xff]
  %v10843 = vld [vmem:[%s2 + $0x130] sm:$0xff]
  %v10844 = vld [vmem:[%s2 + $0x138] sm:$0xff]
  %v10845 = vld [vmem:[%s2 + $0x140] sm:$0xff]
  %v10846 = vld [vmem:[%s2 + $0x148] sm:$0xff]
  %v10847 = vld [vmem:[%s2 + $0x150] sm:$0xff]
  %v10848 = vld [vmem:[%s2 + $0x158] sm:$0xff]
  %v10849 = vld [vmem:[%s2 + $0x160] sm:$0xff]
  %v10850 = vld [vmem:[%s2 + $0x168] sm:$0xff]
  %v10851 = vld [vmem:[%s2 + $0x170] sm:$0xff]
  %v10852 = vld [vmem:[%s2 + $0x178] sm:$0xff]
  %v10853 = vld [vmem:[%s2 + $0x180] sm:$0xff]
  %v10854 = vld [vmem:[%s2 + $0x188] sm:$0xff]
  %v10855 = vld [vmem:[%s2 + $0x190] sm:$0xff]
  %v10856 = vld [vmem:[%s2 + $0x198] sm:$0xff]
  %v10857 = vld [vmem:[%s2 + $0x1a0] sm:$0xff]
  %v10858 = vld [vmem:[%s2 + $0x1a8] sm:$0xff]
  %v10859 = vld [vmem:[%s2 + $0x1b0] sm:$0xff]
  %v10860 = vld [vmem:[%s2 + $0x1b8] sm:$0xff]
  %v10861 = vld [vmem:[%s2 + $0x1c0] sm:$0xff]
  %v10862 = vld [vmem:[%s2 + $0x1c8] sm:$0xff]
  %v10863 = vld [vmem:[%s2 + $0x1d0] sm:$0xff]
  %v10864 = vld [vmem:[%s2 + $0x1d8] sm:$0xff]
  %v10865 = vld [vmem:[%s2 + $0x1e0] sm:$0xff]
  %v10866 = vld [vmem:[%s2 + $0x1e8] sm:$0xff]
  %v10867 = vld [vmem:[%s2 + $0x1f0] sm:$0xff]
  %v10868 = vld [vmem:[%s2 + $0x1f8] sm:$0xff]
  %10885 = vst [vmem:[#allocation1] ss:$9 sm:$0xff] %v10741
  %s10886 = scalar_lea.vmem [#allocation1], 1
  %10887 = vst [vmem:[%s10886] ss:$9 sm:$0xff] %v10742
  %s10888 = scalar_lea.vmem [#allocation1], 2
  %10889 = vst [vmem:[%s10888] ss:$9 sm:$0xff] %v10743
  %s10890 = scalar_lea.vmem [#allocation1], 3
  %10891 = vst [vmem:[%s10890] ss:$9 sm:$0xff] %v10744
  %s10892 = scalar_lea.vmem [#allocation1], 4
  %10893 = vst [vmem:[%s10892] ss:$9 sm:$0xff] %v10745
  %s10894 = scalar_lea.vmem [#allocation1], 5
  %10895 = vst [vmem:[%s10894] ss:$9 sm:$0xff] %v10746
  %s10896 = scalar_lea.vmem [#allocation1], 6
  %10897 = vst [vmem:[%s10896] ss:$9 sm:$0xff] %v10747
  %s10898 = scalar_lea.vmem [#allocation1], 7
  %10899 = vst [vmem:[%s10898] ss:$9 sm:$0xff] %v10748
  %v10900 = vld [vmem:[#allocation1] sm:$0xff]
  %10901 = vst [vmem:[#allocation1] ss:$9 sm:$0xff] %v10749
  %10902 = vst [vmem:[%s10886] ss:$9 sm:$0xff] %v10750
  %10903 = vst [vmem:[%s10888] ss:$9 sm:$0xff] %v10751
  %10904 = vst [vmem:[%s10890] ss:$9 sm:$0xff] %v10752
  %10905 = vst [vmem:[%s10892] ss:$9 sm:$0xff] %v10753
  %10906 = vst [vmem:[%s10894] ss:$9 sm:$0xff] %v10754
  %10907 = vst [vmem:[%s10896] ss:$9 sm:$0xff] %v10755
  %10908 = vst [vmem:[%s10898] ss:$9 sm:$0xff] %v10756
  %v10909 = vld [vmem:[#allocation1] sm:$0xff]
  %10912 = vmatpush.msra.mxu0 %v10865
  %10913 = vmatpush.msra.mxu0 %v10861
  %10914 = vmatpush.msra.mxu0 %v10857
  %10915 = vmatpush.msra.mxu0 %v10853
  %10916 = vmatpush.msra.mxu0 %v10849
  %10917 = vmatpush.msra.mxu0 %v10845
  %10918 = vmatpush.msra.mxu0 %v10841
  %10919 = vmatpush.msra.mxu0 %v10837
  %10920 = vmatpush.msra.mxu0 %v10833
  %10921 = vmatpush.msra.mxu0 %v10829
  %10922 = vmatpush.msra.mxu0 %v10825
  %10923 = vmatpush.msra.mxu0 %v10821
  %10924 = vmatpush.msra.mxu0 %v10817
  %10925 = vmatpush.msra.mxu0 %v10813
  %10926 = vmatpush.msra.mxu0 %v10809
  %10927 = vmatpush.msra.mxu0 %v10805
  %10928 = vmatmul.f32.gmra.mxu0 %v10900
  %v10929 = vpop.f32.mrf.mxu0
  %v10930 = vadd.f32 0.0, %v10929
  %10931 = vmatmul.f32.gmra.mxu0 %v10909
  %v10932 = vpop.f32.mrf.mxu0
  %v10933 = vadd.f32 0.0, %v10932
  %10934 = vdwg.mxu0
  %10935 = vmatpush.msra.mxu0 %v10866
  %10936 = vmatpush.msra.mxu0 %v10862
  %10937 = vmatpush.msra.mxu0 %v10858
  %10938 = vmatpush.msra.mxu0 %v10854
  %10939 = vmatpush.msra.mxu0 %v10850
  %10940 = vmatpush.msra.mxu0 %v10846
  %10941 = vmatpush.msra.mxu0 %v10842
  %10942 = vmatpush.msra.mxu0 %v10838
  %10943 = vmatpush.msra.mxu0 %v10834
  %10944 = vmatpush.msra.mxu0 %v10830
  %10945 = vmatpush.msra.mxu0 %v10826
  %10946 = vmatpush.msra.mxu0 %v10822
  %10947 = vmatpush.msra.mxu0 %v10818
  %10948 = vmatpush.msra.mxu0 %v10814
  %10949 = vmatpush.msra.mxu0 %v10810
  %10950 = vmatpush.msra.mxu0 %v10806
  %10951 = vmatmul.f32.gmra.mxu0 %v10900
  %v10952 = vpop.f32.mrf.mxu0
  %v10953 = vadd.f32 0.0, %v10952
  %10954 = vmatmul.f32.gmra.mxu0 %v10909
  %v10955 = vpop.f32.mrf.mxu0
  %v10956 = vadd.f32 0.0, %v10955
  %10957 = vdwg.mxu0
  %10958 = vmatpush.msra.mxu0 %v10867
  %10959 = vmatpush.msra.mxu0 %v10863
  %10960 = vmatpush.msra.mxu0 %v10859
  %10961 = vmatpush.msra.mxu0 %v10855
  %10962 = vmatpush.msra.mxu0 %v10851
  %10963 = vmatpush.msra.mxu0 %v10847
  %10964 = vmatpush.msra.mxu0 %v10843
  %10965 = vmatpush.msra.mxu0 %v10839
  %10966 = vmatpush.msra.mxu0 %v10835
  %10967 = vmatpush.msra.mxu0 %v10831
  %10968 = vmatpush.msra.mxu0 %v10827
  %10969 = vmatpush.msra.mxu0 %v10823
  %10970 = vmatpush.msra.mxu0 %v10819
  %10971 = vmatpush.msra.mxu0 %v10815
  %10972 = vmatpush.msra.mxu0 %v10811
  %10973 = vmatpush.msra.mxu0 %v10807
  %10974 = vmatmul.f32.gmra.mxu0 %v10900
  %v10975 = vpop.f32.mrf.mxu0
  %v10976 = vadd.f32 0.0, %v10975
  %10977 = vmatmul.f32.gmra.mxu0 %v10909
  %v10978 = vpop.f32.mrf.mxu0
  %v10979 = vadd.f32 0.0, %v10978
  %10980 = vdwg.mxu0
  %10981 = vmatpush.msra.mxu0 %v10868
  %10982 = vmatpush.msra.mxu0 %v10864
  %10983 = vmatpush.msra.mxu0 %v10860
  %10984 = vmatpush.msra.mxu0 %v10856
  %10985 = vmatpush.msra.mxu0 %v10852
  %10986 = vmatpush.msra.mxu0 %v10848
  %10987 = vmatpush.msra.mxu0 %v10844
  %10988 = vmatpush.msra.mxu0 %v10840
  %10989 = vmatpush.msra.mxu0 %v10836
  %10990 = vmatpush.msra.mxu0 %v10832
  %10991 = vmatpush.msra.mxu0 %v10828
  %10992 = vmatpush.msra.mxu0 %v10824
  %10993 = vmatpush.msra.mxu0 %v10820
  %10994 = vmatpush.msra.mxu0 %v10816
  %10995 = vmatpush.msra.mxu0 %v10812
  %10996 = vmatpush.msra.mxu0 %v10808
  %10997 = vmatmul.f32.gmra.mxu0 %v10900
  %v10998 = vpop.f32.mrf.mxu0
  %v10999 = vadd.f32 0.0, %v10998
  %11000 = vmatmul.f32.gmra.mxu0 %v10909
  %v11001 = vpop.f32.mrf.mxu0
  %v11002 = vadd.f32 0.0, %v11001
  %11003 = vdwg.mxu0
  %v11012 = vrot.slane %v10953, 7
  %v11013 = vrot.slane %v10976, 6
  %v11014 = vrot.slane %v10999, 5
  %v11015 = vrot.slane %v10956, 7
  %v11016 = vrot.slane %v10979, 6
  %v11017 = vrot.slane %v11002, 5
  %v11018 = vsel %vm647, %v10930, %v11012
  %v11019 = vsel %vm649, %v11013, %v11014
  %v11020 = vsel %vm651, %v11018, %v11019
  %v11021 = vsel %vm653, %v10930, %v11012
  %v11022 = vsel %vm655, %v11013, %v11014
  %v11023 = vsel %vm657, %v11021, %v11022
  %v11024 = vrot.slane %v11023, 1
  %v11025 = vsel %vm649, %v10930, %v11012
  %v11026 = vsel %vm661, %v11013, %v11014
  %v11027 = vsel %vm663, %v11025, %v11026
  %v11028 = vrot.slane %v11027, 2
  %v11029 = vsel %vm655, %v10930, %v11012
  %v11030 = vsel %vm667, %v11013, %v11014
  %v11031 = vsel %vm669, %v11029, %v11030
  %v11032 = vrot.slane %v11031, 3
  %v11033 = vsel %vm661, %v10930, %v11012
  %v11034 = vsel %vm673, %v11013, %v11014
  %v11035 = vsel %vm675, %v11033, %v11034
  %v11036 = vrot.slane %v11035, 4
  %v11037 = vsel %vm667, %v10930, %v11012
  %v11038 = vsel %vm679, %v11014, %v11013
  %v11039 = vsel %vm681, %v11037, %v11038
  %v11040 = vrot.slane %v11039, 5
  %v11041 = vsel %vm673, %v10930, %v11012
  %v11042 = vsel %vm647, %v11013, %v11014
  %v11043 = vsel %vm686, %v11042, %v11041
  %v11044 = vrot.slane %v11043, 6
  %v11045 = vsel %vm679, %v11012, %v10930
  %v11046 = vsel %vm653, %v11013, %v11014
  %v11047 = vsel %vm691, %v11046, %v11045
  %v11048 = vrot.slane %v11047, 7
  %v11049 = vsel %vm647, %v10933, %v11015
  %v11050 = vsel %vm649, %v11016, %v11017
  %v11051 = vsel %vm651, %v11049, %v11050
  %v11052 = vsel %vm653, %v10933, %v11015
  %v11053 = vsel %vm655, %v11016, %v11017
  %v11054 = vsel %vm657, %v11052, %v11053
  %v11055 = vrot.slane %v11054, 1
  %v11056 = vsel %vm649, %v10933, %v11015
  %v11057 = vsel %vm661, %v11016, %v11017
  %v11058 = vsel %vm663, %v11056, %v11057
  %v11059 = vrot.slane %v11058, 2
  %v11060 = vsel %vm655, %v10933, %v11015
  %v11061 = vsel %vm667, %v11016, %v11017
  %v11062 = vsel %vm669, %v11060, %v11061
  %v11063 = vrot.slane %v11062, 3
  %v11064 = vsel %vm661, %v10933, %v11015
  %v11065 = vsel %vm673, %v11016, %v11017
  %v11066 = vsel %vm675, %v11064, %v11065
  %v11067 = vrot.slane %v11066, 4
  %v11068 = vsel %vm667, %v10933, %v11015
  %v11069 = vsel %vm679, %v11017, %v11016
  %v11070 = vsel %vm681, %v11068, %v11069
  %v11071 = vrot.slane %v11070, 5
  %v11072 = vsel %vm673, %v10933, %v11015
  %v11073 = vsel %vm647, %v11016, %v11017
  %v11074 = vsel %vm686, %v11073, %v11072
  %v11075 = vrot.slane %v11074, 6
  %v11076 = vsel %vm679, %v11015, %v10933
  %v11077 = vsel %vm653, %v11016, %v11017
  %v11078 = vsel %vm691, %v11077, %v11076
  %v11079 = vrot.slane %v11078, 7
  %v11096 = vadd.f32 %v10774, %v11020
  %v11097 = vadd.f32 %v10776, %v11024
  %v11098 = vadd.f32 %v10778, %v11028
  %v11099 = vadd.f32 %v10780, %v11032
  %v11100 = vadd.f32 %v10782, %v11036
  %v11101 = vadd.f32 %v10784, %v11040
  %v11102 = vadd.f32 %v10786, %v11044
  %v11103 = vadd.f32 %v10788, %v11048
  %v11104 = vadd.f32 %v10790, %v11051
  %v11105 = vadd.f32 %v10792, %v11055
  %v11106 = vadd.f32 %v10794, %v11059
  %v11107 = vadd.f32 %v10796, %v11063
  %v11108 = vadd.f32 %v10798, %v11067
  %v11109 = vadd.f32 %v10800, %v11071
  %v11110 = vadd.f32 %v10802, %v11075
  %v11111 = vadd.f32 %v10804, %v11079
  %v11112 = vxor.u32 %v11096, 2147483648
  %v11113 = vxor.u32 %v11097, 2147483648
  %v11114 = vxor.u32 %v11098, 2147483648
  %v11115 = vxor.u32 %v11099, 2147483648
  %v11116 = vxor.u32 %v11100, 2147483648
  %v11117 = vxor.u32 %v11101, 2147483648
  %v11118 = vxor.u32 %v11102, 2147483648
  %v11119 = vxor.u32 %v11103, 2147483648
  %v11120 = vxor.u32 %v11104, 2147483648
  %v11121 = vxor.u32 %v11105, 2147483648
  %v11122 = vxor.u32 %v11106, 2147483648
  %v11123 = vxor.u32 %v11107, 2147483648
  %v11124 = vxor.u32 %v11108, 2147483648
  %v11125 = vxor.u32 %v11109, 2147483648
  %v11126 = vxor.u32 %v11110, 2147483648
  %v11127 = vxor.u32 %v11111, 2147483648
  %v11128 = vmul.f32 %v11112, 1.442695
  %v11129 = vpow.pop %v11128
  %v11130 = vmul.f32 %v11113, 1.442695
  %v11131 = vpow.pop %v11130
  %v11132 = vmul.f32 %v11114, 1.442695
  %v11133 = vpow.pop %v11132
  %v11134 = vmul.f32 %v11115, 1.442695
  %v11135 = vpow.pop %v11134
  %v11136 = vmul.f32 %v11116, 1.442695
  %v11137 = vpow.pop %v11136
  %v11138 = vmul.f32 %v11117, 1.442695
  %v11139 = vpow.pop %v11138
  %v11140 = vmul.f32 %v11118, 1.442695
  %v11141 = vpow.pop %v11140
  %v11142 = vmul.f32 %v11119, 1.442695
  %v11143 = vpow.pop %v11142
  %v11144 = vmul.f32 %v11120, 1.442695
  %v11145 = vpow.pop %v11144
  %v11146 = vmul.f32 %v11121, 1.442695
  %v11147 = vpow.pop %v11146
  %v11148 = vmul.f32 %v11122, 1.442695
  %v11149 = vpow.pop %v11148
  %v11150 = vmul.f32 %v11123, 1.442695
  %v11151 = vpow.pop %v11150
  %v11152 = vmul.f32 %v11124, 1.442695
  %v11153 = vpow.pop %v11152
  %v11154 = vmul.f32 %v11125, 1.442695
  %v11155 = vpow.pop %v11154
  %v11156 = vmul.f32 %v11126, 1.442695
  %v11157 = vpow.pop %v11156
  %v11158 = vmul.f32 %v11127, 1.442695
  %v11159 = vpow.pop %v11158
  %v11160 = vadd.f32 %v11129, 1.0
  %v11161 = vadd.f32 %v11131, 1.0
  %v11162 = vadd.f32 %v11133, 1.0
  %v11163 = vadd.f32 %v11135, 1.0
  %v11164 = vadd.f32 %v11137, 1.0
  %v11165 = vadd.f32 %v11139, 1.0
  %v11166 = vadd.f32 %v11141, 1.0
  %v11167 = vadd.f32 %v11143, 1.0
  %v11168 = vadd.f32 %v11145, 1.0
  %v11169 = vadd.f32 %v11147, 1.0
  %v11170 = vadd.f32 %v11149, 1.0
  %v11171 = vadd.f32 %v11151, 1.0
  %v11172 = vadd.f32 %v11153, 1.0
  %v11173 = vadd.f32 %v11155, 1.0
  %v11174 = vadd.f32 %v11157, 1.0
  %v11175 = vadd.f32 %v11159, 1.0
  %v11176 = vrcp.pop %v11160
  %v11177 = vmul.f32 %v11160, %v11176
  %v11178 = vsub.f32 1.0, %v11177
  %v11179 = vmul.f32 %v11176, %v11178
  %v11180 = vadd.f32 %v11176, %v11179
  %vm11181 = vweird.f32 %v11160
  %vm11182 = vweird.f32 %v11176
  %vm11183 = vmor %vm11181, %vm11182
  %v11184 = vsel %vm11183, %v11176, %v11180
  %v11185 = vand.u32 2147483647, %v11160
  %vm11186 = vcmp.eq.f32.partialorder %v11185, 8.507059e+37
  %v11187 = vand.u32 %v11160, 2147483648
  %v11188 = vor.u32 1.1754944e-38, %v11187
  %v11189 = vsel %vm11186, %v11188, %v11184
  %v11190 = vmul.f32 1.0, %v11189
  %v11191 = vrcp.pop %v11161
  %v11192 = vmul.f32 %v11161, %v11191
  %v11193 = vsub.f32 1.0, %v11192
  %v11194 = vmul.f32 %v11191, %v11193
  %v11195 = vadd.f32 %v11191, %v11194
  %vm11196 = vweird.f32 %v11161
  %vm11197 = vweird.f32 %v11191
  %vm11198 = vmor %vm11196, %vm11197
  %v11199 = vsel %vm11198, %v11191, %v11195
  %v11200 = vand.u32 2147483647, %v11161
  %vm11201 = vcmp.eq.f32.partialorder %v11200, 8.507059e+37
  %v11202 = vand.u32 %v11161, 2147483648
  %v11203 = vor.u32 1.1754944e-38, %v11202
  %v11204 = vsel %vm11201, %v11203, %v11199
  %v11205 = vmul.f32 1.0, %v11204
  %v11206 = vrcp.pop %v11162
  %v11207 = vmul.f32 %v11162, %v11206
  %v11208 = vsub.f32 1.0, %v11207
  %v11209 = vmul.f32 %v11206, %v11208
  %v11210 = vadd.f32 %v11206, %v11209
  %vm11211 = vweird.f32 %v11162
  %vm11212 = vweird.f32 %v11206
  %vm11213 = vmor %vm11211, %vm11212
  %v11214 = vsel %vm11213, %v11206, %v11210
  %v11215 = vand.u32 2147483647, %v11162
  %vm11216 = vcmp.eq.f32.partialorder %v11215, 8.507059e+37
  %v11217 = vand.u32 %v11162, 2147483648
  %v11218 = vor.u32 1.1754944e-38, %v11217
  %v11219 = vsel %vm11216, %v11218, %v11214
  %v11220 = vmul.f32 1.0, %v11219
  %v11221 = vrcp.pop %v11163
  %v11222 = vmul.f32 %v11163, %v11221
  %v11223 = vsub.f32 1.0, %v11222
  %v11224 = vmul.f32 %v11221, %v11223
  %v11225 = vadd.f32 %v11221, %v11224
  %vm11226 = vweird.f32 %v11163
  %vm11227 = vweird.f32 %v11221
  %vm11228 = vmor %vm11226, %vm11227
  %v11229 = vsel %vm11228, %v11221, %v11225
  %v11230 = vand.u32 2147483647, %v11163
  %vm11231 = vcmp.eq.f32.partialorder %v11230, 8.507059e+37
  %v11232 = vand.u32 %v11163, 2147483648
  %v11233 = vor.u32 1.1754944e-38, %v11232
  %v11234 = vsel %vm11231, %v11233, %v11229
  %v11235 = vmul.f32 1.0, %v11234
  %v11236 = vrcp.pop %v11164
  %v11237 = vmul.f32 %v11164, %v11236
  %v11238 = vsub.f32 1.0, %v11237
  %v11239 = vmul.f32 %v11236, %v11238
  %v11240 = vadd.f32 %v11236, %v11239
  %vm11241 = vweird.f32 %v11164
  %vm11242 = vweird.f32 %v11236
  %vm11243 = vmor %vm11241, %vm11242
  %v11244 = vsel %vm11243, %v11236, %v11240
  %v11245 = vand.u32 2147483647, %v11164
  %vm11246 = vcmp.eq.f32.partialorder %v11245, 8.507059e+37
  %v11247 = vand.u32 %v11164, 2147483648
  %v11248 = vor.u32 1.1754944e-38, %v11247
  %v11249 = vsel %vm11246, %v11248, %v11244
  %v11250 = vmul.f32 1.0, %v11249
  %v11251 = vrcp.pop %v11165
  %v11252 = vmul.f32 %v11165, %v11251
  %v11253 = vsub.f32 1.0, %v11252
  %v11254 = vmul.f32 %v11251, %v11253
  %v11255 = vadd.f32 %v11251, %v11254
  %vm11256 = vweird.f32 %v11165
  %vm11257 = vweird.f32 %v11251
  %vm11258 = vmor %vm11256, %vm11257
  %v11259 = vsel %vm11258, %v11251, %v11255
  %v11260 = vand.u32 2147483647, %v11165
  %vm11261 = vcmp.eq.f32.partialorder %v11260, 8.507059e+37
  %v11262 = vand.u32 %v11165, 2147483648
  %v11263 = vor.u32 1.1754944e-38, %v11262
  %v11264 = vsel %vm11261, %v11263, %v11259
  %v11265 = vmul.f32 1.0, %v11264
  %v11266 = vrcp.pop %v11166
  %v11267 = vmul.f32 %v11166, %v11266
  %v11268 = vsub.f32 1.0, %v11267
  %v11269 = vmul.f32 %v11266, %v11268
  %v11270 = vadd.f32 %v11266, %v11269
  %vm11271 = vweird.f32 %v11166
  %vm11272 = vweird.f32 %v11266
  %vm11273 = vmor %vm11271, %vm11272
  %v11274 = vsel %vm11273, %v11266, %v11270
  %v11275 = vand.u32 2147483647, %v11166
  %vm11276 = vcmp.eq.f32.partialorder %v11275, 8.507059e+37
  %v11277 = vand.u32 %v11166, 2147483648
  %v11278 = vor.u32 1.1754944e-38, %v11277
  %v11279 = vsel %vm11276, %v11278, %v11274
  %v11280 = vmul.f32 1.0, %v11279
  %v11281 = vrcp.pop %v11167
  %v11282 = vmul.f32 %v11167, %v11281
  %v11283 = vsub.f32 1.0, %v11282
  %v11284 = vmul.f32 %v11281, %v11283
  %v11285 = vadd.f32 %v11281, %v11284
  %vm11286 = vweird.f32 %v11167
  %vm11287 = vweird.f32 %v11281
  %vm11288 = vmor %vm11286, %vm11287
  %v11289 = vsel %vm11288, %v11281, %v11285
  %v11290 = vand.u32 2147483647, %v11167
  %vm11291 = vcmp.eq.f32.partialorder %v11290, 8.507059e+37
  %v11292 = vand.u32 %v11167, 2147483648
  %v11293 = vor.u32 1.1754944e-38, %v11292
  %v11294 = vsel %vm11291, %v11293, %v11289
  %v11295 = vmul.f32 1.0, %v11294
  %v11296 = vrcp.pop %v11168
  %v11297 = vmul.f32 %v11168, %v11296
  %v11298 = vsub.f32 1.0, %v11297
  %v11299 = vmul.f32 %v11296, %v11298
  %v11300 = vadd.f32 %v11296, %v11299
  %vm11301 = vweird.f32 %v11168
  %vm11302 = vweird.f32 %v11296
  %vm11303 = vmor %vm11301, %vm11302
  %v11304 = vsel %vm11303, %v11296, %v11300
  %v11305 = vand.u32 2147483647, %v11168
  %vm11306 = vcmp.eq.f32.partialorder %v11305, 8.507059e+37
  %v11307 = vand.u32 %v11168, 2147483648
  %v11308 = vor.u32 1.1754944e-38, %v11307
  %v11309 = vsel %vm11306, %v11308, %v11304
  %v11310 = vmul.f32 1.0, %v11309
  %v11311 = vrcp.pop %v11169
  %v11312 = vmul.f32 %v11169, %v11311
  %v11313 = vsub.f32 1.0, %v11312
  %v11314 = vmul.f32 %v11311, %v11313
  %v11315 = vadd.f32 %v11311, %v11314
  %vm11316 = vweird.f32 %v11169
  %vm11317 = vweird.f32 %v11311
  %vm11318 = vmor %vm11316, %vm11317
  %v11319 = vsel %vm11318, %v11311, %v11315
  %v11320 = vand.u32 2147483647, %v11169
  %vm11321 = vcmp.eq.f32.partialorder %v11320, 8.507059e+37
  %v11322 = vand.u32 %v11169, 2147483648
  %v11323 = vor.u32 1.1754944e-38, %v11322
  %v11324 = vsel %vm11321, %v11323, %v11319
  %v11325 = vmul.f32 1.0, %v11324
  %v11326 = vrcp.pop %v11170
  %v11327 = vmul.f32 %v11170, %v11326
  %v11328 = vsub.f32 1.0, %v11327
  %v11329 = vmul.f32 %v11326, %v11328
  %v11330 = vadd.f32 %v11326, %v11329
  %vm11331 = vweird.f32 %v11170
  %vm11332 = vweird.f32 %v11326
  %vm11333 = vmor %vm11331, %vm11332
  %v11334 = vsel %vm11333, %v11326, %v11330
  %v11335 = vand.u32 2147483647, %v11170
  %vm11336 = vcmp.eq.f32.partialorder %v11335, 8.507059e+37
  %v11337 = vand.u32 %v11170, 2147483648
  %v11338 = vor.u32 1.1754944e-38, %v11337
  %v11339 = vsel %vm11336, %v11338, %v11334
  %v11340 = vmul.f32 1.0, %v11339
  %v11341 = vrcp.pop %v11171
  %v11342 = vmul.f32 %v11171, %v11341
  %v11343 = vsub.f32 1.0, %v11342
  %v11344 = vmul.f32 %v11341, %v11343
  %v11345 = vadd.f32 %v11341, %v11344
  %vm11346 = vweird.f32 %v11171
  %vm11347 = vweird.f32 %v11341
  %vm11348 = vmor %vm11346, %vm11347
  %v11349 = vsel %vm11348, %v11341, %v11345
  %v11350 = vand.u32 2147483647, %v11171
  %vm11351 = vcmp.eq.f32.partialorder %v11350, 8.507059e+37
  %v11352 = vand.u32 %v11171, 2147483648
  %v11353 = vor.u32 1.1754944e-38, %v11352
  %v11354 = vsel %vm11351, %v11353, %v11349
  %v11355 = vmul.f32 1.0, %v11354
  %v11356 = vrcp.pop %v11172
  %v11357 = vmul.f32 %v11172, %v11356
  %v11358 = vsub.f32 1.0, %v11357
  %v11359 = vmul.f32 %v11356, %v11358
  %v11360 = vadd.f32 %v11356, %v11359
  %vm11361 = vweird.f32 %v11172
  %vm11362 = vweird.f32 %v11356
  %vm11363 = vmor %vm11361, %vm11362
  %v11364 = vsel %vm11363, %v11356, %v11360
  %v11365 = vand.u32 2147483647, %v11172
  %vm11366 = vcmp.eq.f32.partialorder %v11365, 8.507059e+37
  %v11367 = vand.u32 %v11172, 2147483648
  %v11368 = vor.u32 1.1754944e-38, %v11367
  %v11369 = vsel %vm11366, %v11368, %v11364
  %v11370 = vmul.f32 1.0, %v11369
  %v11371 = vrcp.pop %v11173
  %v11372 = vmul.f32 %v11173, %v11371
  %v11373 = vsub.f32 1.0, %v11372
  %v11374 = vmul.f32 %v11371, %v11373
  %v11375 = vadd.f32 %v11371, %v11374
  %vm11376 = vweird.f32 %v11173
  %vm11377 = vweird.f32 %v11371
  %vm11378 = vmor %vm11376, %vm11377
  %v11379 = vsel %vm11378, %v11371, %v11375
  %v11380 = vand.u32 2147483647, %v11173
  %vm11381 = vcmp.eq.f32.partialorder %v11380, 8.507059e+37
  %v11382 = vand.u32 %v11173, 2147483648
  %v11383 = vor.u32 1.1754944e-38, %v11382
  %v11384 = vsel %vm11381, %v11383, %v11379
  %v11385 = vmul.f32 1.0, %v11384
  %v11386 = vrcp.pop %v11174
  %v11387 = vmul.f32 %v11174, %v11386
  %v11388 = vsub.f32 1.0, %v11387
  %v11389 = vmul.f32 %v11386, %v11388
  %v11390 = vadd.f32 %v11386, %v11389
  %vm11391 = vweird.f32 %v11174
  %vm11392 = vweird.f32 %v11386
  %vm11393 = vmor %vm11391, %vm11392
  %v11394 = vsel %vm11393, %v11386, %v11390
  %v11395 = vand.u32 2147483647, %v11174
  %vm11396 = vcmp.eq.f32.partialorder %v11395, 8.507059e+37
  %v11397 = vand.u32 %v11174, 2147483648
  %v11398 = vor.u32 1.1754944e-38, %v11397
  %v11399 = vsel %vm11396, %v11398, %v11394
  %v11400 = vmul.f32 1.0, %v11399
  %v11401 = vrcp.pop %v11175
  %v11402 = vmul.f32 %v11175, %v11401
  %v11403 = vsub.f32 1.0, %v11402
  %v11404 = vmul.f32 %v11401, %v11403
  %v11405 = vadd.f32 %v11401, %v11404
  %vm11406 = vweird.f32 %v11175
  %vm11407 = vweird.f32 %v11401
  %vm11408 = vmor %vm11406, %vm11407
  %v11409 = vsel %vm11408, %v11401, %v11405
  %v11410 = vand.u32 2147483647, %v11175
  %vm11411 = vcmp.eq.f32.partialorder %v11410, 8.507059e+37
  %v11412 = vand.u32 %v11175, 2147483648
  %v11413 = vor.u32 1.1754944e-38, %v11412
  %v11414 = vsel %vm11411, %v11413, %v11409
  %v11415 = vmul.f32 1.0, %v11414
  %v11432 = vrot.slane %v11096, 1
  %v11433 = vrot.slane %v11097, 1
  %v11434 = vrot.slane %v11098, 1
  %v11435 = vrot.slane %v11099, 1
  %v11436 = vrot.slane %v11100, 1
  %v11437 = vrot.slane %v11101, 1
  %v11438 = vrot.slane %v11102, 1
  %v11439 = vrot.slane %v11103, 1
  %v11440 = vrot.slane %v11104, 1
  %v11441 = vrot.slane %v11105, 1
  %v11442 = vrot.slane %v11106, 1
  %v11443 = vrot.slane %v11107, 1
  %v11444 = vrot.slane %v11108, 1
  %v11445 = vrot.slane %v11109, 1
  %v11446 = vrot.slane %v11110, 1
  %v11447 = vrot.slane %v11111, 1
  %v11464 = vxor.u32 %v11432, 2147483648
  %v11465 = vxor.u32 %v11433, 2147483648
  %v11466 = vxor.u32 %v11434, 2147483648
  %v11467 = vxor.u32 %v11435, 2147483648
  %v11468 = vxor.u32 %v11436, 2147483648
  %v11469 = vxor.u32 %v11437, 2147483648
  %v11470 = vxor.u32 %v11438, 2147483648
  %v11471 = vxor.u32 %v11439, 2147483648
  %v11472 = vxor.u32 %v11440, 2147483648
  %v11473 = vxor.u32 %v11441, 2147483648
  %v11474 = vxor.u32 %v11442, 2147483648
  %v11475 = vxor.u32 %v11443, 2147483648
  %v11476 = vxor.u32 %v11444, 2147483648
  %v11477 = vxor.u32 %v11445, 2147483648
  %v11478 = vxor.u32 %v11446, 2147483648
  %v11479 = vxor.u32 %v11447, 2147483648
  %v11480 = vmul.f32 %v11464, 1.442695
  %v11481 = vpow.pop %v11480
  %v11482 = vmul.f32 %v11465, 1.442695
  %v11483 = vpow.pop %v11482
  %v11484 = vmul.f32 %v11466, 1.442695
  %v11485 = vpow.pop %v11484
  %v11486 = vmul.f32 %v11467, 1.442695
  %v11487 = vpow.pop %v11486
  %v11488 = vmul.f32 %v11468, 1.442695
  %v11489 = vpow.pop %v11488
  %v11490 = vmul.f32 %v11469, 1.442695
  %v11491 = vpow.pop %v11490
  %v11492 = vmul.f32 %v11470, 1.442695
  %v11493 = vpow.pop %v11492
  %v11494 = vmul.f32 %v11471, 1.442695
  %v11495 = vpow.pop %v11494
  %v11496 = vmul.f32 %v11472, 1.442695
  %v11497 = vpow.pop %v11496
  %v11498 = vmul.f32 %v11473, 1.442695
  %v11499 = vpow.pop %v11498
  %v11500 = vmul.f32 %v11474, 1.442695
  %v11501 = vpow.pop %v11500
  %v11502 = vmul.f32 %v11475, 1.442695
  %v11503 = vpow.pop %v11502
  %v11504 = vmul.f32 %v11476, 1.442695
  %v11505 = vpow.pop %v11504
  %v11506 = vmul.f32 %v11477, 1.442695
  %v11507 = vpow.pop %v11506
  %v11508 = vmul.f32 %v11478, 1.442695
  %v11509 = vpow.pop %v11508
  %v11510 = vmul.f32 %v11479, 1.442695
  %v11511 = vpow.pop %v11510
  %v11512 = vadd.f32 %v11481, 1.0
  %v11513 = vadd.f32 %v11483, 1.0
  %v11514 = vadd.f32 %v11485, 1.0
  %v11515 = vadd.f32 %v11487, 1.0
  %v11516 = vadd.f32 %v11489, 1.0
  %v11517 = vadd.f32 %v11491, 1.0
  %v11518 = vadd.f32 %v11493, 1.0
  %v11519 = vadd.f32 %v11495, 1.0
  %v11520 = vadd.f32 %v11497, 1.0
  %v11521 = vadd.f32 %v11499, 1.0
  %v11522 = vadd.f32 %v11501, 1.0
  %v11523 = vadd.f32 %v11503, 1.0
  %v11524 = vadd.f32 %v11505, 1.0
  %v11525 = vadd.f32 %v11507, 1.0
  %v11526 = vadd.f32 %v11509, 1.0
  %v11527 = vadd.f32 %v11511, 1.0
  %v11528 = vrcp.pop %v11512
  %v11529 = vmul.f32 %v11512, %v11528
  %v11530 = vsub.f32 1.0, %v11529
  %v11531 = vmul.f32 %v11528, %v11530
  %v11532 = vadd.f32 %v11528, %v11531
  %vm11533 = vweird.f32 %v11512
  %vm11534 = vweird.f32 %v11528
  %vm11535 = vmor %vm11533, %vm11534
  %v11536 = vsel %vm11535, %v11528, %v11532
  %v11537 = vand.u32 2147483647, %v11512
  %vm11538 = vcmp.eq.f32.partialorder %v11537, 8.507059e+37
  %v11539 = vand.u32 %v11512, 2147483648
  %v11540 = vor.u32 1.1754944e-38, %v11539
  %v11541 = vsel %vm11538, %v11540, %v11536
  %v11542 = vmul.f32 1.0, %v11541
  %v11543 = vrcp.pop %v11513
  %v11544 = vmul.f32 %v11513, %v11543
  %v11545 = vsub.f32 1.0, %v11544
  %v11546 = vmul.f32 %v11543, %v11545
  %v11547 = vadd.f32 %v11543, %v11546
  %vm11548 = vweird.f32 %v11513
  %vm11549 = vweird.f32 %v11543
  %vm11550 = vmor %vm11548, %vm11549
  %v11551 = vsel %vm11550, %v11543, %v11547
  %v11552 = vand.u32 2147483647, %v11513
  %vm11553 = vcmp.eq.f32.partialorder %v11552, 8.507059e+37
  %v11554 = vand.u32 %v11513, 2147483648
  %v11555 = vor.u32 1.1754944e-38, %v11554
  %v11556 = vsel %vm11553, %v11555, %v11551
  %v11557 = vmul.f32 1.0, %v11556
  %v11558 = vrcp.pop %v11514
  %v11559 = vmul.f32 %v11514, %v11558
  %v11560 = vsub.f32 1.0, %v11559
  %v11561 = vmul.f32 %v11558, %v11560
  %v11562 = vadd.f32 %v11558, %v11561
  %vm11563 = vweird.f32 %v11514
  %vm11564 = vweird.f32 %v11558
  %vm11565 = vmor %vm11563, %vm11564
  %v11566 = vsel %vm11565, %v11558, %v11562
  %v11567 = vand.u32 2147483647, %v11514
  %vm11568 = vcmp.eq.f32.partialorder %v11567, 8.507059e+37
  %v11569 = vand.u32 %v11514, 2147483648
  %v11570 = vor.u32 1.1754944e-38, %v11569
  %v11571 = vsel %vm11568, %v11570, %v11566
  %v11572 = vmul.f32 1.0, %v11571
  %v11573 = vrcp.pop %v11515
  %v11574 = vmul.f32 %v11515, %v11573
  %v11575 = vsub.f32 1.0, %v11574
  %v11576 = vmul.f32 %v11573, %v11575
  %v11577 = vadd.f32 %v11573, %v11576
  %vm11578 = vweird.f32 %v11515
  %vm11579 = vweird.f32 %v11573
  %vm11580 = vmor %vm11578, %vm11579
  %v11581 = vsel %vm11580, %v11573, %v11577
  %v11582 = vand.u32 2147483647, %v11515
  %vm11583 = vcmp.eq.f32.partialorder %v11582, 8.507059e+37
  %v11584 = vand.u32 %v11515, 2147483648
  %v11585 = vor.u32 1.1754944e-38, %v11584
  %v11586 = vsel %vm11583, %v11585, %v11581
  %v11587 = vmul.f32 1.0, %v11586
  %v11588 = vrcp.pop %v11516
  %v11589 = vmul.f32 %v11516, %v11588
  %v11590 = vsub.f32 1.0, %v11589
  %v11591 = vmul.f32 %v11588, %v11590
  %v11592 = vadd.f32 %v11588, %v11591
  %vm11593 = vweird.f32 %v11516
  %vm11594 = vweird.f32 %v11588
  %vm11595 = vmor %vm11593, %vm11594
  %v11596 = vsel %vm11595, %v11588, %v11592
  %v11597 = vand.u32 2147483647, %v11516
  %vm11598 = vcmp.eq.f32.partialorder %v11597, 8.507059e+37
  %v11599 = vand.u32 %v11516, 2147483648
  %v11600 = vor.u32 1.1754944e-38, %v11599
  %v11601 = vsel %vm11598, %v11600, %v11596
  %v11602 = vmul.f32 1.0, %v11601
  %v11603 = vrcp.pop %v11517
  %v11604 = vmul.f32 %v11517, %v11603
  %v11605 = vsub.f32 1.0, %v11604
  %v11606 = vmul.f32 %v11603, %v11605
  %v11607 = vadd.f32 %v11603, %v11606
  %vm11608 = vweird.f32 %v11517
  %vm11609 = vweird.f32 %v11603
  %vm11610 = vmor %vm11608, %vm11609
  %v11611 = vsel %vm11610, %v11603, %v11607
  %v11612 = vand.u32 2147483647, %v11517
  %vm11613 = vcmp.eq.f32.partialorder %v11612, 8.507059e+37
  %v11614 = vand.u32 %v11517, 2147483648
  %v11615 = vor.u32 1.1754944e-38, %v11614
  %v11616 = vsel %vm11613, %v11615, %v11611
  %v11617 = vmul.f32 1.0, %v11616
  %v11618 = vrcp.pop %v11518
  %v11619 = vmul.f32 %v11518, %v11618
  %v11620 = vsub.f32 1.0, %v11619
  %v11621 = vmul.f32 %v11618, %v11620
  %v11622 = vadd.f32 %v11618, %v11621
  %vm11623 = vweird.f32 %v11518
  %vm11624 = vweird.f32 %v11618
  %vm11625 = vmor %vm11623, %vm11624
  %v11626 = vsel %vm11625, %v11618, %v11622
  %v11627 = vand.u32 2147483647, %v11518
  %vm11628 = vcmp.eq.f32.partialorder %v11627, 8.507059e+37
  %v11629 = vand.u32 %v11518, 2147483648
  %v11630 = vor.u32 1.1754944e-38, %v11629
  %v11631 = vsel %vm11628, %v11630, %v11626
  %v11632 = vmul.f32 1.0, %v11631
  %v11633 = vrcp.pop %v11519
  %v11634 = vmul.f32 %v11519, %v11633
  %v11635 = vsub.f32 1.0, %v11634
  %v11636 = vmul.f32 %v11633, %v11635
  %v11637 = vadd.f32 %v11633, %v11636
  %vm11638 = vweird.f32 %v11519
  %vm11639 = vweird.f32 %v11633
  %vm11640 = vmor %vm11638, %vm11639
  %v11641 = vsel %vm11640, %v11633, %v11637
  %v11642 = vand.u32 2147483647, %v11519
  %vm11643 = vcmp.eq.f32.partialorder %v11642, 8.507059e+37
  %v11644 = vand.u32 %v11519, 2147483648
  %v11645 = vor.u32 1.1754944e-38, %v11644
  %v11646 = vsel %vm11643, %v11645, %v11641
  %v11647 = vmul.f32 1.0, %v11646
  %v11648 = vrcp.pop %v11520
  %v11649 = vmul.f32 %v11520, %v11648
  %v11650 = vsub.f32 1.0, %v11649
  %v11651 = vmul.f32 %v11648, %v11650
  %v11652 = vadd.f32 %v11648, %v11651
  %vm11653 = vweird.f32 %v11520
  %vm11654 = vweird.f32 %v11648
  %vm11655 = vmor %vm11653, %vm11654
  %v11656 = vsel %vm11655, %v11648, %v11652
  %v11657 = vand.u32 2147483647, %v11520
  %vm11658 = vcmp.eq.f32.partialorder %v11657, 8.507059e+37
  %v11659 = vand.u32 %v11520, 2147483648
  %v11660 = vor.u32 1.1754944e-38, %v11659
  %v11661 = vsel %vm11658, %v11660, %v11656
  %v11662 = vmul.f32 1.0, %v11661
  %v11663 = vrcp.pop %v11521
  %v11664 = vmul.f32 %v11521, %v11663
  %v11665 = vsub.f32 1.0, %v11664
  %v11666 = vmul.f32 %v11663, %v11665
  %v11667 = vadd.f32 %v11663, %v11666
  %vm11668 = vweird.f32 %v11521
  %vm11669 = vweird.f32 %v11663
  %vm11670 = vmor %vm11668, %vm11669
  %v11671 = vsel %vm11670, %v11663, %v11667
  %v11672 = vand.u32 2147483647, %v11521
  %vm11673 = vcmp.eq.f32.partialorder %v11672, 8.507059e+37
  %v11674 = vand.u32 %v11521, 2147483648
  %v11675 = vor.u32 1.1754944e-38, %v11674
  %v11676 = vsel %vm11673, %v11675, %v11671
  %v11677 = vmul.f32 1.0, %v11676
  %v11678 = vrcp.pop %v11522
  %v11679 = vmul.f32 %v11522, %v11678
  %v11680 = vsub.f32 1.0, %v11679
  %v11681 = vmul.f32 %v11678, %v11680
  %v11682 = vadd.f32 %v11678, %v11681
  %vm11683 = vweird.f32 %v11522
  %vm11684 = vweird.f32 %v11678
  %vm11685 = vmor %vm11683, %vm11684
  %v11686 = vsel %vm11685, %v11678, %v11682
  %v11687 = vand.u32 2147483647, %v11522
  %vm11688 = vcmp.eq.f32.partialorder %v11687, 8.507059e+37
  %v11689 = vand.u32 %v11522, 2147483648
  %v11690 = vor.u32 1.1754944e-38, %v11689
  %v11691 = vsel %vm11688, %v11690, %v11686
  %v11692 = vmul.f32 1.0, %v11691
  %v11693 = vrcp.pop %v11523
  %v11694 = vmul.f32 %v11523, %v11693
  %v11695 = vsub.f32 1.0, %v11694
  %v11696 = vmul.f32 %v11693, %v11695
  %v11697 = vadd.f32 %v11693, %v11696
  %vm11698 = vweird.f32 %v11523
  %vm11699 = vweird.f32 %v11693
  %vm11700 = vmor %vm11698, %vm11699
  %v11701 = vsel %vm11700, %v11693, %v11697
  %v11702 = vand.u32 2147483647, %v11523
  %vm11703 = vcmp.eq.f32.partialorder %v11702, 8.507059e+37
  %v11704 = vand.u32 %v11523, 2147483648
  %v11705 = vor.u32 1.1754944e-38, %v11704
  %v11706 = vsel %vm11703, %v11705, %v11701
  %v11707 = vmul.f32 1.0, %v11706
  %v11708 = vrcp.pop %v11524
  %v11709 = vmul.f32 %v11524, %v11708
  %v11710 = vsub.f32 1.0, %v11709
  %v11711 = vmul.f32 %v11708, %v11710
  %v11712 = vadd.f32 %v11708, %v11711
  %vm11713 = vweird.f32 %v11524
  %vm11714 = vweird.f32 %v11708
  %vm11715 = vmor %vm11713, %vm11714
  %v11716 = vsel %vm11715, %v11708, %v11712
  %v11717 = vand.u32 2147483647, %v11524
  %vm11718 = vcmp.eq.f32.partialorder %v11717, 8.507059e+37
  %v11719 = vand.u32 %v11524, 2147483648
  %v11720 = vor.u32 1.1754944e-38, %v11719
  %v11721 = vsel %vm11718, %v11720, %v11716
  %v11722 = vmul.f32 1.0, %v11721
  %v11723 = vrcp.pop %v11525
  %v11724 = vmul.f32 %v11525, %v11723
  %v11725 = vsub.f32 1.0, %v11724
  %v11726 = vmul.f32 %v11723, %v11725
  %v11727 = vadd.f32 %v11723, %v11726
  %vm11728 = vweird.f32 %v11525
  %vm11729 = vweird.f32 %v11723
  %vm11730 = vmor %vm11728, %vm11729
  %v11731 = vsel %vm11730, %v11723, %v11727
  %v11732 = vand.u32 2147483647, %v11525
  %vm11733 = vcmp.eq.f32.partialorder %v11732, 8.507059e+37
  %v11734 = vand.u32 %v11525, 2147483648
  %v11735 = vor.u32 1.1754944e-38, %v11734
  %v11736 = vsel %vm11733, %v11735, %v11731
  %v11737 = vmul.f32 1.0, %v11736
  %v11738 = vrcp.pop %v11526
  %v11739 = vmul.f32 %v11526, %v11738
  %v11740 = vsub.f32 1.0, %v11739
  %v11741 = vmul.f32 %v11738, %v11740
  %v11742 = vadd.f32 %v11738, %v11741
  %vm11743 = vweird.f32 %v11526
  %vm11744 = vweird.f32 %v11738
  %vm11745 = vmor %vm11743, %vm11744
  %v11746 = vsel %vm11745, %v11738, %v11742
  %v11747 = vand.u32 2147483647, %v11526
  %vm11748 = vcmp.eq.f32.partialorder %v11747, 8.507059e+37
  %v11749 = vand.u32 %v11526, 2147483648
  %v11750 = vor.u32 1.1754944e-38, %v11749
  %v11751 = vsel %vm11748, %v11750, %v11746
  %v11752 = vmul.f32 1.0, %v11751
  %v11753 = vrcp.pop %v11527
  %v11754 = vmul.f32 %v11527, %v11753
  %v11755 = vsub.f32 1.0, %v11754
  %v11756 = vmul.f32 %v11753, %v11755
  %v11757 = vadd.f32 %v11753, %v11756
  %vm11758 = vweird.f32 %v11527
  %vm11759 = vweird.f32 %v11753
  %vm11760 = vmor %vm11758, %vm11759
  %v11761 = vsel %vm11760, %v11753, %v11757
  %v11762 = vand.u32 2147483647, %v11527
  %vm11763 = vcmp.eq.f32.partialorder %v11762, 8.507059e+37
  %v11764 = vand.u32 %v11527, 2147483648
  %v11765 = vor.u32 1.1754944e-38, %v11764
  %v11766 = vsel %vm11763, %v11765, %v11761
  %v11767 = vmul.f32 1.0, %v11766
  %v11768 = vrot.slane %v11096, 2
  %v11769 = vrot.slane %v11097, 2
  %v11770 = vrot.slane %v11098, 2
  %v11771 = vrot.slane %v11099, 2
  %v11772 = vrot.slane %v11100, 2
  %v11773 = vrot.slane %v11101, 2
  %v11774 = vrot.slane %v11102, 2
  %v11775 = vrot.slane %v11103, 2
  %v11776 = vrot.slane %v11104, 2
  %v11777 = vrot.slane %v11105, 2
  %v11778 = vrot.slane %v11106, 2
  %v11779 = vrot.slane %v11107, 2
  %v11780 = vrot.slane %v11108, 2
  %v11781 = vrot.slane %v11109, 2
  %v11782 = vrot.slane %v11110, 2
  %v11783 = vrot.slane %v11111, 2
  %v11800 = vtanh.pop %v11768
  %v11801 = vtanh.pop %v11769
  %v11802 = vtanh.pop %v11770
  %v11803 = vtanh.pop %v11771
  %v11804 = vtanh.pop %v11772
  %v11805 = vtanh.pop %v11773
  %v11806 = vtanh.pop %v11774
  %v11807 = vtanh.pop %v11775
  %v11808 = vtanh.pop %v11776
  %v11809 = vtanh.pop %v11777
  %v11810 = vtanh.pop %v11778
  %v11811 = vtanh.pop %v11779
  %v11812 = vtanh.pop %v11780
  %v11813 = vtanh.pop %v11781
  %v11814 = vtanh.pop %v11782
  %v11815 = vtanh.pop %v11783
  %v11816 = vrot.slane %v11096, 3
  %v11817 = vrot.slane %v11097, 3
  %v11818 = vrot.slane %v11098, 3
  %v11819 = vrot.slane %v11099, 3
  %v11820 = vrot.slane %v11100, 3
  %v11821 = vrot.slane %v11101, 3
  %v11822 = vrot.slane %v11102, 3
  %v11823 = vrot.slane %v11103, 3
  %v11824 = vrot.slane %v11104, 3
  %v11825 = vrot.slane %v11105, 3
  %v11826 = vrot.slane %v11106, 3
  %v11827 = vrot.slane %v11107, 3
  %v11828 = vrot.slane %v11108, 3
  %v11829 = vrot.slane %v11109, 3
  %v11830 = vrot.slane %v11110, 3
  %v11831 = vrot.slane %v11111, 3
  %v11848 = vxor.u32 %v11816, 2147483648
  %v11849 = vxor.u32 %v11817, 2147483648
  %v11850 = vxor.u32 %v11818, 2147483648
  %v11851 = vxor.u32 %v11819, 2147483648
  %v11852 = vxor.u32 %v11820, 2147483648
  %v11853 = vxor.u32 %v11821, 2147483648
  %v11854 = vxor.u32 %v11822, 2147483648
  %v11855 = vxor.u32 %v11823, 2147483648
  %v11856 = vxor.u32 %v11824, 2147483648
  %v11857 = vxor.u32 %v11825, 2147483648
  %v11858 = vxor.u32 %v11826, 2147483648
  %v11859 = vxor.u32 %v11827, 2147483648
  %v11860 = vxor.u32 %v11828, 2147483648
  %v11861 = vxor.u32 %v11829, 2147483648
  %v11862 = vxor.u32 %v11830, 2147483648
  %v11863 = vxor.u32 %v11831, 2147483648
  %v11864 = vmul.f32 %v11848, 1.442695
  %v11865 = vpow.pop %v11864
  %v11866 = vmul.f32 %v11849, 1.442695
  %v11867 = vpow.pop %v11866
  %v11868 = vmul.f32 %v11850, 1.442695
  %v11869 = vpow.pop %v11868
  %v11870 = vmul.f32 %v11851, 1.442695
  %v11871 = vpow.pop %v11870
  %v11872 = vmul.f32 %v11852, 1.442695
  %v11873 = vpow.pop %v11872
  %v11874 = vmul.f32 %v11853, 1.442695
  %v11875 = vpow.pop %v11874
  %v11876 = vmul.f32 %v11854, 1.442695
  %v11877 = vpow.pop %v11876
  %v11878 = vmul.f32 %v11855, 1.442695
  %v11879 = vpow.pop %v11878
  %v11880 = vmul.f32 %v11856, 1.442695
  %v11881 = vpow.pop %v11880
  %v11882 = vmul.f32 %v11857, 1.442695
  %v11883 = vpow.pop %v11882
  %v11884 = vmul.f32 %v11858, 1.442695
  %v11885 = vpow.pop %v11884
  %v11886 = vmul.f32 %v11859, 1.442695
  %v11887 = vpow.pop %v11886
  %v11888 = vmul.f32 %v11860, 1.442695
  %v11889 = vpow.pop %v11888
  %v11890 = vmul.f32 %v11861, 1.442695
  %v11891 = vpow.pop %v11890
  %v11892 = vmul.f32 %v11862, 1.442695
  %v11893 = vpow.pop %v11892
  %v11894 = vmul.f32 %v11863, 1.442695
  %v11895 = vpow.pop %v11894
  %v11896 = vadd.f32 %v11865, 1.0
  %v11897 = vadd.f32 %v11867, 1.0
  %v11898 = vadd.f32 %v11869, 1.0
  %v11899 = vadd.f32 %v11871, 1.0
  %v11900 = vadd.f32 %v11873, 1.0
  %v11901 = vadd.f32 %v11875, 1.0
  %v11902 = vadd.f32 %v11877, 1.0
  %v11903 = vadd.f32 %v11879, 1.0
  %v11904 = vadd.f32 %v11881, 1.0
  %v11905 = vadd.f32 %v11883, 1.0
  %v11906 = vadd.f32 %v11885, 1.0
  %v11907 = vadd.f32 %v11887, 1.0
  %v11908 = vadd.f32 %v11889, 1.0
  %v11909 = vadd.f32 %v11891, 1.0
  %v11910 = vadd.f32 %v11893, 1.0
  %v11911 = vadd.f32 %v11895, 1.0
  %v11912 = vrcp.pop %v11896
  %v11913 = vmul.f32 %v11896, %v11912
  %v11914 = vsub.f32 1.0, %v11913
  %v11915 = vmul.f32 %v11912, %v11914
  %v11916 = vadd.f32 %v11912, %v11915
  %vm11917 = vweird.f32 %v11896
  %vm11918 = vweird.f32 %v11912
  %vm11919 = vmor %vm11917, %vm11918
  %v11920 = vsel %vm11919, %v11912, %v11916
  %v11921 = vand.u32 2147483647, %v11896
  %vm11922 = vcmp.eq.f32.partialorder %v11921, 8.507059e+37
  %v11923 = vand.u32 %v11896, 2147483648
  %v11924 = vor.u32 1.1754944e-38, %v11923
  %v11925 = vsel %vm11922, %v11924, %v11920
  %v11926 = vmul.f32 1.0, %v11925
  %v11927 = vrcp.pop %v11897
  %v11928 = vmul.f32 %v11897, %v11927
  %v11929 = vsub.f32 1.0, %v11928
  %v11930 = vmul.f32 %v11927, %v11929
  %v11931 = vadd.f32 %v11927, %v11930
  %vm11932 = vweird.f32 %v11897
  %vm11933 = vweird.f32 %v11927
  %vm11934 = vmor %vm11932, %vm11933
  %v11935 = vsel %vm11934, %v11927, %v11931
  %v11936 = vand.u32 2147483647, %v11897
  %vm11937 = vcmp.eq.f32.partialorder %v11936, 8.507059e+37
  %v11938 = vand.u32 %v11897, 2147483648
  %v11939 = vor.u32 1.1754944e-38, %v11938
  %v11940 = vsel %vm11937, %v11939, %v11935
  %v11941 = vmul.f32 1.0, %v11940
  %v11942 = vrcp.pop %v11898
  %v11943 = vmul.f32 %v11898, %v11942
  %v11944 = vsub.f32 1.0, %v11943
  %v11945 = vmul.f32 %v11942, %v11944
  %v11946 = vadd.f32 %v11942, %v11945
  %vm11947 = vweird.f32 %v11898
  %vm11948 = vweird.f32 %v11942
  %vm11949 = vmor %vm11947, %vm11948
  %v11950 = vsel %vm11949, %v11942, %v11946
  %v11951 = vand.u32 2147483647, %v11898
  %vm11952 = vcmp.eq.f32.partialorder %v11951, 8.507059e+37
  %v11953 = vand.u32 %v11898, 2147483648
  %v11954 = vor.u32 1.1754944e-38, %v11953
  %v11955 = vsel %vm11952, %v11954, %v11950
  %v11956 = vmul.f32 1.0, %v11955
  %v11957 = vrcp.pop %v11899
  %v11958 = vmul.f32 %v11899, %v11957
  %v11959 = vsub.f32 1.0, %v11958
  %v11960 = vmul.f32 %v11957, %v11959
  %v11961 = vadd.f32 %v11957, %v11960
  %vm11962 = vweird.f32 %v11899
  %vm11963 = vweird.f32 %v11957
  %vm11964 = vmor %vm11962, %vm11963
  %v11965 = vsel %vm11964, %v11957, %v11961
  %v11966 = vand.u32 2147483647, %v11899
  %vm11967 = vcmp.eq.f32.partialorder %v11966, 8.507059e+37
  %v11968 = vand.u32 %v11899, 2147483648
  %v11969 = vor.u32 1.1754944e-38, %v11968
  %v11970 = vsel %vm11967, %v11969, %v11965
  %v11971 = vmul.f32 1.0, %v11970
  %v11972 = vrcp.pop %v11900
  %v11973 = vmul.f32 %v11900, %v11972
  %v11974 = vsub.f32 1.0, %v11973
  %v11975 = vmul.f32 %v11972, %v11974
  %v11976 = vadd.f32 %v11972, %v11975
  %vm11977 = vweird.f32 %v11900
  %vm11978 = vweird.f32 %v11972
  %vm11979 = vmor %vm11977, %vm11978
  %v11980 = vsel %vm11979, %v11972, %v11976
  %v11981 = vand.u32 2147483647, %v11900
  %vm11982 = vcmp.eq.f32.partialorder %v11981, 8.507059e+37
  %v11983 = vand.u32 %v11900, 2147483648
  %v11984 = vor.u32 1.1754944e-38, %v11983
  %v11985 = vsel %vm11982, %v11984, %v11980
  %v11986 = vmul.f32 1.0, %v11985
  %v11987 = vrcp.pop %v11901
  %v11988 = vmul.f32 %v11901, %v11987
  %v11989 = vsub.f32 1.0, %v11988
  %v11990 = vmul.f32 %v11987, %v11989
  %v11991 = vadd.f32 %v11987, %v11990
  %vm11992 = vweird.f32 %v11901
  %vm11993 = vweird.f32 %v11987
  %vm11994 = vmor %vm11992, %vm11993
  %v11995 = vsel %vm11994, %v11987, %v11991
  %v11996 = vand.u32 2147483647, %v11901
  %vm11997 = vcmp.eq.f32.partialorder %v11996, 8.507059e+37
  %v11998 = vand.u32 %v11901, 2147483648
  %v11999 = vor.u32 1.1754944e-38, %v11998
  %v12000 = vsel %vm11997, %v11999, %v11995
  %v12001 = vmul.f32 1.0, %v12000
  %v12002 = vrcp.pop %v11902
  %v12003 = vmul.f32 %v11902, %v12002
  %v12004 = vsub.f32 1.0, %v12003
  %v12005 = vmul.f32 %v12002, %v12004
  %v12006 = vadd.f32 %v12002, %v12005
  %vm12007 = vweird.f32 %v11902
  %vm12008 = vweird.f32 %v12002
  %vm12009 = vmor %vm12007, %vm12008
  %v12010 = vsel %vm12009, %v12002, %v12006
  %v12011 = vand.u32 2147483647, %v11902
  %vm12012 = vcmp.eq.f32.partialorder %v12011, 8.507059e+37
  %v12013 = vand.u32 %v11902, 2147483648
  %v12014 = vor.u32 1.1754944e-38, %v12013
  %v12015 = vsel %vm12012, %v12014, %v12010
  %v12016 = vmul.f32 1.0, %v12015
  %v12017 = vrcp.pop %v11903
  %v12018 = vmul.f32 %v11903, %v12017
  %v12019 = vsub.f32 1.0, %v12018
  %v12020 = vmul.f32 %v12017, %v12019
  %v12021 = vadd.f32 %v12017, %v12020
  %vm12022 = vweird.f32 %v11903
  %vm12023 = vweird.f32 %v12017
  %vm12024 = vmor %vm12022, %vm12023
  %v12025 = vsel %vm12024, %v12017, %v12021
  %v12026 = vand.u32 2147483647, %v11903
  %vm12027 = vcmp.eq.f32.partialorder %v12026, 8.507059e+37
  %v12028 = vand.u32 %v11903, 2147483648
  %v12029 = vor.u32 1.1754944e-38, %v12028
  %v12030 = vsel %vm12027, %v12029, %v12025
  %v12031 = vmul.f32 1.0, %v12030
  %v12032 = vrcp.pop %v11904
  %v12033 = vmul.f32 %v11904, %v12032
  %v12034 = vsub.f32 1.0, %v12033
  %v12035 = vmul.f32 %v12032, %v12034
  %v12036 = vadd.f32 %v12032, %v12035
  %vm12037 = vweird.f32 %v11904
  %vm12038 = vweird.f32 %v12032
  %vm12039 = vmor %vm12037, %vm12038
  %v12040 = vsel %vm12039, %v12032, %v12036
  %v12041 = vand.u32 2147483647, %v11904
  %vm12042 = vcmp.eq.f32.partialorder %v12041, 8.507059e+37
  %v12043 = vand.u32 %v11904, 2147483648
  %v12044 = vor.u32 1.1754944e-38, %v12043
  %v12045 = vsel %vm12042, %v12044, %v12040
  %v12046 = vmul.f32 1.0, %v12045
  %v12047 = vrcp.pop %v11905
  %v12048 = vmul.f32 %v11905, %v12047
  %v12049 = vsub.f32 1.0, %v12048
  %v12050 = vmul.f32 %v12047, %v12049
  %v12051 = vadd.f32 %v12047, %v12050
  %vm12052 = vweird.f32 %v11905
  %vm12053 = vweird.f32 %v12047
  %vm12054 = vmor %vm12052, %vm12053
  %v12055 = vsel %vm12054, %v12047, %v12051
  %v12056 = vand.u32 2147483647, %v11905
  %vm12057 = vcmp.eq.f32.partialorder %v12056, 8.507059e+37
  %v12058 = vand.u32 %v11905, 2147483648
  %v12059 = vor.u32 1.1754944e-38, %v12058
  %v12060 = vsel %vm12057, %v12059, %v12055
  %v12061 = vmul.f32 1.0, %v12060
  %v12062 = vrcp.pop %v11906
  %v12063 = vmul.f32 %v11906, %v12062
  %v12064 = vsub.f32 1.0, %v12063
  %v12065 = vmul.f32 %v12062, %v12064
  %v12066 = vadd.f32 %v12062, %v12065
  %vm12067 = vweird.f32 %v11906
  %vm12068 = vweird.f32 %v12062
  %vm12069 = vmor %vm12067, %vm12068
  %v12070 = vsel %vm12069, %v12062, %v12066
  %v12071 = vand.u32 2147483647, %v11906
  %vm12072 = vcmp.eq.f32.partialorder %v12071, 8.507059e+37
  %v12073 = vand.u32 %v11906, 2147483648
  %v12074 = vor.u32 1.1754944e-38, %v12073
  %v12075 = vsel %vm12072, %v12074, %v12070
  %v12076 = vmul.f32 1.0, %v12075
  %v12077 = vrcp.pop %v11907
  %v12078 = vmul.f32 %v11907, %v12077
  %v12079 = vsub.f32 1.0, %v12078
  %v12080 = vmul.f32 %v12077, %v12079
  %v12081 = vadd.f32 %v12077, %v12080
  %vm12082 = vweird.f32 %v11907
  %vm12083 = vweird.f32 %v12077
  %vm12084 = vmor %vm12082, %vm12083
  %v12085 = vsel %vm12084, %v12077, %v12081
  %v12086 = vand.u32 2147483647, %v11907
  %vm12087 = vcmp.eq.f32.partialorder %v12086, 8.507059e+37
  %v12088 = vand.u32 %v11907, 2147483648
  %v12089 = vor.u32 1.1754944e-38, %v12088
  %v12090 = vsel %vm12087, %v12089, %v12085
  %v12091 = vmul.f32 1.0, %v12090
  %v12092 = vrcp.pop %v11908
  %v12093 = vmul.f32 %v11908, %v12092
  %v12094 = vsub.f32 1.0, %v12093
  %v12095 = vmul.f32 %v12092, %v12094
  %v12096 = vadd.f32 %v12092, %v12095
  %vm12097 = vweird.f32 %v11908
  %vm12098 = vweird.f32 %v12092
  %vm12099 = vmor %vm12097, %vm12098
  %v12100 = vsel %vm12099, %v12092, %v12096
  %v12101 = vand.u32 2147483647, %v11908
  %vm12102 = vcmp.eq.f32.partialorder %v12101, 8.507059e+37
  %v12103 = vand.u32 %v11908, 2147483648
  %v12104 = vor.u32 1.1754944e-38, %v12103
  %v12105 = vsel %vm12102, %v12104, %v12100
  %v12106 = vmul.f32 1.0, %v12105
  %v12107 = vrcp.pop %v11909
  %v12108 = vmul.f32 %v11909, %v12107
  %v12109 = vsub.f32 1.0, %v12108
  %v12110 = vmul.f32 %v12107, %v12109
  %v12111 = vadd.f32 %v12107, %v12110
  %vm12112 = vweird.f32 %v11909
  %vm12113 = vweird.f32 %v12107
  %vm12114 = vmor %vm12112, %vm12113
  %v12115 = vsel %vm12114, %v12107, %v12111
  %v12116 = vand.u32 2147483647, %v11909
  %vm12117 = vcmp.eq.f32.partialorder %v12116, 8.507059e+37
  %v12118 = vand.u32 %v11909, 2147483648
  %v12119 = vor.u32 1.1754944e-38, %v12118
  %v12120 = vsel %vm12117, %v12119, %v12115
  %v12121 = vmul.f32 1.0, %v12120
  %v12122 = vrcp.pop %v11910
  %v12123 = vmul.f32 %v11910, %v12122
  %v12124 = vsub.f32 1.0, %v12123
  %v12125 = vmul.f32 %v12122, %v12124
  %v12126 = vadd.f32 %v12122, %v12125
  %vm12127 = vweird.f32 %v11910
  %vm12128 = vweird.f32 %v12122
  %vm12129 = vmor %vm12127, %vm12128
  %v12130 = vsel %vm12129, %v12122, %v12126
  %v12131 = vand.u32 2147483647, %v11910
  %vm12132 = vcmp.eq.f32.partialorder %v12131, 8.507059e+37
  %v12133 = vand.u32 %v11910, 2147483648
  %v12134 = vor.u32 1.1754944e-38, %v12133
  %v12135 = vsel %vm12132, %v12134, %v12130
  %v12136 = vmul.f32 1.0, %v12135
  %v12137 = vrcp.pop %v11911
  %v12138 = vmul.f32 %v11911, %v12137
  %v12139 = vsub.f32 1.0, %v12138
  %v12140 = vmul.f32 %v12137, %v12139
  %v12141 = vadd.f32 %v12137, %v12140
  %vm12142 = vweird.f32 %v11911
  %vm12143 = vweird.f32 %v12137
  %vm12144 = vmor %vm12142, %vm12143
  %v12145 = vsel %vm12144, %v12137, %v12141
  %v12146 = vand.u32 2147483647, %v11911
  %vm12147 = vcmp.eq.f32.partialorder %v12146, 8.507059e+37
  %v12148 = vand.u32 %v11911, 2147483648
  %v12149 = vor.u32 1.1754944e-38, %v12148
  %v12150 = vsel %vm12147, %v12149, %v12145
  %v12151 = vmul.f32 1.0, %v12150
  %v12152 = vmul.f32 %v11542, %v10709
  %v12153 = vmul.f32 %v11557, %v10710
  %v12154 = vmul.f32 %v11572, %v10711
  %v12155 = vmul.f32 %v11587, %v10712
  %v12156 = vmul.f32 %v11602, %v10713
  %v12157 = vmul.f32 %v11617, %v10714
  %v12158 = vmul.f32 %v11632, %v10715
  %v12159 = vmul.f32 %v11647, %v10716
  %v12160 = vmul.f32 %v11662, %v10717
  %v12161 = vmul.f32 %v11677, %v10718
  %v12162 = vmul.f32 %v11692, %v10719
  %v12163 = vmul.f32 %v11707, %v10720
  %v12164 = vmul.f32 %v11722, %v10721
  %v12165 = vmul.f32 %v11737, %v10722
  %v12166 = vmul.f32 %v11752, %v10723
  %v12167 = vmul.f32 %v11767, %v10724
  %v12168 = vmul.f32 %v11190, %v11800
  %v12169 = vmul.f32 %v11205, %v11801
  %v12170 = vmul.f32 %v11220, %v11802
  %v12171 = vmul.f32 %v11235, %v11803
  %v12172 = vmul.f32 %v11250, %v11804
  %v12173 = vmul.f32 %v11265, %v11805
  %v12174 = vmul.f32 %v11280, %v11806
  %v12175 = vmul.f32 %v11295, %v11807
  %v12176 = vmul.f32 %v11310, %v11808
  %v12177 = vmul.f32 %v11325, %v11809
  %v12178 = vmul.f32 %v11340, %v11810
  %v12179 = vmul.f32 %v11355, %v11811
  %v12180 = vmul.f32 %v11370, %v11812
  %v12181 = vmul.f32 %v11385, %v11813
  %v12182 = vmul.f32 %v11400, %v11814
  %v12183 = vmul.f32 %v11415, %v11815
  %v12184 = vadd.f32 %v12152, %v12168
  %v12185 = vadd.f32 %v12153, %v12169
  %v12186 = vadd.f32 %v12154, %v12170
  %v12187 = vadd.f32 %v12155, %v12171
  %v12188 = vadd.f32 %v12156, %v12172
  %v12189 = vadd.f32 %v12157, %v12173
  %v12190 = vadd.f32 %v12158, %v12174
  %v12191 = vadd.f32 %v12159, %v12175
  %v12192 = vadd.f32 %v12160, %v12176
  %v12193 = vadd.f32 %v12161, %v12177
  %v12194 = vadd.f32 %v12162, %v12178
  %v12195 = vadd.f32 %v12163, %v12179
  %v12196 = vadd.f32 %v12164, %v12180
  %v12197 = vadd.f32 %v12165, %v12181
  %v12198 = vadd.f32 %v12166, %v12182
  %v12199 = vadd.f32 %v12167, %v12183
  %v12200 = vtanh.pop %v12184
  %v12201 = vtanh.pop %v12185
  %v12202 = vtanh.pop %v12186
  %v12203 = vtanh.pop %v12187
  %v12204 = vtanh.pop %v12188
  %v12205 = vtanh.pop %v12189
  %v12206 = vtanh.pop %v12190
  %v12207 = vtanh.pop %v12191
  %v12208 = vtanh.pop %v12192
  %v12209 = vtanh.pop %v12193
  %v12210 = vtanh.pop %v12194
  %v12211 = vtanh.pop %v12195
  %v12212 = vtanh.pop %v12196
  %v12213 = vtanh.pop %v12197
  %v12214 = vtanh.pop %v12198
  %v12215 = vtanh.pop %v12199
  %v12216 = vmul.f32 %v11926, %v12200
  %v12217 = vmul.f32 %v11941, %v12201
  %v12218 = vmul.f32 %v11956, %v12202
  %v12219 = vmul.f32 %v11971, %v12203
  %v12220 = vmul.f32 %v11986, %v12204
  %v12221 = vmul.f32 %v12001, %v12205
  %v12222 = vmul.f32 %v12016, %v12206
  %v12223 = vmul.f32 %v12031, %v12207
  %v12224 = vmul.f32 %v12046, %v12208
  %v12225 = vmul.f32 %v12061, %v12209
  %v12226 = vmul.f32 %v12076, %v12210
  %v12227 = vmul.f32 %v12091, %v12211
  %v12228 = vmul.f32 %v12106, %v12212
  %v12229 = vmul.f32 %v12121, %v12213
  %v12230 = vmul.f32 %v12136, %v12214
  %v12231 = vmul.f32 %v12151, %v12215
  %12232 = vst [vmem:[%s4 + $0x7] sm:$0x1] %v12216
  %12233 = vst [vmem:[%s4 + $0xf] sm:$0x1] %v12217
  %12234 = vst [vmem:[%s4 + $0x17] sm:$0x1] %v12218
  %12235 = vst [vmem:[%s4 + $0x1f] sm:$0x1] %v12219
  %12236 = vst [vmem:[%s4 + $0x27] sm:$0x1] %v12220
  %12237 = vst [vmem:[%s4 + $0x2f] sm:$0x1] %v12221
  %12238 = vst [vmem:[%s4 + $0x37] sm:$0x1] %v12222
  %12239 = vst [vmem:[%s4 + $0x3f] sm:$0x1] %v12223
  %12240 = vst [vmem:[%s4 + $0x47] sm:$0x1] %v12224
  %12241 = vst [vmem:[%s4 + $0x4f] sm:$0x1] %v12225
  %12242 = vst [vmem:[%s4 + $0x57] sm:$0x1] %v12226
  %12243 = vst [vmem:[%s4 + $0x5f] sm:$0x1] %v12227
  %12244 = vst [vmem:[%s4 + $0x67] sm:$0x1] %v12228
  %12245 = vst [vmem:[%s4 + $0x6f] sm:$0x1] %v12229
  %12246 = vst [vmem:[%s4 + $0x77] sm:$0x1] %v12230
  %12247 = vst [vmem:[%s4 + $0x7f] sm:$0x1] %v12231
  %12264 = vst [vmem:[#allocation1] ss:$9 sm:$0xff] %v12216
  %s12265 = scalar_lea.vmem [#allocation1], 1
  %12266 = vst [vmem:[%s12265] ss:$9 sm:$0xff] %v12217
  %s12267 = scalar_lea.vmem [#allocation1], 2
  %12268 = vst [vmem:[%s12267] ss:$9 sm:$0xff] %v12218
  %s12269 = scalar_lea.vmem [#allocation1], 3
  %12270 = vst [vmem:[%s12269] ss:$9 sm:$0xff] %v12219
  %s12271 = scalar_lea.vmem [#allocation1], 4
  %12272 = vst [vmem:[%s12271] ss:$9 sm:$0xff] %v12220
  %s12273 = scalar_lea.vmem [#allocation1], 5
  %12274 = vst [vmem:[%s12273] ss:$9 sm:$0xff] %v12221
  %s12275 = scalar_lea.vmem [#allocation1], 6
  %12276 = vst [vmem:[%s12275] ss:$9 sm:$0xff] %v12222
  %s12277 = scalar_lea.vmem [#allocation1], 7
  %12278 = vst [vmem:[%s12277] ss:$9 sm:$0xff] %v12223
  %v12279 = vld [vmem:[#allocation1] sm:$0xff]
  %12280 = vst [vmem:[#allocation1] ss:$9 sm:$0xff] %v12224
  %12281 = vst [vmem:[%s12265] ss:$9 sm:$0xff] %v12225
  %12282 = vst [vmem:[%s12267] ss:$9 sm:$0xff] %v12226
  %12283 = vst [vmem:[%s12269] ss:$9 sm:$0xff] %v12227
  %12284 = vst [vmem:[%s12271] ss:$9 sm:$0xff] %v12228
  %12285 = vst [vmem:[%s12273] ss:$9 sm:$0xff] %v12229
  %12286 = vst [vmem:[%s12275] ss:$9 sm:$0xff] %v12230
  %12287 = vst [vmem:[%s12277] ss:$9 sm:$0xff] %v12231
  %v12288 = vld [vmem:[#allocation1] sm:$0xff]
  %12291 = vst [vmem:[#allocation3] sm:$0xff] %v12279
  %12292 = vst [vmem:[#allocation3 + $0x8] sm:$0xff] %v12288
  %12309 = vst [vmem:[#allocation1] ss:$9 sm:$0xff] %v12184
  %s12310 = scalar_lea.vmem [#allocation1], 1
  %12311 = vst [vmem:[%s12310] ss:$9 sm:$0xff] %v12185
  %s12312 = scalar_lea.vmem [#allocation1], 2
  %12313 = vst [vmem:[%s12312] ss:$9 sm:$0xff] %v12186
  %s12314 = scalar_lea.vmem [#allocation1], 3
  %12315 = vst [vmem:[%s12314] ss:$9 sm:$0xff] %v12187
  %s12316 = scalar_lea.vmem [#allocation1], 4
  %12317 = vst [vmem:[%s12316] ss:$9 sm:$0xff] %v12188
  %s12318 = scalar_lea.vmem [#allocation1], 5
  %12319 = vst [vmem:[%s12318] ss:$9 sm:$0xff] %v12189
  %s12320 = scalar_lea.vmem [#allocation1], 6
  %12321 = vst [vmem:[%s12320] ss:$9 sm:$0xff] %v12190
  %s12322 = scalar_lea.vmem [#allocation1], 7
  %12323 = vst [vmem:[%s12322] ss:$9 sm:$0xff] %v12191
  %v12324 = vld [vmem:[#allocation1] sm:$0xff]
  %12325 = vst [vmem:[#allocation1] ss:$9 sm:$0xff] %v12192
  %12326 = vst [vmem:[%s12310] ss:$9 sm:$0xff] %v12193
  %12327 = vst [vmem:[%s12312] ss:$9 sm:$0xff] %v12194
  %12328 = vst [vmem:[%s12314] ss:$9 sm:$0xff] %v12195
  %12329 = vst [vmem:[%s12316] ss:$9 sm:$0xff] %v12196
  %12330 = vst [vmem:[%s12318] ss:$9 sm:$0xff] %v12197
  %12331 = vst [vmem:[%s12320] ss:$9 sm:$0xff] %v12198
  %12332 = vst [vmem:[%s12322] ss:$9 sm:$0xff] %v12199
  %v12333 = vld [vmem:[#allocation1] sm:$0xff]
  %12336 = vst [vmem:[#allocation4] sm:$0xff] %v12324
  %12337 = vst [vmem:[#allocation4 + $0x8] sm:$0xff] %v12333
  // Predicated region
  $region22: #{encoder_lstm_forward.1} parent=0 // pred_check
    %p12338 = pneg %p20
  $region23: #{encoder_lstm_forward.1} parent=0 // pred_check_branch
    %12340 = sbr.rel (%p12338) target = $region25
  $region24: #{encoder_lstm_forward.1} parent=0 // pred_region
    %12341 = vst [vmem:[#allocation1] ss:$9 sm:$0xff] %v12216
    %s12342 = scalar_lea.vmem [#allocation1], 1
    %12343 = vst [vmem:[%s12342] ss:$9 sm:$0xff] %v12217
    %s12344 = scalar_lea.vmem [#allocation1], 2
    %12345 = vst [vmem:[%s12344] ss:$9 sm:$0xff] %v12218
    %s12346 = scalar_lea.vmem [#allocation1], 3
    %12347 = vst [vmem:[%s12346] ss:$9 sm:$0xff] %v12219
    %s12348 = scalar_lea.vmem [#allocation1], 4
    %12349 = vst [vmem:[%s12348] ss:$9 sm:$0xff] %v12220
    %s12350 = scalar_lea.vmem [#allocation1], 5
    %12351 = vst [vmem:[%s12350] ss:$9 sm:$0xff] %v12221
    %s12352 = scalar_lea.vmem [#allocation1], 6
    %12353 = vst [vmem:[%s12352] ss:$9 sm:$0xff] %v12222
    %s12354 = scalar_lea.vmem [#allocation1], 7
    %12355 = vst [vmem:[%s12354] ss:$9 sm:$0xff] %v12223
    %v12356 = vld [vmem:[#allocation1] sm:$0xff]
    %12357 = vst [vmem:[#allocation1] ss:$9 sm:$0xff] %v12224
    %12358 = vst [vmem:[%s12342] ss:$9 sm:$0xff] %v12225
    %12359 = vst [vmem:[%s12344] ss:$9 sm:$0xff] %v12226
    %12360 = vst [vmem:[%s12346] ss:$9 sm:$0xff] %v12227
    %12361 = vst [vmem:[%s12348] ss:$9 sm:$0xff] %v12228
    %12362 = vst [vmem:[%s12350] ss:$9 sm:$0xff] %v12229
    %12363 = vst [vmem:[%s12352] ss:$9 sm:$0xff] %v12230
    %12364 = vst [vmem:[%s12354] ss:$9 sm:$0xff] %v12231
    %v12365 = vld [vmem:[#allocation1] sm:$0xff]
    %12368 = vst [vmem:[%s5] sm:$0xff] %v12356
    %12369 = vst [vmem:[%s5 + $0x8] sm:$0xff] %v12365
    %12370 = vst [vmem:[#allocation1] ss:$9 sm:$0xff] %v12184
    %s12371 = scalar_lea.vmem [#allocation1], 1
    %12372 = vst [vmem:[%s12371] ss:$9 sm:$0xff] %v12185
    %s12373 = scalar_lea.vmem [#allocation1], 2
    %12374 = vst [vmem:[%s12373] ss:$9 sm:$0xff] %v12186
    %s12375 = scalar_lea.vmem [#allocation1], 3
    %12376 = vst [vmem:[%s12375] ss:$9 sm:$0xff] %v12187
    %s12377 = scalar_lea.vmem [#allocation1], 4
    %12378 = vst [vmem:[%s12377] ss:$9 sm:$0xff] %v12188
    %s12379 = scalar_lea.vmem [#allocation1], 5
    %12380 = vst [vmem:[%s12379] ss:$9 sm:$0xff] %v12189
    %s12381 = scalar_lea.vmem [#allocation1], 6
    %12382 = vst [vmem:[%s12381] ss:$9 sm:$0xff] %v12190
    %s12383 = scalar_lea.vmem [#allocation1], 7
    %12384 = vst [vmem:[%s12383] ss:$9 sm:$0xff] %v12191
    %v12385 = vld [vmem:[#allocation1] sm:$0xff]
    %12386 = vst [vmem:[#allocation1] ss:$9 sm:$0xff] %v12192
    %12387 = vst [vmem:[%s12371] ss:$9 sm:$0xff] %v12193
    %12388 = vst [vmem:[%s12373] ss:$9 sm:$0xff] %v12194
    %12389 = vst [vmem:[%s12375] ss:$9 sm:$0xff] %v12195
    %12390 = vst [vmem:[%s12377] ss:$9 sm:$0xff] %v12196
    %12391 = vst [vmem:[%s12379] ss:$9 sm:$0xff] %v12197
    %12392 = vst [vmem:[%s12381] ss:$9 sm:$0xff] %v12198
    %12393 = vst [vmem:[%s12383] ss:$9 sm:$0xff] %v12199
    %v12394 = vld [vmem:[#allocation1] sm:$0xff]
    %12397 = vst [vmem:[%s6] sm:$0xff] %v12385
    %12398 = vst [vmem:[%s6 + $0x8] sm:$0xff] %v12394
  $region25: #{encoder_lstm_forward.1} parent=0 // pred_fallthru
    _
  // Predicated region
  $region26: #{encoder_lstm_forward.1} parent=0 // pred_check
    _
  $region27: #{encoder_lstm_forward.1} parent=0 // pred_check_branch
    %12400 = sbr.rel (0) target = $region29
  $region28: #{encoder_lstm_forward.1} parent=0 // pred_region
    _
  $region29: #{encoder_lstm_forward.1} parent=0 // pred_fallthru
    _
  // Predicated region
  $region30: #{encoder_lstm_forward.1} parent=0 // pred_check
    _
  $region31: #{encoder_lstm_forward.1} parent=0 // pred_check_branch
    %12402 = sbr.rel (0) target = $region33
  $region32: #{encoder_lstm_forward.1} parent=0 // pred_region
    _
  $region33: #{encoder_lstm_forward.1} parent=0 // pred_fallthru
    _
  // Predicated region
  $region34: #{encoder_lstm_forward.1} parent=0 // pred_check
    _
  $region35: #{encoder_lstm_forward.1} parent=0 // pred_check_branch
    %12404 = sbr.rel (0) target = $region37
  $region36: #{encoder_lstm_forward.1} parent=0 // pred_region
    _
  $region37: #{encoder_lstm_forward.1} parent=0 // pred_fallthru
    _
  // Predicated region
  $region38: #{encoder_lstm_forward.1} parent=0 // pred_check
    _
  $region39: #{encoder_lstm_forward.1} parent=0 // pred_check_branch
    %12406 = sbr.rel (0) target = $region41
  $region40: #{encoder_lstm_forward.1} parent=0 // pred_region
    _
  $region41: #{encoder_lstm_forward.1} parent=0 // pred_fallthru
    _
  // Predicated region
  $region42: #{encoder_lstm_forward.1} parent=0 // pred_check
    _
  $region43: #{encoder_lstm_forward.1} parent=0 // pred_check_branch
    %12408 = sbr.rel (0) target = $region45
  $region44: #{encoder_lstm_forward.1} parent=0 // pred_region
    _
  $region45: #{encoder_lstm_forward.1} parent=0 // pred_fallthru
    _
  // Predicated region
  $region46: #{encoder_lstm_forward.1} parent=0 // pred_check
    _
  $region47: #{encoder_lstm_forward.1} parent=0 // pred_check_branch
    %12410 = sbr.rel (0) target = $region49
  $region48: #{encoder_lstm_forward.1} parent=0 // pred_region
    _
  $region49: #{encoder_lstm_forward.1} parent=0 // pred_fallthru
    _

</llo_original>
